<compile_context>
chip_gen: v7x
topology: tpu7x:2x2x1
jax: 0.10.0
libtpu: 0.0.40
codegen_flags: <defaults>
</compile_context>

<pallas_src>
import functools

import jax
import jax.numpy as jnp
from jax import lax
from jax.experimental import pallas as pl
from jax.experimental.pallas import tpu as pltpu

BN_EPS = 1e-5
NEG_PAD_BIAS = -1e30  # f32 bias for padded class lanes / padded points


def _pointnet_cls_kernel(x_ref,
                         w1, b1, w2, b2, w3, b3,      # PointNetFeat convs (BN folded)
                         w4, b4, w5, b5, w6, b6,      # classifier fc (BN folded)
                         o_ref, g_ref, *, n_points, mask_points):
    # x_ref block: [Bt, n_chunk, 3] -> Bt point clouds, one point-chunk per grid step.
    Bt, n_chunk, _ = x_ref.shape
    c = pl.program_id(1)
    n_c = pl.num_programs(1)

    pts = x_ref[...]                                                  # [Bt, nc, 3] f32

    # conv1 + BN + ReLU : [Bt, nc, 3] -> [Bt, nc, 64]
    # K=3 contraction as three VPU broadcast-FMAs (cheaper than an MXU pass).
    w1f = w1[...]                                                     # [3, 64] f32
    h1 = (pts[:, :, 0:1] * w1f[0:1, :]
          + pts[:, :, 1:2] * w1f[1:2, :]
          + pts[:, :, 2:3] * w1f[2:3, :]
          + b1[...])
    h1 = jnp.maximum(h1, 0.0)

    # conv2 + BN + ReLU : [Bt*nc, 64] -> [Bt*nc, 128]  (MXU, bf16 in / f32 accumulate)
    h1_2d = h1.reshape(Bt * n_chunk, 64).astype(jnp.bfloat16)
    h2 = jnp.dot(h1_2d, w2[...], preferred_element_type=jnp.float32) + b2[...]
    h2 = jnp.maximum(h2, 0.0)

    # conv3 + BN (no ReLU, matches the PyTorch module) : [Bt*nc, 128] -> [Bt*nc, 1024]
    h3 = jnp.dot(h2.astype(jnp.bfloat16), w3[...],
                 preferred_element_type=jnp.float32) + b3[...]
    h3 = h3.reshape(Bt, n_chunk, 1024)

    # Mask padded points so they can't contaminate the global max (only compiled in
    # when N was padded up to a chunk multiple).
    if mask_points:
        idx = lax.broadcasted_iota(jnp.int32, (Bt, n_chunk, 1), 1) + c * n_chunk
        h3 = jnp.where(idx < n_points, h3, NEG_PAD_BIAS)

    part = jnp.max(h3, axis=1)                                        # [Bt, 1024]

    # Running global max-pool over points (torch.max(x, 2)) in VMEM scratch.
    @pl.when(c == 0)
    def _():
        g_ref[...] = part

    @pl.when(c != 0)
    def _():
        g_ref[...] = jnp.maximum(g_ref[...], part)

    # Classifier head only on the last point-chunk, batched over Bt rows.
    @pl.when(c == n_c - 1)
    def _():
        g = g_ref[...]
        # fc1 + BN + ReLU : [Bt, 1024] -> [Bt, 512]
        y = jnp.dot(g.astype(jnp.bfloat16), w4[...],
                    preferred_element_type=jnp.float32) + b4[...]
        y = jnp.maximum(y, 0.0)
        # fc2 + Dropout(eval=identity) + BN + ReLU : [Bt, 512] -> [Bt, 256]
        y = jnp.dot(y.astype(jnp.bfloat16), w5[...],
                    preferred_element_type=jnp.float32) + b5[...]
        y = jnp.maximum(y, 0.0)
        # fc3 : [Bt, 256] -> [Bt, 128-padded classes] (lane-dense output)
        logits = jnp.dot(y.astype(jnp.bfloat16), w6[...],
                         preferred_element_type=jnp.float32) + b6[...]
        # log_softmax over classes (pad lanes carry a -1e30 f32 bias -> exp() == 0).
        m = jnp.max(logits, axis=-1, keepdims=True)
        lse = m + jnp.log(jnp.sum(jnp.exp(logits - m), axis=-1, keepdims=True))
        o_ref[...] = logits - lse


def _pick_point_chunk(n, block_b, max_rows=2048):
    """Point-chunk size: multiple of 8 (sublane aligned), bounded so that
    block_b * n_chunk <= max_rows (keeps the [*,1024] conv3 tile <= ~8 MiB f32)."""
    ceil8 = lambda v: ((v + 7) // 8) * 8
    max_chunk = max(8, ((max_rows // block_b) // 8) * 8)
    return min(max_chunk, ceil8(n))


def _pick_vmem_limit_bytes():
    """Per-generation scoped-VMEM limit: ~half the physical VMEM, clamped 32..96 MiB
    (v5e/v6e: 128 MiB physical -> 64 MiB; v7x: 64 MiB physical -> 32 MiB)."""
    cap = None
    try:
        cap = int(pltpu.get_tpu_info().vmem_capacity_bytes)
    except Exception:
        cap = None
    if not cap or cap <= 0:
        cap = 64 * 1024 * 1024
    return int(max(32 * 1024 * 1024, min(cap // 2, 96 * 1024 * 1024)))


def _const_spec(shape):
    """BlockSpec for a constant (grid-invariant) operand: single-buffered."""
    idx = lambda b, c: (0, 0)
    try:
        return pl.BlockSpec(shape, idx, pipeline_mode=pl.Buffered(1))
    except TypeError:
        return pl.BlockSpec(shape, idx)


def pointnet_cls_forward(pointcloud, kparams, num_classes, *, block_b=16):
    """pointcloud: [B, N, 3] f32. kparams from prepare_kernel_params.
    Returns (log_probs [B, num_classes], feat_trans=None)."""
    B, N, _ = pointcloud.shape
    ncp = kparams[-1][0].shape[1]          # padded class count (multiple of 128)

    Bt = block_b
    B_pad = ((B + Bt - 1) // Bt) * Bt
    n_chunk = _pick_point_chunk(N, Bt)
    N_pad = ((N + n_chunk - 1) // n_chunk) * n_chunk

    x = pointcloud
    if B_pad != B or N_pad != N:
        x = jnp.pad(x, ((0, B_pad - B), (0, N_pad - N), (0, 0)))

    kernel = functools.partial(_pointnet_cls_kernel,
                               n_points=N, mask_points=(N_pad != N))

    weight_specs = []
    weight_args = []
    for w, b in kparams:
        weight_specs.append(_const_spec(w.shape))
        weight_args.append(w)
        weight_specs.append(_const_spec(b.shape))
        weight_args.append(b)

    flops = int(B_pad * (2 * N_pad * (3 * 64 + 64 * 128 + 128 * 1024)
                         + 2 * (1024 * 512 + 512 * 256 + 256 * ncp)))
    transcendentals = int(B_pad * ncp)
    bytes_accessed = int(x.size * 4
                         + sum(int(w.nbytes) + int(b.nbytes) for w, b in kparams)
                         + B_pad * ncp * 4)

    out = pl.pallas_call(
        kernel,
        out_shape=jax.ShapeDtypeStruct((B_pad, ncp), jnp.float32),
        grid_spec=pltpu.PrefetchScalarGridSpec(
            num_scalar_prefetch=0,
            grid=(B_pad // Bt, N_pad // n_chunk),   # reduction (points) axis last
            in_specs=[pl.BlockSpec((Bt, n_chunk, 3), lambda b, c: (b, c, 0))]
                     + weight_specs,
            out_specs=pl.BlockSpec((Bt, ncp), lambda b, c: (b, 0)),
            scratch_shapes=[pltpu.VMEM((Bt, 1024), jnp.float32)],   # running max-pool
        ),
        compiler_params=pltpu.CompilerParams(
            dimension_semantics=("parallel", "arbitrary"),
            vmem_limit_bytes=_pick_vmem_limit_bytes(),
        ),
        cost_estimate=pl.CostEstimate(flops=flops,
                                      transcendentals=transcendentals,
                                      bytes_accessed=bytes_accessed),
    )(x, *weight_args)

    return out[:B, :num_classes], None  # feat_trans is None (feature_transform=False)


def make_params(key, num_classes):
    """Deterministic f32 parameters (shapes from the PyTorch module), BN folded
    (eval mode: running_mean=0, running_var=1, gamma=1, beta=0)."""
    dims = [(3, 64), (64, 128), (128, 1024),              # conv1..conv3 (kernel_size=1)
            (1024, 512), (512, 256), (256, num_classes)]  # fc1..fc3
    bn_after = [True, True, True, True, True, False]      # last Linear has no BN
    params = []
    keys = jax.random.split(key, 2 * len(dims))
    s = jnp.float32(1.0 / jnp.sqrt(1.0 + BN_EPS))         # folded BN scale; shift = 0
    for i, ((cin, cout), has_bn) in enumerate(zip(dims, bn_after)):
        w = jax.random.normal(keys[2 * i], (cin, cout), jnp.float32) * (1.0 / jnp.sqrt(cin))
        b = jax.random.normal(keys[2 * i + 1], (cout,), jnp.float32) * 0.1
        if has_bn:
            w = w * s
            b = b * s
        params.append((w, b))
    return params


def prepare_kernel_params(params):
    """Kernel-side parameter prep: biases -> [1, C] f32; weights of MXU layers -> bf16;
    last layer padded to a multiple of 128 classes (pad lanes get a -1e30 f32 bias)."""
    kparams = []
    n_layers = len(params)
    for i, (w, b) in enumerate(params):
        bk = b.reshape(1, -1).astype(jnp.float32)
        if i == 0:
            wk = w.astype(jnp.float32)            # conv1 runs on the VPU in f32
        else:
            wk = w.astype(jnp.bfloat16)
        if i == n_layers - 1:
            cout = w.shape[1]
            ncp = ((cout + 127) // 128) * 128
            wk = jnp.pad(wk, ((0, 0), (0, ncp - cout)))
            bk = jnp.pad(bk, ((0, 0), (0, ncp - cout)), constant_values=NEG_PAD_BIAS)
        kparams.append((wk, bk))
    return kparams


def reference_forward(pointcloud, kparams, num_classes):
    """Pure-JAX reference using the same precision recipe (bf16 operands, f32 accum)."""
    (w1, b1), (w2, b2), (w3, b3), (w4, b4), (w5, b5), (w6, b6) = kparams
    x = pointcloud
    h = (x[:, :, 0:1] * w1[0:1, :] + x[:, :, 1:2] * w1[1:2, :]
         + x[:, :, 2:3] * w1[2:3, :] + b1)
    h = jnp.maximum(h, 0.0)
    h = jnp.einsum('bnc,cd->bnd', h.astype(jnp.bfloat16), w2,
                   preferred_element_type=jnp.float32) + b2
    h = jnp.maximum(h, 0.0)
    h = jnp.einsum('bnc,cd->bnd', h.astype(jnp.bfloat16), w3,
                   preferred_element_type=jnp.float32) + b3
    g = jnp.max(h, axis=1)
    y = jnp.maximum(jnp.dot(g.astype(jnp.bfloat16), w4,
                            preferred_element_type=jnp.float32) + b4, 0.0)
    y = jnp.maximum(jnp.dot(y.astype(jnp.bfloat16), w5,
                            preferred_element_type=jnp.float32) + b5, 0.0)
    logits = jnp.dot(y.astype(jnp.bfloat16), w6,
                     preferred_element_type=jnp.float32) + b6
    logits = logits[:, :num_classes]
    return jax.nn.log_softmax(logits, axis=-1)


if __name__ == "__main__":
    key = jax.random.PRNGKey(0)
    k_pc, k_params = jax.random.split(key)

    B, N, num_classes = 16, 64, 10
    pointcloud = jax.random.normal(k_pc, (B, N, 3), jnp.float32)
    params = make_params(k_params, num_classes)
    kparams = prepare_kernel_params(params)

    log_probs, feat_trans = pointnet_cls_forward(pointcloud, kparams, num_classes,
                                                 block_b=16)
    log_probs = jax.block_until_ready(log_probs)

    ref = reference_forward(pointcloud, kparams, num_classes)
    assert log_probs.shape == (B, num_classes)
    assert feat_trans is None
    assert jnp.allclose(log_probs, ref, atol=1e-2, rtol=1e-2), "mismatch vs JAX reference"

    print("KERNEL_OK")
</pallas_src>

<mosaic_0001>
module attributes {stable_mosaic.version = 11 : i64} {
  func.func @_pointnet_cls_kernel(%arg0: i32, %arg1: i32, %arg2: memref<16x64x3xf32, #tpu.memory_space<vmem>>, %arg3: memref<3x64xf32, #tpu.memory_space<vmem>>, %arg4: memref<1x64xf32, #tpu.memory_space<vmem>>, %arg5: memref<64x128xbf16, #tpu.memory_space<vmem>>, %arg6: memref<1x128xf32, #tpu.memory_space<vmem>>, %arg7: memref<128x1024xbf16, #tpu.memory_space<vmem>>, %arg8: memref<1x1024xf32, #tpu.memory_space<vmem>>, %arg9: memref<1024x512xbf16, #tpu.memory_space<vmem>>, %arg10: memref<1x512xf32, #tpu.memory_space<vmem>>, %arg11: memref<512x256xbf16, #tpu.memory_space<vmem>>, %arg12: memref<1x256xf32, #tpu.memory_space<vmem>>, %arg13: memref<256x128xbf16, #tpu.memory_space<vmem>>, %arg14: memref<1x128xf32, #tpu.memory_space<vmem>>, %arg15: memref<16x128xf32, #tpu.memory_space<vmem>>, %arg16: memref<16x1024xf32, #tpu.memory_space<vmem>>) attributes {dimension_semantics = [#tpu.dimension_semantics<parallel>, #tpu.dimension_semantics<arbitrary>], iteration_bounds = array<i64: 1, 1>, scalar_prefetch = 0 : i64, scratch_operands = 1 : i64, tpu.core_type = #tpu.core_type<tc>, window_params = [{transform_indices = @transform_0, window_bounds = array<i64: 16, 64, 3>}, {pipeline_mode = #tpu.pipeline_mode<synchronous>, transform_indices = @transform_1, window_bounds = array<i64: 3, 64>}, {pipeline_mode = #tpu.pipeline_mode<synchronous>, transform_indices = @transform_2, window_bounds = array<i64: 1, 64>}, {pipeline_mode = #tpu.pipeline_mode<synchronous>, transform_indices = @transform_3, window_bounds = array<i64: 64, 128>}, {pipeline_mode = #tpu.pipeline_mode<synchronous>, transform_indices = @transform_4, window_bounds = array<i64: 1, 128>}, {pipeline_mode = #tpu.pipeline_mode<synchronous>, transform_indices = @transform_5, window_bounds = array<i64: 128, 1024>}, {pipeline_mode = #tpu.pipeline_mode<synchronous>, transform_indices = @transform_6, window_bounds = array<i64: 1, 1024>}, {pipeline_mode = #tpu.pipeline_mode<synchronous>, transform_indices = @transform_7, window_bounds = array<i64: 1024, 512>}, {pipeline_mode = #tpu.pipeline_mode<synchronous>, transform_indices = @transform_8, window_bounds = array<i64: 1, 512>}, {pipeline_mode = #tpu.pipeline_mode<synchronous>, transform_indices = @transform_9, window_bounds = array<i64: 512, 256>}, {pipeline_mode = #tpu.pipeline_mode<synchronous>, transform_indices = @transform_10, window_bounds = array<i64: 1, 256>}, {pipeline_mode = #tpu.pipeline_mode<synchronous>, transform_indices = @transform_11, window_bounds = array<i64: 256, 128>}, {pipeline_mode = #tpu.pipeline_mode<synchronous>, transform_indices = @transform_12, window_bounds = array<i64: 1, 128>}, {transform_indices = @transform_13, window_bounds = array<i64: 16, 128>}]} {
    %c0 = arith.constant 0 : index
    %c0_0 = arith.constant 0 : index
    %c0_1 = arith.constant 0 : index
    %0 = vector.load %arg2[%c0, %c0_0, %c0_1] : memref<16x64x3xf32, #tpu.memory_space<vmem>>, vector<16x64x3xf32>
    %c0_2 = arith.constant 0 : index
    %c0_3 = arith.constant 0 : index
    %1 = vector.load %arg3[%c0_2, %c0_3] : memref<3x64xf32, #tpu.memory_space<vmem>>, vector<3x64xf32>
    %2 = vector.extract_strided_slice %0 {offsets = [0, 0, 0], sizes = [16, 64, 1], strides = [1, 1, 1]} : vector<16x64x3xf32> to vector<16x64x1xf32>
    %3 = vector.extract_strided_slice %1 {offsets = [0, 0], sizes = [1, 64], strides = [1, 1]} : vector<3x64xf32> to vector<1x64xf32>
    %4 = vector.shape_cast %3 : vector<1x64xf32> to vector<1x1x64xf32>
    %5 = vector.broadcast %2 : vector<16x64x1xf32> to vector<16x64x64xf32>
    %6 = vector.broadcast %4 : vector<1x1x64xf32> to vector<16x64x64xf32>
    %7 = arith.mulf %5, %6 : vector<16x64x64xf32>
    %8 = vector.extract_strided_slice %0 {offsets = [0, 0, 1], sizes = [16, 64, 1], strides = [1, 1, 1]} : vector<16x64x3xf32> to vector<16x64x1xf32>
    %9 = vector.extract_strided_slice %1 {offsets = [1, 0], sizes = [1, 64], strides = [1, 1]} : vector<3x64xf32> to vector<1x64xf32>
    %10 = vector.shape_cast %9 : vector<1x64xf32> to vector<1x1x64xf32>
    %11 = vector.broadcast %8 : vector<16x64x1xf32> to vector<16x64x64xf32>
    %12 = vector.broadcast %10 : vector<1x1x64xf32> to vector<16x64x64xf32>
    %13 = arith.mulf %11, %12 : vector<16x64x64xf32>
    %14 = arith.addf %7, %13 : vector<16x64x64xf32>
    %15 = vector.extract_strided_slice %0 {offsets = [0, 0, 2], sizes = [16, 64, 1], strides = [1, 1, 1]} : vector<16x64x3xf32> to vector<16x64x1xf32>
    %16 = vector.extract_strided_slice %1 {offsets = [2, 0], sizes = [1, 64], strides = [1, 1]} : vector<3x64xf32> to vector<1x64xf32>
    %17 = vector.shape_cast %16 : vector<1x64xf32> to vector<1x1x64xf32>
    %18 = vector.broadcast %15 : vector<16x64x1xf32> to vector<16x64x64xf32>
    %19 = vector.broadcast %17 : vector<1x1x64xf32> to vector<16x64x64xf32>
    %20 = arith.mulf %18, %19 : vector<16x64x64xf32>
    %21 = arith.addf %14, %20 : vector<16x64x64xf32>
    %c0_4 = arith.constant 0 : index
    %c0_5 = arith.constant 0 : index
    %22 = vector.load %arg4[%c0_4, %c0_5] : memref<1x64xf32, #tpu.memory_space<vmem>>, vector<1x64xf32>
    %23 = vector.shape_cast %22 : vector<1x64xf32> to vector<1x1x64xf32>
    %24 = vector.broadcast %23 : vector<1x1x64xf32> to vector<16x64x64xf32>
    %25 = arith.addf %21, %24 : vector<16x64x64xf32>
    %cst = arith.constant 0.000000e+00 : f32
    %26 = vector.broadcast %cst : f32 to vector<16x64x64xf32>
    %27 = arith.maximumf %25, %26 : vector<16x64x64xf32>
    %28 = vector.shape_cast %27 : vector<16x64x64xf32> to vector<1024x64xf32>
    %29 = arith.truncf %28 : vector<1024x64xf32> to vector<1024x64xbf16>
    %c0_6 = arith.constant 0 : index
    %c0_7 = arith.constant 0 : index
    %30 = vector.load %arg5[%c0_6, %c0_7] : memref<64x128xbf16, #tpu.memory_space<vmem>>, vector<64x128xbf16>
    %cst_8 = arith.constant dense<0.000000e+00> : vector<1024x128xf32>
    %31 = tpu.matmul %29, %30, %cst_8 {dimension_numbers = #tpu.dot_dimension_numbers<[1], [0], [0], [1], [0, 0, 1, 1], [], []>} : vector<1024x64xbf16>, vector<64x128xbf16>, vector<1024x128xf32> -> vector<1024x128xf32>
    %c0_9 = arith.constant 0 : index
    %c0_10 = arith.constant 0 : index
    %32 = vector.load %arg6[%c0_9, %c0_10] : memref<1x128xf32, #tpu.memory_space<vmem>>, vector<1x128xf32>
    %33 = vector.broadcast %32 : vector<1x128xf32> to vector<1024x128xf32>
    %34 = arith.addf %31, %33 : vector<1024x128xf32>
    %cst_11 = arith.constant 0.000000e+00 : f32
    %35 = vector.broadcast %cst_11 : f32 to vector<1024x128xf32>
    %36 = arith.maximumf %34, %35 : vector<1024x128xf32>
    %37 = arith.truncf %36 : vector<1024x128xf32> to vector<1024x128xbf16>
    %c0_12 = arith.constant 0 : index
    %c0_13 = arith.constant 0 : index
    %38 = vector.load %arg7[%c0_12, %c0_13] : memref<128x1024xbf16, #tpu.memory_space<vmem>>, vector<128x1024xbf16>
    %cst_14 = arith.constant dense<0.000000e+00> : vector<1024x1024xf32>
    %39 = tpu.matmul %37, %38, %cst_14 {dimension_numbers = #tpu.dot_dimension_numbers<[1], [0], [0], [1], [0, 0, 1, 1], [], []>} : vector<1024x128xbf16>, vector<128x1024xbf16>, vector<1024x1024xf32> -> vector<1024x1024xf32>
    %c0_15 = arith.constant 0 : index
    %c0_16 = arith.constant 0 : index
    %40 = vector.load %arg8[%c0_15, %c0_16] : memref<1x1024xf32, #tpu.memory_space<vmem>>, vector<1x1024xf32>
    %41 = vector.broadcast %40 : vector<1x1024xf32> to vector<1024x1024xf32>
    %42 = arith.addf %39, %41 : vector<1024x1024xf32>
    %43 = vector.shape_cast %42 : vector<1024x1024xf32> to vector<16x64x1024xf32>
    %cst_17 = arith.constant dense<0xFF800000> : vector<16x1024xf32>
    %44 = vector.multi_reduction <maximumf>, %43, %cst_17 [1] : vector<16x64x1024xf32> to vector<16x1024xf32>
    %c0_i32 = arith.constant 0 : i32
    %45 = arith.cmpi eq, %arg1, %c0_i32 : i32
    %46 = arith.extui %45 : i1 to i32
    %c0_i32_18 = arith.constant 0 : i32
    %47 = arith.cmpi ne, %46, %c0_i32_18 : i32
    scf.if %47 {
      %c0_23 = arith.constant 0 : index
      %c0_24 = arith.constant 0 : index
      %54 = vector.load %arg16[%c0_23, %c0_24] : memref<16x1024xf32, #tpu.memory_space<vmem>>, vector<16x1024xf32>
      tpu.vector_store %arg16[%c0_23, %c0_24], %44 {strides = array<i32>} : memref<16x1024xf32, #tpu.memory_space<vmem>>, vector<16x1024xf32>,
    } else {
    }
    %c0_i32_19 = arith.constant 0 : i32
    %48 = arith.cmpi ne, %arg1, %c0_i32_19 : i32
    %49 = arith.extui %48 : i1 to i32
    %c0_i32_20 = arith.constant 0 : i32
    %50 = arith.cmpi ne, %49, %c0_i32_20 : i32
    scf.if %50 {
      %c0_23 = arith.constant 0 : index
      %c0_24 = arith.constant 0 : index
      %54 = vector.load %arg16[%c0_23, %c0_24] : memref<16x1024xf32, #tpu.memory_space<vmem>>, vector<16x1024xf32>
      %55 = arith.maximumf %54, %44 : vector<16x1024xf32>
      %c0_25 = arith.constant 0 : index
      %c0_26 = arith.constant 0 : index
      %56 = vector.load %arg16[%c0_25, %c0_26] : memref<16x1024xf32, #tpu.memory_space<vmem>>, vector<16x1024xf32>
      tpu.vector_store %arg16[%c0_25, %c0_26], %55 {strides = array<i32>} : memref<16x1024xf32, #tpu.memory_space<vmem>>, vector<16x1024xf32>,
    } else {
    }
    %c0_i32_21 = arith.constant 0 : i32
    %51 = arith.cmpi eq, %arg1, %c0_i32_21 : i32
    %52 = arith.extui %51 : i1 to i32
    %c0_i32_22 = arith.constant 0 : i32
    %53 = arith.cmpi ne, %52, %c0_i32_22 : i32
    scf.if %53 {
      %c0_23 = arith.constant 0 : index
      %c0_24 = arith.constant 0 : index
      %54 = vector.load %arg16[%c0_23, %c0_24] : memref<16x1024xf32, #tpu.memory_space<vmem>>, vector<16x1024xf32>
      %55 = arith.truncf %54 : vector<16x1024xf32> to vector<16x1024xbf16>
      %c0_25 = arith.constant 0 : index
      %c0_26 = arith.constant 0 : index
      %56 = vector.load %arg9[%c0_25, %c0_26] : memref<1024x512xbf16, #tpu.memory_space<vmem>>, vector<1024x512xbf16>
      %cst_27 = arith.constant dense<0.000000e+00> : vector<16x512xf32>
      %57 = tpu.matmul %55, %56, %cst_27 {dimension_numbers = #tpu.dot_dimension_numbers<[1], [0], [0], [1], [0, 0, 1, 1], [], []>} : vector<16x1024xbf16>, vector<1024x512xbf16>, vector<16x512xf32> -> vector<16x512xf32>
      %c0_28 = arith.constant 0 : index
      %c0_29 = arith.constant 0 : index
      %58 = vector.load %arg10[%c0_28, %c0_29] : memref<1x512xf32, #tpu.memory_space<vmem>>, vector<1x512xf32>
      %59 = vector.broadcast %58 : vector<1x512xf32> to vector<16x512xf32>
      %60 = arith.addf %57, %59 : vector<16x512xf32>
      %cst_30 = arith.constant 0.000000e+00 : f32
      %61 = vector.broadcast %cst_30 : f32 to vector<16x512xf32>
      %62 = arith.maximumf %60, %61 : vector<16x512xf32>
      %63 = arith.truncf %62 : vector<16x512xf32> to vector<16x512xbf16>
      %c0_31 = arith.constant 0 : index
      %c0_32 = arith.constant 0 : index
      %64 = vector.load %arg11[%c0_31, %c0_32] : memref<512x256xbf16, #tpu.memory_space<vmem>>, vector<512x256xbf16>
      %cst_33 = arith.constant dense<0.000000e+00> : vector<16x256xf32>
      %65 = tpu.matmul %63, %64, %cst_33 {dimension_numbers = #tpu.dot_dimension_numbers<[1], [0], [0], [1], [0, 0, 1, 1], [], []>} : vector<16x512xbf16>, vector<512x256xbf16>, vector<16x256xf32> -> vector<16x256xf32>
      %c0_34 = arith.constant 0 : index
      %c0_35 = arith.constant 0 : index
      %66 = vector.load %arg12[%c0_34, %c0_35] : memref<1x256xf32, #tpu.memory_space<vmem>>, vector<1x256xf32>
      %67 = vector.broadcast %66 : vector<1x256xf32> to vector<16x256xf32>
      %68 = arith.addf %65, %67 : vector<16x256xf32>
      %cst_36 = arith.constant 0.000000e+00 : f32
      %69 = vector.broadcast %cst_36 : f32 to vector<16x256xf32>
      %70 = arith.maximumf %68, %69 : vector<16x256xf32>
      %71 = arith.truncf %70 : vector<16x256xf32> to vector<16x256xbf16>
      %c0_37 = arith.constant 0 : index
      %c0_38 = arith.constant 0 : index
      %72 = vector.load %arg13[%c0_37, %c0_38] : memref<256x128xbf16, #tpu.memory_space<vmem>>, vector<256x128xbf16>
      %cst_39 = arith.constant dense<0.000000e+00> : vector<16x128xf32>
      %73 = tpu.matmul %71, %72, %cst_39 {dimension_numbers = #tpu.dot_dimension_numbers<[1], [0], [0], [1], [0, 0, 1, 1], [], []>} : vector<16x256xbf16>, vector<256x128xbf16>, vector<16x128xf32> -> vector<16x128xf32>
      %c0_40 = arith.constant 0 : index
      %c0_41 = arith.constant 0 : index
      %74 = vector.load %arg14[%c0_40, %c0_41] : memref<1x128xf32, #tpu.memory_space<vmem>>, vector<1x128xf32>
      %75 = vector.broadcast %74 : vector<1x128xf32> to vector<16x128xf32>
      %76 = arith.addf %73, %75 : vector<16x128xf32>
      %cst_42 = arith.constant dense<0xFF800000> : vector<16xf32>
      %77 = vector.multi_reduction <maximumf>, %76, %cst_42 [1] : vector<16x128xf32> to vector<16xf32>
      %78 = vector.shape_cast %77 : vector<16xf32> to vector<16x1xf32>
      %79 = vector.broadcast %78 : vector<16x1xf32> to vector<16x128xf32>
      %80 = arith.subf %76, %79 : vector<16x128xf32>
      %81 = math.exp %80 : vector<16x128xf32>
      %cst_43 = arith.constant dense<0.000000e+00> : vector<16xf32>
      %82 = vector.multi_reduction <add>, %81, %cst_43 [1] : vector<16x128xf32> to vector<16xf32>
      %83 = vector.shape_cast %82 : vector<16xf32> to vector<16x1xf32>
      %84 = math.log %83 : vector<16x1xf32>
      %85 = arith.addf %78, %84 : vector<16x1xf32>
      %86 = vector.broadcast %85 : vector<16x1xf32> to vector<16x128xf32>
      %87 = arith.subf %76, %86 : vector<16x128xf32>
      %c0_44 = arith.constant 0 : index
      %c0_45 = arith.constant 0 : index
      %88 = vector.load %arg15[%c0_44, %c0_45] : memref<16x128xf32, #tpu.memory_space<vmem>>, vector<16x128xf32>
      tpu.vector_store %arg15[%c0_44, %c0_45], %87 {strides = array<i32>} : memref<16x128xf32, #tpu.memory_space<vmem>>, vector<16x128xf32>,
    } else {
    }
    return
  }
  func.func @transform_0(%arg0: i32, %arg1: i32) -> (i32, i32, i32) {
    %c0_i32 = arith.constant 0 : i32
    %c0_i32_0 = arith.constant 0 : i32
    return %arg0, %arg1, %c0_i32 : i32, i32, i32
  }
  func.func @transform_1(%arg0: i32, %arg1: i32) -> (i32, i32) {
    %c0_i32 = arith.constant 0 : i32
    %c0_i32_0 = arith.constant 0 : i32
    %c0_i32_1 = arith.constant 0 : i32
    return %c0_i32, %c0_i32_0 : i32, i32
  }
  func.func @transform_2(%arg0: i32, %arg1: i32) -> (i32, i32) {
    %c0_i32 = arith.constant 0 : i32
    %c0_i32_0 = arith.constant 0 : i32
    %c0_i32_1 = arith.constant 0 : i32
    return %c0_i32, %c0_i32_0 : i32, i32
  }
  func.func @transform_3(%arg0: i32, %arg1: i32) -> (i32, i32) {
    %c0_i32 = arith.constant 0 : i32
    %c0_i32_0 = arith.constant 0 : i32
    %c0_i32_1 = arith.constant 0 : i32
    return %c0_i32, %c0_i32_0 : i32, i32
  }
  func.func @transform_4(%arg0: i32, %arg1: i32) -> (i32, i32) {
    %c0_i32 = arith.constant 0 : i32
    %c0_i32_0 = arith.constant 0 : i32
    %c0_i32_1 = arith.constant 0 : i32
    return %c0_i32, %c0_i32_0 : i32, i32
  }
  func.func @transform_5(%arg0: i32, %arg1: i32) -> (i32, i32) {
    %c0_i32 = arith.constant 0 : i32
    %c0_i32_0 = arith.constant 0 : i32
    %c0_i32_1 = arith.constant 0 : i32
    return %c0_i32, %c0_i32_0 : i32, i32
  }
  func.func @transform_6(%arg0: i32, %arg1: i32) -> (i32, i32) {
    %c0_i32 = arith.constant 0 : i32
    %c0_i32_0 = arith.constant 0 : i32
    %c0_i32_1 = arith.constant 0 : i32
    return %c0_i32, %c0_i32_0 : i32, i32
  }
  func.func @transform_7(%arg0: i32, %arg1: i32) -> (i32, i32) {
    %c0_i32 = arith.constant 0 : i32
    %c0_i32_0 = arith.constant 0 : i32
    %c0_i32_1 = arith.constant 0 : i32
    return %c0_i32, %c0_i32_0 : i32, i32
  }
  func.func @transform_8(%arg0: i32, %arg1: i32) -> (i32, i32) {
    %c0_i32 = arith.constant 0 : i32
    %c0_i32_0 = arith.constant 0 : i32
    %c0_i32_1 = arith.constant 0 : i32
    return %c0_i32, %c0_i32_0 : i32, i32
  }
  func.func @transform_9(%arg0: i32, %arg1: i32) -> (i32, i32) {
    %c0_i32 = arith.constant 0 : i32
    %c0_i32_0 = arith.constant 0 : i32
    %c0_i32_1 = arith.constant 0 : i32
    return %c0_i32, %c0_i32_0 : i32, i32
  }
  func.func @transform_10(%arg0: i32, %arg1: i32) -> (i32, i32) {
    %c0_i32 = arith.constant 0 : i32
    %c0_i32_0 = arith.constant 0 : i32
    %c0_i32_1 = arith.constant 0 : i32
    return %c0_i32, %c0_i32_0 : i32, i32
  }
  func.func @transform_11(%arg0: i32, %arg1: i32) -> (i32, i32) {
    %c0_i32 = arith.constant 0 : i32
    %c0_i32_0 = arith.constant 0 : i32
    %c0_i32_1 = arith.constant 0 : i32
    return %c0_i32, %c0_i32_0 : i32, i32
  }
  func.func @transform_12(%arg0: i32, %arg1: i32) -> (i32, i32) {
    %c0_i32 = arith.constant 0 : i32
    %c0_i32_0 = arith.constant 0 : i32
    %c0_i32_1 = arith.constant 0 : i32
    return %c0_i32, %c0_i32_0 : i32, i32
  }
  func.func @transform_13(%arg0: i32, %arg1: i32) -> (i32, i32) {
    %c0_i32 = arith.constant 0 : i32
    %c0_i32_0 = arith.constant 0 : i32
    return %arg0, %c0_i32 : i32, i32
  }
}

</mosaic_0001>

<llo_original>
// kernel: tpu_custom_call.1
$region0: #{tpu_custom_call.1}
  #allocation0 [shape = 'u32[]', space=smem, size = 0x4, offset = 0x4, fixed_abs, tag = 'smem constant byte address 0x4 - core index']
  #allocation1 [shape = 'u32[144,128]{1,0:T(1,128)}', space=vmem, size = 0x12000, scoped, tag = 'internal scratch']
  #allocation2 [shape = 'f32[16,1024]{1,0:T(8,128)}', space=vmem, size = 0x10000, scoped, tag = 'scratch operand']
  %s0 = inlined_call_operand.vmem [shape: f32[16,64,3], index: 0, kind: input, shape index: {}]
  %s1 = inlined_call_operand.vmem [shape: f32[3,64], index: 1, kind: input, shape index: {}]
  %s2 = inlined_call_operand.hbm [shape: f32[1,64], index: 2, kind: input, shape index: {}]
  %s3 = inlined_call_operand.vmem [shape: bf16[64,128], index: 3, kind: input, shape index: {}]
  %s4 = inlined_call_operand.vmem [shape: f32[1,128], index: 4, kind: input, shape index: {}]
  %s5 = inlined_call_operand.vmem [shape: bf16[128,1024], index: 5, kind: input, shape index: {}]
  %s6 = inlined_call_operand.vmem [shape: f32[1,1024], index: 6, kind: input, shape index: {}]
  %s7 = inlined_call_operand.hbm [shape: bf16[1024,512], index: 7, kind: input, shape index: {}]
  %s8 = inlined_call_operand.vmem [shape: f32[1,512], index: 8, kind: input, shape index: {}]
  %s9 = inlined_call_operand.vmem [shape: bf16[512,256], index: 9, kind: input, shape index: {}]
  %s10 = inlined_call_operand.vmem [shape: f32[1,256], index: 10, kind: input, shape index: {}]
  %s11 = inlined_call_operand.hbm [shape: bf16[256,128], index: 11, kind: input, shape index: {}]
  %s12 = inlined_call_operand.vmem [shape: f32[1,128], index: 12, kind: input, shape index: {}]
  %s13 = inlined_call_operand.hbm [shape: f32[16,128], index: 13, kind: output, shape index: {}]
  %s14 = sld [smem:[#allocation0]]
  $region86: #{tpu_custom_call.1} parent=0
    _
  %s16 = ssub.s32 1, %s14
  %s17 = scalar_select 0, %s16, %s14
  $region1: #{tpu_custom_call.1} parent=0
    #allocation3 [shape = 'u8[512]{0}', space=vmem, size = 0x400, scoped, tag = 'input window, operand 2, single buffered']
    #allocation4 [shape = 's32[1]{0}', space=sflag, size = 0x4, scoped, tag = 'scoped memory for tpu_custom_call.1']
    #allocation5 [shape = 's32[1]{0}', space=sflag, size = 0x4, scoped, tag = 'scoped memory for tpu_custom_call.1']
    #allocation6 [shape = 'u8[1048576]{0}', space=vmem, size = 0x100000, scoped, tag = 'input window, operand 7, single buffered']
    #allocation7 [shape = 's32[1]{0}', space=sflag, size = 0x4, scoped, tag = 'scoped memory for tpu_custom_call.1']
    #allocation8 [shape = 'u8[65536]{0}', space=vmem, size = 0x10000, scoped, tag = 'input window, operand 11, single buffered']
    #allocation9 [shape = 'u8[8192]{0}', space=vmem, size = 0x2000, scoped, tag = 'output window, operand 0, single buffered']
    %18 = vsyncpa [#allocation4], 0
    %19 = vsyncpa [#allocation7], 0
    %20 = vsyncpa [#allocation5], 0
    // Predicated region
    $region2: #{tpu_custom_call.1} parent=1 // pred_check
      _
    $region3: #{tpu_custom_call.1} parent=1 // pred_check_branch
      %22 = sbr.rel (0) target = $region5
    $region4: #{tpu_custom_call.1} parent=1 // pred_region
      _
    $region5: #{tpu_custom_call.1} parent=1 // pred_fallthru
      _
    // Predicated region
    $region6: #{tpu_custom_call.1} parent=1 // pred_check
      _
    $region7: #{tpu_custom_call.1} parent=1 // pred_check_branch
      %24 = sbr.rel (0) target = $region9
    $region8: #{tpu_custom_call.1} parent=1 // pred_region
      _
    $region9: #{tpu_custom_call.1} parent=1 // pred_fallthru
      _
    // Predicated region
    $region10: #{tpu_custom_call.1} parent=1 // pred_check
      _
    $region11: #{tpu_custom_call.1} parent=1 // pred_check_branch
      %26 = sbr.rel (0) target = $region13
    $region12: #{tpu_custom_call.1} parent=1 // pred_region
      %s28 = ssub.s32 16, 16
      %29 = vsyncadd [#allocation4], %s28
      %s31 = sshll.u32 [#allocation3], 4
      %s32 = int_to_ptr.vmem [resolvable:$true] %s31
      %34 = dma.hbm_to_vmem [thread:$0]  %s2, 16, %s32, [#allocation4]
    $region13: #{tpu_custom_call.1} parent=1 // pred_fallthru
      _
    // Predicated region
    $region14: #{tpu_custom_call.1} parent=1 // pred_check
      _
    $region15: #{tpu_custom_call.1} parent=1 // pred_check_branch
      %36 = sbr.rel (0) target = $region17
    $region16: #{tpu_custom_call.1} parent=1 // pred_region
      _
    $region17: #{tpu_custom_call.1} parent=1 // pred_fallthru
      _
    // Predicated region
    $region18: #{tpu_custom_call.1} parent=1 // pred_check
      _
    $region19: #{tpu_custom_call.1} parent=1 // pred_check_branch
      %38 = sbr.rel (0) target = $region21
    $region20: #{tpu_custom_call.1} parent=1 // pred_region
      _
    $region21: #{tpu_custom_call.1} parent=1 // pred_fallthru
      _
    // Predicated region
    $region22: #{tpu_custom_call.1} parent=1 // pred_check
      _
    $region23: #{tpu_custom_call.1} parent=1 // pred_check_branch
      %40 = sbr.rel (0) target = $region25
    $region24: #{tpu_custom_call.1} parent=1 // pred_region
      _
    $region25: #{tpu_custom_call.1} parent=1 // pred_fallthru
      _
    // Predicated region
    $region26: #{tpu_custom_call.1} parent=1 // pred_check
      _
    $region27: #{tpu_custom_call.1} parent=1 // pred_check_branch
      %42 = sbr.rel (0) target = $region29
    $region28: #{tpu_custom_call.1} parent=1 // pred_region
      _
    $region29: #{tpu_custom_call.1} parent=1 // pred_fallthru
      _
    // Predicated region
    $region30: #{tpu_custom_call.1} parent=1 // pred_check
      _
    $region31: #{tpu_custom_call.1} parent=1 // pred_check_branch
      %44 = sbr.rel (0) target = $region33
    $region32: #{tpu_custom_call.1} parent=1 // pred_region
      %s46 = ssub.s32 32768, 32768
      %47 = vsyncadd [#allocation7], %s46
      %s48 = sshll.u32 [#allocation6], 4
      %s49 = int_to_ptr.vmem [resolvable:$true] %s48
      %54 = dma.hbm_to_vmem [thread:$0]  %s7, 32768, %s49, [#allocation7], 256, 256, 16
    $region33: #{tpu_custom_call.1} parent=1 // pred_fallthru
      _
    // Predicated region
    $region34: #{tpu_custom_call.1} parent=1 // pred_check
      _
    $region35: #{tpu_custom_call.1} parent=1 // pred_check_branch
      %56 = sbr.rel (0) target = $region37
    $region36: #{tpu_custom_call.1} parent=1 // pred_region
      _
    $region37: #{tpu_custom_call.1} parent=1 // pred_fallthru
      _
    // Predicated region
    $region38: #{tpu_custom_call.1} parent=1 // pred_check
      _
    $region39: #{tpu_custom_call.1} parent=1 // pred_check_branch
      %58 = sbr.rel (0) target = $region41
    $region40: #{tpu_custom_call.1} parent=1 // pred_region
      _
    $region41: #{tpu_custom_call.1} parent=1 // pred_fallthru
      _
    // Predicated region
    $region42: #{tpu_custom_call.1} parent=1 // pred_check
      _
    $region43: #{tpu_custom_call.1} parent=1 // pred_check_branch
      %60 = sbr.rel (0) target = $region45
    $region44: #{tpu_custom_call.1} parent=1 // pred_region
      _
    $region45: #{tpu_custom_call.1} parent=1 // pred_fallthru
      _
    // Predicated region
    $region46: #{tpu_custom_call.1} parent=1 // pred_check
      _
    $region47: #{tpu_custom_call.1} parent=1 // pred_check_branch
      %62 = sbr.rel (0) target = $region49
    $region48: #{tpu_custom_call.1} parent=1 // pred_region
      %s64 = ssub.s32 2048, 2048
      %65 = vsyncadd [#allocation7], %s64
      %s66 = sshll.u32 [#allocation8], 4
      %s67 = int_to_ptr.vmem [resolvable:$true] %s66
      %72 = dma.hbm_to_vmem [thread:$0]  %s11, 2048, %s67, [#allocation7], 64, 64, 4
    $region49: #{tpu_custom_call.1} parent=1 // pred_fallthru
      _
    // Predicated region
    $region50: #{tpu_custom_call.1} parent=1 // pred_check
      _
    $region51: #{tpu_custom_call.1} parent=1 // pred_check_branch
      %74 = sbr.rel (0) target = $region53
    $region52: #{tpu_custom_call.1} parent=1 // pred_region
      _
    $region53: #{tpu_custom_call.1} parent=1 // pred_fallthru
      _
    // Predicated region
    $region54: #{tpu_custom_call.1} parent=1 // pred_check
      _
    $region55: #{tpu_custom_call.1} parent=1 // pred_check_branch
      %76 = sbr.rel (0) target = $region57
    $region56: #{tpu_custom_call.1} parent=1 // pred_region
      %77 = dma.done [#allocation4], 16
    $region57: #{tpu_custom_call.1} parent=1 // pred_fallthru
      _
    // Predicated region
    $region58: #{tpu_custom_call.1} parent=1 // pred_check
      _
    $region59: #{tpu_custom_call.1} parent=1 // pred_check_branch
      %79 = sbr.rel (0) target = $region61
    $region60: #{tpu_custom_call.1} parent=1 // pred_region
      %80 = dma.done [#allocation7], 32768
    $region61: #{tpu_custom_call.1} parent=1 // pred_fallthru
      _
    // Predicated region
    $region62: #{tpu_custom_call.1} parent=1 // pred_check
      _
    $region63: #{tpu_custom_call.1} parent=1 // pred_check_branch
      %82 = sbr.rel (0) target = $region65
    $region64: #{tpu_custom_call.1} parent=1 // pred_region
      %83 = dma.done [#allocation7], 2048
    $region65: #{tpu_custom_call.1} parent=1 // pred_fallthru
      _
    %v85 = vld [vmem:[%s0] sm:$0xff]
    %v86 = vld [vmem:[%s0 + $0x8] sm:$0xff]
    %v87 = vld [vmem:[%s0 + $0x10] sm:$0xff]
    %v88 = vld [vmem:[%s0 + $0x18] sm:$0xff]
    %v89 = vld [vmem:[%s0 + $0x20] sm:$0xff]
    %v90 = vld [vmem:[%s0 + $0x28] sm:$0xff]
    %v91 = vld [vmem:[%s0 + $0x30] sm:$0xff]
    %v92 = vld [vmem:[%s0 + $0x38] sm:$0xff]
    %v93 = vld [vmem:[%s0 + $0x40] sm:$0xff]
    %v94 = vld [vmem:[%s0 + $0x48] sm:$0xff]
    %v95 = vld [vmem:[%s0 + $0x50] sm:$0xff]
    %v96 = vld [vmem:[%s0 + $0x58] sm:$0xff]
    %v97 = vld [vmem:[%s0 + $0x60] sm:$0xff]
    %v98 = vld [vmem:[%s0 + $0x68] sm:$0xff]
    %v99 = vld [vmem:[%s0 + $0x70] sm:$0xff]
    %v100 = vld [vmem:[%s0 + $0x78] sm:$0xff]
    %v101 = vld [vmem:[%s0 + $0x80] sm:$0xff]
    %v102 = vld [vmem:[%s0 + $0x88] sm:$0xff]
    %v103 = vld [vmem:[%s0 + $0x90] sm:$0xff]
    %v104 = vld [vmem:[%s0 + $0x98] sm:$0xff]
    %v105 = vld [vmem:[%s0 + $0xa0] sm:$0xff]
    %v106 = vld [vmem:[%s0 + $0xa8] sm:$0xff]
    %v107 = vld [vmem:[%s0 + $0xb0] sm:$0xff]
    %v108 = vld [vmem:[%s0 + $0xb8] sm:$0xff]
    %v109 = vld [vmem:[%s0 + $0xc0] sm:$0xff]
    %v110 = vld [vmem:[%s0 + $0xc8] sm:$0xff]
    %v111 = vld [vmem:[%s0 + $0xd0] sm:$0xff]
    %v112 = vld [vmem:[%s0 + $0xd8] sm:$0xff]
    %v113 = vld [vmem:[%s0 + $0xe0] sm:$0xff]
    %v114 = vld [vmem:[%s0 + $0xe8] sm:$0xff]
    %v115 = vld [vmem:[%s0 + $0xf0] sm:$0xff]
    %v116 = vld [vmem:[%s0 + $0xf8] sm:$0xff]
    %v117 = vld [vmem:[%s0 + $0x100] sm:$0xff]
    %v118 = vld [vmem:[%s0 + $0x108] sm:$0xff]
    %v119 = vld [vmem:[%s0 + $0x110] sm:$0xff]
    %v120 = vld [vmem:[%s0 + $0x118] sm:$0xff]
    %v121 = vld [vmem:[%s0 + $0x120] sm:$0xff]
    %v122 = vld [vmem:[%s0 + $0x128] sm:$0xff]
    %v123 = vld [vmem:[%s0 + $0x130] sm:$0xff]
    %v124 = vld [vmem:[%s0 + $0x138] sm:$0xff]
    %v125 = vld [vmem:[%s0 + $0x140] sm:$0xff]
    %v126 = vld [vmem:[%s0 + $0x148] sm:$0xff]
    %v127 = vld [vmem:[%s0 + $0x150] sm:$0xff]
    %v128 = vld [vmem:[%s0 + $0x158] sm:$0xff]
    %v129 = vld [vmem:[%s0 + $0x160] sm:$0xff]
    %v130 = vld [vmem:[%s0 + $0x168] sm:$0xff]
    %v131 = vld [vmem:[%s0 + $0x170] sm:$0xff]
    %v132 = vld [vmem:[%s0 + $0x178] sm:$0xff]
    %v133 = vld [vmem:[%s0 + $0x180] sm:$0xff]
    %v134 = vld [vmem:[%s0 + $0x188] sm:$0xff]
    %v135 = vld [vmem:[%s0 + $0x190] sm:$0xff]
    %v136 = vld [vmem:[%s0 + $0x198] sm:$0xff]
    %v137 = vld [vmem:[%s0 + $0x1a0] sm:$0xff]
    %v138 = vld [vmem:[%s0 + $0x1a8] sm:$0xff]
    %v139 = vld [vmem:[%s0 + $0x1b0] sm:$0xff]
    %v140 = vld [vmem:[%s0 + $0x1b8] sm:$0xff]
    %v141 = vld [vmem:[%s0 + $0x1c0] sm:$0xff]
    %v142 = vld [vmem:[%s0 + $0x1c8] sm:$0xff]
    %v143 = vld [vmem:[%s0 + $0x1d0] sm:$0xff]
    %v144 = vld [vmem:[%s0 + $0x1d8] sm:$0xff]
    %v145 = vld [vmem:[%s0 + $0x1e0] sm:$0xff]
    %v146 = vld [vmem:[%s0 + $0x1e8] sm:$0xff]
    %v147 = vld [vmem:[%s0 + $0x1f0] sm:$0xff]
    %v148 = vld [vmem:[%s0 + $0x1f8] sm:$0xff]
    %v149 = vld [vmem:[%s0 + $0x200] sm:$0xff]
    %v150 = vld [vmem:[%s0 + $0x208] sm:$0xff]
    %v151 = vld [vmem:[%s0 + $0x210] sm:$0xff]
    %v152 = vld [vmem:[%s0 + $0x218] sm:$0xff]
    %v153 = vld [vmem:[%s0 + $0x220] sm:$0xff]
    %v154 = vld [vmem:[%s0 + $0x228] sm:$0xff]
    %v155 = vld [vmem:[%s0 + $0x230] sm:$0xff]
    %v156 = vld [vmem:[%s0 + $0x238] sm:$0xff]
    %v157 = vld [vmem:[%s0 + $0x240] sm:$0xff]
    %v158 = vld [vmem:[%s0 + $0x248] sm:$0xff]
    %v159 = vld [vmem:[%s0 + $0x250] sm:$0xff]
    %v160 = vld [vmem:[%s0 + $0x258] sm:$0xff]
    %v161 = vld [vmem:[%s0 + $0x260] sm:$0xff]
    %v162 = vld [vmem:[%s0 + $0x268] sm:$0xff]
    %v163 = vld [vmem:[%s0 + $0x270] sm:$0xff]
    %v164 = vld [vmem:[%s0 + $0x278] sm:$0xff]
    %v165 = vld [vmem:[%s0 + $0x280] sm:$0xff]
    %v166 = vld [vmem:[%s0 + $0x288] sm:$0xff]
    %v167 = vld [vmem:[%s0 + $0x290] sm:$0xff]
    %v168 = vld [vmem:[%s0 + $0x298] sm:$0xff]
    %v169 = vld [vmem:[%s0 + $0x2a0] sm:$0xff]
    %v170 = vld [vmem:[%s0 + $0x2a8] sm:$0xff]
    %v171 = vld [vmem:[%s0 + $0x2b0] sm:$0xff]
    %v172 = vld [vmem:[%s0 + $0x2b8] sm:$0xff]
    %v173 = vld [vmem:[%s0 + $0x2c0] sm:$0xff]
    %v174 = vld [vmem:[%s0 + $0x2c8] sm:$0xff]
    %v175 = vld [vmem:[%s0 + $0x2d0] sm:$0xff]
    %v176 = vld [vmem:[%s0 + $0x2d8] sm:$0xff]
    %v177 = vld [vmem:[%s0 + $0x2e0] sm:$0xff]
    %v178 = vld [vmem:[%s0 + $0x2e8] sm:$0xff]
    %v179 = vld [vmem:[%s0 + $0x2f0] sm:$0xff]
    %v180 = vld [vmem:[%s0 + $0x2f8] sm:$0xff]
    %v181 = vld [vmem:[%s0 + $0x300] sm:$0xff]
    %v182 = vld [vmem:[%s0 + $0x308] sm:$0xff]
    %v183 = vld [vmem:[%s0 + $0x310] sm:$0xff]
    %v184 = vld [vmem:[%s0 + $0x318] sm:$0xff]
    %v185 = vld [vmem:[%s0 + $0x320] sm:$0xff]
    %v186 = vld [vmem:[%s0 + $0x328] sm:$0xff]
    %v187 = vld [vmem:[%s0 + $0x330] sm:$0xff]
    %v188 = vld [vmem:[%s0 + $0x338] sm:$0xff]
    %v189 = vld [vmem:[%s0 + $0x340] sm:$0xff]
    %v190 = vld [vmem:[%s0 + $0x348] sm:$0xff]
    %v191 = vld [vmem:[%s0 + $0x350] sm:$0xff]
    %v192 = vld [vmem:[%s0 + $0x358] sm:$0xff]
    %v193 = vld [vmem:[%s0 + $0x360] sm:$0xff]
    %v194 = vld [vmem:[%s0 + $0x368] sm:$0xff]
    %v195 = vld [vmem:[%s0 + $0x370] sm:$0xff]
    %v196 = vld [vmem:[%s0 + $0x378] sm:$0xff]
    %v197 = vld [vmem:[%s0 + $0x380] sm:$0xff]
    %v198 = vld [vmem:[%s0 + $0x388] sm:$0xff]
    %v199 = vld [vmem:[%s0 + $0x390] sm:$0xff]
    %v200 = vld [vmem:[%s0 + $0x398] sm:$0xff]
    %v201 = vld [vmem:[%s0 + $0x3a0] sm:$0xff]
    %v202 = vld [vmem:[%s0 + $0x3a8] sm:$0xff]
    %v203 = vld [vmem:[%s0 + $0x3b0] sm:$0xff]
    %v204 = vld [vmem:[%s0 + $0x3b8] sm:$0xff]
    %v205 = vld [vmem:[%s0 + $0x3c0] sm:$0xff]
    %v206 = vld [vmem:[%s0 + $0x3c8] sm:$0xff]
    %v207 = vld [vmem:[%s0 + $0x3d0] sm:$0xff]
    %v208 = vld [vmem:[%s0 + $0x3d8] sm:$0xff]
    %v209 = vld [vmem:[%s0 + $0x3e0] sm:$0xff]
    %v210 = vld [vmem:[%s0 + $0x3e8] sm:$0xff]
    %v211 = vld [vmem:[%s0 + $0x3f0] sm:$0xff]
    %v212 = vld [vmem:[%s0 + $0x3f8] sm:$0xff]
    %v213 = vld [vmem:[%s1] sm:$0x7]
    %215 = vset.pattern.permute.xlu0 0
    %216 = vperm.xlu0 %215, %v85
    %v217 = vpop.permute.xlu0 %216
    %220 = vset.pattern.permute.xlu0 0
    %221 = vperm.xlu0 %220, %v86
    %v222 = vpop.permute.xlu0 %221
    %225 = vset.pattern.permute.xlu0 0
    %226 = vperm.xlu0 %225, %v87
    %v227 = vpop.permute.xlu0 %226
    %230 = vset.pattern.permute.xlu0 0
    %231 = vperm.xlu0 %230, %v88
    %v232 = vpop.permute.xlu0 %231
    %235 = vset.pattern.permute.xlu0 0
    %236 = vperm.xlu0 %235, %v89
    %v237 = vpop.permute.xlu0 %236
    %240 = vset.pattern.permute.xlu0 0
    %241 = vperm.xlu0 %240, %v90
    %v242 = vpop.permute.xlu0 %241
    %245 = vset.pattern.permute.xlu0 0
    %246 = vperm.xlu0 %245, %v91
    %v247 = vpop.permute.xlu0 %246
    %250 = vset.pattern.permute.xlu0 0
    %251 = vperm.xlu0 %250, %v92
    %v252 = vpop.permute.xlu0 %251
    %255 = vset.pattern.permute.xlu0 0
    %256 = vperm.xlu0 %255, %v93
    %v257 = vpop.permute.xlu0 %256
    %260 = vset.pattern.permute.xlu0 0
    %261 = vperm.xlu0 %260, %v94
    %v262 = vpop.permute.xlu0 %261
    %265 = vset.pattern.permute.xlu0 0
    %266 = vperm.xlu0 %265, %v95
    %v267 = vpop.permute.xlu0 %266
    %270 = vset.pattern.permute.xlu0 0
    %271 = vperm.xlu0 %270, %v96
    %v272 = vpop.permute.xlu0 %271
    %275 = vset.pattern.permute.xlu0 0
    %276 = vperm.xlu0 %275, %v97
    %v277 = vpop.permute.xlu0 %276
    %280 = vset.pattern.permute.xlu0 0
    %281 = vperm.xlu0 %280, %v98
    %v282 = vpop.permute.xlu0 %281
    %285 = vset.pattern.permute.xlu0 0
    %286 = vperm.xlu0 %285, %v99
    %v287 = vpop.permute.xlu0 %286
    %290 = vset.pattern.permute.xlu0 0
    %291 = vperm.xlu0 %290, %v100
    %v292 = vpop.permute.xlu0 %291
    %295 = vset.pattern.permute.xlu0 0
    %296 = vperm.xlu0 %295, %v101
    %v297 = vpop.permute.xlu0 %296
    %300 = vset.pattern.permute.xlu0 0
    %301 = vperm.xlu0 %300, %v102
    %v302 = vpop.permute.xlu0 %301
    %305 = vset.pattern.permute.xlu0 0
    %306 = vperm.xlu0 %305, %v103
    %v307 = vpop.permute.xlu0 %306
    %310 = vset.pattern.permute.xlu0 0
    %311 = vperm.xlu0 %310, %v104
    %v312 = vpop.permute.xlu0 %311
    %315 = vset.pattern.permute.xlu0 0
    %316 = vperm.xlu0 %315, %v105
    %v317 = vpop.permute.xlu0 %316
    %320 = vset.pattern.permute.xlu0 0
    %321 = vperm.xlu0 %320, %v106
    %v322 = vpop.permute.xlu0 %321
    %325 = vset.pattern.permute.xlu0 0
    %326 = vperm.xlu0 %325, %v107
    %v327 = vpop.permute.xlu0 %326
    %330 = vset.pattern.permute.xlu0 0
    %331 = vperm.xlu0 %330, %v108
    %v332 = vpop.permute.xlu0 %331
    %335 = vset.pattern.permute.xlu0 0
    %336 = vperm.xlu0 %335, %v109
    %v337 = vpop.permute.xlu0 %336
    %340 = vset.pattern.permute.xlu0 0
    %341 = vperm.xlu0 %340, %v110
    %v342 = vpop.permute.xlu0 %341
    %345 = vset.pattern.permute.xlu0 0
    %346 = vperm.xlu0 %345, %v111
    %v347 = vpop.permute.xlu0 %346
    %350 = vset.pattern.permute.xlu0 0
    %351 = vperm.xlu0 %350, %v112
    %v352 = vpop.permute.xlu0 %351
    %355 = vset.pattern.permute.xlu0 0
    %356 = vperm.xlu0 %355, %v113
    %v357 = vpop.permute.xlu0 %356
    %360 = vset.pattern.permute.xlu0 0
    %361 = vperm.xlu0 %360, %v114
    %v362 = vpop.permute.xlu0 %361
    %365 = vset.pattern.permute.xlu0 0
    %366 = vperm.xlu0 %365, %v115
    %v367 = vpop.permute.xlu0 %366
    %370 = vset.pattern.permute.xlu0 0
    %371 = vperm.xlu0 %370, %v116
    %v372 = vpop.permute.xlu0 %371
    %375 = vset.pattern.permute.xlu0 0
    %376 = vperm.xlu0 %375, %v117
    %v377 = vpop.permute.xlu0 %376
    %380 = vset.pattern.permute.xlu0 0
    %381 = vperm.xlu0 %380, %v118
    %v382 = vpop.permute.xlu0 %381
    %385 = vset.pattern.permute.xlu0 0
    %386 = vperm.xlu0 %385, %v119
    %v387 = vpop.permute.xlu0 %386
    %390 = vset.pattern.permute.xlu0 0
    %391 = vperm.xlu0 %390, %v120
    %v392 = vpop.permute.xlu0 %391
    %395 = vset.pattern.permute.xlu0 0
    %396 = vperm.xlu0 %395, %v121
    %v397 = vpop.permute.xlu0 %396
    %400 = vset.pattern.permute.xlu0 0
    %401 = vperm.xlu0 %400, %v122
    %v402 = vpop.permute.xlu0 %401
    %405 = vset.pattern.permute.xlu0 0
    %406 = vperm.xlu0 %405, %v123
    %v407 = vpop.permute.xlu0 %406
    %410 = vset.pattern.permute.xlu0 0
    %411 = vperm.xlu0 %410, %v124
    %v412 = vpop.permute.xlu0 %411
    %415 = vset.pattern.permute.xlu0 0
    %416 = vperm.xlu0 %415, %v125
    %v417 = vpop.permute.xlu0 %416
    %420 = vset.pattern.permute.xlu0 0
    %421 = vperm.xlu0 %420, %v126
    %v422 = vpop.permute.xlu0 %421
    %425 = vset.pattern.permute.xlu0 0
    %426 = vperm.xlu0 %425, %v127
    %v427 = vpop.permute.xlu0 %426
    %430 = vset.pattern.permute.xlu0 0
    %431 = vperm.xlu0 %430, %v128
    %v432 = vpop.permute.xlu0 %431
    %435 = vset.pattern.permute.xlu0 0
    %436 = vperm.xlu0 %435, %v129
    %v437 = vpop.permute.xlu0 %436
    %440 = vset.pattern.permute.xlu0 0
    %441 = vperm.xlu0 %440, %v130
    %v442 = vpop.permute.xlu0 %441
    %445 = vset.pattern.permute.xlu0 0
    %446 = vperm.xlu0 %445, %v131
    %v447 = vpop.permute.xlu0 %446
    %450 = vset.pattern.permute.xlu0 0
    %451 = vperm.xlu0 %450, %v132
    %v452 = vpop.permute.xlu0 %451
    %455 = vset.pattern.permute.xlu0 0
    %456 = vperm.xlu0 %455, %v133
    %v457 = vpop.permute.xlu0 %456
    %460 = vset.pattern.permute.xlu0 0
    %461 = vperm.xlu0 %460, %v134
    %v462 = vpop.permute.xlu0 %461
    %465 = vset.pattern.permute.xlu0 0
    %466 = vperm.xlu0 %465, %v135
    %v467 = vpop.permute.xlu0 %466
    %470 = vset.pattern.permute.xlu0 0
    %471 = vperm.xlu0 %470, %v136
    %v472 = vpop.permute.xlu0 %471
    %475 = vset.pattern.permute.xlu0 0
    %476 = vperm.xlu0 %475, %v137
    %v477 = vpop.permute.xlu0 %476
    %480 = vset.pattern.permute.xlu0 0
    %481 = vperm.xlu0 %480, %v138
    %v482 = vpop.permute.xlu0 %481
    %485 = vset.pattern.permute.xlu0 0
    %486 = vperm.xlu0 %485, %v139
    %v487 = vpop.permute.xlu0 %486
    %490 = vset.pattern.permute.xlu0 0
    %491 = vperm.xlu0 %490, %v140
    %v492 = vpop.permute.xlu0 %491
    %495 = vset.pattern.permute.xlu0 0
    %496 = vperm.xlu0 %495, %v141
    %v497 = vpop.permute.xlu0 %496
    %500 = vset.pattern.permute.xlu0 0
    %501 = vperm.xlu0 %500, %v142
    %v502 = vpop.permute.xlu0 %501
    %505 = vset.pattern.permute.xlu0 0
    %506 = vperm.xlu0 %505, %v143
    %v507 = vpop.permute.xlu0 %506
    %510 = vset.pattern.permute.xlu0 0
    %511 = vperm.xlu0 %510, %v144
    %v512 = vpop.permute.xlu0 %511
    %515 = vset.pattern.permute.xlu0 0
    %516 = vperm.xlu0 %515, %v145
    %v517 = vpop.permute.xlu0 %516
    %520 = vset.pattern.permute.xlu0 0
    %521 = vperm.xlu0 %520, %v146
    %v522 = vpop.permute.xlu0 %521
    %525 = vset.pattern.permute.xlu0 0
    %526 = vperm.xlu0 %525, %v147
    %v527 = vpop.permute.xlu0 %526
    %530 = vset.pattern.permute.xlu0 0
    %531 = vperm.xlu0 %530, %v148
    %v532 = vpop.permute.xlu0 %531
    %535 = vset.pattern.permute.xlu0 0
    %536 = vperm.xlu0 %535, %v149
    %v537 = vpop.permute.xlu0 %536
    %540 = vset.pattern.permute.xlu0 0
    %541 = vperm.xlu0 %540, %v150
    %v542 = vpop.permute.xlu0 %541
    %545 = vset.pattern.permute.xlu0 0
    %546 = vperm.xlu0 %545, %v151
    %v547 = vpop.permute.xlu0 %546
    %550 = vset.pattern.permute.xlu0 0
    %551 = vperm.xlu0 %550, %v152
    %v552 = vpop.permute.xlu0 %551
    %555 = vset.pattern.permute.xlu0 0
    %556 = vperm.xlu0 %555, %v153
    %v557 = vpop.permute.xlu0 %556
    %560 = vset.pattern.permute.xlu0 0
    %561 = vperm.xlu0 %560, %v154
    %v562 = vpop.permute.xlu0 %561
    %565 = vset.pattern.permute.xlu0 0
    %566 = vperm.xlu0 %565, %v155
    %v567 = vpop.permute.xlu0 %566
    %570 = vset.pattern.permute.xlu0 0
    %571 = vperm.xlu0 %570, %v156
    %v572 = vpop.permute.xlu0 %571
    %575 = vset.pattern.permute.xlu0 0
    %576 = vperm.xlu0 %575, %v157
    %v577 = vpop.permute.xlu0 %576
    %580 = vset.pattern.permute.xlu0 0
    %581 = vperm.xlu0 %580, %v158
    %v582 = vpop.permute.xlu0 %581
    %585 = vset.pattern.permute.xlu0 0
    %586 = vperm.xlu0 %585, %v159
    %v587 = vpop.permute.xlu0 %586
    %590 = vset.pattern.permute.xlu0 0
    %591 = vperm.xlu0 %590, %v160
    %v592 = vpop.permute.xlu0 %591
    %595 = vset.pattern.permute.xlu0 0
    %596 = vperm.xlu0 %595, %v161
    %v597 = vpop.permute.xlu0 %596
    %600 = vset.pattern.permute.xlu0 0
    %601 = vperm.xlu0 %600, %v162
    %v602 = vpop.permute.xlu0 %601
    %605 = vset.pattern.permute.xlu0 0
    %606 = vperm.xlu0 %605, %v163
    %v607 = vpop.permute.xlu0 %606
    %610 = vset.pattern.permute.xlu0 0
    %611 = vperm.xlu0 %610, %v164
    %v612 = vpop.permute.xlu0 %611
    %615 = vset.pattern.permute.xlu0 0
    %616 = vperm.xlu0 %615, %v165
    %v617 = vpop.permute.xlu0 %616
    %620 = vset.pattern.permute.xlu0 0
    %621 = vperm.xlu0 %620, %v166
    %v622 = vpop.permute.xlu0 %621
    %625 = vset.pattern.permute.xlu0 0
    %626 = vperm.xlu0 %625, %v167
    %v627 = vpop.permute.xlu0 %626
    %630 = vset.pattern.permute.xlu0 0
    %631 = vperm.xlu0 %630, %v168
    %v632 = vpop.permute.xlu0 %631
    %635 = vset.pattern.permute.xlu0 0
    %636 = vperm.xlu0 %635, %v169
    %v637 = vpop.permute.xlu0 %636
    %640 = vset.pattern.permute.xlu0 0
    %641 = vperm.xlu0 %640, %v170
    %v642 = vpop.permute.xlu0 %641
    %645 = vset.pattern.permute.xlu0 0
    %646 = vperm.xlu0 %645, %v171
    %v647 = vpop.permute.xlu0 %646
    %650 = vset.pattern.permute.xlu0 0
    %651 = vperm.xlu0 %650, %v172
    %v652 = vpop.permute.xlu0 %651
    %655 = vset.pattern.permute.xlu0 0
    %656 = vperm.xlu0 %655, %v173
    %v657 = vpop.permute.xlu0 %656
    %660 = vset.pattern.permute.xlu0 0
    %661 = vperm.xlu0 %660, %v174
    %v662 = vpop.permute.xlu0 %661
    %665 = vset.pattern.permute.xlu0 0
    %666 = vperm.xlu0 %665, %v175
    %v667 = vpop.permute.xlu0 %666
    %670 = vset.pattern.permute.xlu0 0
    %671 = vperm.xlu0 %670, %v176
    %v672 = vpop.permute.xlu0 %671
    %675 = vset.pattern.permute.xlu0 0
    %676 = vperm.xlu0 %675, %v177
    %v677 = vpop.permute.xlu0 %676
    %680 = vset.pattern.permute.xlu0 0
    %681 = vperm.xlu0 %680, %v178
    %v682 = vpop.permute.xlu0 %681
    %685 = vset.pattern.permute.xlu0 0
    %686 = vperm.xlu0 %685, %v179
    %v687 = vpop.permute.xlu0 %686
    %690 = vset.pattern.permute.xlu0 0
    %691 = vperm.xlu0 %690, %v180
    %v692 = vpop.permute.xlu0 %691
    %695 = vset.pattern.permute.xlu0 0
    %696 = vperm.xlu0 %695, %v181
    %v697 = vpop.permute.xlu0 %696
    %700 = vset.pattern.permute.xlu0 0
    %701 = vperm.xlu0 %700, %v182
    %v702 = vpop.permute.xlu0 %701
    %705 = vset.pattern.permute.xlu0 0
    %706 = vperm.xlu0 %705, %v183
    %v707 = vpop.permute.xlu0 %706
    %710 = vset.pattern.permute.xlu0 0
    %711 = vperm.xlu0 %710, %v184
    %v712 = vpop.permute.xlu0 %711
    %715 = vset.pattern.permute.xlu0 0
    %716 = vperm.xlu0 %715, %v185
    %v717 = vpop.permute.xlu0 %716
    %720 = vset.pattern.permute.xlu0 0
    %721 = vperm.xlu0 %720, %v186
    %v722 = vpop.permute.xlu0 %721
    %725 = vset.pattern.permute.xlu0 0
    %726 = vperm.xlu0 %725, %v187
    %v727 = vpop.permute.xlu0 %726
    %730 = vset.pattern.permute.xlu0 0
    %731 = vperm.xlu0 %730, %v188
    %v732 = vpop.permute.xlu0 %731
    %735 = vset.pattern.permute.xlu0 0
    %736 = vperm.xlu0 %735, %v189
    %v737 = vpop.permute.xlu0 %736
    %740 = vset.pattern.permute.xlu0 0
    %741 = vperm.xlu0 %740, %v190
    %v742 = vpop.permute.xlu0 %741
    %745 = vset.pattern.permute.xlu0 0
    %746 = vperm.xlu0 %745, %v191
    %v747 = vpop.permute.xlu0 %746
    %750 = vset.pattern.permute.xlu0 0
    %751 = vperm.xlu0 %750, %v192
    %v752 = vpop.permute.xlu0 %751
    %755 = vset.pattern.permute.xlu0 0
    %756 = vperm.xlu0 %755, %v193
    %v757 = vpop.permute.xlu0 %756
    %760 = vset.pattern.permute.xlu0 0
    %761 = vperm.xlu0 %760, %v194
    %v762 = vpop.permute.xlu0 %761
    %765 = vset.pattern.permute.xlu0 0
    %766 = vperm.xlu0 %765, %v195
    %v767 = vpop.permute.xlu0 %766
    %770 = vset.pattern.permute.xlu0 0
    %771 = vperm.xlu0 %770, %v196
    %v772 = vpop.permute.xlu0 %771
    %775 = vset.pattern.permute.xlu0 0
    %776 = vperm.xlu0 %775, %v197
    %v777 = vpop.permute.xlu0 %776
    %780 = vset.pattern.permute.xlu0 0
    %781 = vperm.xlu0 %780, %v198
    %v782 = vpop.permute.xlu0 %781
    %785 = vset.pattern.permute.xlu0 0
    %786 = vperm.xlu0 %785, %v199
    %v787 = vpop.permute.xlu0 %786
    %790 = vset.pattern.permute.xlu0 0
    %791 = vperm.xlu0 %790, %v200
    %v792 = vpop.permute.xlu0 %791
    %795 = vset.pattern.permute.xlu0 0
    %796 = vperm.xlu0 %795, %v201
    %v797 = vpop.permute.xlu0 %796
    %800 = vset.pattern.permute.xlu0 0
    %801 = vperm.xlu0 %800, %v202
    %v802 = vpop.permute.xlu0 %801
    %805 = vset.pattern.permute.xlu0 0
    %806 = vperm.xlu0 %805, %v203
    %v807 = vpop.permute.xlu0 %806
    %810 = vset.pattern.permute.xlu0 0
    %811 = vperm.xlu0 %810, %v204
    %v812 = vpop.permute.xlu0 %811
    %815 = vset.pattern.permute.xlu0 0
    %816 = vperm.xlu0 %815, %v205
    %v817 = vpop.permute.xlu0 %816
    %820 = vset.pattern.permute.xlu0 0
    %821 = vperm.xlu0 %820, %v206
    %v822 = vpop.permute.xlu0 %821
    %825 = vset.pattern.permute.xlu0 0
    %826 = vperm.xlu0 %825, %v207
    %v827 = vpop.permute.xlu0 %826
    %830 = vset.pattern.permute.xlu0 0
    %831 = vperm.xlu0 %830, %v208
    %v832 = vpop.permute.xlu0 %831
    %835 = vset.pattern.permute.xlu0 0
    %836 = vperm.xlu0 %835, %v209
    %v837 = vpop.permute.xlu0 %836
    %840 = vset.pattern.permute.xlu0 0
    %841 = vperm.xlu0 %840, %v210
    %v842 = vpop.permute.xlu0 %841
    %845 = vset.pattern.permute.xlu0 0
    %846 = vperm.xlu0 %845, %v211
    %v847 = vpop.permute.xlu0 %846
    %850 = vset.pattern.permute.xlu0 0
    %851 = vperm.xlu0 %850, %v212
    %v852 = vpop.permute.xlu0 %851
    %v854 = vlaneseq
    %v855 = vshrl.u32 %v854, 7
    %v856 = vsub.s32 0, %v855
    %v857 = vrot.slane %v213, %v856
    %v858 = vmul.f32 %v217, %v857
    %v859 = vmul.f32 %v222, %v857
    %v860 = vmul.f32 %v227, %v857
    %v861 = vmul.f32 %v232, %v857
    %v862 = vmul.f32 %v237, %v857
    %v863 = vmul.f32 %v242, %v857
    %v864 = vmul.f32 %v247, %v857
    %v865 = vmul.f32 %v252, %v857
    %v866 = vmul.f32 %v257, %v857
    %v867 = vmul.f32 %v262, %v857
    %v868 = vmul.f32 %v267, %v857
    %v869 = vmul.f32 %v272, %v857
    %v870 = vmul.f32 %v277, %v857
    %v871 = vmul.f32 %v282, %v857
    %v872 = vmul.f32 %v287, %v857
    %v873 = vmul.f32 %v292, %v857
    %v874 = vmul.f32 %v297, %v857
    %v875 = vmul.f32 %v302, %v857
    %v876 = vmul.f32 %v307, %v857
    %v877 = vmul.f32 %v312, %v857
    %v878 = vmul.f32 %v317, %v857
    %v879 = vmul.f32 %v322, %v857
    %v880 = vmul.f32 %v327, %v857
    %v881 = vmul.f32 %v332, %v857
    %v882 = vmul.f32 %v337, %v857
    %v883 = vmul.f32 %v342, %v857
    %v884 = vmul.f32 %v347, %v857
    %v885 = vmul.f32 %v352, %v857
    %v886 = vmul.f32 %v357, %v857
    %v887 = vmul.f32 %v362, %v857
    %v888 = vmul.f32 %v367, %v857
    %v889 = vmul.f32 %v372, %v857
    %v890 = vmul.f32 %v377, %v857
    %v891 = vmul.f32 %v382, %v857
    %v892 = vmul.f32 %v387, %v857
    %v893 = vmul.f32 %v392, %v857
    %v894 = vmul.f32 %v397, %v857
    %v895 = vmul.f32 %v402, %v857
    %v896 = vmul.f32 %v407, %v857
    %v897 = vmul.f32 %v412, %v857
    %v898 = vmul.f32 %v417, %v857
    %v899 = vmul.f32 %v422, %v857
    %v900 = vmul.f32 %v427, %v857
    %v901 = vmul.f32 %v432, %v857
    %v902 = vmul.f32 %v437, %v857
    %v903 = vmul.f32 %v442, %v857
    %v904 = vmul.f32 %v447, %v857
    %v905 = vmul.f32 %v452, %v857
    %v906 = vmul.f32 %v457, %v857
    %v907 = vmul.f32 %v462, %v857
    %v908 = vmul.f32 %v467, %v857
    %v909 = vmul.f32 %v472, %v857
    %v910 = vmul.f32 %v477, %v857
    %v911 = vmul.f32 %v482, %v857
    %v912 = vmul.f32 %v487, %v857
    %v913 = vmul.f32 %v492, %v857
    %v914 = vmul.f32 %v497, %v857
    %v915 = vmul.f32 %v502, %v857
    %v916 = vmul.f32 %v507, %v857
    %v917 = vmul.f32 %v512, %v857
    %v918 = vmul.f32 %v517, %v857
    %v919 = vmul.f32 %v522, %v857
    %v920 = vmul.f32 %v527, %v857
    %v921 = vmul.f32 %v532, %v857
    %v922 = vmul.f32 %v537, %v857
    %v923 = vmul.f32 %v542, %v857
    %v924 = vmul.f32 %v547, %v857
    %v925 = vmul.f32 %v552, %v857
    %v926 = vmul.f32 %v557, %v857
    %v927 = vmul.f32 %v562, %v857
    %v928 = vmul.f32 %v567, %v857
    %v929 = vmul.f32 %v572, %v857
    %v930 = vmul.f32 %v577, %v857
    %v931 = vmul.f32 %v582, %v857
    %v932 = vmul.f32 %v587, %v857
    %v933 = vmul.f32 %v592, %v857
    %v934 = vmul.f32 %v597, %v857
    %v935 = vmul.f32 %v602, %v857
    %v936 = vmul.f32 %v607, %v857
    %v937 = vmul.f32 %v612, %v857
    %v938 = vmul.f32 %v617, %v857
    %v939 = vmul.f32 %v622, %v857
    %v940 = vmul.f32 %v627, %v857
    %v941 = vmul.f32 %v632, %v857
    %v942 = vmul.f32 %v637, %v857
    %v943 = vmul.f32 %v642, %v857
    %v944 = vmul.f32 %v647, %v857
    %v945 = vmul.f32 %v652, %v857
    %v946 = vmul.f32 %v657, %v857
    %v947 = vmul.f32 %v662, %v857
    %v948 = vmul.f32 %v667, %v857
    %v949 = vmul.f32 %v672, %v857
    %v950 = vmul.f32 %v677, %v857
    %v951 = vmul.f32 %v682, %v857
    %v952 = vmul.f32 %v687, %v857
    %v953 = vmul.f32 %v692, %v857
    %v954 = vmul.f32 %v697, %v857
    %v955 = vmul.f32 %v702, %v857
    %v956 = vmul.f32 %v707, %v857
    %v957 = vmul.f32 %v712, %v857
    %v958 = vmul.f32 %v717, %v857
    %v959 = vmul.f32 %v722, %v857
    %v960 = vmul.f32 %v727, %v857
    %v961 = vmul.f32 %v732, %v857
    %v962 = vmul.f32 %v737, %v857
    %v963 = vmul.f32 %v742, %v857
    %v964 = vmul.f32 %v747, %v857
    %v965 = vmul.f32 %v752, %v857
    %v966 = vmul.f32 %v757, %v857
    %v967 = vmul.f32 %v762, %v857
    %v968 = vmul.f32 %v767, %v857
    %v969 = vmul.f32 %v772, %v857
    %v970 = vmul.f32 %v777, %v857
    %v971 = vmul.f32 %v782, %v857
    %v972 = vmul.f32 %v787, %v857
    %v973 = vmul.f32 %v792, %v857
    %v974 = vmul.f32 %v797, %v857
    %v975 = vmul.f32 %v802, %v857
    %v976 = vmul.f32 %v807, %v857
    %v977 = vmul.f32 %v812, %v857
    %v978 = vmul.f32 %v817, %v857
    %v979 = vmul.f32 %v822, %v857
    %v980 = vmul.f32 %v827, %v857
    %v981 = vmul.f32 %v832, %v857
    %v982 = vmul.f32 %v837, %v857
    %v983 = vmul.f32 %v842, %v857
    %v984 = vmul.f32 %v847, %v857
    %v985 = vmul.f32 %v852, %v857
    %986 = vset.pattern.permute.xlu0 1
    %987 = vperm.xlu0 %986, %v85
    %v988 = vpop.permute.xlu0 %987
    %990 = vset.pattern.permute.xlu0 1
    %991 = vperm.xlu0 %990, %v86
    %v992 = vpop.permute.xlu0 %991
    %994 = vset.pattern.permute.xlu0 1
    %995 = vperm.xlu0 %994, %v87
    %v996 = vpop.permute.xlu0 %995
    %998 = vset.pattern.permute.xlu0 1
    %999 = vperm.xlu0 %998, %v88
    %v1000 = vpop.permute.xlu0 %999
    %1002 = vset.pattern.permute.xlu0 1
    %1003 = vperm.xlu0 %1002, %v89
    %v1004 = vpop.permute.xlu0 %1003
    %1006 = vset.pattern.permute.xlu0 1
    %1007 = vperm.xlu0 %1006, %v90
    %v1008 = vpop.permute.xlu0 %1007
    %1010 = vset.pattern.permute.xlu0 1
    %1011 = vperm.xlu0 %1010, %v91
    %v1012 = vpop.permute.xlu0 %1011
    %1014 = vset.pattern.permute.xlu0 1
    %1015 = vperm.xlu0 %1014, %v92
    %v1016 = vpop.permute.xlu0 %1015
    %1018 = vset.pattern.permute.xlu0 1
    %1019 = vperm.xlu0 %1018, %v93
    %v1020 = vpop.permute.xlu0 %1019
    %1022 = vset.pattern.permute.xlu0 1
    %1023 = vperm.xlu0 %1022, %v94
    %v1024 = vpop.permute.xlu0 %1023
    %1026 = vset.pattern.permute.xlu0 1
    %1027 = vperm.xlu0 %1026, %v95
    %v1028 = vpop.permute.xlu0 %1027
    %1030 = vset.pattern.permute.xlu0 1
    %1031 = vperm.xlu0 %1030, %v96
    %v1032 = vpop.permute.xlu0 %1031
    %1034 = vset.pattern.permute.xlu0 1
    %1035 = vperm.xlu0 %1034, %v97
    %v1036 = vpop.permute.xlu0 %1035
    %1038 = vset.pattern.permute.xlu0 1
    %1039 = vperm.xlu0 %1038, %v98
    %v1040 = vpop.permute.xlu0 %1039
    %1042 = vset.pattern.permute.xlu0 1
    %1043 = vperm.xlu0 %1042, %v99
    %v1044 = vpop.permute.xlu0 %1043
    %1046 = vset.pattern.permute.xlu0 1
    %1047 = vperm.xlu0 %1046, %v100
    %v1048 = vpop.permute.xlu0 %1047
    %1050 = vset.pattern.permute.xlu0 1
    %1051 = vperm.xlu0 %1050, %v101
    %v1052 = vpop.permute.xlu0 %1051
    %1054 = vset.pattern.permute.xlu0 1
    %1055 = vperm.xlu0 %1054, %v102
    %v1056 = vpop.permute.xlu0 %1055
    %1058 = vset.pattern.permute.xlu0 1
    %1059 = vperm.xlu0 %1058, %v103
    %v1060 = vpop.permute.xlu0 %1059
    %1062 = vset.pattern.permute.xlu0 1
    %1063 = vperm.xlu0 %1062, %v104
    %v1064 = vpop.permute.xlu0 %1063
    %1066 = vset.pattern.permute.xlu0 1
    %1067 = vperm.xlu0 %1066, %v105
    %v1068 = vpop.permute.xlu0 %1067
    %1070 = vset.pattern.permute.xlu0 1
    %1071 = vperm.xlu0 %1070, %v106
    %v1072 = vpop.permute.xlu0 %1071
    %1074 = vset.pattern.permute.xlu0 1
    %1075 = vperm.xlu0 %1074, %v107
    %v1076 = vpop.permute.xlu0 %1075
    %1078 = vset.pattern.permute.xlu0 1
    %1079 = vperm.xlu0 %1078, %v108
    %v1080 = vpop.permute.xlu0 %1079
    %1082 = vset.pattern.permute.xlu0 1
    %1083 = vperm.xlu0 %1082, %v109
    %v1084 = vpop.permute.xlu0 %1083
    %1086 = vset.pattern.permute.xlu0 1
    %1087 = vperm.xlu0 %1086, %v110
    %v1088 = vpop.permute.xlu0 %1087
    %1090 = vset.pattern.permute.xlu0 1
    %1091 = vperm.xlu0 %1090, %v111
    %v1092 = vpop.permute.xlu0 %1091
    %1094 = vset.pattern.permute.xlu0 1
    %1095 = vperm.xlu0 %1094, %v112
    %v1096 = vpop.permute.xlu0 %1095
    %1098 = vset.pattern.permute.xlu0 1
    %1099 = vperm.xlu0 %1098, %v113
    %v1100 = vpop.permute.xlu0 %1099
    %1102 = vset.pattern.permute.xlu0 1
    %1103 = vperm.xlu0 %1102, %v114
    %v1104 = vpop.permute.xlu0 %1103
    %1106 = vset.pattern.permute.xlu0 1
    %1107 = vperm.xlu0 %1106, %v115
    %v1108 = vpop.permute.xlu0 %1107
    %1110 = vset.pattern.permute.xlu0 1
    %1111 = vperm.xlu0 %1110, %v116
    %v1112 = vpop.permute.xlu0 %1111
    %1114 = vset.pattern.permute.xlu0 1
    %1115 = vperm.xlu0 %1114, %v117
    %v1116 = vpop.permute.xlu0 %1115
    %1118 = vset.pattern.permute.xlu0 1
    %1119 = vperm.xlu0 %1118, %v118
    %v1120 = vpop.permute.xlu0 %1119
    %1122 = vset.pattern.permute.xlu0 1
    %1123 = vperm.xlu0 %1122, %v119
    %v1124 = vpop.permute.xlu0 %1123
    %1126 = vset.pattern.permute.xlu0 1
    %1127 = vperm.xlu0 %1126, %v120
    %v1128 = vpop.permute.xlu0 %1127
    %1130 = vset.pattern.permute.xlu0 1
    %1131 = vperm.xlu0 %1130, %v121
    %v1132 = vpop.permute.xlu0 %1131
    %1134 = vset.pattern.permute.xlu0 1
    %1135 = vperm.xlu0 %1134, %v122
    %v1136 = vpop.permute.xlu0 %1135
    %1138 = vset.pattern.permute.xlu0 1
    %1139 = vperm.xlu0 %1138, %v123
    %v1140 = vpop.permute.xlu0 %1139
    %1142 = vset.pattern.permute.xlu0 1
    %1143 = vperm.xlu0 %1142, %v124
    %v1144 = vpop.permute.xlu0 %1143
    %1146 = vset.pattern.permute.xlu0 1
    %1147 = vperm.xlu0 %1146, %v125
    %v1148 = vpop.permute.xlu0 %1147
    %1150 = vset.pattern.permute.xlu0 1
    %1151 = vperm.xlu0 %1150, %v126
    %v1152 = vpop.permute.xlu0 %1151
    %1154 = vset.pattern.permute.xlu0 1
    %1155 = vperm.xlu0 %1154, %v127
    %v1156 = vpop.permute.xlu0 %1155
    %1158 = vset.pattern.permute.xlu0 1
    %1159 = vperm.xlu0 %1158, %v128
    %v1160 = vpop.permute.xlu0 %1159
    %1162 = vset.pattern.permute.xlu0 1
    %1163 = vperm.xlu0 %1162, %v129
    %v1164 = vpop.permute.xlu0 %1163
    %1166 = vset.pattern.permute.xlu0 1
    %1167 = vperm.xlu0 %1166, %v130
    %v1168 = vpop.permute.xlu0 %1167
    %1170 = vset.pattern.permute.xlu0 1
    %1171 = vperm.xlu0 %1170, %v131
    %v1172 = vpop.permute.xlu0 %1171
    %1174 = vset.pattern.permute.xlu0 1
    %1175 = vperm.xlu0 %1174, %v132
    %v1176 = vpop.permute.xlu0 %1175
    %1178 = vset.pattern.permute.xlu0 1
    %1179 = vperm.xlu0 %1178, %v133
    %v1180 = vpop.permute.xlu0 %1179
    %1182 = vset.pattern.permute.xlu0 1
    %1183 = vperm.xlu0 %1182, %v134
    %v1184 = vpop.permute.xlu0 %1183
    %1186 = vset.pattern.permute.xlu0 1
    %1187 = vperm.xlu0 %1186, %v135
    %v1188 = vpop.permute.xlu0 %1187
    %1190 = vset.pattern.permute.xlu0 1
    %1191 = vperm.xlu0 %1190, %v136
    %v1192 = vpop.permute.xlu0 %1191
    %1194 = vset.pattern.permute.xlu0 1
    %1195 = vperm.xlu0 %1194, %v137
    %v1196 = vpop.permute.xlu0 %1195
    %1198 = vset.pattern.permute.xlu0 1
    %1199 = vperm.xlu0 %1198, %v138
    %v1200 = vpop.permute.xlu0 %1199
    %1202 = vset.pattern.permute.xlu0 1
    %1203 = vperm.xlu0 %1202, %v139
    %v1204 = vpop.permute.xlu0 %1203
    %1206 = vset.pattern.permute.xlu0 1
    %1207 = vperm.xlu0 %1206, %v140
    %v1208 = vpop.permute.xlu0 %1207
    %1210 = vset.pattern.permute.xlu0 1
    %1211 = vperm.xlu0 %1210, %v141
    %v1212 = vpop.permute.xlu0 %1211
    %1214 = vset.pattern.permute.xlu0 1
    %1215 = vperm.xlu0 %1214, %v142
    %v1216 = vpop.permute.xlu0 %1215
    %1218 = vset.pattern.permute.xlu0 1
    %1219 = vperm.xlu0 %1218, %v143
    %v1220 = vpop.permute.xlu0 %1219
    %1222 = vset.pattern.permute.xlu0 1
    %1223 = vperm.xlu0 %1222, %v144
    %v1224 = vpop.permute.xlu0 %1223
    %1226 = vset.pattern.permute.xlu0 1
    %1227 = vperm.xlu0 %1226, %v145
    %v1228 = vpop.permute.xlu0 %1227
    %1230 = vset.pattern.permute.xlu0 1
    %1231 = vperm.xlu0 %1230, %v146
    %v1232 = vpop.permute.xlu0 %1231
    %1234 = vset.pattern.permute.xlu0 1
    %1235 = vperm.xlu0 %1234, %v147
    %v1236 = vpop.permute.xlu0 %1235
    %1238 = vset.pattern.permute.xlu0 1
    %1239 = vperm.xlu0 %1238, %v148
    %v1240 = vpop.permute.xlu0 %1239
    %1242 = vset.pattern.permute.xlu0 1
    %1243 = vperm.xlu0 %1242, %v149
    %v1244 = vpop.permute.xlu0 %1243
    %1246 = vset.pattern.permute.xlu0 1
    %1247 = vperm.xlu0 %1246, %v150
    %v1248 = vpop.permute.xlu0 %1247
    %1250 = vset.pattern.permute.xlu0 1
    %1251 = vperm.xlu0 %1250, %v151
    %v1252 = vpop.permute.xlu0 %1251
    %1254 = vset.pattern.permute.xlu0 1
    %1255 = vperm.xlu0 %1254, %v152
    %v1256 = vpop.permute.xlu0 %1255
    %1258 = vset.pattern.permute.xlu0 1
    %1259 = vperm.xlu0 %1258, %v153
    %v1260 = vpop.permute.xlu0 %1259
    %1262 = vset.pattern.permute.xlu0 1
    %1263 = vperm.xlu0 %1262, %v154
    %v1264 = vpop.permute.xlu0 %1263
    %1266 = vset.pattern.permute.xlu0 1
    %1267 = vperm.xlu0 %1266, %v155
    %v1268 = vpop.permute.xlu0 %1267
    %1270 = vset.pattern.permute.xlu0 1
    %1271 = vperm.xlu0 %1270, %v156
    %v1272 = vpop.permute.xlu0 %1271
    %1274 = vset.pattern.permute.xlu0 1
    %1275 = vperm.xlu0 %1274, %v157
    %v1276 = vpop.permute.xlu0 %1275
    %1278 = vset.pattern.permute.xlu0 1
    %1279 = vperm.xlu0 %1278, %v158
    %v1280 = vpop.permute.xlu0 %1279
    %1282 = vset.pattern.permute.xlu0 1
    %1283 = vperm.xlu0 %1282, %v159
    %v1284 = vpop.permute.xlu0 %1283
    %1286 = vset.pattern.permute.xlu0 1
    %1287 = vperm.xlu0 %1286, %v160
    %v1288 = vpop.permute.xlu0 %1287
    %1290 = vset.pattern.permute.xlu0 1
    %1291 = vperm.xlu0 %1290, %v161
    %v1292 = vpop.permute.xlu0 %1291
    %1294 = vset.pattern.permute.xlu0 1
    %1295 = vperm.xlu0 %1294, %v162
    %v1296 = vpop.permute.xlu0 %1295
    %1298 = vset.pattern.permute.xlu0 1
    %1299 = vperm.xlu0 %1298, %v163
    %v1300 = vpop.permute.xlu0 %1299
    %1302 = vset.pattern.permute.xlu0 1
    %1303 = vperm.xlu0 %1302, %v164
    %v1304 = vpop.permute.xlu0 %1303
    %1306 = vset.pattern.permute.xlu0 1
    %1307 = vperm.xlu0 %1306, %v165
    %v1308 = vpop.permute.xlu0 %1307
    %1310 = vset.pattern.permute.xlu0 1
    %1311 = vperm.xlu0 %1310, %v166
    %v1312 = vpop.permute.xlu0 %1311
    %1314 = vset.pattern.permute.xlu0 1
    %1315 = vperm.xlu0 %1314, %v167
    %v1316 = vpop.permute.xlu0 %1315
    %1318 = vset.pattern.permute.xlu0 1
    %1319 = vperm.xlu0 %1318, %v168
    %v1320 = vpop.permute.xlu0 %1319
    %1322 = vset.pattern.permute.xlu0 1
    %1323 = vperm.xlu0 %1322, %v169
    %v1324 = vpop.permute.xlu0 %1323
    %1326 = vset.pattern.permute.xlu0 1
    %1327 = vperm.xlu0 %1326, %v170
    %v1328 = vpop.permute.xlu0 %1327
    %1330 = vset.pattern.permute.xlu0 1
    %1331 = vperm.xlu0 %1330, %v171
    %v1332 = vpop.permute.xlu0 %1331
    %1334 = vset.pattern.permute.xlu0 1
    %1335 = vperm.xlu0 %1334, %v172
    %v1336 = vpop.permute.xlu0 %1335
    %1338 = vset.pattern.permute.xlu0 1
    %1339 = vperm.xlu0 %1338, %v173
    %v1340 = vpop.permute.xlu0 %1339
    %1342 = vset.pattern.permute.xlu0 1
    %1343 = vperm.xlu0 %1342, %v174
    %v1344 = vpop.permute.xlu0 %1343
    %1346 = vset.pattern.permute.xlu0 1
    %1347 = vperm.xlu0 %1346, %v175
    %v1348 = vpop.permute.xlu0 %1347
    %1350 = vset.pattern.permute.xlu0 1
    %1351 = vperm.xlu0 %1350, %v176
    %v1352 = vpop.permute.xlu0 %1351
    %1354 = vset.pattern.permute.xlu0 1
    %1355 = vperm.xlu0 %1354, %v177
    %v1356 = vpop.permute.xlu0 %1355
    %1358 = vset.pattern.permute.xlu0 1
    %1359 = vperm.xlu0 %1358, %v178
    %v1360 = vpop.permute.xlu0 %1359
    %1362 = vset.pattern.permute.xlu0 1
    %1363 = vperm.xlu0 %1362, %v179
    %v1364 = vpop.permute.xlu0 %1363
    %1366 = vset.pattern.permute.xlu0 1
    %1367 = vperm.xlu0 %1366, %v180
    %v1368 = vpop.permute.xlu0 %1367
    %1370 = vset.pattern.permute.xlu0 1
    %1371 = vperm.xlu0 %1370, %v181
    %v1372 = vpop.permute.xlu0 %1371
    %1374 = vset.pattern.permute.xlu0 1
    %1375 = vperm.xlu0 %1374, %v182
    %v1376 = vpop.permute.xlu0 %1375
    %1378 = vset.pattern.permute.xlu0 1
    %1379 = vperm.xlu0 %1378, %v183
    %v1380 = vpop.permute.xlu0 %1379
    %1382 = vset.pattern.permute.xlu0 1
    %1383 = vperm.xlu0 %1382, %v184
    %v1384 = vpop.permute.xlu0 %1383
    %1386 = vset.pattern.permute.xlu0 1
    %1387 = vperm.xlu0 %1386, %v185
    %v1388 = vpop.permute.xlu0 %1387
    %1390 = vset.pattern.permute.xlu0 1
    %1391 = vperm.xlu0 %1390, %v186
    %v1392 = vpop.permute.xlu0 %1391
    %1394 = vset.pattern.permute.xlu0 1
    %1395 = vperm.xlu0 %1394, %v187
    %v1396 = vpop.permute.xlu0 %1395
    %1398 = vset.pattern.permute.xlu0 1
    %1399 = vperm.xlu0 %1398, %v188
    %v1400 = vpop.permute.xlu0 %1399
    %1402 = vset.pattern.permute.xlu0 1
    %1403 = vperm.xlu0 %1402, %v189
    %v1404 = vpop.permute.xlu0 %1403
    %1406 = vset.pattern.permute.xlu0 1
    %1407 = vperm.xlu0 %1406, %v190
    %v1408 = vpop.permute.xlu0 %1407
    %1410 = vset.pattern.permute.xlu0 1
    %1411 = vperm.xlu0 %1410, %v191
    %v1412 = vpop.permute.xlu0 %1411
    %1414 = vset.pattern.permute.xlu0 1
    %1415 = vperm.xlu0 %1414, %v192
    %v1416 = vpop.permute.xlu0 %1415
    %1418 = vset.pattern.permute.xlu0 1
    %1419 = vperm.xlu0 %1418, %v193
    %v1420 = vpop.permute.xlu0 %1419
    %1422 = vset.pattern.permute.xlu0 1
    %1423 = vperm.xlu0 %1422, %v194
    %v1424 = vpop.permute.xlu0 %1423
    %1426 = vset.pattern.permute.xlu0 1
    %1427 = vperm.xlu0 %1426, %v195
    %v1428 = vpop.permute.xlu0 %1427
    %1430 = vset.pattern.permute.xlu0 1
    %1431 = vperm.xlu0 %1430, %v196
    %v1432 = vpop.permute.xlu0 %1431
    %1434 = vset.pattern.permute.xlu0 1
    %1435 = vperm.xlu0 %1434, %v197
    %v1436 = vpop.permute.xlu0 %1435
    %1438 = vset.pattern.permute.xlu0 1
    %1439 = vperm.xlu0 %1438, %v198
    %v1440 = vpop.permute.xlu0 %1439
    %1442 = vset.pattern.permute.xlu0 1
    %1443 = vperm.xlu0 %1442, %v199
    %v1444 = vpop.permute.xlu0 %1443
    %1446 = vset.pattern.permute.xlu0 1
    %1447 = vperm.xlu0 %1446, %v200
    %v1448 = vpop.permute.xlu0 %1447
    %1450 = vset.pattern.permute.xlu0 1
    %1451 = vperm.xlu0 %1450, %v201
    %v1452 = vpop.permute.xlu0 %1451
    %1454 = vset.pattern.permute.xlu0 1
    %1455 = vperm.xlu0 %1454, %v202
    %v1456 = vpop.permute.xlu0 %1455
    %1458 = vset.pattern.permute.xlu0 1
    %1459 = vperm.xlu0 %1458, %v203
    %v1460 = vpop.permute.xlu0 %1459
    %1462 = vset.pattern.permute.xlu0 1
    %1463 = vperm.xlu0 %1462, %v204
    %v1464 = vpop.permute.xlu0 %1463
    %1466 = vset.pattern.permute.xlu0 1
    %1467 = vperm.xlu0 %1466, %v205
    %v1468 = vpop.permute.xlu0 %1467
    %1470 = vset.pattern.permute.xlu0 1
    %1471 = vperm.xlu0 %1470, %v206
    %v1472 = vpop.permute.xlu0 %1471
    %1474 = vset.pattern.permute.xlu0 1
    %1475 = vperm.xlu0 %1474, %v207
    %v1476 = vpop.permute.xlu0 %1475
    %1478 = vset.pattern.permute.xlu0 1
    %1479 = vperm.xlu0 %1478, %v208
    %v1480 = vpop.permute.xlu0 %1479
    %1482 = vset.pattern.permute.xlu0 1
    %1483 = vperm.xlu0 %1482, %v209
    %v1484 = vpop.permute.xlu0 %1483
    %1486 = vset.pattern.permute.xlu0 1
    %1487 = vperm.xlu0 %1486, %v210
    %v1488 = vpop.permute.xlu0 %1487
    %1490 = vset.pattern.permute.xlu0 1
    %1491 = vperm.xlu0 %1490, %v211
    %v1492 = vpop.permute.xlu0 %1491
    %1494 = vset.pattern.permute.xlu0 1
    %1495 = vperm.xlu0 %1494, %v212
    %v1496 = vpop.permute.xlu0 %1495
    %v1498 = vlaneseq
    %v1499 = vshrl.u32 %v1498, 7
    %v1500 = vsub.s32 1, %v1499
    %v1501 = vrot.slane %v213, %v1500
    %v1502 = vmul.f32 %v988, %v1501
    %v1503 = vmul.f32 %v992, %v1501
    %v1504 = vmul.f32 %v996, %v1501
    %v1505 = vmul.f32 %v1000, %v1501
    %v1506 = vmul.f32 %v1004, %v1501
    %v1507 = vmul.f32 %v1008, %v1501
    %v1508 = vmul.f32 %v1012, %v1501
    %v1509 = vmul.f32 %v1016, %v1501
    %v1510 = vmul.f32 %v1020, %v1501
    %v1511 = vmul.f32 %v1024, %v1501
    %v1512 = vmul.f32 %v1028, %v1501
    %v1513 = vmul.f32 %v1032, %v1501
    %v1514 = vmul.f32 %v1036, %v1501
    %v1515 = vmul.f32 %v1040, %v1501
    %v1516 = vmul.f32 %v1044, %v1501
    %v1517 = vmul.f32 %v1048, %v1501
    %v1518 = vmul.f32 %v1052, %v1501
    %v1519 = vmul.f32 %v1056, %v1501
    %v1520 = vmul.f32 %v1060, %v1501
    %v1521 = vmul.f32 %v1064, %v1501
    %v1522 = vmul.f32 %v1068, %v1501
    %v1523 = vmul.f32 %v1072, %v1501
    %v1524 = vmul.f32 %v1076, %v1501
    %v1525 = vmul.f32 %v1080, %v1501
    %v1526 = vmul.f32 %v1084, %v1501
    %v1527 = vmul.f32 %v1088, %v1501
    %v1528 = vmul.f32 %v1092, %v1501
    %v1529 = vmul.f32 %v1096, %v1501
    %v1530 = vmul.f32 %v1100, %v1501
    %v1531 = vmul.f32 %v1104, %v1501
    %v1532 = vmul.f32 %v1108, %v1501
    %v1533 = vmul.f32 %v1112, %v1501
    %v1534 = vmul.f32 %v1116, %v1501
    %v1535 = vmul.f32 %v1120, %v1501
    %v1536 = vmul.f32 %v1124, %v1501
    %v1537 = vmul.f32 %v1128, %v1501
    %v1538 = vmul.f32 %v1132, %v1501
    %v1539 = vmul.f32 %v1136, %v1501
    %v1540 = vmul.f32 %v1140, %v1501
    %v1541 = vmul.f32 %v1144, %v1501
    %v1542 = vmul.f32 %v1148, %v1501
    %v1543 = vmul.f32 %v1152, %v1501
    %v1544 = vmul.f32 %v1156, %v1501
    %v1545 = vmul.f32 %v1160, %v1501
    %v1546 = vmul.f32 %v1164, %v1501
    %v1547 = vmul.f32 %v1168, %v1501
    %v1548 = vmul.f32 %v1172, %v1501
    %v1549 = vmul.f32 %v1176, %v1501
    %v1550 = vmul.f32 %v1180, %v1501
    %v1551 = vmul.f32 %v1184, %v1501
    %v1552 = vmul.f32 %v1188, %v1501
    %v1553 = vmul.f32 %v1192, %v1501
    %v1554 = vmul.f32 %v1196, %v1501
    %v1555 = vmul.f32 %v1200, %v1501
    %v1556 = vmul.f32 %v1204, %v1501
    %v1557 = vmul.f32 %v1208, %v1501
    %v1558 = vmul.f32 %v1212, %v1501
    %v1559 = vmul.f32 %v1216, %v1501
    %v1560 = vmul.f32 %v1220, %v1501
    %v1561 = vmul.f32 %v1224, %v1501
    %v1562 = vmul.f32 %v1228, %v1501
    %v1563 = vmul.f32 %v1232, %v1501
    %v1564 = vmul.f32 %v1236, %v1501
    %v1565 = vmul.f32 %v1240, %v1501
    %v1566 = vmul.f32 %v1244, %v1501
    %v1567 = vmul.f32 %v1248, %v1501
    %v1568 = vmul.f32 %v1252, %v1501
    %v1569 = vmul.f32 %v1256, %v1501
    %v1570 = vmul.f32 %v1260, %v1501
    %v1571 = vmul.f32 %v1264, %v1501
    %v1572 = vmul.f32 %v1268, %v1501
    %v1573 = vmul.f32 %v1272, %v1501
    %v1574 = vmul.f32 %v1276, %v1501
    %v1575 = vmul.f32 %v1280, %v1501
    %v1576 = vmul.f32 %v1284, %v1501
    %v1577 = vmul.f32 %v1288, %v1501
    %v1578 = vmul.f32 %v1292, %v1501
    %v1579 = vmul.f32 %v1296, %v1501
    %v1580 = vmul.f32 %v1300, %v1501
    %v1581 = vmul.f32 %v1304, %v1501
    %v1582 = vmul.f32 %v1308, %v1501
    %v1583 = vmul.f32 %v1312, %v1501
    %v1584 = vmul.f32 %v1316, %v1501
    %v1585 = vmul.f32 %v1320, %v1501
    %v1586 = vmul.f32 %v1324, %v1501
    %v1587 = vmul.f32 %v1328, %v1501
    %v1588 = vmul.f32 %v1332, %v1501
    %v1589 = vmul.f32 %v1336, %v1501
    %v1590 = vmul.f32 %v1340, %v1501
    %v1591 = vmul.f32 %v1344, %v1501
    %v1592 = vmul.f32 %v1348, %v1501
    %v1593 = vmul.f32 %v1352, %v1501
    %v1594 = vmul.f32 %v1356, %v1501
    %v1595 = vmul.f32 %v1360, %v1501
    %v1596 = vmul.f32 %v1364, %v1501
    %v1597 = vmul.f32 %v1368, %v1501
    %v1598 = vmul.f32 %v1372, %v1501
    %v1599 = vmul.f32 %v1376, %v1501
    %v1600 = vmul.f32 %v1380, %v1501
    %v1601 = vmul.f32 %v1384, %v1501
    %v1602 = vmul.f32 %v1388, %v1501
    %v1603 = vmul.f32 %v1392, %v1501
    %v1604 = vmul.f32 %v1396, %v1501
    %v1605 = vmul.f32 %v1400, %v1501
    %v1606 = vmul.f32 %v1404, %v1501
    %v1607 = vmul.f32 %v1408, %v1501
    %v1608 = vmul.f32 %v1412, %v1501
    %v1609 = vmul.f32 %v1416, %v1501
    %v1610 = vmul.f32 %v1420, %v1501
    %v1611 = vmul.f32 %v1424, %v1501
    %v1612 = vmul.f32 %v1428, %v1501
    %v1613 = vmul.f32 %v1432, %v1501
    %v1614 = vmul.f32 %v1436, %v1501
    %v1615 = vmul.f32 %v1440, %v1501
    %v1616 = vmul.f32 %v1444, %v1501
    %v1617 = vmul.f32 %v1448, %v1501
    %v1618 = vmul.f32 %v1452, %v1501
    %v1619 = vmul.f32 %v1456, %v1501
    %v1620 = vmul.f32 %v1460, %v1501
    %v1621 = vmul.f32 %v1464, %v1501
    %v1622 = vmul.f32 %v1468, %v1501
    %v1623 = vmul.f32 %v1472, %v1501
    %v1624 = vmul.f32 %v1476, %v1501
    %v1625 = vmul.f32 %v1480, %v1501
    %v1626 = vmul.f32 %v1484, %v1501
    %v1627 = vmul.f32 %v1488, %v1501
    %v1628 = vmul.f32 %v1492, %v1501
    %v1629 = vmul.f32 %v1496, %v1501
    %v1630 = vadd.f32 %v858, %v1502
    %v1631 = vadd.f32 %v859, %v1503
    %v1632 = vadd.f32 %v860, %v1504
    %v1633 = vadd.f32 %v861, %v1505
    %v1634 = vadd.f32 %v862, %v1506
    %v1635 = vadd.f32 %v863, %v1507
    %v1636 = vadd.f32 %v864, %v1508
    %v1637 = vadd.f32 %v865, %v1509
    %v1638 = vadd.f32 %v866, %v1510
    %v1639 = vadd.f32 %v867, %v1511
    %v1640 = vadd.f32 %v868, %v1512
    %v1641 = vadd.f32 %v869, %v1513
    %v1642 = vadd.f32 %v870, %v1514
    %v1643 = vadd.f32 %v871, %v1515
    %v1644 = vadd.f32 %v872, %v1516
    %v1645 = vadd.f32 %v873, %v1517
    %v1646 = vadd.f32 %v874, %v1518
    %v1647 = vadd.f32 %v875, %v1519
    %v1648 = vadd.f32 %v876, %v1520
    %v1649 = vadd.f32 %v877, %v1521
    %v1650 = vadd.f32 %v878, %v1522
    %v1651 = vadd.f32 %v879, %v1523
    %v1652 = vadd.f32 %v880, %v1524
    %v1653 = vadd.f32 %v881, %v1525
    %v1654 = vadd.f32 %v882, %v1526
    %v1655 = vadd.f32 %v883, %v1527
    %v1656 = vadd.f32 %v884, %v1528
    %v1657 = vadd.f32 %v885, %v1529
    %v1658 = vadd.f32 %v886, %v1530
    %v1659 = vadd.f32 %v887, %v1531
    %v1660 = vadd.f32 %v888, %v1532
    %v1661 = vadd.f32 %v889, %v1533
    %v1662 = vadd.f32 %v890, %v1534
    %v1663 = vadd.f32 %v891, %v1535
    %v1664 = vadd.f32 %v892, %v1536
    %v1665 = vadd.f32 %v893, %v1537
    %v1666 = vadd.f32 %v894, %v1538
    %v1667 = vadd.f32 %v895, %v1539
    %v1668 = vadd.f32 %v896, %v1540
    %v1669 = vadd.f32 %v897, %v1541
    %v1670 = vadd.f32 %v898, %v1542
    %v1671 = vadd.f32 %v899, %v1543
    %v1672 = vadd.f32 %v900, %v1544
    %v1673 = vadd.f32 %v901, %v1545
    %v1674 = vadd.f32 %v902, %v1546
    %v1675 = vadd.f32 %v903, %v1547
    %v1676 = vadd.f32 %v904, %v1548
    %v1677 = vadd.f32 %v905, %v1549
    %v1678 = vadd.f32 %v906, %v1550
    %v1679 = vadd.f32 %v907, %v1551
    %v1680 = vadd.f32 %v908, %v1552
    %v1681 = vadd.f32 %v909, %v1553
    %v1682 = vadd.f32 %v910, %v1554
    %v1683 = vadd.f32 %v911, %v1555
    %v1684 = vadd.f32 %v912, %v1556
    %v1685 = vadd.f32 %v913, %v1557
    %v1686 = vadd.f32 %v914, %v1558
    %v1687 = vadd.f32 %v915, %v1559
    %v1688 = vadd.f32 %v916, %v1560
    %v1689 = vadd.f32 %v917, %v1561
    %v1690 = vadd.f32 %v918, %v1562
    %v1691 = vadd.f32 %v919, %v1563
    %v1692 = vadd.f32 %v920, %v1564
    %v1693 = vadd.f32 %v921, %v1565
    %v1694 = vadd.f32 %v922, %v1566
    %v1695 = vadd.f32 %v923, %v1567
    %v1696 = vadd.f32 %v924, %v1568
    %v1697 = vadd.f32 %v925, %v1569
    %v1698 = vadd.f32 %v926, %v1570
    %v1699 = vadd.f32 %v927, %v1571
    %v1700 = vadd.f32 %v928, %v1572
    %v1701 = vadd.f32 %v929, %v1573
    %v1702 = vadd.f32 %v930, %v1574
    %v1703 = vadd.f32 %v931, %v1575
    %v1704 = vadd.f32 %v932, %v1576
    %v1705 = vadd.f32 %v933, %v1577
    %v1706 = vadd.f32 %v934, %v1578
    %v1707 = vadd.f32 %v935, %v1579
    %v1708 = vadd.f32 %v936, %v1580
    %v1709 = vadd.f32 %v937, %v1581
    %v1710 = vadd.f32 %v938, %v1582
    %v1711 = vadd.f32 %v939, %v1583
    %v1712 = vadd.f32 %v940, %v1584
    %v1713 = vadd.f32 %v941, %v1585
    %v1714 = vadd.f32 %v942, %v1586
    %v1715 = vadd.f32 %v943, %v1587
    %v1716 = vadd.f32 %v944, %v1588
    %v1717 = vadd.f32 %v945, %v1589
    %v1718 = vadd.f32 %v946, %v1590
    %v1719 = vadd.f32 %v947, %v1591
    %v1720 = vadd.f32 %v948, %v1592
    %v1721 = vadd.f32 %v949, %v1593
    %v1722 = vadd.f32 %v950, %v1594
    %v1723 = vadd.f32 %v951, %v1595
    %v1724 = vadd.f32 %v952, %v1596
    %v1725 = vadd.f32 %v953, %v1597
    %v1726 = vadd.f32 %v954, %v1598
    %v1727 = vadd.f32 %v955, %v1599
    %v1728 = vadd.f32 %v956, %v1600
    %v1729 = vadd.f32 %v957, %v1601
    %v1730 = vadd.f32 %v958, %v1602
    %v1731 = vadd.f32 %v959, %v1603
    %v1732 = vadd.f32 %v960, %v1604
    %v1733 = vadd.f32 %v961, %v1605
    %v1734 = vadd.f32 %v962, %v1606
    %v1735 = vadd.f32 %v963, %v1607
    %v1736 = vadd.f32 %v964, %v1608
    %v1737 = vadd.f32 %v965, %v1609
    %v1738 = vadd.f32 %v966, %v1610
    %v1739 = vadd.f32 %v967, %v1611
    %v1740 = vadd.f32 %v968, %v1612
    %v1741 = vadd.f32 %v969, %v1613
    %v1742 = vadd.f32 %v970, %v1614
    %v1743 = vadd.f32 %v971, %v1615
    %v1744 = vadd.f32 %v972, %v1616
    %v1745 = vadd.f32 %v973, %v1617
    %v1746 = vadd.f32 %v974, %v1618
    %v1747 = vadd.f32 %v975, %v1619
    %v1748 = vadd.f32 %v976, %v1620
    %v1749 = vadd.f32 %v977, %v1621
    %v1750 = vadd.f32 %v978, %v1622
    %v1751 = vadd.f32 %v979, %v1623
    %v1752 = vadd.f32 %v980, %v1624
    %v1753 = vadd.f32 %v981, %v1625
    %v1754 = vadd.f32 %v982, %v1626
    %v1755 = vadd.f32 %v983, %v1627
    %v1756 = vadd.f32 %v984, %v1628
    %v1757 = vadd.f32 %v985, %v1629
    %1758 = vset.pattern.permute.xlu0 2
    %1759 = vperm.xlu0 %1758, %v85
    %v1760 = vpop.permute.xlu0 %1759
    %1762 = vset.pattern.permute.xlu0 2
    %1763 = vperm.xlu0 %1762, %v86
    %v1764 = vpop.permute.xlu0 %1763
    %1766 = vset.pattern.permute.xlu0 2
    %1767 = vperm.xlu0 %1766, %v87
    %v1768 = vpop.permute.xlu0 %1767
    %1770 = vset.pattern.permute.xlu0 2
    %1771 = vperm.xlu0 %1770, %v88
    %v1772 = vpop.permute.xlu0 %1771
    %1774 = vset.pattern.permute.xlu0 2
    %1775 = vperm.xlu0 %1774, %v89
    %v1776 = vpop.permute.xlu0 %1775
    %1778 = vset.pattern.permute.xlu0 2
    %1779 = vperm.xlu0 %1778, %v90
    %v1780 = vpop.permute.xlu0 %1779
    %1782 = vset.pattern.permute.xlu0 2
    %1783 = vperm.xlu0 %1782, %v91
    %v1784 = vpop.permute.xlu0 %1783
    %1786 = vset.pattern.permute.xlu0 2
    %1787 = vperm.xlu0 %1786, %v92
    %v1788 = vpop.permute.xlu0 %1787
    %1790 = vset.pattern.permute.xlu0 2
    %1791 = vperm.xlu0 %1790, %v93
    %v1792 = vpop.permute.xlu0 %1791
    %1794 = vset.pattern.permute.xlu0 2
    %1795 = vperm.xlu0 %1794, %v94
    %v1796 = vpop.permute.xlu0 %1795
    %1798 = vset.pattern.permute.xlu0 2
    %1799 = vperm.xlu0 %1798, %v95
    %v1800 = vpop.permute.xlu0 %1799
    %1802 = vset.pattern.permute.xlu0 2
    %1803 = vperm.xlu0 %1802, %v96
    %v1804 = vpop.permute.xlu0 %1803
    %1806 = vset.pattern.permute.xlu0 2
    %1807 = vperm.xlu0 %1806, %v97
    %v1808 = vpop.permute.xlu0 %1807
    %1810 = vset.pattern.permute.xlu0 2
    %1811 = vperm.xlu0 %1810, %v98
    %v1812 = vpop.permute.xlu0 %1811
    %1814 = vset.pattern.permute.xlu0 2
    %1815 = vperm.xlu0 %1814, %v99
    %v1816 = vpop.permute.xlu0 %1815
    %1818 = vset.pattern.permute.xlu0 2
    %1819 = vperm.xlu0 %1818, %v100
    %v1820 = vpop.permute.xlu0 %1819
    %1822 = vset.pattern.permute.xlu0 2
    %1823 = vperm.xlu0 %1822, %v101
    %v1824 = vpop.permute.xlu0 %1823
    %1826 = vset.pattern.permute.xlu0 2
    %1827 = vperm.xlu0 %1826, %v102
    %v1828 = vpop.permute.xlu0 %1827
    %1830 = vset.pattern.permute.xlu0 2
    %1831 = vperm.xlu0 %1830, %v103
    %v1832 = vpop.permute.xlu0 %1831
    %1834 = vset.pattern.permute.xlu0 2
    %1835 = vperm.xlu0 %1834, %v104
    %v1836 = vpop.permute.xlu0 %1835
    %1838 = vset.pattern.permute.xlu0 2
    %1839 = vperm.xlu0 %1838, %v105
    %v1840 = vpop.permute.xlu0 %1839
    %1842 = vset.pattern.permute.xlu0 2
    %1843 = vperm.xlu0 %1842, %v106
    %v1844 = vpop.permute.xlu0 %1843
    %1846 = vset.pattern.permute.xlu0 2
    %1847 = vperm.xlu0 %1846, %v107
    %v1848 = vpop.permute.xlu0 %1847
    %1850 = vset.pattern.permute.xlu0 2
    %1851 = vperm.xlu0 %1850, %v108
    %v1852 = vpop.permute.xlu0 %1851
    %1854 = vset.pattern.permute.xlu0 2
    %1855 = vperm.xlu0 %1854, %v109
    %v1856 = vpop.permute.xlu0 %1855
    %1858 = vset.pattern.permute.xlu0 2
    %1859 = vperm.xlu0 %1858, %v110
    %v1860 = vpop.permute.xlu0 %1859
    %1862 = vset.pattern.permute.xlu0 2
    %1863 = vperm.xlu0 %1862, %v111
    %v1864 = vpop.permute.xlu0 %1863
    %1866 = vset.pattern.permute.xlu0 2
    %1867 = vperm.xlu0 %1866, %v112
    %v1868 = vpop.permute.xlu0 %1867
    %1870 = vset.pattern.permute.xlu0 2
    %1871 = vperm.xlu0 %1870, %v113
    %v1872 = vpop.permute.xlu0 %1871
    %1874 = vset.pattern.permute.xlu0 2
    %1875 = vperm.xlu0 %1874, %v114
    %v1876 = vpop.permute.xlu0 %1875
    %1878 = vset.pattern.permute.xlu0 2
    %1879 = vperm.xlu0 %1878, %v115
    %v1880 = vpop.permute.xlu0 %1879
    %1882 = vset.pattern.permute.xlu0 2
    %1883 = vperm.xlu0 %1882, %v116
    %v1884 = vpop.permute.xlu0 %1883
    %1886 = vset.pattern.permute.xlu0 2
    %1887 = vperm.xlu0 %1886, %v117
    %v1888 = vpop.permute.xlu0 %1887
    %1890 = vset.pattern.permute.xlu0 2
    %1891 = vperm.xlu0 %1890, %v118
    %v1892 = vpop.permute.xlu0 %1891
    %1894 = vset.pattern.permute.xlu0 2
    %1895 = vperm.xlu0 %1894, %v119
    %v1896 = vpop.permute.xlu0 %1895
    %1898 = vset.pattern.permute.xlu0 2
    %1899 = vperm.xlu0 %1898, %v120
    %v1900 = vpop.permute.xlu0 %1899
    %1902 = vset.pattern.permute.xlu0 2
    %1903 = vperm.xlu0 %1902, %v121
    %v1904 = vpop.permute.xlu0 %1903
    %1906 = vset.pattern.permute.xlu0 2
    %1907 = vperm.xlu0 %1906, %v122
    %v1908 = vpop.permute.xlu0 %1907
    %1910 = vset.pattern.permute.xlu0 2
    %1911 = vperm.xlu0 %1910, %v123
    %v1912 = vpop.permute.xlu0 %1911
    %1914 = vset.pattern.permute.xlu0 2
    %1915 = vperm.xlu0 %1914, %v124
    %v1916 = vpop.permute.xlu0 %1915
    %1918 = vset.pattern.permute.xlu0 2
    %1919 = vperm.xlu0 %1918, %v125
    %v1920 = vpop.permute.xlu0 %1919
    %1922 = vset.pattern.permute.xlu0 2
    %1923 = vperm.xlu0 %1922, %v126
    %v1924 = vpop.permute.xlu0 %1923
    %1926 = vset.pattern.permute.xlu0 2
    %1927 = vperm.xlu0 %1926, %v127
    %v1928 = vpop.permute.xlu0 %1927
    %1930 = vset.pattern.permute.xlu0 2
    %1931 = vperm.xlu0 %1930, %v128
    %v1932 = vpop.permute.xlu0 %1931
    %1934 = vset.pattern.permute.xlu0 2
    %1935 = vperm.xlu0 %1934, %v129
    %v1936 = vpop.permute.xlu0 %1935
    %1938 = vset.pattern.permute.xlu0 2
    %1939 = vperm.xlu0 %1938, %v130
    %v1940 = vpop.permute.xlu0 %1939
    %1942 = vset.pattern.permute.xlu0 2
    %1943 = vperm.xlu0 %1942, %v131
    %v1944 = vpop.permute.xlu0 %1943
    %1946 = vset.pattern.permute.xlu0 2
    %1947 = vperm.xlu0 %1946, %v132
    %v1948 = vpop.permute.xlu0 %1947
    %1950 = vset.pattern.permute.xlu0 2
    %1951 = vperm.xlu0 %1950, %v133
    %v1952 = vpop.permute.xlu0 %1951
    %1954 = vset.pattern.permute.xlu0 2
    %1955 = vperm.xlu0 %1954, %v134
    %v1956 = vpop.permute.xlu0 %1955
    %1958 = vset.pattern.permute.xlu0 2
    %1959 = vperm.xlu0 %1958, %v135
    %v1960 = vpop.permute.xlu0 %1959
    %1962 = vset.pattern.permute.xlu0 2
    %1963 = vperm.xlu0 %1962, %v136
    %v1964 = vpop.permute.xlu0 %1963
    %1966 = vset.pattern.permute.xlu0 2
    %1967 = vperm.xlu0 %1966, %v137
    %v1968 = vpop.permute.xlu0 %1967
    %1970 = vset.pattern.permute.xlu0 2
    %1971 = vperm.xlu0 %1970, %v138
    %v1972 = vpop.permute.xlu0 %1971
    %1974 = vset.pattern.permute.xlu0 2
    %1975 = vperm.xlu0 %1974, %v139
    %v1976 = vpop.permute.xlu0 %1975
    %1978 = vset.pattern.permute.xlu0 2
    %1979 = vperm.xlu0 %1978, %v140
    %v1980 = vpop.permute.xlu0 %1979
    %1982 = vset.pattern.permute.xlu0 2
    %1983 = vperm.xlu0 %1982, %v141
    %v1984 = vpop.permute.xlu0 %1983
    %1986 = vset.pattern.permute.xlu0 2
    %1987 = vperm.xlu0 %1986, %v142
    %v1988 = vpop.permute.xlu0 %1987
    %1990 = vset.pattern.permute.xlu0 2
    %1991 = vperm.xlu0 %1990, %v143
    %v1992 = vpop.permute.xlu0 %1991
    %1994 = vset.pattern.permute.xlu0 2
    %1995 = vperm.xlu0 %1994, %v144
    %v1996 = vpop.permute.xlu0 %1995
    %1998 = vset.pattern.permute.xlu0 2
    %1999 = vperm.xlu0 %1998, %v145
    %v2000 = vpop.permute.xlu0 %1999
    %2002 = vset.pattern.permute.xlu0 2
    %2003 = vperm.xlu0 %2002, %v146
    %v2004 = vpop.permute.xlu0 %2003
    %2006 = vset.pattern.permute.xlu0 2
    %2007 = vperm.xlu0 %2006, %v147
    %v2008 = vpop.permute.xlu0 %2007
    %2010 = vset.pattern.permute.xlu0 2
    %2011 = vperm.xlu0 %2010, %v148
    %v2012 = vpop.permute.xlu0 %2011
    %2014 = vset.pattern.permute.xlu0 2
    %2015 = vperm.xlu0 %2014, %v149
    %v2016 = vpop.permute.xlu0 %2015
    %2018 = vset.pattern.permute.xlu0 2
    %2019 = vperm.xlu0 %2018, %v150
    %v2020 = vpop.permute.xlu0 %2019
    %2022 = vset.pattern.permute.xlu0 2
    %2023 = vperm.xlu0 %2022, %v151
    %v2024 = vpop.permute.xlu0 %2023
    %2026 = vset.pattern.permute.xlu0 2
    %2027 = vperm.xlu0 %2026, %v152
    %v2028 = vpop.permute.xlu0 %2027
    %2030 = vset.pattern.permute.xlu0 2
    %2031 = vperm.xlu0 %2030, %v153
    %v2032 = vpop.permute.xlu0 %2031
    %2034 = vset.pattern.permute.xlu0 2
    %2035 = vperm.xlu0 %2034, %v154
    %v2036 = vpop.permute.xlu0 %2035
    %2038 = vset.pattern.permute.xlu0 2
    %2039 = vperm.xlu0 %2038, %v155
    %v2040 = vpop.permute.xlu0 %2039
    %2042 = vset.pattern.permute.xlu0 2
    %2043 = vperm.xlu0 %2042, %v156
    %v2044 = vpop.permute.xlu0 %2043
    %2046 = vset.pattern.permute.xlu0 2
    %2047 = vperm.xlu0 %2046, %v157
    %v2048 = vpop.permute.xlu0 %2047
    %2050 = vset.pattern.permute.xlu0 2
    %2051 = vperm.xlu0 %2050, %v158
    %v2052 = vpop.permute.xlu0 %2051
    %2054 = vset.pattern.permute.xlu0 2
    %2055 = vperm.xlu0 %2054, %v159
    %v2056 = vpop.permute.xlu0 %2055
    %2058 = vset.pattern.permute.xlu0 2
    %2059 = vperm.xlu0 %2058, %v160
    %v2060 = vpop.permute.xlu0 %2059
    %2062 = vset.pattern.permute.xlu0 2
    %2063 = vperm.xlu0 %2062, %v161
    %v2064 = vpop.permute.xlu0 %2063
    %2066 = vset.pattern.permute.xlu0 2
    %2067 = vperm.xlu0 %2066, %v162
    %v2068 = vpop.permute.xlu0 %2067
    %2070 = vset.pattern.permute.xlu0 2
    %2071 = vperm.xlu0 %2070, %v163
    %v2072 = vpop.permute.xlu0 %2071
    %2074 = vset.pattern.permute.xlu0 2
    %2075 = vperm.xlu0 %2074, %v164
    %v2076 = vpop.permute.xlu0 %2075
    %2078 = vset.pattern.permute.xlu0 2
    %2079 = vperm.xlu0 %2078, %v165
    %v2080 = vpop.permute.xlu0 %2079
    %2082 = vset.pattern.permute.xlu0 2
    %2083 = vperm.xlu0 %2082, %v166
    %v2084 = vpop.permute.xlu0 %2083
    %2086 = vset.pattern.permute.xlu0 2
    %2087 = vperm.xlu0 %2086, %v167
    %v2088 = vpop.permute.xlu0 %2087
    %2090 = vset.pattern.permute.xlu0 2
    %2091 = vperm.xlu0 %2090, %v168
    %v2092 = vpop.permute.xlu0 %2091
    %2094 = vset.pattern.permute.xlu0 2
    %2095 = vperm.xlu0 %2094, %v169
    %v2096 = vpop.permute.xlu0 %2095
    %2098 = vset.pattern.permute.xlu0 2
    %2099 = vperm.xlu0 %2098, %v170
    %v2100 = vpop.permute.xlu0 %2099
    %2102 = vset.pattern.permute.xlu0 2
    %2103 = vperm.xlu0 %2102, %v171
    %v2104 = vpop.permute.xlu0 %2103
    %2106 = vset.pattern.permute.xlu0 2
    %2107 = vperm.xlu0 %2106, %v172
    %v2108 = vpop.permute.xlu0 %2107
    %2110 = vset.pattern.permute.xlu0 2
    %2111 = vperm.xlu0 %2110, %v173
    %v2112 = vpop.permute.xlu0 %2111
    %2114 = vset.pattern.permute.xlu0 2
    %2115 = vperm.xlu0 %2114, %v174
    %v2116 = vpop.permute.xlu0 %2115
    %2118 = vset.pattern.permute.xlu0 2
    %2119 = vperm.xlu0 %2118, %v175
    %v2120 = vpop.permute.xlu0 %2119
    %2122 = vset.pattern.permute.xlu0 2
    %2123 = vperm.xlu0 %2122, %v176
    %v2124 = vpop.permute.xlu0 %2123
    %2126 = vset.pattern.permute.xlu0 2
    %2127 = vperm.xlu0 %2126, %v177
    %v2128 = vpop.permute.xlu0 %2127
    %2130 = vset.pattern.permute.xlu0 2
    %2131 = vperm.xlu0 %2130, %v178
    %v2132 = vpop.permute.xlu0 %2131
    %2134 = vset.pattern.permute.xlu0 2
    %2135 = vperm.xlu0 %2134, %v179
    %v2136 = vpop.permute.xlu0 %2135
    %2138 = vset.pattern.permute.xlu0 2
    %2139 = vperm.xlu0 %2138, %v180
    %v2140 = vpop.permute.xlu0 %2139
    %2142 = vset.pattern.permute.xlu0 2
    %2143 = vperm.xlu0 %2142, %v181
    %v2144 = vpop.permute.xlu0 %2143
    %2146 = vset.pattern.permute.xlu0 2
    %2147 = vperm.xlu0 %2146, %v182
    %v2148 = vpop.permute.xlu0 %2147
    %2150 = vset.pattern.permute.xlu0 2
    %2151 = vperm.xlu0 %2150, %v183
    %v2152 = vpop.permute.xlu0 %2151
    %2154 = vset.pattern.permute.xlu0 2
    %2155 = vperm.xlu0 %2154, %v184
    %v2156 = vpop.permute.xlu0 %2155
    %2158 = vset.pattern.permute.xlu0 2
    %2159 = vperm.xlu0 %2158, %v185
    %v2160 = vpop.permute.xlu0 %2159
    %2162 = vset.pattern.permute.xlu0 2
    %2163 = vperm.xlu0 %2162, %v186
    %v2164 = vpop.permute.xlu0 %2163
    %2166 = vset.pattern.permute.xlu0 2
    %2167 = vperm.xlu0 %2166, %v187
    %v2168 = vpop.permute.xlu0 %2167
    %2170 = vset.pattern.permute.xlu0 2
    %2171 = vperm.xlu0 %2170, %v188
    %v2172 = vpop.permute.xlu0 %2171
    %2174 = vset.pattern.permute.xlu0 2
    %2175 = vperm.xlu0 %2174, %v189
    %v2176 = vpop.permute.xlu0 %2175
    %2178 = vset.pattern.permute.xlu0 2
    %2179 = vperm.xlu0 %2178, %v190
    %v2180 = vpop.permute.xlu0 %2179
    %2182 = vset.pattern.permute.xlu0 2
    %2183 = vperm.xlu0 %2182, %v191
    %v2184 = vpop.permute.xlu0 %2183
    %2186 = vset.pattern.permute.xlu0 2
    %2187 = vperm.xlu0 %2186, %v192
    %v2188 = vpop.permute.xlu0 %2187
    %2190 = vset.pattern.permute.xlu0 2
    %2191 = vperm.xlu0 %2190, %v193
    %v2192 = vpop.permute.xlu0 %2191
    %2194 = vset.pattern.permute.xlu0 2
    %2195 = vperm.xlu0 %2194, %v194
    %v2196 = vpop.permute.xlu0 %2195
    %2198 = vset.pattern.permute.xlu0 2
    %2199 = vperm.xlu0 %2198, %v195
    %v2200 = vpop.permute.xlu0 %2199
    %2202 = vset.pattern.permute.xlu0 2
    %2203 = vperm.xlu0 %2202, %v196
    %v2204 = vpop.permute.xlu0 %2203
    %2206 = vset.pattern.permute.xlu0 2
    %2207 = vperm.xlu0 %2206, %v197
    %v2208 = vpop.permute.xlu0 %2207
    %2210 = vset.pattern.permute.xlu0 2
    %2211 = vperm.xlu0 %2210, %v198
    %v2212 = vpop.permute.xlu0 %2211
    %2214 = vset.pattern.permute.xlu0 2
    %2215 = vperm.xlu0 %2214, %v199
    %v2216 = vpop.permute.xlu0 %2215
    %2218 = vset.pattern.permute.xlu0 2
    %2219 = vperm.xlu0 %2218, %v200
    %v2220 = vpop.permute.xlu0 %2219
    %2222 = vset.pattern.permute.xlu0 2
    %2223 = vperm.xlu0 %2222, %v201
    %v2224 = vpop.permute.xlu0 %2223
    %2226 = vset.pattern.permute.xlu0 2
    %2227 = vperm.xlu0 %2226, %v202
    %v2228 = vpop.permute.xlu0 %2227
    %2230 = vset.pattern.permute.xlu0 2
    %2231 = vperm.xlu0 %2230, %v203
    %v2232 = vpop.permute.xlu0 %2231
    %2234 = vset.pattern.permute.xlu0 2
    %2235 = vperm.xlu0 %2234, %v204
    %v2236 = vpop.permute.xlu0 %2235
    %2238 = vset.pattern.permute.xlu0 2
    %2239 = vperm.xlu0 %2238, %v205
    %v2240 = vpop.permute.xlu0 %2239
    %2242 = vset.pattern.permute.xlu0 2
    %2243 = vperm.xlu0 %2242, %v206
    %v2244 = vpop.permute.xlu0 %2243
    %2246 = vset.pattern.permute.xlu0 2
    %2247 = vperm.xlu0 %2246, %v207
    %v2248 = vpop.permute.xlu0 %2247
    %2250 = vset.pattern.permute.xlu0 2
    %2251 = vperm.xlu0 %2250, %v208
    %v2252 = vpop.permute.xlu0 %2251
    %2254 = vset.pattern.permute.xlu0 2
    %2255 = vperm.xlu0 %2254, %v209
    %v2256 = vpop.permute.xlu0 %2255
    %2258 = vset.pattern.permute.xlu0 2
    %2259 = vperm.xlu0 %2258, %v210
    %v2260 = vpop.permute.xlu0 %2259
    %2262 = vset.pattern.permute.xlu0 2
    %2263 = vperm.xlu0 %2262, %v211
    %v2264 = vpop.permute.xlu0 %2263
    %2266 = vset.pattern.permute.xlu0 2
    %2267 = vperm.xlu0 %2266, %v212
    %v2268 = vpop.permute.xlu0 %2267
    %v2270 = vlaneseq
    %v2271 = vshrl.u32 %v2270, 7
    %v2272 = vsub.s32 2, %v2271
    %v2273 = vrot.slane %v213, %v2272
    %v2274 = vmul.f32 %v1760, %v2273
    %v2275 = vmul.f32 %v1764, %v2273
    %v2276 = vmul.f32 %v1768, %v2273
    %v2277 = vmul.f32 %v1772, %v2273
    %v2278 = vmul.f32 %v1776, %v2273
    %v2279 = vmul.f32 %v1780, %v2273
    %v2280 = vmul.f32 %v1784, %v2273
    %v2281 = vmul.f32 %v1788, %v2273
    %v2282 = vmul.f32 %v1792, %v2273
    %v2283 = vmul.f32 %v1796, %v2273
    %v2284 = vmul.f32 %v1800, %v2273
    %v2285 = vmul.f32 %v1804, %v2273
    %v2286 = vmul.f32 %v1808, %v2273
    %v2287 = vmul.f32 %v1812, %v2273
    %v2288 = vmul.f32 %v1816, %v2273
    %v2289 = vmul.f32 %v1820, %v2273
    %v2290 = vmul.f32 %v1824, %v2273
    %v2291 = vmul.f32 %v1828, %v2273
    %v2292 = vmul.f32 %v1832, %v2273
    %v2293 = vmul.f32 %v1836, %v2273
    %v2294 = vmul.f32 %v1840, %v2273
    %v2295 = vmul.f32 %v1844, %v2273
    %v2296 = vmul.f32 %v1848, %v2273
    %v2297 = vmul.f32 %v1852, %v2273
    %v2298 = vmul.f32 %v1856, %v2273
    %v2299 = vmul.f32 %v1860, %v2273
    %v2300 = vmul.f32 %v1864, %v2273
    %v2301 = vmul.f32 %v1868, %v2273
    %v2302 = vmul.f32 %v1872, %v2273
    %v2303 = vmul.f32 %v1876, %v2273
    %v2304 = vmul.f32 %v1880, %v2273
    %v2305 = vmul.f32 %v1884, %v2273
    %v2306 = vmul.f32 %v1888, %v2273
    %v2307 = vmul.f32 %v1892, %v2273
    %v2308 = vmul.f32 %v1896, %v2273
    %v2309 = vmul.f32 %v1900, %v2273
    %v2310 = vmul.f32 %v1904, %v2273
    %v2311 = vmul.f32 %v1908, %v2273
    %v2312 = vmul.f32 %v1912, %v2273
    %v2313 = vmul.f32 %v1916, %v2273
    %v2314 = vmul.f32 %v1920, %v2273
    %v2315 = vmul.f32 %v1924, %v2273
    %v2316 = vmul.f32 %v1928, %v2273
    %v2317 = vmul.f32 %v1932, %v2273
    %v2318 = vmul.f32 %v1936, %v2273
    %v2319 = vmul.f32 %v1940, %v2273
    %v2320 = vmul.f32 %v1944, %v2273
    %v2321 = vmul.f32 %v1948, %v2273
    %v2322 = vmul.f32 %v1952, %v2273
    %v2323 = vmul.f32 %v1956, %v2273
    %v2324 = vmul.f32 %v1960, %v2273
    %v2325 = vmul.f32 %v1964, %v2273
    %v2326 = vmul.f32 %v1968, %v2273
    %v2327 = vmul.f32 %v1972, %v2273
    %v2328 = vmul.f32 %v1976, %v2273
    %v2329 = vmul.f32 %v1980, %v2273
    %v2330 = vmul.f32 %v1984, %v2273
    %v2331 = vmul.f32 %v1988, %v2273
    %v2332 = vmul.f32 %v1992, %v2273
    %v2333 = vmul.f32 %v1996, %v2273
    %v2334 = vmul.f32 %v2000, %v2273
    %v2335 = vmul.f32 %v2004, %v2273
    %v2336 = vmul.f32 %v2008, %v2273
    %v2337 = vmul.f32 %v2012, %v2273
    %v2338 = vmul.f32 %v2016, %v2273
    %v2339 = vmul.f32 %v2020, %v2273
    %v2340 = vmul.f32 %v2024, %v2273
    %v2341 = vmul.f32 %v2028, %v2273
    %v2342 = vmul.f32 %v2032, %v2273
    %v2343 = vmul.f32 %v2036, %v2273
    %v2344 = vmul.f32 %v2040, %v2273
    %v2345 = vmul.f32 %v2044, %v2273
    %v2346 = vmul.f32 %v2048, %v2273
    %v2347 = vmul.f32 %v2052, %v2273
    %v2348 = vmul.f32 %v2056, %v2273
    %v2349 = vmul.f32 %v2060, %v2273
    %v2350 = vmul.f32 %v2064, %v2273
    %v2351 = vmul.f32 %v2068, %v2273
    %v2352 = vmul.f32 %v2072, %v2273
    %v2353 = vmul.f32 %v2076, %v2273
    %v2354 = vmul.f32 %v2080, %v2273
    %v2355 = vmul.f32 %v2084, %v2273
    %v2356 = vmul.f32 %v2088, %v2273
    %v2357 = vmul.f32 %v2092, %v2273
    %v2358 = vmul.f32 %v2096, %v2273
    %v2359 = vmul.f32 %v2100, %v2273
    %v2360 = vmul.f32 %v2104, %v2273
    %v2361 = vmul.f32 %v2108, %v2273
    %v2362 = vmul.f32 %v2112, %v2273
    %v2363 = vmul.f32 %v2116, %v2273
    %v2364 = vmul.f32 %v2120, %v2273
    %v2365 = vmul.f32 %v2124, %v2273
    %v2366 = vmul.f32 %v2128, %v2273
    %v2367 = vmul.f32 %v2132, %v2273
    %v2368 = vmul.f32 %v2136, %v2273
    %v2369 = vmul.f32 %v2140, %v2273
    %v2370 = vmul.f32 %v2144, %v2273
    %v2371 = vmul.f32 %v2148, %v2273
    %v2372 = vmul.f32 %v2152, %v2273
    %v2373 = vmul.f32 %v2156, %v2273
    %v2374 = vmul.f32 %v2160, %v2273
    %v2375 = vmul.f32 %v2164, %v2273
    %v2376 = vmul.f32 %v2168, %v2273
    %v2377 = vmul.f32 %v2172, %v2273
    %v2378 = vmul.f32 %v2176, %v2273
    %v2379 = vmul.f32 %v2180, %v2273
    %v2380 = vmul.f32 %v2184, %v2273
    %v2381 = vmul.f32 %v2188, %v2273
    %v2382 = vmul.f32 %v2192, %v2273
    %v2383 = vmul.f32 %v2196, %v2273
    %v2384 = vmul.f32 %v2200, %v2273
    %v2385 = vmul.f32 %v2204, %v2273
    %v2386 = vmul.f32 %v2208, %v2273
    %v2387 = vmul.f32 %v2212, %v2273
    %v2388 = vmul.f32 %v2216, %v2273
    %v2389 = vmul.f32 %v2220, %v2273
    %v2390 = vmul.f32 %v2224, %v2273
    %v2391 = vmul.f32 %v2228, %v2273
    %v2392 = vmul.f32 %v2232, %v2273
    %v2393 = vmul.f32 %v2236, %v2273
    %v2394 = vmul.f32 %v2240, %v2273
    %v2395 = vmul.f32 %v2244, %v2273
    %v2396 = vmul.f32 %v2248, %v2273
    %v2397 = vmul.f32 %v2252, %v2273
    %v2398 = vmul.f32 %v2256, %v2273
    %v2399 = vmul.f32 %v2260, %v2273
    %v2400 = vmul.f32 %v2264, %v2273
    %v2401 = vmul.f32 %v2268, %v2273
    %v2402 = vadd.f32 %v1630, %v2274
    %v2403 = vadd.f32 %v1631, %v2275
    %v2404 = vadd.f32 %v1632, %v2276
    %v2405 = vadd.f32 %v1633, %v2277
    %v2406 = vadd.f32 %v1634, %v2278
    %v2407 = vadd.f32 %v1635, %v2279
    %v2408 = vadd.f32 %v1636, %v2280
    %v2409 = vadd.f32 %v1637, %v2281
    %v2410 = vadd.f32 %v1638, %v2282
    %v2411 = vadd.f32 %v1639, %v2283
    %v2412 = vadd.f32 %v1640, %v2284
    %v2413 = vadd.f32 %v1641, %v2285
    %v2414 = vadd.f32 %v1642, %v2286
    %v2415 = vadd.f32 %v1643, %v2287
    %v2416 = vadd.f32 %v1644, %v2288
    %v2417 = vadd.f32 %v1645, %v2289
    %v2418 = vadd.f32 %v1646, %v2290
    %v2419 = vadd.f32 %v1647, %v2291
    %v2420 = vadd.f32 %v1648, %v2292
    %v2421 = vadd.f32 %v1649, %v2293
    %v2422 = vadd.f32 %v1650, %v2294
    %v2423 = vadd.f32 %v1651, %v2295
    %v2424 = vadd.f32 %v1652, %v2296
    %v2425 = vadd.f32 %v1653, %v2297
    %v2426 = vadd.f32 %v1654, %v2298
    %v2427 = vadd.f32 %v1655, %v2299
    %v2428 = vadd.f32 %v1656, %v2300
    %v2429 = vadd.f32 %v1657, %v2301
    %v2430 = vadd.f32 %v1658, %v2302
    %v2431 = vadd.f32 %v1659, %v2303
    %v2432 = vadd.f32 %v1660, %v2304
    %v2433 = vadd.f32 %v1661, %v2305
    %v2434 = vadd.f32 %v1662, %v2306
    %v2435 = vadd.f32 %v1663, %v2307
    %v2436 = vadd.f32 %v1664, %v2308
    %v2437 = vadd.f32 %v1665, %v2309
    %v2438 = vadd.f32 %v1666, %v2310
    %v2439 = vadd.f32 %v1667, %v2311
    %v2440 = vadd.f32 %v1668, %v2312
    %v2441 = vadd.f32 %v1669, %v2313
    %v2442 = vadd.f32 %v1670, %v2314
    %v2443 = vadd.f32 %v1671, %v2315
    %v2444 = vadd.f32 %v1672, %v2316
    %v2445 = vadd.f32 %v1673, %v2317
    %v2446 = vadd.f32 %v1674, %v2318
    %v2447 = vadd.f32 %v1675, %v2319
    %v2448 = vadd.f32 %v1676, %v2320
    %v2449 = vadd.f32 %v1677, %v2321
    %v2450 = vadd.f32 %v1678, %v2322
    %v2451 = vadd.f32 %v1679, %v2323
    %v2452 = vadd.f32 %v1680, %v2324
    %v2453 = vadd.f32 %v1681, %v2325
    %v2454 = vadd.f32 %v1682, %v2326
    %v2455 = vadd.f32 %v1683, %v2327
    %v2456 = vadd.f32 %v1684, %v2328
    %v2457 = vadd.f32 %v1685, %v2329
    %v2458 = vadd.f32 %v1686, %v2330
    %v2459 = vadd.f32 %v1687, %v2331
    %v2460 = vadd.f32 %v1688, %v2332
    %v2461 = vadd.f32 %v1689, %v2333
    %v2462 = vadd.f32 %v1690, %v2334
    %v2463 = vadd.f32 %v1691, %v2335
    %v2464 = vadd.f32 %v1692, %v2336
    %v2465 = vadd.f32 %v1693, %v2337
    %v2466 = vadd.f32 %v1694, %v2338
    %v2467 = vadd.f32 %v1695, %v2339
    %v2468 = vadd.f32 %v1696, %v2340
    %v2469 = vadd.f32 %v1697, %v2341
    %v2470 = vadd.f32 %v1698, %v2342
    %v2471 = vadd.f32 %v1699, %v2343
    %v2472 = vadd.f32 %v1700, %v2344
    %v2473 = vadd.f32 %v1701, %v2345
    %v2474 = vadd.f32 %v1702, %v2346
    %v2475 = vadd.f32 %v1703, %v2347
    %v2476 = vadd.f32 %v1704, %v2348
    %v2477 = vadd.f32 %v1705, %v2349
    %v2478 = vadd.f32 %v1706, %v2350
    %v2479 = vadd.f32 %v1707, %v2351
    %v2480 = vadd.f32 %v1708, %v2352
    %v2481 = vadd.f32 %v1709, %v2353
    %v2482 = vadd.f32 %v1710, %v2354
    %v2483 = vadd.f32 %v1711, %v2355
    %v2484 = vadd.f32 %v1712, %v2356
    %v2485 = vadd.f32 %v1713, %v2357
    %v2486 = vadd.f32 %v1714, %v2358
    %v2487 = vadd.f32 %v1715, %v2359
    %v2488 = vadd.f32 %v1716, %v2360
    %v2489 = vadd.f32 %v1717, %v2361
    %v2490 = vadd.f32 %v1718, %v2362
    %v2491 = vadd.f32 %v1719, %v2363
    %v2492 = vadd.f32 %v1720, %v2364
    %v2493 = vadd.f32 %v1721, %v2365
    %v2494 = vadd.f32 %v1722, %v2366
    %v2495 = vadd.f32 %v1723, %v2367
    %v2496 = vadd.f32 %v1724, %v2368
    %v2497 = vadd.f32 %v1725, %v2369
    %v2498 = vadd.f32 %v1726, %v2370
    %v2499 = vadd.f32 %v1727, %v2371
    %v2500 = vadd.f32 %v1728, %v2372
    %v2501 = vadd.f32 %v1729, %v2373
    %v2502 = vadd.f32 %v1730, %v2374
    %v2503 = vadd.f32 %v1731, %v2375
    %v2504 = vadd.f32 %v1732, %v2376
    %v2505 = vadd.f32 %v1733, %v2377
    %v2506 = vadd.f32 %v1734, %v2378
    %v2507 = vadd.f32 %v1735, %v2379
    %v2508 = vadd.f32 %v1736, %v2380
    %v2509 = vadd.f32 %v1737, %v2381
    %v2510 = vadd.f32 %v1738, %v2382
    %v2511 = vadd.f32 %v1739, %v2383
    %v2512 = vadd.f32 %v1740, %v2384
    %v2513 = vadd.f32 %v1741, %v2385
    %v2514 = vadd.f32 %v1742, %v2386
    %v2515 = vadd.f32 %v1743, %v2387
    %v2516 = vadd.f32 %v1744, %v2388
    %v2517 = vadd.f32 %v1745, %v2389
    %v2518 = vadd.f32 %v1746, %v2390
    %v2519 = vadd.f32 %v1747, %v2391
    %v2520 = vadd.f32 %v1748, %v2392
    %v2521 = vadd.f32 %v1749, %v2393
    %v2522 = vadd.f32 %v1750, %v2394
    %v2523 = vadd.f32 %v1751, %v2395
    %v2524 = vadd.f32 %v1752, %v2396
    %v2525 = vadd.f32 %v1753, %v2397
    %v2526 = vadd.f32 %v1754, %v2398
    %v2527 = vadd.f32 %v1755, %v2399
    %v2528 = vadd.f32 %v1756, %v2400
    %v2529 = vadd.f32 %v1757, %v2401
    %v2530 = vld [vmem:[#allocation3] sm:$0x1]
    %v2532 = vlaneseq
    %v2533 = vshrl.u32 %v2532, 7
    %v2534 = vsub.s32 0, %v2533
    %v2535 = vrot.slane %v2530, %v2534
    %v2537 = vadd.f32 %v2402, %v2535
    %v2538 = vadd.f32 %v2403, %v2535
    %v2539 = vadd.f32 %v2404, %v2535
    %v2540 = vadd.f32 %v2405, %v2535
    %v2541 = vadd.f32 %v2406, %v2535
    %v2542 = vadd.f32 %v2407, %v2535
    %v2543 = vadd.f32 %v2408, %v2535
    %v2544 = vadd.f32 %v2409, %v2535
    %v2545 = vadd.f32 %v2410, %v2535
    %v2546 = vadd.f32 %v2411, %v2535
    %v2547 = vadd.f32 %v2412, %v2535
    %v2548 = vadd.f32 %v2413, %v2535
    %v2549 = vadd.f32 %v2414, %v2535
    %v2550 = vadd.f32 %v2415, %v2535
    %v2551 = vadd.f32 %v2416, %v2535
    %v2552 = vadd.f32 %v2417, %v2535
    %v2553 = vadd.f32 %v2418, %v2535
    %v2554 = vadd.f32 %v2419, %v2535
    %v2555 = vadd.f32 %v2420, %v2535
    %v2556 = vadd.f32 %v2421, %v2535
    %v2557 = vadd.f32 %v2422, %v2535
    %v2558 = vadd.f32 %v2423, %v2535
    %v2559 = vadd.f32 %v2424, %v2535
    %v2560 = vadd.f32 %v2425, %v2535
    %v2561 = vadd.f32 %v2426, %v2535
    %v2562 = vadd.f32 %v2427, %v2535
    %v2563 = vadd.f32 %v2428, %v2535
    %v2564 = vadd.f32 %v2429, %v2535
    %v2565 = vadd.f32 %v2430, %v2535
    %v2566 = vadd.f32 %v2431, %v2535
    %v2567 = vadd.f32 %v2432, %v2535
    %v2568 = vadd.f32 %v2433, %v2535
    %v2569 = vadd.f32 %v2434, %v2535
    %v2570 = vadd.f32 %v2435, %v2535
    %v2571 = vadd.f32 %v2436, %v2535
    %v2572 = vadd.f32 %v2437, %v2535
    %v2573 = vadd.f32 %v2438, %v2535
    %v2574 = vadd.f32 %v2439, %v2535
    %v2575 = vadd.f32 %v2440, %v2535
    %v2576 = vadd.f32 %v2441, %v2535
    %v2577 = vadd.f32 %v2442, %v2535
    %v2578 = vadd.f32 %v2443, %v2535
    %v2579 = vadd.f32 %v2444, %v2535
    %v2580 = vadd.f32 %v2445, %v2535
    %v2581 = vadd.f32 %v2446, %v2535
    %v2582 = vadd.f32 %v2447, %v2535
    %v2583 = vadd.f32 %v2448, %v2535
    %v2584 = vadd.f32 %v2449, %v2535
    %v2585 = vadd.f32 %v2450, %v2535
    %v2586 = vadd.f32 %v2451, %v2535
    %v2587 = vadd.f32 %v2452, %v2535
    %v2588 = vadd.f32 %v2453, %v2535
    %v2589 = vadd.f32 %v2454, %v2535
    %v2590 = vadd.f32 %v2455, %v2535
    %v2591 = vadd.f32 %v2456, %v2535
    %v2592 = vadd.f32 %v2457, %v2535
    %v2593 = vadd.f32 %v2458, %v2535
    %v2594 = vadd.f32 %v2459, %v2535
    %v2595 = vadd.f32 %v2460, %v2535
    %v2596 = vadd.f32 %v2461, %v2535
    %v2597 = vadd.f32 %v2462, %v2535
    %v2598 = vadd.f32 %v2463, %v2535
    %v2599 = vadd.f32 %v2464, %v2535
    %v2600 = vadd.f32 %v2465, %v2535
    %v2601 = vadd.f32 %v2466, %v2535
    %v2602 = vadd.f32 %v2467, %v2535
    %v2603 = vadd.f32 %v2468, %v2535
    %v2604 = vadd.f32 %v2469, %v2535
    %v2605 = vadd.f32 %v2470, %v2535
    %v2606 = vadd.f32 %v2471, %v2535
    %v2607 = vadd.f32 %v2472, %v2535
    %v2608 = vadd.f32 %v2473, %v2535
    %v2609 = vadd.f32 %v2474, %v2535
    %v2610 = vadd.f32 %v2475, %v2535
    %v2611 = vadd.f32 %v2476, %v2535
    %v2612 = vadd.f32 %v2477, %v2535
    %v2613 = vadd.f32 %v2478, %v2535
    %v2614 = vadd.f32 %v2479, %v2535
    %v2615 = vadd.f32 %v2480, %v2535
    %v2616 = vadd.f32 %v2481, %v2535
    %v2617 = vadd.f32 %v2482, %v2535
    %v2618 = vadd.f32 %v2483, %v2535
    %v2619 = vadd.f32 %v2484, %v2535
    %v2620 = vadd.f32 %v2485, %v2535
    %v2621 = vadd.f32 %v2486, %v2535
    %v2622 = vadd.f32 %v2487, %v2535
    %v2623 = vadd.f32 %v2488, %v2535
    %v2624 = vadd.f32 %v2489, %v2535
    %v2625 = vadd.f32 %v2490, %v2535
    %v2626 = vadd.f32 %v2491, %v2535
    %v2627 = vadd.f32 %v2492, %v2535
    %v2628 = vadd.f32 %v2493, %v2535
    %v2629 = vadd.f32 %v2494, %v2535
    %v2630 = vadd.f32 %v2495, %v2535
    %v2631 = vadd.f32 %v2496, %v2535
    %v2632 = vadd.f32 %v2497, %v2535
    %v2633 = vadd.f32 %v2498, %v2535
    %v2634 = vadd.f32 %v2499, %v2535
    %v2635 = vadd.f32 %v2500, %v2535
    %v2636 = vadd.f32 %v2501, %v2535
    %v2637 = vadd.f32 %v2502, %v2535
    %v2638 = vadd.f32 %v2503, %v2535
    %v2639 = vadd.f32 %v2504, %v2535
    %v2640 = vadd.f32 %v2505, %v2535
    %v2641 = vadd.f32 %v2506, %v2535
    %v2642 = vadd.f32 %v2507, %v2535
    %v2643 = vadd.f32 %v2508, %v2535
    %v2644 = vadd.f32 %v2509, %v2535
    %v2645 = vadd.f32 %v2510, %v2535
    %v2646 = vadd.f32 %v2511, %v2535
    %v2647 = vadd.f32 %v2512, %v2535
    %v2648 = vadd.f32 %v2513, %v2535
    %v2649 = vadd.f32 %v2514, %v2535
    %v2650 = vadd.f32 %v2515, %v2535
    %v2651 = vadd.f32 %v2516, %v2535
    %v2652 = vadd.f32 %v2517, %v2535
    %v2653 = vadd.f32 %v2518, %v2535
    %v2654 = vadd.f32 %v2519, %v2535
    %v2655 = vadd.f32 %v2520, %v2535
    %v2656 = vadd.f32 %v2521, %v2535
    %v2657 = vadd.f32 %v2522, %v2535
    %v2658 = vadd.f32 %v2523, %v2535
    %v2659 = vadd.f32 %v2524, %v2535
    %v2660 = vadd.f32 %v2525, %v2535
    %v2661 = vadd.f32 %v2526, %v2535
    %v2662 = vadd.f32 %v2527, %v2535
    %v2663 = vadd.f32 %v2528, %v2535
    %v2664 = vadd.f32 %v2529, %v2535
    %v2665 = vmax.f32 %v2537, 0.0
    %v2666 = vmax.f32 %v2538, 0.0
    %v2667 = vmax.f32 %v2539, 0.0
    %v2668 = vmax.f32 %v2540, 0.0
    %v2669 = vmax.f32 %v2541, 0.0
    %v2670 = vmax.f32 %v2542, 0.0
    %v2671 = vmax.f32 %v2543, 0.0
    %v2672 = vmax.f32 %v2544, 0.0
    %v2673 = vmax.f32 %v2545, 0.0
    %v2674 = vmax.f32 %v2546, 0.0
    %v2675 = vmax.f32 %v2547, 0.0
    %v2676 = vmax.f32 %v2548, 0.0
    %v2677 = vmax.f32 %v2549, 0.0
    %v2678 = vmax.f32 %v2550, 0.0
    %v2679 = vmax.f32 %v2551, 0.0
    %v2680 = vmax.f32 %v2552, 0.0
    %v2681 = vmax.f32 %v2553, 0.0
    %v2682 = vmax.f32 %v2554, 0.0
    %v2683 = vmax.f32 %v2555, 0.0
    %v2684 = vmax.f32 %v2556, 0.0
    %v2685 = vmax.f32 %v2557, 0.0
    %v2686 = vmax.f32 %v2558, 0.0
    %v2687 = vmax.f32 %v2559, 0.0
    %v2688 = vmax.f32 %v2560, 0.0
    %v2689 = vmax.f32 %v2561, 0.0
    %v2690 = vmax.f32 %v2562, 0.0
    %v2691 = vmax.f32 %v2563, 0.0
    %v2692 = vmax.f32 %v2564, 0.0
    %v2693 = vmax.f32 %v2565, 0.0
    %v2694 = vmax.f32 %v2566, 0.0
    %v2695 = vmax.f32 %v2567, 0.0
    %v2696 = vmax.f32 %v2568, 0.0
    %v2697 = vmax.f32 %v2569, 0.0
    %v2698 = vmax.f32 %v2570, 0.0
    %v2699 = vmax.f32 %v2571, 0.0
    %v2700 = vmax.f32 %v2572, 0.0
    %v2701 = vmax.f32 %v2573, 0.0
    %v2702 = vmax.f32 %v2574, 0.0
    %v2703 = vmax.f32 %v2575, 0.0
    %v2704 = vmax.f32 %v2576, 0.0
    %v2705 = vmax.f32 %v2577, 0.0
    %v2706 = vmax.f32 %v2578, 0.0
    %v2707 = vmax.f32 %v2579, 0.0
    %v2708 = vmax.f32 %v2580, 0.0
    %v2709 = vmax.f32 %v2581, 0.0
    %v2710 = vmax.f32 %v2582, 0.0
    %v2711 = vmax.f32 %v2583, 0.0
    %v2712 = vmax.f32 %v2584, 0.0
    %v2713 = vmax.f32 %v2585, 0.0
    %v2714 = vmax.f32 %v2586, 0.0
    %v2715 = vmax.f32 %v2587, 0.0
    %v2716 = vmax.f32 %v2588, 0.0
    %v2717 = vmax.f32 %v2589, 0.0
    %v2718 = vmax.f32 %v2590, 0.0
    %v2719 = vmax.f32 %v2591, 0.0
    %v2720 = vmax.f32 %v2592, 0.0
    %v2721 = vmax.f32 %v2593, 0.0
    %v2722 = vmax.f32 %v2594, 0.0
    %v2723 = vmax.f32 %v2595, 0.0
    %v2724 = vmax.f32 %v2596, 0.0
    %v2725 = vmax.f32 %v2597, 0.0
    %v2726 = vmax.f32 %v2598, 0.0
    %v2727 = vmax.f32 %v2599, 0.0
    %v2728 = vmax.f32 %v2600, 0.0
    %v2729 = vmax.f32 %v2601, 0.0
    %v2730 = vmax.f32 %v2602, 0.0
    %v2731 = vmax.f32 %v2603, 0.0
    %v2732 = vmax.f32 %v2604, 0.0
    %v2733 = vmax.f32 %v2605, 0.0
    %v2734 = vmax.f32 %v2606, 0.0
    %v2735 = vmax.f32 %v2607, 0.0
    %v2736 = vmax.f32 %v2608, 0.0
    %v2737 = vmax.f32 %v2609, 0.0
    %v2738 = vmax.f32 %v2610, 0.0
    %v2739 = vmax.f32 %v2611, 0.0
    %v2740 = vmax.f32 %v2612, 0.0
    %v2741 = vmax.f32 %v2613, 0.0
    %v2742 = vmax.f32 %v2614, 0.0
    %v2743 = vmax.f32 %v2615, 0.0
    %v2744 = vmax.f32 %v2616, 0.0
    %v2745 = vmax.f32 %v2617, 0.0
    %v2746 = vmax.f32 %v2618, 0.0
    %v2747 = vmax.f32 %v2619, 0.0
    %v2748 = vmax.f32 %v2620, 0.0
    %v2749 = vmax.f32 %v2621, 0.0
    %v2750 = vmax.f32 %v2622, 0.0
    %v2751 = vmax.f32 %v2623, 0.0
    %v2752 = vmax.f32 %v2624, 0.0
    %v2753 = vmax.f32 %v2625, 0.0
    %v2754 = vmax.f32 %v2626, 0.0
    %v2755 = vmax.f32 %v2627, 0.0
    %v2756 = vmax.f32 %v2628, 0.0
    %v2757 = vmax.f32 %v2629, 0.0
    %v2758 = vmax.f32 %v2630, 0.0
    %v2759 = vmax.f32 %v2631, 0.0
    %v2760 = vmax.f32 %v2632, 0.0
    %v2761 = vmax.f32 %v2633, 0.0
    %v2762 = vmax.f32 %v2634, 0.0
    %v2763 = vmax.f32 %v2635, 0.0
    %v2764 = vmax.f32 %v2636, 0.0
    %v2765 = vmax.f32 %v2637, 0.0
    %v2766 = vmax.f32 %v2638, 0.0
    %v2767 = vmax.f32 %v2639, 0.0
    %v2768 = vmax.f32 %v2640, 0.0
    %v2769 = vmax.f32 %v2641, 0.0
    %v2770 = vmax.f32 %v2642, 0.0
    %v2771 = vmax.f32 %v2643, 0.0
    %v2772 = vmax.f32 %v2644, 0.0
    %v2773 = vmax.f32 %v2645, 0.0
    %v2774 = vmax.f32 %v2646, 0.0
    %v2775 = vmax.f32 %v2647, 0.0
    %v2776 = vmax.f32 %v2648, 0.0
    %v2777 = vmax.f32 %v2649, 0.0
    %v2778 = vmax.f32 %v2650, 0.0
    %v2779 = vmax.f32 %v2651, 0.0
    %v2780 = vmax.f32 %v2652, 0.0
    %v2781 = vmax.f32 %v2653, 0.0
    %v2782 = vmax.f32 %v2654, 0.0
    %v2783 = vmax.f32 %v2655, 0.0
    %v2784 = vmax.f32 %v2656, 0.0
    %v2785 = vmax.f32 %v2657, 0.0
    %v2786 = vmax.f32 %v2658, 0.0
    %v2787 = vmax.f32 %v2659, 0.0
    %v2788 = vmax.f32 %v2660, 0.0
    %v2789 = vmax.f32 %v2661, 0.0
    %v2790 = vmax.f32 %v2662, 0.0
    %v2791 = vmax.f32 %v2663, 0.0
    %v2792 = vmax.f32 %v2664, 0.0
    %v2793 = vpack.c.bf16 %v2666, %v2665
    %v2794 = vpack.c.bf16 %v2668, %v2667
    %v2795 = vpack.c.bf16 %v2670, %v2669
    %v2796 = vpack.c.bf16 %v2672, %v2671
    %v2797 = vpack.c.bf16 %v2674, %v2673
    %v2798 = vpack.c.bf16 %v2676, %v2675
    %v2799 = vpack.c.bf16 %v2678, %v2677
    %v2800 = vpack.c.bf16 %v2680, %v2679
    %v2801 = vpack.c.bf16 %v2682, %v2681
    %v2802 = vpack.c.bf16 %v2684, %v2683
    %v2803 = vpack.c.bf16 %v2686, %v2685
    %v2804 = vpack.c.bf16 %v2688, %v2687
    %v2805 = vpack.c.bf16 %v2690, %v2689
    %v2806 = vpack.c.bf16 %v2692, %v2691
    %v2807 = vpack.c.bf16 %v2694, %v2693
    %v2808 = vpack.c.bf16 %v2696, %v2695
    %v2809 = vpack.c.bf16 %v2698, %v2697
    %v2810 = vpack.c.bf16 %v2700, %v2699
    %v2811 = vpack.c.bf16 %v2702, %v2701
    %v2812 = vpack.c.bf16 %v2704, %v2703
    %v2813 = vpack.c.bf16 %v2706, %v2705
    %v2814 = vpack.c.bf16 %v2708, %v2707
    %v2815 = vpack.c.bf16 %v2710, %v2709
    %v2816 = vpack.c.bf16 %v2712, %v2711
    %v2817 = vpack.c.bf16 %v2714, %v2713
    %v2818 = vpack.c.bf16 %v2716, %v2715
    %v2819 = vpack.c.bf16 %v2718, %v2717
    %v2820 = vpack.c.bf16 %v2720, %v2719
    %v2821 = vpack.c.bf16 %v2722, %v2721
    %v2822 = vpack.c.bf16 %v2724, %v2723
    %v2823 = vpack.c.bf16 %v2726, %v2725
    %v2824 = vpack.c.bf16 %v2728, %v2727
    %v2825 = vpack.c.bf16 %v2730, %v2729
    %v2826 = vpack.c.bf16 %v2732, %v2731
    %v2827 = vpack.c.bf16 %v2734, %v2733
    %v2828 = vpack.c.bf16 %v2736, %v2735
    %v2829 = vpack.c.bf16 %v2738, %v2737
    %v2830 = vpack.c.bf16 %v2740, %v2739
    %v2831 = vpack.c.bf16 %v2742, %v2741
    %v2832 = vpack.c.bf16 %v2744, %v2743
    %v2833 = vpack.c.bf16 %v2746, %v2745
    %v2834 = vpack.c.bf16 %v2748, %v2747
    %v2835 = vpack.c.bf16 %v2750, %v2749
    %v2836 = vpack.c.bf16 %v2752, %v2751
    %v2837 = vpack.c.bf16 %v2754, %v2753
    %v2838 = vpack.c.bf16 %v2756, %v2755
    %v2839 = vpack.c.bf16 %v2758, %v2757
    %v2840 = vpack.c.bf16 %v2760, %v2759
    %v2841 = vpack.c.bf16 %v2762, %v2761
    %v2842 = vpack.c.bf16 %v2764, %v2763
    %v2843 = vpack.c.bf16 %v2766, %v2765
    %v2844 = vpack.c.bf16 %v2768, %v2767
    %v2845 = vpack.c.bf16 %v2770, %v2769
    %v2846 = vpack.c.bf16 %v2772, %v2771
    %v2847 = vpack.c.bf16 %v2774, %v2773
    %v2848 = vpack.c.bf16 %v2776, %v2775
    %v2849 = vpack.c.bf16 %v2778, %v2777
    %v2850 = vpack.c.bf16 %v2780, %v2779
    %v2851 = vpack.c.bf16 %v2782, %v2781
    %v2852 = vpack.c.bf16 %v2784, %v2783
    %v2853 = vpack.c.bf16 %v2786, %v2785
    %v2854 = vpack.c.bf16 %v2788, %v2787
    %v2855 = vpack.c.bf16 %v2790, %v2789
    %v2856 = vpack.c.bf16 %v2792, %v2791
    %v2857 = vld [vmem:[%s3] sm:$0xf]
    %v2858 = vld [vmem:[%s3 + $0x4] sm:$0xf]
    %v2859 = vld [vmem:[%s3 + $0x8] sm:$0xf]
    %v2860 = vld [vmem:[%s3 + $0xc] sm:$0xf]
    %v2861 = vld [vmem:[%s3 + $0x10] sm:$0xf]
    %v2862 = vld [vmem:[%s3 + $0x14] sm:$0xf]
    %v2863 = vld [vmem:[%s3 + $0x18] sm:$0xf]
    %v2864 = vld [vmem:[%s3 + $0x1c] sm:$0xf]
    %v2865 = vld [vmem:[%s4] sm:$0x1]
    %v2867 = vlaneseq
    %v2868 = vshrl.u32 %v2867, 7
    %v2869 = vsub.s32 0, %v2868
    %v2870 = vrot.slane %v2865, %v2869
    %v2880 = vunpack.c.l.b16 %v2857
    %v2881 = vunpack.c.l.b16 %v2858
    %v2882 = vunpack.c.l.b16 %v2859
    %v2883 = vunpack.c.l.b16 %v2860
    %v2884 = vunpack.c.l.b16 %v2861
    %v2885 = vunpack.c.l.b16 %v2862
    %v2886 = vunpack.c.l.b16 %v2863
    %v2887 = vunpack.c.l.b16 %v2864
    %v2888 = vpack.c.b16 %v2881, %v2880
    %v2889 = vpack.c.b16 %v2883, %v2882
    %v2890 = vpack.c.b16 %v2885, %v2884
    %v2891 = vpack.c.b16 %v2887, %v2886
    %vm2896 = vcmask 523264
    %v2898 = vsel %vm2896, %v2793, 0
    %v2901 = vsel %vm2896, %v2794, 0
    %v2904 = vsel %vm2896, %v2795, 0
    %v2907 = vsel %vm2896, %v2796, 0
    %v2910 = vsel %vm2896, %v2797, 0
    %v2913 = vsel %vm2896, %v2798, 0
    %v2916 = vsel %vm2896, %v2799, 0
    %v2919 = vsel %vm2896, %v2800, 0
    %v2922 = vsel %vm2896, %v2801, 0
    %v2925 = vsel %vm2896, %v2802, 0
    %v2928 = vsel %vm2896, %v2803, 0
    %v2931 = vsel %vm2896, %v2804, 0
    %v2934 = vsel %vm2896, %v2805, 0
    %v2937 = vsel %vm2896, %v2806, 0
    %v2940 = vsel %vm2896, %v2807, 0
    %v2943 = vsel %vm2896, %v2808, 0
    %v2946 = vsel %vm2896, %v2809, 0
    %v2949 = vsel %vm2896, %v2810, 0
    %v2952 = vsel %vm2896, %v2811, 0
    %v2955 = vsel %vm2896, %v2812, 0
    %v2958 = vsel %vm2896, %v2813, 0
    %v2961 = vsel %vm2896, %v2814, 0
    %v2964 = vsel %vm2896, %v2815, 0
    %v2967 = vsel %vm2896, %v2816, 0
    %v2970 = vsel %vm2896, %v2817, 0
    %v2973 = vsel %vm2896, %v2818, 0
    %v2976 = vsel %vm2896, %v2819, 0
    %v2979 = vsel %vm2896, %v2820, 0
    %v2982 = vsel %vm2896, %v2821, 0
    %v2985 = vsel %vm2896, %v2822, 0
    %v2988 = vsel %vm2896, %v2823, 0
    %v2991 = vsel %vm2896, %v2824, 0
    %v2994 = vsel %vm2896, %v2825, 0
    %v2997 = vsel %vm2896, %v2826, 0
    %v3000 = vsel %vm2896, %v2827, 0
    %v3003 = vsel %vm2896, %v2828, 0
    %v3006 = vsel %vm2896, %v2829, 0
    %v3009 = vsel %vm2896, %v2830, 0
    %v3012 = vsel %vm2896, %v2831, 0
    %v3015 = vsel %vm2896, %v2832, 0
    %v3018 = vsel %vm2896, %v2833, 0
    %v3021 = vsel %vm2896, %v2834, 0
    %v3024 = vsel %vm2896, %v2835, 0
    %v3027 = vsel %vm2896, %v2836, 0
    %v3030 = vsel %vm2896, %v2837, 0
    %v3033 = vsel %vm2896, %v2838, 0
    %v3036 = vsel %vm2896, %v2839, 0
    %v3039 = vsel %vm2896, %v2840, 0
    %v3042 = vsel %vm2896, %v2841, 0
    %v3045 = vsel %vm2896, %v2842, 0
    %v3048 = vsel %vm2896, %v2843, 0
    %v3051 = vsel %vm2896, %v2844, 0
    %v3054 = vsel %vm2896, %v2845, 0
    %v3057 = vsel %vm2896, %v2846, 0
    %v3060 = vsel %vm2896, %v2847, 0
    %v3063 = vsel %vm2896, %v2848, 0
    %v3066 = vsel %vm2896, %v2849, 0
    %v3069 = vsel %vm2896, %v2850, 0
    %v3072 = vsel %vm2896, %v2851, 0
    %v3075 = vsel %vm2896, %v2852, 0
    %v3078 = vsel %vm2896, %v2853, 0
    %v3081 = vsel %vm2896, %v2854, 0
    %v3084 = vsel %vm2896, %v2855, 0
    %v3087 = vsel %vm2896, %v2856, 0
    %3089 = vmatprep.subr.bf16.mxu0 0
    %3090 = vmatpush1.bf16.msra.mxu0 %v2888
    %3091 = vmatprep.subr.bf16.mxu0 0
    %3092 = vmatpush1.bf16.msra.mxu0 %v2889
    %3093 = vmatprep.subr.bf16.mxu0 0
    %3094 = vmatpush1.bf16.msra.mxu0 %v2890
    %3095 = vmatprep.subr.bf16.mxu0 0
    %3096 = vmatpush1.bf16.msra.mxu0 %v2891
    %3097 = vmatprep.subr.bf16.mxu0 0
    %3098 = vmatpush1.bf16.msra.mxu0 0
    %3099 = vmatprep.subr.bf16.mxu0 0
    %3100 = vmatpush1.bf16.msra.mxu0 0
    %3101 = vmatprep.subr.bf16.mxu0 0
    %3102 = vmatpush1.bf16.msra.mxu0 0
    %3103 = vmatprep.subr.bf16.mxu0 0
    %3104 = vmatpush1.bf16.msra.mxu0 0
    %3105 = vmatprep.subr.bf16.mxu0 0
    %3106 = vmatpush1.bf16.msra.mxu0 0
    %3107 = vmatprep.subr.bf16.mxu0 0
    %3108 = vmatpush1.bf16.msra.mxu0 0
    %3109 = vmatprep.subr.bf16.mxu0 0
    %3110 = vmatpush1.bf16.msra.mxu0 0
    %3111 = vmatprep.subr.bf16.mxu0 0
    %3112 = vmatpush1.bf16.msra.mxu0 0
    %3113 = vmatprep.subr.bf16.mxu0 0
    %3114 = vmatpush1.bf16.msra.mxu0 0
    %3115 = vmatprep.subr.bf16.mxu0 0
    %3116 = vmatpush1.bf16.msra.mxu0 0
    %3117 = vmatprep.subr.bf16.mxu0 0
    %3118 = vmatpush1.bf16.msra.mxu0 0
    %3119 = vmatprep.subr.bf16.mxu0 0
    %3120 = vmatpush1.bf16.msra.mxu0 0
    %3121 = vmatprep.mubr.bf16.mxu0 0
    %3122 = vmatmul.mubr.bf16.gmra.mrb[0].mxu0 %v2898
    %v3123 = vpop.f32.mrb[0].mxu0
    %v3124 = vadd.f32 %v2870, %v3123
    %v3125 = vpop.f32.mrb[0].mxu0
    %v3126 = vpop.f32.mrb[0].mxu0
    %v3127 = vadd.f32 %v2870, %v3126
    %v3128 = vpop.f32.mrb[0].mxu0
    %3129 = vmatprep.mubr.bf16.mxu0 0
    %3130 = vmatmul.mubr.bf16.gmra.mrb[0].mxu0 %v2901
    %v3131 = vpop.f32.mrb[0].mxu0
    %v3132 = vadd.f32 %v2870, %v3131
    %v3133 = vpop.f32.mrb[0].mxu0
    %v3134 = vpop.f32.mrb[0].mxu0
    %v3135 = vadd.f32 %v2870, %v3134
    %v3136 = vpop.f32.mrb[0].mxu0
    %3137 = vmatprep.mubr.bf16.mxu0 0
    %3138 = vmatmul.mubr.bf16.gmra.mrb[0].mxu0 %v2904
    %v3139 = vpop.f32.mrb[0].mxu0
    %v3140 = vadd.f32 %v2870, %v3139
    %v3141 = vpop.f32.mrb[0].mxu0
    %v3142 = vpop.f32.mrb[0].mxu0
    %v3143 = vadd.f32 %v2870, %v3142
    %v3144 = vpop.f32.mrb[0].mxu0
    %3145 = vmatprep.mubr.bf16.mxu0 0
    %3146 = vmatmul.mubr.bf16.gmra.mrb[0].mxu0 %v2907
    %v3147 = vpop.f32.mrb[0].mxu0
    %v3148 = vadd.f32 %v2870, %v3147
    %v3149 = vpop.f32.mrb[0].mxu0
    %v3150 = vpop.f32.mrb[0].mxu0
    %v3151 = vadd.f32 %v2870, %v3150
    %v3152 = vpop.f32.mrb[0].mxu0
    %3153 = vmatprep.mubr.bf16.mxu0 0
    %3154 = vmatmul.mubr.bf16.gmra.mrb[0].mxu0 %v2910
    %v3155 = vpop.f32.mrb[0].mxu0
    %v3156 = vadd.f32 %v2870, %v3155
    %v3157 = vpop.f32.mrb[0].mxu0
    %v3158 = vpop.f32.mrb[0].mxu0
    %v3159 = vadd.f32 %v2870, %v3158
    %v3160 = vpop.f32.mrb[0].mxu0
    %3161 = vmatprep.mubr.bf16.mxu0 0
    %3162 = vmatmul.mubr.bf16.gmra.mrb[0].mxu0 %v2913
    %v3163 = vpop.f32.mrb[0].mxu0
    %v3164 = vadd.f32 %v2870, %v3163
    %v3165 = vpop.f32.mrb[0].mxu0
    %v3166 = vpop.f32.mrb[0].mxu0
    %v3167 = vadd.f32 %v2870, %v3166
    %v3168 = vpop.f32.mrb[0].mxu0
    %3169 = vmatprep.mubr.bf16.mxu0 0
    %3170 = vmatmul.mubr.bf16.gmra.mrb[0].mxu0 %v2916
    %v3171 = vpop.f32.mrb[0].mxu0
    %v3172 = vadd.f32 %v2870, %v3171
    %v3173 = vpop.f32.mrb[0].mxu0
    %v3174 = vpop.f32.mrb[0].mxu0
    %v3175 = vadd.f32 %v2870, %v3174
    %v3176 = vpop.f32.mrb[0].mxu0
    %3177 = vmatprep.mubr.bf16.mxu0 0
    %3178 = vmatmul.mubr.bf16.gmra.mrb[0].mxu0 %v2919
    %v3179 = vpop.f32.mrb[0].mxu0
    %v3180 = vadd.f32 %v2870, %v3179
    %v3181 = vpop.f32.mrb[0].mxu0
    %v3182 = vpop.f32.mrb[0].mxu0
    %v3183 = vadd.f32 %v2870, %v3182
    %v3184 = vpop.f32.mrb[0].mxu0
    %3185 = vmatprep.mubr.bf16.mxu0 0
    %3186 = vmatmul.mubr.bf16.gmra.mrb[0].mxu0 %v2922
    %v3187 = vpop.f32.mrb[0].mxu0
    %v3188 = vadd.f32 %v2870, %v3187
    %v3189 = vpop.f32.mrb[0].mxu0
    %v3190 = vpop.f32.mrb[0].mxu0
    %v3191 = vadd.f32 %v2870, %v3190
    %v3192 = vpop.f32.mrb[0].mxu0
    %3193 = vmatprep.mubr.bf16.mxu0 0
    %3194 = vmatmul.mubr.bf16.gmra.mrb[0].mxu0 %v2925
    %v3195 = vpop.f32.mrb[0].mxu0
    %v3196 = vadd.f32 %v2870, %v3195
    %v3197 = vpop.f32.mrb[0].mxu0
    %v3198 = vpop.f32.mrb[0].mxu0
    %v3199 = vadd.f32 %v2870, %v3198
    %v3200 = vpop.f32.mrb[0].mxu0
    %3201 = vmatprep.mubr.bf16.mxu0 0
    %3202 = vmatmul.mubr.bf16.gmra.mrb[0].mxu0 %v2928
    %v3203 = vpop.f32.mrb[0].mxu0
    %v3204 = vadd.f32 %v2870, %v3203
    %v3205 = vpop.f32.mrb[0].mxu0
    %v3206 = vpop.f32.mrb[0].mxu0
    %v3207 = vadd.f32 %v2870, %v3206
    %v3208 = vpop.f32.mrb[0].mxu0
    %3209 = vmatprep.mubr.bf16.mxu0 0
    %3210 = vmatmul.mubr.bf16.gmra.mrb[0].mxu0 %v2931
    %v3211 = vpop.f32.mrb[0].mxu0
    %v3212 = vadd.f32 %v2870, %v3211
    %v3213 = vpop.f32.mrb[0].mxu0
    %v3214 = vpop.f32.mrb[0].mxu0
    %v3215 = vadd.f32 %v2870, %v3214
    %v3216 = vpop.f32.mrb[0].mxu0
    %3217 = vmatprep.mubr.bf16.mxu0 0
    %3218 = vmatmul.mubr.bf16.gmra.mrb[0].mxu0 %v2934
    %v3219 = vpop.f32.mrb[0].mxu0
    %v3220 = vadd.f32 %v2870, %v3219
    %v3221 = vpop.f32.mrb[0].mxu0
    %v3222 = vpop.f32.mrb[0].mxu0
    %v3223 = vadd.f32 %v2870, %v3222
    %v3224 = vpop.f32.mrb[0].mxu0
    %3225 = vmatprep.mubr.bf16.mxu0 0
    %3226 = vmatmul.mubr.bf16.gmra.mrb[0].mxu0 %v2937
    %v3227 = vpop.f32.mrb[0].mxu0
    %v3228 = vadd.f32 %v2870, %v3227
    %v3229 = vpop.f32.mrb[0].mxu0
    %v3230 = vpop.f32.mrb[0].mxu0
    %v3231 = vadd.f32 %v2870, %v3230
    %v3232 = vpop.f32.mrb[0].mxu0
    %3233 = vmatprep.mubr.bf16.mxu0 0
    %3234 = vmatmul.mubr.bf16.gmra.mrb[0].mxu0 %v2940
    %v3235 = vpop.f32.mrb[0].mxu0
    %v3236 = vadd.f32 %v2870, %v3235
    %v3237 = vpop.f32.mrb[0].mxu0
    %v3238 = vpop.f32.mrb[0].mxu0
    %v3239 = vadd.f32 %v2870, %v3238
    %v3240 = vpop.f32.mrb[0].mxu0
    %3241 = vmatprep.mubr.bf16.mxu0 0
    %3242 = vmatmul.mubr.bf16.gmra.mrb[0].mxu0 %v2943
    %v3243 = vpop.f32.mrb[0].mxu0
    %v3244 = vadd.f32 %v2870, %v3243
    %v3245 = vpop.f32.mrb[0].mxu0
    %v3246 = vpop.f32.mrb[0].mxu0
    %v3247 = vadd.f32 %v2870, %v3246
    %v3248 = vpop.f32.mrb[0].mxu0
    %3249 = vmatprep.mubr.bf16.mxu0 0
    %3250 = vmatmul.mubr.bf16.gmra.mrb[0].mxu0 %v2946
    %v3251 = vpop.f32.mrb[0].mxu0
    %v3252 = vadd.f32 %v2870, %v3251
    %v3253 = vpop.f32.mrb[0].mxu0
    %v3254 = vpop.f32.mrb[0].mxu0
    %v3255 = vadd.f32 %v2870, %v3254
    %v3256 = vpop.f32.mrb[0].mxu0
    %3257 = vmatprep.mubr.bf16.mxu0 0
    %3258 = vmatmul.mubr.bf16.gmra.mrb[0].mxu0 %v2949
    %v3259 = vpop.f32.mrb[0].mxu0
    %v3260 = vadd.f32 %v2870, %v3259
    %v3261 = vpop.f32.mrb[0].mxu0
    %v3262 = vpop.f32.mrb[0].mxu0
    %v3263 = vadd.f32 %v2870, %v3262
    %v3264 = vpop.f32.mrb[0].mxu0
    %3265 = vmatprep.mubr.bf16.mxu0 0
    %3266 = vmatmul.mubr.bf16.gmra.mrb[0].mxu0 %v2952
    %v3267 = vpop.f32.mrb[0].mxu0
    %v3268 = vadd.f32 %v2870, %v3267
    %v3269 = vpop.f32.mrb[0].mxu0
    %v3270 = vpop.f32.mrb[0].mxu0
    %v3271 = vadd.f32 %v2870, %v3270
    %v3272 = vpop.f32.mrb[0].mxu0
    %3273 = vmatprep.mubr.bf16.mxu0 0
    %3274 = vmatmul.mubr.bf16.gmra.mrb[0].mxu0 %v2955
    %v3275 = vpop.f32.mrb[0].mxu0
    %v3276 = vadd.f32 %v2870, %v3275
    %v3277 = vpop.f32.mrb[0].mxu0
    %v3278 = vpop.f32.mrb[0].mxu0
    %v3279 = vadd.f32 %v2870, %v3278
    %v3280 = vpop.f32.mrb[0].mxu0
    %3281 = vmatprep.mubr.bf16.mxu0 0
    %3282 = vmatmul.mubr.bf16.gmra.mrb[0].mxu0 %v2958
    %v3283 = vpop.f32.mrb[0].mxu0
    %v3284 = vadd.f32 %v2870, %v3283
    %v3285 = vpop.f32.mrb[0].mxu0
    %v3286 = vpop.f32.mrb[0].mxu0
    %v3287 = vadd.f32 %v2870, %v3286
    %v3288 = vpop.f32.mrb[0].mxu0
    %3289 = vmatprep.mubr.bf16.mxu0 0
    %3290 = vmatmul.mubr.bf16.gmra.mrb[0].mxu0 %v2961
    %v3291 = vpop.f32.mrb[0].mxu0
    %v3292 = vadd.f32 %v2870, %v3291
    %v3293 = vpop.f32.mrb[0].mxu0
    %v3294 = vpop.f32.mrb[0].mxu0
    %v3295 = vadd.f32 %v2870, %v3294
    %v3296 = vpop.f32.mrb[0].mxu0
    %3297 = vmatprep.mubr.bf16.mxu0 0
    %3298 = vmatmul.mubr.bf16.gmra.mrb[0].mxu0 %v2964
    %v3299 = vpop.f32.mrb[0].mxu0
    %v3300 = vadd.f32 %v2870, %v3299
    %v3301 = vpop.f32.mrb[0].mxu0
    %v3302 = vpop.f32.mrb[0].mxu0
    %v3303 = vadd.f32 %v2870, %v3302
    %v3304 = vpop.f32.mrb[0].mxu0
    %3305 = vmatprep.mubr.bf16.mxu0 0
    %3306 = vmatmul.mubr.bf16.gmra.mrb[0].mxu0 %v2967
    %v3307 = vpop.f32.mrb[0].mxu0
    %v3308 = vadd.f32 %v2870, %v3307
    %v3309 = vpop.f32.mrb[0].mxu0
    %v3310 = vpop.f32.mrb[0].mxu0
    %v3311 = vadd.f32 %v2870, %v3310
    %v3312 = vpop.f32.mrb[0].mxu0
    %3313 = vmatprep.mubr.bf16.mxu0 0
    %3314 = vmatmul.mubr.bf16.gmra.mrb[0].mxu0 %v2970
    %v3315 = vpop.f32.mrb[0].mxu0
    %v3316 = vadd.f32 %v2870, %v3315
    %v3317 = vpop.f32.mrb[0].mxu0
    %v3318 = vpop.f32.mrb[0].mxu0
    %v3319 = vadd.f32 %v2870, %v3318
    %v3320 = vpop.f32.mrb[0].mxu0
    %3321 = vmatprep.mubr.bf16.mxu0 0
    %3322 = vmatmul.mubr.bf16.gmra.mrb[0].mxu0 %v2973
    %v3323 = vpop.f32.mrb[0].mxu0
    %v3324 = vadd.f32 %v2870, %v3323
    %v3325 = vpop.f32.mrb[0].mxu0
    %v3326 = vpop.f32.mrb[0].mxu0
    %v3327 = vadd.f32 %v2870, %v3326
    %v3328 = vpop.f32.mrb[0].mxu0
    %3329 = vmatprep.mubr.bf16.mxu0 0
    %3330 = vmatmul.mubr.bf16.gmra.mrb[0].mxu0 %v2976
    %v3331 = vpop.f32.mrb[0].mxu0
    %v3332 = vadd.f32 %v2870, %v3331
    %v3333 = vpop.f32.mrb[0].mxu0
    %v3334 = vpop.f32.mrb[0].mxu0
    %v3335 = vadd.f32 %v2870, %v3334
    %v3336 = vpop.f32.mrb[0].mxu0
    %3337 = vmatprep.mubr.bf16.mxu0 0
    %3338 = vmatmul.mubr.bf16.gmra.mrb[0].mxu0 %v2979
    %v3339 = vpop.f32.mrb[0].mxu0
    %v3340 = vadd.f32 %v2870, %v3339
    %v3341 = vpop.f32.mrb[0].mxu0
    %v3342 = vpop.f32.mrb[0].mxu0
    %v3343 = vadd.f32 %v2870, %v3342
    %v3344 = vpop.f32.mrb[0].mxu0
    %3345 = vmatprep.mubr.bf16.mxu0 0
    %3346 = vmatmul.mubr.bf16.gmra.mrb[0].mxu0 %v2982
    %v3347 = vpop.f32.mrb[0].mxu0
    %v3348 = vadd.f32 %v2870, %v3347
    %v3349 = vpop.f32.mrb[0].mxu0
    %v3350 = vpop.f32.mrb[0].mxu0
    %v3351 = vadd.f32 %v2870, %v3350
    %v3352 = vpop.f32.mrb[0].mxu0
    %3353 = vmatprep.mubr.bf16.mxu0 0
    %3354 = vmatmul.mubr.bf16.gmra.mrb[0].mxu0 %v2985
    %v3355 = vpop.f32.mrb[0].mxu0
    %v3356 = vadd.f32 %v2870, %v3355
    %v3357 = vpop.f32.mrb[0].mxu0
    %v3358 = vpop.f32.mrb[0].mxu0
    %v3359 = vadd.f32 %v2870, %v3358
    %v3360 = vpop.f32.mrb[0].mxu0
    %3361 = vmatprep.mubr.bf16.mxu0 0
    %3362 = vmatmul.mubr.bf16.gmra.mrb[0].mxu0 %v2988
    %v3363 = vpop.f32.mrb[0].mxu0
    %v3364 = vadd.f32 %v2870, %v3363
    %v3365 = vpop.f32.mrb[0].mxu0
    %v3366 = vpop.f32.mrb[0].mxu0
    %v3367 = vadd.f32 %v2870, %v3366
    %v3368 = vpop.f32.mrb[0].mxu0
    %3369 = vmatprep.mubr.bf16.mxu0 0
    %3370 = vmatmul.mubr.bf16.gmra.mrb[0].mxu0 %v2991
    %v3371 = vpop.f32.mrb[0].mxu0
    %v3372 = vadd.f32 %v2870, %v3371
    %v3373 = vpop.f32.mrb[0].mxu0
    %v3374 = vpop.f32.mrb[0].mxu0
    %v3375 = vadd.f32 %v2870, %v3374
    %v3376 = vpop.f32.mrb[0].mxu0
    %3377 = vmatprep.mubr.bf16.mxu0 0
    %3378 = vmatmul.mubr.bf16.gmra.mrb[0].mxu0 %v2994
    %v3379 = vpop.f32.mrb[0].mxu0
    %v3380 = vadd.f32 %v2870, %v3379
    %v3381 = vpop.f32.mrb[0].mxu0
    %v3382 = vpop.f32.mrb[0].mxu0
    %v3383 = vadd.f32 %v2870, %v3382
    %v3384 = vpop.f32.mrb[0].mxu0
    %3385 = vmatprep.mubr.bf16.mxu0 0
    %3386 = vmatmul.mubr.bf16.gmra.mrb[0].mxu0 %v2997
    %v3387 = vpop.f32.mrb[0].mxu0
    %v3388 = vadd.f32 %v2870, %v3387
    %v3389 = vpop.f32.mrb[0].mxu0
    %v3390 = vpop.f32.mrb[0].mxu0
    %v3391 = vadd.f32 %v2870, %v3390
    %v3392 = vpop.f32.mrb[0].mxu0
    %3393 = vmatprep.mubr.bf16.mxu0 0
    %3394 = vmatmul.mubr.bf16.gmra.mrb[0].mxu0 %v3000
    %v3395 = vpop.f32.mrb[0].mxu0
    %v3396 = vadd.f32 %v2870, %v3395
    %v3397 = vpop.f32.mrb[0].mxu0
    %v3398 = vpop.f32.mrb[0].mxu0
    %v3399 = vadd.f32 %v2870, %v3398
    %v3400 = vpop.f32.mrb[0].mxu0
    %3401 = vmatprep.mubr.bf16.mxu0 0
    %3402 = vmatmul.mubr.bf16.gmra.mrb[0].mxu0 %v3003
    %v3403 = vpop.f32.mrb[0].mxu0
    %v3404 = vadd.f32 %v2870, %v3403
    %v3405 = vpop.f32.mrb[0].mxu0
    %v3406 = vpop.f32.mrb[0].mxu0
    %v3407 = vadd.f32 %v2870, %v3406
    %v3408 = vpop.f32.mrb[0].mxu0
    %3409 = vmatprep.mubr.bf16.mxu0 0
    %3410 = vmatmul.mubr.bf16.gmra.mrb[0].mxu0 %v3006
    %v3411 = vpop.f32.mrb[0].mxu0
    %v3412 = vadd.f32 %v2870, %v3411
    %v3413 = vpop.f32.mrb[0].mxu0
    %v3414 = vpop.f32.mrb[0].mxu0
    %v3415 = vadd.f32 %v2870, %v3414
    %v3416 = vpop.f32.mrb[0].mxu0
    %3417 = vmatprep.mubr.bf16.mxu0 0
    %3418 = vmatmul.mubr.bf16.gmra.mrb[0].mxu0 %v3009
    %v3419 = vpop.f32.mrb[0].mxu0
    %v3420 = vadd.f32 %v2870, %v3419
    %v3421 = vpop.f32.mrb[0].mxu0
    %v3422 = vpop.f32.mrb[0].mxu0
    %v3423 = vadd.f32 %v2870, %v3422
    %v3424 = vpop.f32.mrb[0].mxu0
    %3425 = vmatprep.mubr.bf16.mxu0 0
    %3426 = vmatmul.mubr.bf16.gmra.mrb[0].mxu0 %v3012
    %v3427 = vpop.f32.mrb[0].mxu0
    %v3428 = vadd.f32 %v2870, %v3427
    %v3429 = vpop.f32.mrb[0].mxu0
    %v3430 = vpop.f32.mrb[0].mxu0
    %v3431 = vadd.f32 %v2870, %v3430
    %v3432 = vpop.f32.mrb[0].mxu0
    %3433 = vmatprep.mubr.bf16.mxu0 0
    %3434 = vmatmul.mubr.bf16.gmra.mrb[0].mxu0 %v3015
    %v3435 = vpop.f32.mrb[0].mxu0
    %v3436 = vadd.f32 %v2870, %v3435
    %v3437 = vpop.f32.mrb[0].mxu0
    %v3438 = vpop.f32.mrb[0].mxu0
    %v3439 = vadd.f32 %v2870, %v3438
    %v3440 = vpop.f32.mrb[0].mxu0
    %3441 = vmatprep.mubr.bf16.mxu0 0
    %3442 = vmatmul.mubr.bf16.gmra.mrb[0].mxu0 %v3018
    %v3443 = vpop.f32.mrb[0].mxu0
    %v3444 = vadd.f32 %v2870, %v3443
    %v3445 = vpop.f32.mrb[0].mxu0
    %v3446 = vpop.f32.mrb[0].mxu0
    %v3447 = vadd.f32 %v2870, %v3446
    %v3448 = vpop.f32.mrb[0].mxu0
    %3449 = vmatprep.mubr.bf16.mxu0 0
    %3450 = vmatmul.mubr.bf16.gmra.mrb[0].mxu0 %v3021
    %v3451 = vpop.f32.mrb[0].mxu0
    %v3452 = vadd.f32 %v2870, %v3451
    %v3453 = vpop.f32.mrb[0].mxu0
    %v3454 = vpop.f32.mrb[0].mxu0
    %v3455 = vadd.f32 %v2870, %v3454
    %v3456 = vpop.f32.mrb[0].mxu0
    %3457 = vmatprep.mubr.bf16.mxu0 0
    %3458 = vmatmul.mubr.bf16.gmra.mrb[0].mxu0 %v3024
    %v3459 = vpop.f32.mrb[0].mxu0
    %v3460 = vadd.f32 %v2870, %v3459
    %v3461 = vpop.f32.mrb[0].mxu0
    %v3462 = vpop.f32.mrb[0].mxu0
    %v3463 = vadd.f32 %v2870, %v3462
    %v3464 = vpop.f32.mrb[0].mxu0
    %3465 = vmatprep.mubr.bf16.mxu0 0
    %3466 = vmatmul.mubr.bf16.gmra.mrb[0].mxu0 %v3027
    %v3467 = vpop.f32.mrb[0].mxu0
    %v3468 = vadd.f32 %v2870, %v3467
    %v3469 = vpop.f32.mrb[0].mxu0
    %v3470 = vpop.f32.mrb[0].mxu0
    %v3471 = vadd.f32 %v2870, %v3470
    %v3472 = vpop.f32.mrb[0].mxu0
    %3473 = vmatprep.mubr.bf16.mxu0 0
    %3474 = vmatmul.mubr.bf16.gmra.mrb[0].mxu0 %v3030
    %v3475 = vpop.f32.mrb[0].mxu0
    %v3476 = vadd.f32 %v2870, %v3475
    %v3477 = vpop.f32.mrb[0].mxu0
    %v3478 = vpop.f32.mrb[0].mxu0
    %v3479 = vadd.f32 %v2870, %v3478
    %v3480 = vpop.f32.mrb[0].mxu0
    %3481 = vmatprep.mubr.bf16.mxu0 0
    %3482 = vmatmul.mubr.bf16.gmra.mrb[0].mxu0 %v3033
    %v3483 = vpop.f32.mrb[0].mxu0
    %v3484 = vadd.f32 %v2870, %v3483
    %v3485 = vpop.f32.mrb[0].mxu0
    %v3486 = vpop.f32.mrb[0].mxu0
    %v3487 = vadd.f32 %v2870, %v3486
    %v3488 = vpop.f32.mrb[0].mxu0
    %3489 = vmatprep.mubr.bf16.mxu0 0
    %3490 = vmatmul.mubr.bf16.gmra.mrb[0].mxu0 %v3036
    %v3491 = vpop.f32.mrb[0].mxu0
    %v3492 = vadd.f32 %v2870, %v3491
    %v3493 = vpop.f32.mrb[0].mxu0
    %v3494 = vpop.f32.mrb[0].mxu0
    %v3495 = vadd.f32 %v2870, %v3494
    %v3496 = vpop.f32.mrb[0].mxu0
    %3497 = vmatprep.mubr.bf16.mxu0 0
    %3498 = vmatmul.mubr.bf16.gmra.mrb[0].mxu0 %v3039
    %v3499 = vpop.f32.mrb[0].mxu0
    %v3500 = vadd.f32 %v2870, %v3499
    %v3501 = vpop.f32.mrb[0].mxu0
    %v3502 = vpop.f32.mrb[0].mxu0
    %v3503 = vadd.f32 %v2870, %v3502
    %v3504 = vpop.f32.mrb[0].mxu0
    %3505 = vmatprep.mubr.bf16.mxu0 0
    %3506 = vmatmul.mubr.bf16.gmra.mrb[0].mxu0 %v3042
    %v3507 = vpop.f32.mrb[0].mxu0
    %v3508 = vadd.f32 %v2870, %v3507
    %v3509 = vpop.f32.mrb[0].mxu0
    %v3510 = vpop.f32.mrb[0].mxu0
    %v3511 = vadd.f32 %v2870, %v3510
    %v3512 = vpop.f32.mrb[0].mxu0
    %3513 = vmatprep.mubr.bf16.mxu0 0
    %3514 = vmatmul.mubr.bf16.gmra.mrb[0].mxu0 %v3045
    %v3515 = vpop.f32.mrb[0].mxu0
    %v3516 = vadd.f32 %v2870, %v3515
    %v3517 = vpop.f32.mrb[0].mxu0
    %v3518 = vpop.f32.mrb[0].mxu0
    %v3519 = vadd.f32 %v2870, %v3518
    %v3520 = vpop.f32.mrb[0].mxu0
    %3521 = vmatprep.mubr.bf16.mxu0 0
    %3522 = vmatmul.mubr.bf16.gmra.mrb[0].mxu0 %v3048
    %v3523 = vpop.f32.mrb[0].mxu0
    %v3524 = vadd.f32 %v2870, %v3523
    %v3525 = vpop.f32.mrb[0].mxu0
    %v3526 = vpop.f32.mrb[0].mxu0
    %v3527 = vadd.f32 %v2870, %v3526
    %v3528 = vpop.f32.mrb[0].mxu0
    %3529 = vmatprep.mubr.bf16.mxu0 0
    %3530 = vmatmul.mubr.bf16.gmra.mrb[0].mxu0 %v3051
    %v3531 = vpop.f32.mrb[0].mxu0
    %v3532 = vadd.f32 %v2870, %v3531
    %v3533 = vpop.f32.mrb[0].mxu0
    %v3534 = vpop.f32.mrb[0].mxu0
    %v3535 = vadd.f32 %v2870, %v3534
    %v3536 = vpop.f32.mrb[0].mxu0
    %3537 = vmatprep.mubr.bf16.mxu0 0
    %3538 = vmatmul.mubr.bf16.gmra.mrb[0].mxu0 %v3054
    %v3539 = vpop.f32.mrb[0].mxu0
    %v3540 = vadd.f32 %v2870, %v3539
    %v3541 = vpop.f32.mrb[0].mxu0
    %v3542 = vpop.f32.mrb[0].mxu0
    %v3543 = vadd.f32 %v2870, %v3542
    %v3544 = vpop.f32.mrb[0].mxu0
    %3545 = vmatprep.mubr.bf16.mxu0 0
    %3546 = vmatmul.mubr.bf16.gmra.mrb[0].mxu0 %v3057
    %v3547 = vpop.f32.mrb[0].mxu0
    %v3548 = vadd.f32 %v2870, %v3547
    %v3549 = vpop.f32.mrb[0].mxu0
    %v3550 = vpop.f32.mrb[0].mxu0
    %v3551 = vadd.f32 %v2870, %v3550
    %v3552 = vpop.f32.mrb[0].mxu0
    %3553 = vmatprep.mubr.bf16.mxu0 0
    %3554 = vmatmul.mubr.bf16.gmra.mrb[0].mxu0 %v3060
    %v3555 = vpop.f32.mrb[0].mxu0
    %v3556 = vadd.f32 %v2870, %v3555
    %v3557 = vpop.f32.mrb[0].mxu0
    %v3558 = vpop.f32.mrb[0].mxu0
    %v3559 = vadd.f32 %v2870, %v3558
    %v3560 = vpop.f32.mrb[0].mxu0
    %3561 = vmatprep.mubr.bf16.mxu0 0
    %3562 = vmatmul.mubr.bf16.gmra.mrb[0].mxu0 %v3063
    %v3563 = vpop.f32.mrb[0].mxu0
    %v3564 = vadd.f32 %v2870, %v3563
    %v3565 = vpop.f32.mrb[0].mxu0
    %v3566 = vpop.f32.mrb[0].mxu0
    %v3567 = vadd.f32 %v2870, %v3566
    %v3568 = vpop.f32.mrb[0].mxu0
    %3569 = vmatprep.mubr.bf16.mxu0 0
    %3570 = vmatmul.mubr.bf16.gmra.mrb[0].mxu0 %v3066
    %v3571 = vpop.f32.mrb[0].mxu0
    %v3572 = vadd.f32 %v2870, %v3571
    %v3573 = vpop.f32.mrb[0].mxu0
    %v3574 = vpop.f32.mrb[0].mxu0
    %v3575 = vadd.f32 %v2870, %v3574
    %v3576 = vpop.f32.mrb[0].mxu0
    %3577 = vmatprep.mubr.bf16.mxu0 0
    %3578 = vmatmul.mubr.bf16.gmra.mrb[0].mxu0 %v3069
    %v3579 = vpop.f32.mrb[0].mxu0
    %v3580 = vadd.f32 %v2870, %v3579
    %v3581 = vpop.f32.mrb[0].mxu0
    %v3582 = vpop.f32.mrb[0].mxu0
    %v3583 = vadd.f32 %v2870, %v3582
    %v3584 = vpop.f32.mrb[0].mxu0
    %3585 = vmatprep.mubr.bf16.mxu0 0
    %3586 = vmatmul.mubr.bf16.gmra.mrb[0].mxu0 %v3072
    %v3587 = vpop.f32.mrb[0].mxu0
    %v3588 = vadd.f32 %v2870, %v3587
    %v3589 = vpop.f32.mrb[0].mxu0
    %v3590 = vpop.f32.mrb[0].mxu0
    %v3591 = vadd.f32 %v2870, %v3590
    %v3592 = vpop.f32.mrb[0].mxu0
    %3593 = vmatprep.mubr.bf16.mxu0 0
    %3594 = vmatmul.mubr.bf16.gmra.mrb[0].mxu0 %v3075
    %v3595 = vpop.f32.mrb[0].mxu0
    %v3596 = vadd.f32 %v2870, %v3595
    %v3597 = vpop.f32.mrb[0].mxu0
    %v3598 = vpop.f32.mrb[0].mxu0
    %v3599 = vadd.f32 %v2870, %v3598
    %v3600 = vpop.f32.mrb[0].mxu0
    %3601 = vmatprep.mubr.bf16.mxu0 0
    %3602 = vmatmul.mubr.bf16.gmra.mrb[0].mxu0 %v3078
    %v3603 = vpop.f32.mrb[0].mxu0
    %v3604 = vadd.f32 %v2870, %v3603
    %v3605 = vpop.f32.mrb[0].mxu0
    %v3606 = vpop.f32.mrb[0].mxu0
    %v3607 = vadd.f32 %v2870, %v3606
    %v3608 = vpop.f32.mrb[0].mxu0
    %3609 = vmatprep.mubr.bf16.mxu0 0
    %3610 = vmatmul.mubr.bf16.gmra.mrb[0].mxu0 %v3081
    %v3611 = vpop.f32.mrb[0].mxu0
    %v3612 = vadd.f32 %v2870, %v3611
    %v3613 = vpop.f32.mrb[0].mxu0
    %v3614 = vpop.f32.mrb[0].mxu0
    %v3615 = vadd.f32 %v2870, %v3614
    %v3616 = vpop.f32.mrb[0].mxu0
    %3617 = vmatprep.mubr.bf16.mxu0 0
    %3618 = vmatmul.mubr.bf16.gmra.mrb[0].mxu0 %v3084
    %v3619 = vpop.f32.mrb[0].mxu0
    %v3620 = vadd.f32 %v2870, %v3619
    %v3621 = vpop.f32.mrb[0].mxu0
    %v3622 = vpop.f32.mrb[0].mxu0
    %v3623 = vadd.f32 %v2870, %v3622
    %v3624 = vpop.f32.mrb[0].mxu0
    %3625 = vmatprep.mubr.bf16.mxu0 0
    %3626 = vmatmul.mubr.bf16.gmra.mrb[0].mxu0 %v3087
    %v3627 = vpop.f32.mrb[0].mxu0
    %v3628 = vadd.f32 %v2870, %v3627
    %v3629 = vpop.f32.mrb[0].mxu0
    %v3630 = vpop.f32.mrb[0].mxu0
    %v3631 = vadd.f32 %v2870, %v3630
    %v3632 = vpop.f32.mrb[0].mxu0
    %3633 = vdwg.mxu0
    %v3634 = vmax.f32 %v3124, 0.0
    %v3635 = vmax.f32 %v3127, 0.0
    %v3636 = vmax.f32 %v3132, 0.0
    %v3637 = vmax.f32 %v3135, 0.0
    %v3638 = vmax.f32 %v3140, 0.0
    %v3639 = vmax.f32 %v3143, 0.0
    %v3640 = vmax.f32 %v3148, 0.0
    %v3641 = vmax.f32 %v3151, 0.0
    %v3642 = vmax.f32 %v3156, 0.0
    %v3643 = vmax.f32 %v3159, 0.0
    %v3644 = vmax.f32 %v3164, 0.0
    %v3645 = vmax.f32 %v3167, 0.0
    %v3646 = vmax.f32 %v3172, 0.0
    %v3647 = vmax.f32 %v3175, 0.0
    %v3648 = vmax.f32 %v3180, 0.0
    %v3649 = vmax.f32 %v3183, 0.0
    %v3650 = vmax.f32 %v3188, 0.0
    %v3651 = vmax.f32 %v3191, 0.0
    %v3652 = vmax.f32 %v3196, 0.0
    %v3653 = vmax.f32 %v3199, 0.0
    %v3654 = vmax.f32 %v3204, 0.0
    %v3655 = vmax.f32 %v3207, 0.0
    %v3656 = vmax.f32 %v3212, 0.0
    %v3657 = vmax.f32 %v3215, 0.0
    %v3658 = vmax.f32 %v3220, 0.0
    %v3659 = vmax.f32 %v3223, 0.0
    %v3660 = vmax.f32 %v3228, 0.0
    %v3661 = vmax.f32 %v3231, 0.0
    %v3662 = vmax.f32 %v3236, 0.0
    %v3663 = vmax.f32 %v3239, 0.0
    %v3664 = vmax.f32 %v3244, 0.0
    %v3665 = vmax.f32 %v3247, 0.0
    %v3666 = vmax.f32 %v3252, 0.0
    %v3667 = vmax.f32 %v3255, 0.0
    %v3668 = vmax.f32 %v3260, 0.0
    %v3669 = vmax.f32 %v3263, 0.0
    %v3670 = vmax.f32 %v3268, 0.0
    %v3671 = vmax.f32 %v3271, 0.0
    %v3672 = vmax.f32 %v3276, 0.0
    %v3673 = vmax.f32 %v3279, 0.0
    %v3674 = vmax.f32 %v3284, 0.0
    %v3675 = vmax.f32 %v3287, 0.0
    %v3676 = vmax.f32 %v3292, 0.0
    %v3677 = vmax.f32 %v3295, 0.0
    %v3678 = vmax.f32 %v3300, 0.0
    %v3679 = vmax.f32 %v3303, 0.0
    %v3680 = vmax.f32 %v3308, 0.0
    %v3681 = vmax.f32 %v3311, 0.0
    %v3682 = vmax.f32 %v3316, 0.0
    %v3683 = vmax.f32 %v3319, 0.0
    %v3684 = vmax.f32 %v3324, 0.0
    %v3685 = vmax.f32 %v3327, 0.0
    %v3686 = vmax.f32 %v3332, 0.0
    %v3687 = vmax.f32 %v3335, 0.0
    %v3688 = vmax.f32 %v3340, 0.0
    %v3689 = vmax.f32 %v3343, 0.0
    %v3690 = vmax.f32 %v3348, 0.0
    %v3691 = vmax.f32 %v3351, 0.0
    %v3692 = vmax.f32 %v3356, 0.0
    %v3693 = vmax.f32 %v3359, 0.0
    %v3694 = vmax.f32 %v3364, 0.0
    %v3695 = vmax.f32 %v3367, 0.0
    %v3696 = vmax.f32 %v3372, 0.0
    %v3697 = vmax.f32 %v3375, 0.0
    %v3698 = vmax.f32 %v3380, 0.0
    %v3699 = vmax.f32 %v3383, 0.0
    %v3700 = vmax.f32 %v3388, 0.0
    %v3701 = vmax.f32 %v3391, 0.0
    %v3702 = vmax.f32 %v3396, 0.0
    %v3703 = vmax.f32 %v3399, 0.0
    %v3704 = vmax.f32 %v3404, 0.0
    %v3705 = vmax.f32 %v3407, 0.0
    %v3706 = vmax.f32 %v3412, 0.0
    %v3707 = vmax.f32 %v3415, 0.0
    %v3708 = vmax.f32 %v3420, 0.0
    %v3709 = vmax.f32 %v3423, 0.0
    %v3710 = vmax.f32 %v3428, 0.0
    %v3711 = vmax.f32 %v3431, 0.0
    %v3712 = vmax.f32 %v3436, 0.0
    %v3713 = vmax.f32 %v3439, 0.0
    %v3714 = vmax.f32 %v3444, 0.0
    %v3715 = vmax.f32 %v3447, 0.0
    %v3716 = vmax.f32 %v3452, 0.0
    %v3717 = vmax.f32 %v3455, 0.0
    %v3718 = vmax.f32 %v3460, 0.0
    %v3719 = vmax.f32 %v3463, 0.0
    %v3720 = vmax.f32 %v3468, 0.0
    %v3721 = vmax.f32 %v3471, 0.0
    %v3722 = vmax.f32 %v3476, 0.0
    %v3723 = vmax.f32 %v3479, 0.0
    %v3724 = vmax.f32 %v3484, 0.0
    %v3725 = vmax.f32 %v3487, 0.0
    %v3726 = vmax.f32 %v3492, 0.0
    %v3727 = vmax.f32 %v3495, 0.0
    %v3728 = vmax.f32 %v3500, 0.0
    %v3729 = vmax.f32 %v3503, 0.0
    %v3730 = vmax.f32 %v3508, 0.0
    %v3731 = vmax.f32 %v3511, 0.0
    %v3732 = vmax.f32 %v3516, 0.0
    %v3733 = vmax.f32 %v3519, 0.0
    %v3734 = vmax.f32 %v3524, 0.0
    %v3735 = vmax.f32 %v3527, 0.0
    %v3736 = vmax.f32 %v3532, 0.0
    %v3737 = vmax.f32 %v3535, 0.0
    %v3738 = vmax.f32 %v3540, 0.0
    %v3739 = vmax.f32 %v3543, 0.0
    %v3740 = vmax.f32 %v3548, 0.0
    %v3741 = vmax.f32 %v3551, 0.0
    %v3742 = vmax.f32 %v3556, 0.0
    %v3743 = vmax.f32 %v3559, 0.0
    %v3744 = vmax.f32 %v3564, 0.0
    %v3745 = vmax.f32 %v3567, 0.0
    %v3746 = vmax.f32 %v3572, 0.0
    %v3747 = vmax.f32 %v3575, 0.0
    %v3748 = vmax.f32 %v3580, 0.0
    %v3749 = vmax.f32 %v3583, 0.0
    %v3750 = vmax.f32 %v3588, 0.0
    %v3751 = vmax.f32 %v3591, 0.0
    %v3752 = vmax.f32 %v3596, 0.0
    %v3753 = vmax.f32 %v3599, 0.0
    %v3754 = vmax.f32 %v3604, 0.0
    %v3755 = vmax.f32 %v3607, 0.0
    %v3756 = vmax.f32 %v3612, 0.0
    %v3757 = vmax.f32 %v3615, 0.0
    %v3758 = vmax.f32 %v3620, 0.0
    %v3759 = vmax.f32 %v3623, 0.0
    %v3760 = vmax.f32 %v3628, 0.0
    %v3761 = vmax.f32 %v3631, 0.0
    %v3762 = vpack.c.bf16 %v3635, %v3634
    %v3763 = vpack.c.bf16 %v3637, %v3636
    %v3764 = vpack.c.bf16 %v3639, %v3638
    %v3765 = vpack.c.bf16 %v3641, %v3640
    %v3766 = vpack.c.bf16 %v3643, %v3642
    %v3767 = vpack.c.bf16 %v3645, %v3644
    %v3768 = vpack.c.bf16 %v3647, %v3646
    %v3769 = vpack.c.bf16 %v3649, %v3648
    %v3770 = vpack.c.bf16 %v3651, %v3650
    %v3771 = vpack.c.bf16 %v3653, %v3652
    %v3772 = vpack.c.bf16 %v3655, %v3654
    %v3773 = vpack.c.bf16 %v3657, %v3656
    %v3774 = vpack.c.bf16 %v3659, %v3658
    %v3775 = vpack.c.bf16 %v3661, %v3660
    %v3776 = vpack.c.bf16 %v3663, %v3662
    %v3777 = vpack.c.bf16 %v3665, %v3664
    %v3778 = vpack.c.bf16 %v3667, %v3666
    %v3779 = vpack.c.bf16 %v3669, %v3668
    %v3780 = vpack.c.bf16 %v3671, %v3670
    %v3781 = vpack.c.bf16 %v3673, %v3672
    %v3782 = vpack.c.bf16 %v3675, %v3674
    %v3783 = vpack.c.bf16 %v3677, %v3676
    %v3784 = vpack.c.bf16 %v3679, %v3678
    %v3785 = vpack.c.bf16 %v3681, %v3680
    %v3786 = vpack.c.bf16 %v3683, %v3682
    %v3787 = vpack.c.bf16 %v3685, %v3684
    %v3788 = vpack.c.bf16 %v3687, %v3686
    %v3789 = vpack.c.bf16 %v3689, %v3688
    %v3790 = vpack.c.bf16 %v3691, %v3690
    %v3791 = vpack.c.bf16 %v3693, %v3692
    %v3792 = vpack.c.bf16 %v3695, %v3694
    %v3793 = vpack.c.bf16 %v3697, %v3696
    %v3794 = vpack.c.bf16 %v3699, %v3698
    %v3795 = vpack.c.bf16 %v3701, %v3700
    %v3796 = vpack.c.bf16 %v3703, %v3702
    %v3797 = vpack.c.bf16 %v3705, %v3704
    %v3798 = vpack.c.bf16 %v3707, %v3706
    %v3799 = vpack.c.bf16 %v3709, %v3708
    %v3800 = vpack.c.bf16 %v3711, %v3710
    %v3801 = vpack.c.bf16 %v3713, %v3712
    %v3802 = vpack.c.bf16 %v3715, %v3714
    %v3803 = vpack.c.bf16 %v3717, %v3716
    %v3804 = vpack.c.bf16 %v3719, %v3718
    %v3805 = vpack.c.bf16 %v3721, %v3720
    %v3806 = vpack.c.bf16 %v3723, %v3722
    %v3807 = vpack.c.bf16 %v3725, %v3724
    %v3808 = vpack.c.bf16 %v3727, %v3726
    %v3809 = vpack.c.bf16 %v3729, %v3728
    %v3810 = vpack.c.bf16 %v3731, %v3730
    %v3811 = vpack.c.bf16 %v3733, %v3732
    %v3812 = vpack.c.bf16 %v3735, %v3734
    %v3813 = vpack.c.bf16 %v3737, %v3736
    %v3814 = vpack.c.bf16 %v3739, %v3738
    %v3815 = vpack.c.bf16 %v3741, %v3740
    %v3816 = vpack.c.bf16 %v3743, %v3742
    %v3817 = vpack.c.bf16 %v3745, %v3744
    %v3818 = vpack.c.bf16 %v3747, %v3746
    %v3819 = vpack.c.bf16 %v3749, %v3748
    %v3820 = vpack.c.bf16 %v3751, %v3750
    %v3821 = vpack.c.bf16 %v3753, %v3752
    %v3822 = vpack.c.bf16 %v3755, %v3754
    %v3823 = vpack.c.bf16 %v3757, %v3756
    %v3824 = vpack.c.bf16 %v3759, %v3758
    %v3825 = vpack.c.bf16 %v3761, %v3760
    %v3826 = vld [vmem:[%s5] sm:$0xff]
    %v3827 = vld [vmem:[%s5 + $0x8] sm:$0xff]
    %v3828 = vld [vmem:[%s5 + $0x10] sm:$0xff]
    %v3829 = vld [vmem:[%s5 + $0x18] sm:$0xff]
    %v3830 = vld [vmem:[%s5 + $0x20] sm:$0xff]
    %v3831 = vld [vmem:[%s5 + $0x28] sm:$0xff]
    %v3832 = vld [vmem:[%s5 + $0x30] sm:$0xff]
    %v3833 = vld [vmem:[%s5 + $0x38] sm:$0xff]
    %v3834 = vld [vmem:[%s5 + $0x40] sm:$0xff]
    %v3835 = vld [vmem:[%s5 + $0x48] sm:$0xff]
    %v3836 = vld [vmem:[%s5 + $0x50] sm:$0xff]
    %v3837 = vld [vmem:[%s5 + $0x58] sm:$0xff]
    %v3838 = vld [vmem:[%s5 + $0x60] sm:$0xff]
    %v3839 = vld [vmem:[%s5 + $0x68] sm:$0xff]
    %v3840 = vld [vmem:[%s5 + $0x70] sm:$0xff]
    %v3841 = vld [vmem:[%s5 + $0x78] sm:$0xff]
    %v3842 = vld [vmem:[%s5 + $0x80] sm:$0xff]
    %v3843 = vld [vmem:[%s5 + $0x88] sm:$0xff]
    %v3844 = vld [vmem:[%s5 + $0x90] sm:$0xff]
    %v3845 = vld [vmem:[%s5 + $0x98] sm:$0xff]
    %v3846 = vld [vmem:[%s5 + $0xa0] sm:$0xff]
    %v3847 = vld [vmem:[%s5 + $0xa8] sm:$0xff]
    %v3848 = vld [vmem:[%s5 + $0xb0] sm:$0xff]
    %v3849 = vld [vmem:[%s5 + $0xb8] sm:$0xff]
    %v3850 = vld [vmem:[%s5 + $0xc0] sm:$0xff]
    %v3851 = vld [vmem:[%s5 + $0xc8] sm:$0xff]
    %v3852 = vld [vmem:[%s5 + $0xd0] sm:$0xff]
    %v3853 = vld [vmem:[%s5 + $0xd8] sm:$0xff]
    %v3854 = vld [vmem:[%s5 + $0xe0] sm:$0xff]
    %v3855 = vld [vmem:[%s5 + $0xe8] sm:$0xff]
    %v3856 = vld [vmem:[%s5 + $0xf0] sm:$0xff]
    %v3857 = vld [vmem:[%s5 + $0xf8] sm:$0xff]
    %v3858 = vld [vmem:[%s5 + $0x100] sm:$0xff]
    %v3859 = vld [vmem:[%s5 + $0x108] sm:$0xff]
    %v3860 = vld [vmem:[%s5 + $0x110] sm:$0xff]
    %v3861 = vld [vmem:[%s5 + $0x118] sm:$0xff]
    %v3862 = vld [vmem:[%s5 + $0x120] sm:$0xff]
    %v3863 = vld [vmem:[%s5 + $0x128] sm:$0xff]
    %v3864 = vld [vmem:[%s5 + $0x130] sm:$0xff]
    %v3865 = vld [vmem:[%s5 + $0x138] sm:$0xff]
    %v3866 = vld [vmem:[%s5 + $0x140] sm:$0xff]
    %v3867 = vld [vmem:[%s5 + $0x148] sm:$0xff]
    %v3868 = vld [vmem:[%s5 + $0x150] sm:$0xff]
    %v3869 = vld [vmem:[%s5 + $0x158] sm:$0xff]
    %v3870 = vld [vmem:[%s5 + $0x160] sm:$0xff]
    %v3871 = vld [vmem:[%s5 + $0x168] sm:$0xff]
    %v3872 = vld [vmem:[%s5 + $0x170] sm:$0xff]
    %v3873 = vld [vmem:[%s5 + $0x178] sm:$0xff]
    %v3874 = vld [vmem:[%s5 + $0x180] sm:$0xff]
    %v3875 = vld [vmem:[%s5 + $0x188] sm:$0xff]
    %v3876 = vld [vmem:[%s5 + $0x190] sm:$0xff]
    %v3877 = vld [vmem:[%s5 + $0x198] sm:$0xff]
    %v3878 = vld [vmem:[%s5 + $0x1a0] sm:$0xff]
    %v3879 = vld [vmem:[%s5 + $0x1a8] sm:$0xff]
    %v3880 = vld [vmem:[%s5 + $0x1b0] sm:$0xff]
    %v3881 = vld [vmem:[%s5 + $0x1b8] sm:$0xff]
    %v3882 = vld [vmem:[%s5 + $0x1c0] sm:$0xff]
    %v3883 = vld [vmem:[%s5 + $0x1c8] sm:$0xff]
    %v3884 = vld [vmem:[%s5 + $0x1d0] sm:$0xff]
    %v3885 = vld [vmem:[%s5 + $0x1d8] sm:$0xff]
    %v3886 = vld [vmem:[%s5 + $0x1e0] sm:$0xff]
    %v3887 = vld [vmem:[%s5 + $0x1e8] sm:$0xff]
    %v3888 = vld [vmem:[%s5 + $0x1f0] sm:$0xff]
    %v3889 = vld [vmem:[%s5 + $0x1f8] sm:$0xff]
    %v3890 = vld [vmem:[%s6] sm:$0xff]
    %v3892 = vlaneseq
    %v3893 = vshrl.u32 %v3892, 7
    %v3894 = vsub.s32 0, %v3893
    %v3895 = vrot.slane %v3890, %v3894
    %v3896 = vlaneseq
    %v3897 = vshrl.u32 %v3896, 7
    %v3898 = vsub.s32 1, %v3897
    %v3899 = vrot.slane %v3890, %v3898
    %v3900 = vlaneseq
    %v3901 = vshrl.u32 %v3900, 7
    %v3902 = vsub.s32 2, %v3901
    %v3903 = vrot.slane %v3890, %v3902
    %v3904 = vlaneseq
    %v3905 = vshrl.u32 %v3904, 7
    %v3906 = vsub.s32 3, %v3905
    %v3907 = vrot.slane %v3890, %v3906
    %v3908 = vlaneseq
    %v3909 = vshrl.u32 %v3908, 7
    %v3910 = vsub.s32 4, %v3909
    %v3911 = vrot.slane %v3890, %v3910
    %v3912 = vlaneseq
    %v3913 = vshrl.u32 %v3912, 7
    %v3914 = vsub.s32 5, %v3913
    %v3915 = vrot.slane %v3890, %v3914
    %v3916 = vlaneseq
    %v3917 = vshrl.u32 %v3916, 7
    %v3918 = vsub.s32 6, %v3917
    %v3919 = vrot.slane %v3890, %v3918
    %v3920 = vlaneseq
    %v3921 = vshrl.u32 %v3920, 7
    %v3922 = vsub.s32 7, %v3921
    %v3923 = vrot.slane %v3890, %v3922
    %v3996 = vunpack.c.l.b16 %v3826
    %v3997 = vunpack.c.h.b16 %v3826
    %v3998 = vunpack.c.l.b16 %v3827
    %v3999 = vunpack.c.h.b16 %v3827
    %v4000 = vunpack.c.l.b16 %v3828
    %v4001 = vunpack.c.h.b16 %v3828
    %v4002 = vunpack.c.l.b16 %v3829
    %v4003 = vunpack.c.h.b16 %v3829
    %v4004 = vunpack.c.l.b16 %v3830
    %v4005 = vunpack.c.h.b16 %v3830
    %v4006 = vunpack.c.l.b16 %v3831
    %v4007 = vunpack.c.h.b16 %v3831
    %v4008 = vunpack.c.l.b16 %v3832
    %v4009 = vunpack.c.h.b16 %v3832
    %v4010 = vunpack.c.l.b16 %v3833
    %v4011 = vunpack.c.h.b16 %v3833
    %v4012 = vunpack.c.l.b16 %v3834
    %v4013 = vunpack.c.h.b16 %v3834
    %v4014 = vunpack.c.l.b16 %v3835
    %v4015 = vunpack.c.h.b16 %v3835
    %v4016 = vunpack.c.l.b16 %v3836
    %v4017 = vunpack.c.h.b16 %v3836
    %v4018 = vunpack.c.l.b16 %v3837
    %v4019 = vunpack.c.h.b16 %v3837
    %v4020 = vunpack.c.l.b16 %v3838
    %v4021 = vunpack.c.h.b16 %v3838
    %v4022 = vunpack.c.l.b16 %v3839
    %v4023 = vunpack.c.h.b16 %v3839
    %v4024 = vunpack.c.l.b16 %v3840
    %v4025 = vunpack.c.h.b16 %v3840
    %v4026 = vunpack.c.l.b16 %v3841
    %v4027 = vunpack.c.h.b16 %v3841
    %v4028 = vunpack.c.l.b16 %v3842
    %v4029 = vunpack.c.h.b16 %v3842
    %v4030 = vunpack.c.l.b16 %v3843
    %v4031 = vunpack.c.h.b16 %v3843
    %v4032 = vunpack.c.l.b16 %v3844
    %v4033 = vunpack.c.h.b16 %v3844
    %v4034 = vunpack.c.l.b16 %v3845
    %v4035 = vunpack.c.h.b16 %v3845
    %v4036 = vunpack.c.l.b16 %v3846
    %v4037 = vunpack.c.h.b16 %v3846
    %v4038 = vunpack.c.l.b16 %v3847
    %v4039 = vunpack.c.h.b16 %v3847
    %v4040 = vunpack.c.l.b16 %v3848
    %v4041 = vunpack.c.h.b16 %v3848
    %v4042 = vunpack.c.l.b16 %v3849
    %v4043 = vunpack.c.h.b16 %v3849
    %v4044 = vunpack.c.l.b16 %v3850
    %v4045 = vunpack.c.h.b16 %v3850
    %v4046 = vunpack.c.l.b16 %v3851
    %v4047 = vunpack.c.h.b16 %v3851
    %v4048 = vunpack.c.l.b16 %v3852
    %v4049 = vunpack.c.h.b16 %v3852
    %v4050 = vunpack.c.l.b16 %v3853
    %v4051 = vunpack.c.h.b16 %v3853
    %v4052 = vunpack.c.l.b16 %v3854
    %v4053 = vunpack.c.h.b16 %v3854
    %v4054 = vunpack.c.l.b16 %v3855
    %v4055 = vunpack.c.h.b16 %v3855
    %v4056 = vunpack.c.l.b16 %v3856
    %v4057 = vunpack.c.h.b16 %v3856
    %v4058 = vunpack.c.l.b16 %v3857
    %v4059 = vunpack.c.h.b16 %v3857
    %v4060 = vunpack.c.l.b16 %v3858
    %v4061 = vunpack.c.h.b16 %v3858
    %v4062 = vunpack.c.l.b16 %v3859
    %v4063 = vunpack.c.h.b16 %v3859
    %v4064 = vunpack.c.l.b16 %v3860
    %v4065 = vunpack.c.h.b16 %v3860
    %v4066 = vunpack.c.l.b16 %v3861
    %v4067 = vunpack.c.h.b16 %v3861
    %v4068 = vunpack.c.l.b16 %v3862
    %v4069 = vunpack.c.h.b16 %v3862
    %v4070 = vunpack.c.l.b16 %v3863
    %v4071 = vunpack.c.h.b16 %v3863
    %v4072 = vunpack.c.l.b16 %v3864
    %v4073 = vunpack.c.h.b16 %v3864
    %v4074 = vunpack.c.l.b16 %v3865
    %v4075 = vunpack.c.h.b16 %v3865
    %v4076 = vunpack.c.l.b16 %v3866
    %v4077 = vunpack.c.h.b16 %v3866
    %v4078 = vunpack.c.l.b16 %v3867
    %v4079 = vunpack.c.h.b16 %v3867
    %v4080 = vunpack.c.l.b16 %v3868
    %v4081 = vunpack.c.h.b16 %v3868
    %v4082 = vunpack.c.l.b16 %v3869
    %v4083 = vunpack.c.h.b16 %v3869
    %v4084 = vunpack.c.l.b16 %v3870
    %v4085 = vunpack.c.h.b16 %v3870
    %v4086 = vunpack.c.l.b16 %v3871
    %v4087 = vunpack.c.h.b16 %v3871
    %v4088 = vunpack.c.l.b16 %v3872
    %v4089 = vunpack.c.h.b16 %v3872
    %v4090 = vunpack.c.l.b16 %v3873
    %v4091 = vunpack.c.h.b16 %v3873
    %v4092 = vunpack.c.l.b16 %v3874
    %v4093 = vunpack.c.h.b16 %v3874
    %v4094 = vunpack.c.l.b16 %v3875
    %v4095 = vunpack.c.h.b16 %v3875
    %v4096 = vunpack.c.l.b16 %v3876
    %v4097 = vunpack.c.h.b16 %v3876
    %v4098 = vunpack.c.l.b16 %v3877
    %v4099 = vunpack.c.h.b16 %v3877
    %v4100 = vunpack.c.l.b16 %v3878
    %v4101 = vunpack.c.h.b16 %v3878
    %v4102 = vunpack.c.l.b16 %v3879
    %v4103 = vunpack.c.h.b16 %v3879
    %v4104 = vunpack.c.l.b16 %v3880
    %v4105 = vunpack.c.h.b16 %v3880
    %v4106 = vunpack.c.l.b16 %v3881
    %v4107 = vunpack.c.h.b16 %v3881
    %v4108 = vunpack.c.l.b16 %v3882
    %v4109 = vunpack.c.h.b16 %v3882
    %v4110 = vunpack.c.l.b16 %v3883
    %v4111 = vunpack.c.h.b16 %v3883
    %v4112 = vunpack.c.l.b16 %v3884
    %v4113 = vunpack.c.h.b16 %v3884
    %v4114 = vunpack.c.l.b16 %v3885
    %v4115 = vunpack.c.h.b16 %v3885
    %v4116 = vunpack.c.l.b16 %v3886
    %v4117 = vunpack.c.h.b16 %v3886
    %v4118 = vunpack.c.l.b16 %v3887
    %v4119 = vunpack.c.h.b16 %v3887
    %v4120 = vunpack.c.l.b16 %v3888
    %v4121 = vunpack.c.h.b16 %v3888
    %v4122 = vunpack.c.l.b16 %v3889
    %v4123 = vunpack.c.h.b16 %v3889
    %v4124 = vpack.c.b16 %v4004, %v3996
    %v4125 = vpack.c.b16 %v4005, %v3997
    %v4126 = vpack.c.b16 %v4006, %v3998
    %v4127 = vpack.c.b16 %v4007, %v3999
    %v4128 = vpack.c.b16 %v4008, %v4000
    %v4129 = vpack.c.b16 %v4009, %v4001
    %v4130 = vpack.c.b16 %v4010, %v4002
    %v4131 = vpack.c.b16 %v4011, %v4003
    %v4132 = vpack.c.b16 %v4020, %v4012
    %v4133 = vpack.c.b16 %v4021, %v4013
    %v4134 = vpack.c.b16 %v4022, %v4014
    %v4135 = vpack.c.b16 %v4023, %v4015
    %v4136 = vpack.c.b16 %v4024, %v4016
    %v4137 = vpack.c.b16 %v4025, %v4017
    %v4138 = vpack.c.b16 %v4026, %v4018
    %v4139 = vpack.c.b16 %v4027, %v4019
    %v4140 = vpack.c.b16 %v4036, %v4028
    %v4141 = vpack.c.b16 %v4037, %v4029
    %v4142 = vpack.c.b16 %v4038, %v4030
    %v4143 = vpack.c.b16 %v4039, %v4031
    %v4144 = vpack.c.b16 %v4040, %v4032
    %v4145 = vpack.c.b16 %v4041, %v4033
    %v4146 = vpack.c.b16 %v4042, %v4034
    %v4147 = vpack.c.b16 %v4043, %v4035
    %v4148 = vpack.c.b16 %v4052, %v4044
    %v4149 = vpack.c.b16 %v4053, %v4045
    %v4150 = vpack.c.b16 %v4054, %v4046
    %v4151 = vpack.c.b16 %v4055, %v4047
    %v4152 = vpack.c.b16 %v4056, %v4048
    %v4153 = vpack.c.b16 %v4057, %v4049
    %v4154 = vpack.c.b16 %v4058, %v4050
    %v4155 = vpack.c.b16 %v4059, %v4051
    %v4156 = vpack.c.b16 %v4068, %v4060
    %v4157 = vpack.c.b16 %v4069, %v4061
    %v4158 = vpack.c.b16 %v4070, %v4062
    %v4159 = vpack.c.b16 %v4071, %v4063
    %v4160 = vpack.c.b16 %v4072, %v4064
    %v4161 = vpack.c.b16 %v4073, %v4065
    %v4162 = vpack.c.b16 %v4074, %v4066
    %v4163 = vpack.c.b16 %v4075, %v4067
    %v4164 = vpack.c.b16 %v4084, %v4076
    %v4165 = vpack.c.b16 %v4085, %v4077
    %v4166 = vpack.c.b16 %v4086, %v4078
    %v4167 = vpack.c.b16 %v4087, %v4079
    %v4168 = vpack.c.b16 %v4088, %v4080
    %v4169 = vpack.c.b16 %v4089, %v4081
    %v4170 = vpack.c.b16 %v4090, %v4082
    %v4171 = vpack.c.b16 %v4091, %v4083
    %v4172 = vpack.c.b16 %v4100, %v4092
    %v4173 = vpack.c.b16 %v4101, %v4093
    %v4174 = vpack.c.b16 %v4102, %v4094
    %v4175 = vpack.c.b16 %v4103, %v4095
    %v4176 = vpack.c.b16 %v4104, %v4096
    %v4177 = vpack.c.b16 %v4105, %v4097
    %v4178 = vpack.c.b16 %v4106, %v4098
    %v4179 = vpack.c.b16 %v4107, %v4099
    %v4180 = vpack.c.b16 %v4116, %v4108
    %v4181 = vpack.c.b16 %v4117, %v4109
    %v4182 = vpack.c.b16 %v4118, %v4110
    %v4183 = vpack.c.b16 %v4119, %v4111
    %v4184 = vpack.c.b16 %v4120, %v4112
    %v4185 = vpack.c.b16 %v4121, %v4113
    %v4186 = vpack.c.b16 %v4122, %v4114
    %v4187 = vpack.c.b16 %v4123, %v4115
    %4252 = vmatprep.subr.bf16.mxu0 %v4125
    %4253 = vmatpush1.bf16.msra.mxu0 %v4124
    %4254 = vmatprep.subr.bf16.mxu0 %v4133
    %4255 = vmatpush1.bf16.msra.mxu0 %v4132
    %4256 = vmatprep.subr.bf16.mxu0 %v4141
    %4257 = vmatpush1.bf16.msra.mxu0 %v4140
    %4258 = vmatprep.subr.bf16.mxu0 %v4149
    %4259 = vmatpush1.bf16.msra.mxu0 %v4148
    %4260 = vmatprep.subr.bf16.mxu0 %v4157
    %4261 = vmatpush1.bf16.msra.mxu0 %v4156
    %4262 = vmatprep.subr.bf16.mxu0 %v4165
    %4263 = vmatpush1.bf16.msra.mxu0 %v4164
    %4264 = vmatprep.subr.bf16.mxu0 %v4173
    %4265 = vmatpush1.bf16.msra.mxu0 %v4172
    %4266 = vmatprep.subr.bf16.mxu0 %v4181
    %4267 = vmatpush1.bf16.msra.mxu0 %v4180
    %4268 = vmatprep.subr.bf16.mxu0 0
    %4269 = vmatpush1.bf16.msra.mxu0 0
    %4270 = vmatprep.subr.bf16.mxu0 0
    %4271 = vmatpush1.bf16.msra.mxu0 0
    %4272 = vmatprep.subr.bf16.mxu0 0
    %4273 = vmatpush1.bf16.msra.mxu0 0
    %4274 = vmatprep.subr.bf16.mxu0 0
    %4275 = vmatpush1.bf16.msra.mxu0 0
    %4276 = vmatprep.subr.bf16.mxu0 0
    %4277 = vmatpush1.bf16.msra.mxu0 0
    %4278 = vmatprep.subr.bf16.mxu0 0
    %4279 = vmatpush1.bf16.msra.mxu0 0
    %4280 = vmatprep.subr.bf16.mxu0 0
    %4281 = vmatpush1.bf16.msra.mxu0 0
    %4282 = vmatprep.subr.bf16.mxu0 0
    %4283 = vmatpush1.bf16.msra.mxu0 0
    %4284 = vmatprep.mubr.bf16.mxu0 0
    %4285 = vmatmul.mubr.bf16.gmra.mrb[0].mxu0 %v3762
    %v4286 = vpop.f32.mrb[0].mxu0
    %v4287 = vadd.f32 %v3895, %v4286
    %v4288 = vpop.f32.mrb[0].mxu0
    %v4289 = vadd.f32 %v3899, %v4288
    %v4290 = vpop.f32.mrb[0].mxu0
    %v4291 = vadd.f32 %v3895, %v4290
    %v4292 = vpop.f32.mrb[0].mxu0
    %v4293 = vadd.f32 %v3899, %v4292
    %4294 = vmatprep.mubr.bf16.mxu0 0
    %4295 = vmatmul.mubr.bf16.gmra.mrb[0].mxu0 %v3763
    %v4296 = vpop.f32.mrb[0].mxu0
    %v4297 = vadd.f32 %v3895, %v4296
    %v4298 = vpop.f32.mrb[0].mxu0
    %v4299 = vadd.f32 %v3899, %v4298
    %v4300 = vpop.f32.mrb[0].mxu0
    %v4301 = vadd.f32 %v3895, %v4300
    %v4302 = vpop.f32.mrb[0].mxu0
    %v4303 = vadd.f32 %v3899, %v4302
    %4304 = vmatprep.mubr.bf16.mxu0 0
    %4305 = vmatmul.mubr.bf16.gmra.mrb[0].mxu0 %v3764
    %v4306 = vpop.f32.mrb[0].mxu0
    %v4307 = vadd.f32 %v3895, %v4306
    %v4308 = vpop.f32.mrb[0].mxu0
    %v4309 = vadd.f32 %v3899, %v4308
    %v4310 = vpop.f32.mrb[0].mxu0
    %v4311 = vadd.f32 %v3895, %v4310
    %v4312 = vpop.f32.mrb[0].mxu0
    %v4313 = vadd.f32 %v3899, %v4312
    %4314 = vmatprep.mubr.bf16.mxu0 0
    %4315 = vmatmul.mubr.bf16.gmra.mrb[0].mxu0 %v3765
    %v4316 = vpop.f32.mrb[0].mxu0
    %v4317 = vadd.f32 %v3895, %v4316
    %v4318 = vpop.f32.mrb[0].mxu0
    %v4319 = vadd.f32 %v3899, %v4318
    %v4320 = vpop.f32.mrb[0].mxu0
    %v4321 = vadd.f32 %v3895, %v4320
    %v4322 = vpop.f32.mrb[0].mxu0
    %v4323 = vadd.f32 %v3899, %v4322
    %4324 = vmatprep.mubr.bf16.mxu0 0
    %4325 = vmatmul.mubr.bf16.gmra.mrb[0].mxu0 %v3766
    %v4326 = vpop.f32.mrb[0].mxu0
    %v4327 = vadd.f32 %v3895, %v4326
    %v4328 = vpop.f32.mrb[0].mxu0
    %v4329 = vadd.f32 %v3899, %v4328
    %v4330 = vpop.f32.mrb[0].mxu0
    %v4331 = vadd.f32 %v3895, %v4330
    %v4332 = vpop.f32.mrb[0].mxu0
    %v4333 = vadd.f32 %v3899, %v4332
    %4334 = vmatprep.mubr.bf16.mxu0 0
    %4335 = vmatmul.mubr.bf16.gmra.mrb[0].mxu0 %v3767
    %v4336 = vpop.f32.mrb[0].mxu0
    %v4337 = vadd.f32 %v3895, %v4336
    %v4338 = vpop.f32.mrb[0].mxu0
    %v4339 = vadd.f32 %v3899, %v4338
    %v4340 = vpop.f32.mrb[0].mxu0
    %v4341 = vadd.f32 %v3895, %v4340
    %v4342 = vpop.f32.mrb[0].mxu0
    %v4343 = vadd.f32 %v3899, %v4342
    %4344 = vmatprep.mubr.bf16.mxu0 0
    %4345 = vmatmul.mubr.bf16.gmra.mrb[0].mxu0 %v3768
    %v4346 = vpop.f32.mrb[0].mxu0
    %v4347 = vadd.f32 %v3895, %v4346
    %v4348 = vpop.f32.mrb[0].mxu0
    %v4349 = vadd.f32 %v3899, %v4348
    %v4350 = vpop.f32.mrb[0].mxu0
    %v4351 = vadd.f32 %v3895, %v4350
    %v4352 = vpop.f32.mrb[0].mxu0
    %v4353 = vadd.f32 %v3899, %v4352
    %4354 = vmatprep.mubr.bf16.mxu0 0
    %4355 = vmatmul.mubr.bf16.gmra.mrb[0].mxu0 %v3769
    %v4356 = vpop.f32.mrb[0].mxu0
    %v4357 = vadd.f32 %v3895, %v4356
    %v4358 = vpop.f32.mrb[0].mxu0
    %v4359 = vadd.f32 %v3899, %v4358
    %v4360 = vpop.f32.mrb[0].mxu0
    %v4361 = vadd.f32 %v3895, %v4360
    %v4362 = vpop.f32.mrb[0].mxu0
    %v4363 = vadd.f32 %v3899, %v4362
    %4364 = vmatprep.mubr.bf16.mxu0 0
    %4365 = vmatmul.mubr.bf16.gmra.mrb[0].mxu0 %v3770
    %v4366 = vpop.f32.mrb[0].mxu0
    %v4367 = vadd.f32 %v3895, %v4366
    %v4368 = vpop.f32.mrb[0].mxu0
    %v4369 = vadd.f32 %v3899, %v4368
    %v4370 = vpop.f32.mrb[0].mxu0
    %v4371 = vadd.f32 %v3895, %v4370
    %v4372 = vpop.f32.mrb[0].mxu0
    %v4373 = vadd.f32 %v3899, %v4372
    %4374 = vmatprep.mubr.bf16.mxu0 0
    %4375 = vmatmul.mubr.bf16.gmra.mrb[0].mxu0 %v3771
    %v4376 = vpop.f32.mrb[0].mxu0
    %v4377 = vadd.f32 %v3895, %v4376
    %v4378 = vpop.f32.mrb[0].mxu0
    %v4379 = vadd.f32 %v3899, %v4378
    %v4380 = vpop.f32.mrb[0].mxu0
    %v4381 = vadd.f32 %v3895, %v4380
    %v4382 = vpop.f32.mrb[0].mxu0
    %v4383 = vadd.f32 %v3899, %v4382
    %4384 = vmatprep.mubr.bf16.mxu0 0
    %4385 = vmatmul.mubr.bf16.gmra.mrb[0].mxu0 %v3772
    %v4386 = vpop.f32.mrb[0].mxu0
    %v4387 = vadd.f32 %v3895, %v4386
    %v4388 = vpop.f32.mrb[0].mxu0
    %v4389 = vadd.f32 %v3899, %v4388
    %v4390 = vpop.f32.mrb[0].mxu0
    %v4391 = vadd.f32 %v3895, %v4390
    %v4392 = vpop.f32.mrb[0].mxu0
    %v4393 = vadd.f32 %v3899, %v4392
    %4394 = vmatprep.mubr.bf16.mxu0 0
    %4395 = vmatmul.mubr.bf16.gmra.mrb[0].mxu0 %v3773
    %v4396 = vpop.f32.mrb[0].mxu0
    %v4397 = vadd.f32 %v3895, %v4396
    %v4398 = vpop.f32.mrb[0].mxu0
    %v4399 = vadd.f32 %v3899, %v4398
    %v4400 = vpop.f32.mrb[0].mxu0
    %v4401 = vadd.f32 %v3895, %v4400
    %v4402 = vpop.f32.mrb[0].mxu0
    %v4403 = vadd.f32 %v3899, %v4402
    %4404 = vmatprep.mubr.bf16.mxu0 0
    %4405 = vmatmul.mubr.bf16.gmra.mrb[0].mxu0 %v3774
    %v4406 = vpop.f32.mrb[0].mxu0
    %v4407 = vadd.f32 %v3895, %v4406
    %v4408 = vpop.f32.mrb[0].mxu0
    %v4409 = vadd.f32 %v3899, %v4408
    %v4410 = vpop.f32.mrb[0].mxu0
    %v4411 = vadd.f32 %v3895, %v4410
    %v4412 = vpop.f32.mrb[0].mxu0
    %v4413 = vadd.f32 %v3899, %v4412
    %4414 = vmatprep.mubr.bf16.mxu0 0
    %4415 = vmatmul.mubr.bf16.gmra.mrb[0].mxu0 %v3775
    %v4416 = vpop.f32.mrb[0].mxu0
    %v4417 = vadd.f32 %v3895, %v4416
    %v4418 = vpop.f32.mrb[0].mxu0
    %v4419 = vadd.f32 %v3899, %v4418
    %v4420 = vpop.f32.mrb[0].mxu0
    %v4421 = vadd.f32 %v3895, %v4420
    %v4422 = vpop.f32.mrb[0].mxu0
    %v4423 = vadd.f32 %v3899, %v4422
    %4424 = vmatprep.mubr.bf16.mxu0 0
    %4425 = vmatmul.mubr.bf16.gmra.mrb[0].mxu0 %v3776
    %v4426 = vpop.f32.mrb[0].mxu0
    %v4427 = vadd.f32 %v3895, %v4426
    %v4428 = vpop.f32.mrb[0].mxu0
    %v4429 = vadd.f32 %v3899, %v4428
    %v4430 = vpop.f32.mrb[0].mxu0
    %v4431 = vadd.f32 %v3895, %v4430
    %v4432 = vpop.f32.mrb[0].mxu0
    %v4433 = vadd.f32 %v3899, %v4432
    %4434 = vmatprep.mubr.bf16.mxu0 0
    %4435 = vmatmul.mubr.bf16.gmra.mrb[0].mxu0 %v3777
    %v4436 = vpop.f32.mrb[0].mxu0
    %v4437 = vadd.f32 %v3895, %v4436
    %v4438 = vpop.f32.mrb[0].mxu0
    %v4439 = vadd.f32 %v3899, %v4438
    %v4440 = vpop.f32.mrb[0].mxu0
    %v4441 = vadd.f32 %v3895, %v4440
    %v4442 = vpop.f32.mrb[0].mxu0
    %v4443 = vadd.f32 %v3899, %v4442
    %4444 = vmatprep.mubr.bf16.mxu0 0
    %4445 = vmatmul.mubr.bf16.gmra.mrb[0].mxu0 %v3778
    %v4446 = vpop.f32.mrb[0].mxu0
    %v4447 = vadd.f32 %v3895, %v4446
    %v4448 = vpop.f32.mrb[0].mxu0
    %v4449 = vadd.f32 %v3899, %v4448
    %v4450 = vpop.f32.mrb[0].mxu0
    %v4451 = vadd.f32 %v3895, %v4450
    %v4452 = vpop.f32.mrb[0].mxu0
    %v4453 = vadd.f32 %v3899, %v4452
    %4454 = vmatprep.mubr.bf16.mxu0 0
    %4455 = vmatmul.mubr.bf16.gmra.mrb[0].mxu0 %v3779
    %v4456 = vpop.f32.mrb[0].mxu0
    %v4457 = vadd.f32 %v3895, %v4456
    %v4458 = vpop.f32.mrb[0].mxu0
    %v4459 = vadd.f32 %v3899, %v4458
    %v4460 = vpop.f32.mrb[0].mxu0
    %v4461 = vadd.f32 %v3895, %v4460
    %v4462 = vpop.f32.mrb[0].mxu0
    %v4463 = vadd.f32 %v3899, %v4462
    %4464 = vmatprep.mubr.bf16.mxu0 0
    %4465 = vmatmul.mubr.bf16.gmra.mrb[0].mxu0 %v3780
    %v4466 = vpop.f32.mrb[0].mxu0
    %v4467 = vadd.f32 %v3895, %v4466
    %v4468 = vpop.f32.mrb[0].mxu0
    %v4469 = vadd.f32 %v3899, %v4468
    %v4470 = vpop.f32.mrb[0].mxu0
    %v4471 = vadd.f32 %v3895, %v4470
    %v4472 = vpop.f32.mrb[0].mxu0
    %v4473 = vadd.f32 %v3899, %v4472
    %4474 = vmatprep.mubr.bf16.mxu0 0
    %4475 = vmatmul.mubr.bf16.gmra.mrb[0].mxu0 %v3781
    %v4476 = vpop.f32.mrb[0].mxu0
    %v4477 = vadd.f32 %v3895, %v4476
    %v4478 = vpop.f32.mrb[0].mxu0
    %v4479 = vadd.f32 %v3899, %v4478
    %v4480 = vpop.f32.mrb[0].mxu0
    %v4481 = vadd.f32 %v3895, %v4480
    %v4482 = vpop.f32.mrb[0].mxu0
    %v4483 = vadd.f32 %v3899, %v4482
    %4484 = vmatprep.mubr.bf16.mxu0 0
    %4485 = vmatmul.mubr.bf16.gmra.mrb[0].mxu0 %v3782
    %v4486 = vpop.f32.mrb[0].mxu0
    %v4487 = vadd.f32 %v3895, %v4486
    %v4488 = vpop.f32.mrb[0].mxu0
    %v4489 = vadd.f32 %v3899, %v4488
    %v4490 = vpop.f32.mrb[0].mxu0
    %v4491 = vadd.f32 %v3895, %v4490
    %v4492 = vpop.f32.mrb[0].mxu0
    %v4493 = vadd.f32 %v3899, %v4492
    %4494 = vmatprep.mubr.bf16.mxu0 0
    %4495 = vmatmul.mubr.bf16.gmra.mrb[0].mxu0 %v3783
    %v4496 = vpop.f32.mrb[0].mxu0
    %v4497 = vadd.f32 %v3895, %v4496
    %v4498 = vpop.f32.mrb[0].mxu0
    %v4499 = vadd.f32 %v3899, %v4498
    %v4500 = vpop.f32.mrb[0].mxu0
    %v4501 = vadd.f32 %v3895, %v4500
    %v4502 = vpop.f32.mrb[0].mxu0
    %v4503 = vadd.f32 %v3899, %v4502
    %4504 = vmatprep.mubr.bf16.mxu0 0
    %4505 = vmatmul.mubr.bf16.gmra.mrb[0].mxu0 %v3784
    %v4506 = vpop.f32.mrb[0].mxu0
    %v4507 = vadd.f32 %v3895, %v4506
    %v4508 = vpop.f32.mrb[0].mxu0
    %v4509 = vadd.f32 %v3899, %v4508
    %v4510 = vpop.f32.mrb[0].mxu0
    %v4511 = vadd.f32 %v3895, %v4510
    %v4512 = vpop.f32.mrb[0].mxu0
    %v4513 = vadd.f32 %v3899, %v4512
    %4514 = vmatprep.mubr.bf16.mxu0 0
    %4515 = vmatmul.mubr.bf16.gmra.mrb[0].mxu0 %v3785
    %v4516 = vpop.f32.mrb[0].mxu0
    %v4517 = vadd.f32 %v3895, %v4516
    %v4518 = vpop.f32.mrb[0].mxu0
    %v4519 = vadd.f32 %v3899, %v4518
    %v4520 = vpop.f32.mrb[0].mxu0
    %v4521 = vadd.f32 %v3895, %v4520
    %v4522 = vpop.f32.mrb[0].mxu0
    %v4523 = vadd.f32 %v3899, %v4522
    %4524 = vmatprep.mubr.bf16.mxu0 0
    %4525 = vmatmul.mubr.bf16.gmra.mrb[0].mxu0 %v3786
    %v4526 = vpop.f32.mrb[0].mxu0
    %v4527 = vadd.f32 %v3895, %v4526
    %v4528 = vpop.f32.mrb[0].mxu0
    %v4529 = vadd.f32 %v3899, %v4528
    %v4530 = vpop.f32.mrb[0].mxu0
    %v4531 = vadd.f32 %v3895, %v4530
    %v4532 = vpop.f32.mrb[0].mxu0
    %v4533 = vadd.f32 %v3899, %v4532
    %4534 = vmatprep.mubr.bf16.mxu0 0
    %4535 = vmatmul.mubr.bf16.gmra.mrb[0].mxu0 %v3787
    %v4536 = vpop.f32.mrb[0].mxu0
    %v4537 = vadd.f32 %v3895, %v4536
    %v4538 = vpop.f32.mrb[0].mxu0
    %v4539 = vadd.f32 %v3899, %v4538
    %v4540 = vpop.f32.mrb[0].mxu0
    %v4541 = vadd.f32 %v3895, %v4540
    %v4542 = vpop.f32.mrb[0].mxu0
    %v4543 = vadd.f32 %v3899, %v4542
    %4544 = vmatprep.mubr.bf16.mxu0 0
    %4545 = vmatmul.mubr.bf16.gmra.mrb[0].mxu0 %v3788
    %v4546 = vpop.f32.mrb[0].mxu0
    %v4547 = vadd.f32 %v3895, %v4546
    %v4548 = vpop.f32.mrb[0].mxu0
    %v4549 = vadd.f32 %v3899, %v4548
    %v4550 = vpop.f32.mrb[0].mxu0
    %v4551 = vadd.f32 %v3895, %v4550
    %v4552 = vpop.f32.mrb[0].mxu0
    %v4553 = vadd.f32 %v3899, %v4552
    %4554 = vmatprep.mubr.bf16.mxu0 0
    %4555 = vmatmul.mubr.bf16.gmra.mrb[0].mxu0 %v3789
    %v4556 = vpop.f32.mrb[0].mxu0
    %v4557 = vadd.f32 %v3895, %v4556
    %v4558 = vpop.f32.mrb[0].mxu0
    %v4559 = vadd.f32 %v3899, %v4558
    %v4560 = vpop.f32.mrb[0].mxu0
    %v4561 = vadd.f32 %v3895, %v4560
    %v4562 = vpop.f32.mrb[0].mxu0
    %v4563 = vadd.f32 %v3899, %v4562
    %4564 = vmatprep.mubr.bf16.mxu0 0
    %4565 = vmatmul.mubr.bf16.gmra.mrb[0].mxu0 %v3790
    %v4566 = vpop.f32.mrb[0].mxu0
    %v4567 = vadd.f32 %v3895, %v4566
    %v4568 = vpop.f32.mrb[0].mxu0
    %v4569 = vadd.f32 %v3899, %v4568
    %v4570 = vpop.f32.mrb[0].mxu0
    %v4571 = vadd.f32 %v3895, %v4570
    %v4572 = vpop.f32.mrb[0].mxu0
    %v4573 = vadd.f32 %v3899, %v4572
    %4574 = vmatprep.mubr.bf16.mxu0 0
    %4575 = vmatmul.mubr.bf16.gmra.mrb[0].mxu0 %v3791
    %v4576 = vpop.f32.mrb[0].mxu0
    %v4577 = vadd.f32 %v3895, %v4576
    %v4578 = vpop.f32.mrb[0].mxu0
    %v4579 = vadd.f32 %v3899, %v4578
    %v4580 = vpop.f32.mrb[0].mxu0
    %v4581 = vadd.f32 %v3895, %v4580
    %v4582 = vpop.f32.mrb[0].mxu0
    %v4583 = vadd.f32 %v3899, %v4582
    %4584 = vmatprep.mubr.bf16.mxu0 0
    %4585 = vmatmul.mubr.bf16.gmra.mrb[0].mxu0 %v3792
    %v4586 = vpop.f32.mrb[0].mxu0
    %v4587 = vadd.f32 %v3895, %v4586
    %v4588 = vpop.f32.mrb[0].mxu0
    %v4589 = vadd.f32 %v3899, %v4588
    %v4590 = vpop.f32.mrb[0].mxu0
    %v4591 = vadd.f32 %v3895, %v4590
    %v4592 = vpop.f32.mrb[0].mxu0
    %v4593 = vadd.f32 %v3899, %v4592
    %4594 = vmatprep.mubr.bf16.mxu0 0
    %4595 = vmatmul.mubr.bf16.gmra.mrb[0].mxu0 %v3793
    %v4596 = vpop.f32.mrb[0].mxu0
    %v4597 = vadd.f32 %v3895, %v4596
    %v4598 = vpop.f32.mrb[0].mxu0
    %v4599 = vadd.f32 %v3899, %v4598
    %v4600 = vpop.f32.mrb[0].mxu0
    %v4601 = vadd.f32 %v3895, %v4600
    %v4602 = vpop.f32.mrb[0].mxu0
    %v4603 = vadd.f32 %v3899, %v4602
    %4604 = vmatprep.mubr.bf16.mxu0 0
    %4605 = vmatmul.mubr.bf16.gmra.mrb[0].mxu0 %v3794
    %v4606 = vpop.f32.mrb[0].mxu0
    %v4607 = vadd.f32 %v3895, %v4606
    %v4608 = vpop.f32.mrb[0].mxu0
    %v4609 = vadd.f32 %v3899, %v4608
    %v4610 = vpop.f32.mrb[0].mxu0
    %v4611 = vadd.f32 %v3895, %v4610
    %v4612 = vpop.f32.mrb[0].mxu0
    %v4613 = vadd.f32 %v3899, %v4612
    %4614 = vmatprep.mubr.bf16.mxu0 0
    %4615 = vmatmul.mubr.bf16.gmra.mrb[0].mxu0 %v3795
    %v4616 = vpop.f32.mrb[0].mxu0
    %v4617 = vadd.f32 %v3895, %v4616
    %v4618 = vpop.f32.mrb[0].mxu0
    %v4619 = vadd.f32 %v3899, %v4618
    %v4620 = vpop.f32.mrb[0].mxu0
    %v4621 = vadd.f32 %v3895, %v4620
    %v4622 = vpop.f32.mrb[0].mxu0
    %v4623 = vadd.f32 %v3899, %v4622
    %4624 = vmatprep.mubr.bf16.mxu0 0
    %4625 = vmatmul.mubr.bf16.gmra.mrb[0].mxu0 %v3796
    %v4626 = vpop.f32.mrb[0].mxu0
    %v4627 = vadd.f32 %v3895, %v4626
    %v4628 = vpop.f32.mrb[0].mxu0
    %v4629 = vadd.f32 %v3899, %v4628
    %v4630 = vpop.f32.mrb[0].mxu0
    %v4631 = vadd.f32 %v3895, %v4630
    %v4632 = vpop.f32.mrb[0].mxu0
    %v4633 = vadd.f32 %v3899, %v4632
    %4634 = vmatprep.mubr.bf16.mxu0 0
    %4635 = vmatmul.mubr.bf16.gmra.mrb[0].mxu0 %v3797
    %v4636 = vpop.f32.mrb[0].mxu0
    %v4637 = vadd.f32 %v3895, %v4636
    %v4638 = vpop.f32.mrb[0].mxu0
    %v4639 = vadd.f32 %v3899, %v4638
    %v4640 = vpop.f32.mrb[0].mxu0
    %v4641 = vadd.f32 %v3895, %v4640
    %v4642 = vpop.f32.mrb[0].mxu0
    %v4643 = vadd.f32 %v3899, %v4642
    %4644 = vmatprep.mubr.bf16.mxu0 0
    %4645 = vmatmul.mubr.bf16.gmra.mrb[0].mxu0 %v3798
    %v4646 = vpop.f32.mrb[0].mxu0
    %v4647 = vadd.f32 %v3895, %v4646
    %v4648 = vpop.f32.mrb[0].mxu0
    %v4649 = vadd.f32 %v3899, %v4648
    %v4650 = vpop.f32.mrb[0].mxu0
    %v4651 = vadd.f32 %v3895, %v4650
    %v4652 = vpop.f32.mrb[0].mxu0
    %v4653 = vadd.f32 %v3899, %v4652
    %4654 = vmatprep.mubr.bf16.mxu0 0
    %4655 = vmatmul.mubr.bf16.gmra.mrb[0].mxu0 %v3799
    %v4656 = vpop.f32.mrb[0].mxu0
    %v4657 = vadd.f32 %v3895, %v4656
    %v4658 = vpop.f32.mrb[0].mxu0
    %v4659 = vadd.f32 %v3899, %v4658
    %v4660 = vpop.f32.mrb[0].mxu0
    %v4661 = vadd.f32 %v3895, %v4660
    %v4662 = vpop.f32.mrb[0].mxu0
    %v4663 = vadd.f32 %v3899, %v4662
    %4664 = vmatprep.mubr.bf16.mxu0 0
    %4665 = vmatmul.mubr.bf16.gmra.mrb[0].mxu0 %v3800
    %v4666 = vpop.f32.mrb[0].mxu0
    %v4667 = vadd.f32 %v3895, %v4666
    %v4668 = vpop.f32.mrb[0].mxu0
    %v4669 = vadd.f32 %v3899, %v4668
    %v4670 = vpop.f32.mrb[0].mxu0
    %v4671 = vadd.f32 %v3895, %v4670
    %v4672 = vpop.f32.mrb[0].mxu0
    %v4673 = vadd.f32 %v3899, %v4672
    %4674 = vmatprep.mubr.bf16.mxu0 0
    %4675 = vmatmul.mubr.bf16.gmra.mrb[0].mxu0 %v3801
    %v4676 = vpop.f32.mrb[0].mxu0
    %v4677 = vadd.f32 %v3895, %v4676
    %v4678 = vpop.f32.mrb[0].mxu0
    %v4679 = vadd.f32 %v3899, %v4678
    %v4680 = vpop.f32.mrb[0].mxu0
    %v4681 = vadd.f32 %v3895, %v4680
    %v4682 = vpop.f32.mrb[0].mxu0
    %v4683 = vadd.f32 %v3899, %v4682
    %4684 = vmatprep.mubr.bf16.mxu0 0
    %4685 = vmatmul.mubr.bf16.gmra.mrb[0].mxu0 %v3802
    %v4686 = vpop.f32.mrb[0].mxu0
    %v4687 = vadd.f32 %v3895, %v4686
    %v4688 = vpop.f32.mrb[0].mxu0
    %v4689 = vadd.f32 %v3899, %v4688
    %v4690 = vpop.f32.mrb[0].mxu0
    %v4691 = vadd.f32 %v3895, %v4690
    %v4692 = vpop.f32.mrb[0].mxu0
    %v4693 = vadd.f32 %v3899, %v4692
    %4694 = vmatprep.mubr.bf16.mxu0 0
    %4695 = vmatmul.mubr.bf16.gmra.mrb[0].mxu0 %v3803
    %v4696 = vpop.f32.mrb[0].mxu0
    %v4697 = vadd.f32 %v3895, %v4696
    %v4698 = vpop.f32.mrb[0].mxu0
    %v4699 = vadd.f32 %v3899, %v4698
    %v4700 = vpop.f32.mrb[0].mxu0
    %v4701 = vadd.f32 %v3895, %v4700
    %v4702 = vpop.f32.mrb[0].mxu0
    %v4703 = vadd.f32 %v3899, %v4702
    %4704 = vmatprep.mubr.bf16.mxu0 0
    %4705 = vmatmul.mubr.bf16.gmra.mrb[0].mxu0 %v3804
    %v4706 = vpop.f32.mrb[0].mxu0
    %v4707 = vadd.f32 %v3895, %v4706
    %v4708 = vpop.f32.mrb[0].mxu0
    %v4709 = vadd.f32 %v3899, %v4708
    %v4710 = vpop.f32.mrb[0].mxu0
    %v4711 = vadd.f32 %v3895, %v4710
    %v4712 = vpop.f32.mrb[0].mxu0
    %v4713 = vadd.f32 %v3899, %v4712
    %4714 = vmatprep.mubr.bf16.mxu0 0
    %4715 = vmatmul.mubr.bf16.gmra.mrb[0].mxu0 %v3805
    %v4716 = vpop.f32.mrb[0].mxu0
    %v4717 = vadd.f32 %v3895, %v4716
    %v4718 = vpop.f32.mrb[0].mxu0
    %v4719 = vadd.f32 %v3899, %v4718
    %v4720 = vpop.f32.mrb[0].mxu0
    %v4721 = vadd.f32 %v3895, %v4720
    %v4722 = vpop.f32.mrb[0].mxu0
    %v4723 = vadd.f32 %v3899, %v4722
    %4724 = vmatprep.mubr.bf16.mxu0 0
    %4725 = vmatmul.mubr.bf16.gmra.mrb[0].mxu0 %v3806
    %v4726 = vpop.f32.mrb[0].mxu0
    %v4727 = vadd.f32 %v3895, %v4726
    %v4728 = vpop.f32.mrb[0].mxu0
    %v4729 = vadd.f32 %v3899, %v4728
    %v4730 = vpop.f32.mrb[0].mxu0
    %v4731 = vadd.f32 %v3895, %v4730
    %v4732 = vpop.f32.mrb[0].mxu0
    %v4733 = vadd.f32 %v3899, %v4732
    %4734 = vmatprep.mubr.bf16.mxu0 0
    %4735 = vmatmul.mubr.bf16.gmra.mrb[0].mxu0 %v3807
    %v4736 = vpop.f32.mrb[0].mxu0
    %v4737 = vadd.f32 %v3895, %v4736
    %v4738 = vpop.f32.mrb[0].mxu0
    %v4739 = vadd.f32 %v3899, %v4738
    %v4740 = vpop.f32.mrb[0].mxu0
    %v4741 = vadd.f32 %v3895, %v4740
    %v4742 = vpop.f32.mrb[0].mxu0
    %v4743 = vadd.f32 %v3899, %v4742
    %4744 = vmatprep.mubr.bf16.mxu0 0
    %4745 = vmatmul.mubr.bf16.gmra.mrb[0].mxu0 %v3808
    %v4746 = vpop.f32.mrb[0].mxu0
    %v4747 = vadd.f32 %v3895, %v4746
    %v4748 = vpop.f32.mrb[0].mxu0
    %v4749 = vadd.f32 %v3899, %v4748
    %v4750 = vpop.f32.mrb[0].mxu0
    %v4751 = vadd.f32 %v3895, %v4750
    %v4752 = vpop.f32.mrb[0].mxu0
    %v4753 = vadd.f32 %v3899, %v4752
    %4754 = vmatprep.mubr.bf16.mxu0 0
    %4755 = vmatmul.mubr.bf16.gmra.mrb[0].mxu0 %v3809
    %v4756 = vpop.f32.mrb[0].mxu0
    %v4757 = vadd.f32 %v3895, %v4756
    %v4758 = vpop.f32.mrb[0].mxu0
    %v4759 = vadd.f32 %v3899, %v4758
    %v4760 = vpop.f32.mrb[0].mxu0
    %v4761 = vadd.f32 %v3895, %v4760
    %v4762 = vpop.f32.mrb[0].mxu0
    %v4763 = vadd.f32 %v3899, %v4762
    %4764 = vmatprep.mubr.bf16.mxu0 0
    %4765 = vmatmul.mubr.bf16.gmra.mrb[0].mxu0 %v3810
    %v4766 = vpop.f32.mrb[0].mxu0
    %v4767 = vadd.f32 %v3895, %v4766
    %v4768 = vpop.f32.mrb[0].mxu0
    %v4769 = vadd.f32 %v3899, %v4768
    %v4770 = vpop.f32.mrb[0].mxu0
    %v4771 = vadd.f32 %v3895, %v4770
    %v4772 = vpop.f32.mrb[0].mxu0
    %v4773 = vadd.f32 %v3899, %v4772
    %4774 = vmatprep.mubr.bf16.mxu0 0
    %4775 = vmatmul.mubr.bf16.gmra.mrb[0].mxu0 %v3811
    %v4776 = vpop.f32.mrb[0].mxu0
    %v4777 = vadd.f32 %v3895, %v4776
    %v4778 = vpop.f32.mrb[0].mxu0
    %v4779 = vadd.f32 %v3899, %v4778
    %v4780 = vpop.f32.mrb[0].mxu0
    %v4781 = vadd.f32 %v3895, %v4780
    %v4782 = vpop.f32.mrb[0].mxu0
    %v4783 = vadd.f32 %v3899, %v4782
    %4784 = vmatprep.mubr.bf16.mxu0 0
    %4785 = vmatmul.mubr.bf16.gmra.mrb[0].mxu0 %v3812
    %v4786 = vpop.f32.mrb[0].mxu0
    %v4787 = vadd.f32 %v3895, %v4786
    %v4788 = vpop.f32.mrb[0].mxu0
    %v4789 = vadd.f32 %v3899, %v4788
    %v4790 = vpop.f32.mrb[0].mxu0
    %v4791 = vadd.f32 %v3895, %v4790
    %v4792 = vpop.f32.mrb[0].mxu0
    %v4793 = vadd.f32 %v3899, %v4792
    %4794 = vmatprep.mubr.bf16.mxu0 0
    %4795 = vmatmul.mubr.bf16.gmra.mrb[0].mxu0 %v3813
    %v4796 = vpop.f32.mrb[0].mxu0
    %v4797 = vadd.f32 %v3895, %v4796
    %v4798 = vpop.f32.mrb[0].mxu0
    %v4799 = vadd.f32 %v3899, %v4798
    %v4800 = vpop.f32.mrb[0].mxu0
    %v4801 = vadd.f32 %v3895, %v4800
    %v4802 = vpop.f32.mrb[0].mxu0
    %v4803 = vadd.f32 %v3899, %v4802
    %4804 = vmatprep.mubr.bf16.mxu0 0
    %4805 = vmatmul.mubr.bf16.gmra.mrb[0].mxu0 %v3814
    %v4806 = vpop.f32.mrb[0].mxu0
    %v4807 = vadd.f32 %v3895, %v4806
    %v4808 = vpop.f32.mrb[0].mxu0
    %v4809 = vadd.f32 %v3899, %v4808
    %v4810 = vpop.f32.mrb[0].mxu0
    %v4811 = vadd.f32 %v3895, %v4810
    %v4812 = vpop.f32.mrb[0].mxu0
    %v4813 = vadd.f32 %v3899, %v4812
    %4814 = vmatprep.mubr.bf16.mxu0 0
    %4815 = vmatmul.mubr.bf16.gmra.mrb[0].mxu0 %v3815
    %v4816 = vpop.f32.mrb[0].mxu0
    %v4817 = vadd.f32 %v3895, %v4816
    %v4818 = vpop.f32.mrb[0].mxu0
    %v4819 = vadd.f32 %v3899, %v4818
    %v4820 = vpop.f32.mrb[0].mxu0
    %v4821 = vadd.f32 %v3895, %v4820
    %v4822 = vpop.f32.mrb[0].mxu0
    %v4823 = vadd.f32 %v3899, %v4822
    %4824 = vmatprep.mubr.bf16.mxu0 0
    %4825 = vmatmul.mubr.bf16.gmra.mrb[0].mxu0 %v3816
    %v4826 = vpop.f32.mrb[0].mxu0
    %v4827 = vadd.f32 %v3895, %v4826
    %v4828 = vpop.f32.mrb[0].mxu0
    %v4829 = vadd.f32 %v3899, %v4828
    %v4830 = vpop.f32.mrb[0].mxu0
    %v4831 = vadd.f32 %v3895, %v4830
    %v4832 = vpop.f32.mrb[0].mxu0
    %v4833 = vadd.f32 %v3899, %v4832
    %4834 = vmatprep.mubr.bf16.mxu0 0
    %4835 = vmatmul.mubr.bf16.gmra.mrb[0].mxu0 %v3817
    %v4836 = vpop.f32.mrb[0].mxu0
    %v4837 = vadd.f32 %v3895, %v4836
    %v4838 = vpop.f32.mrb[0].mxu0
    %v4839 = vadd.f32 %v3899, %v4838
    %v4840 = vpop.f32.mrb[0].mxu0
    %v4841 = vadd.f32 %v3895, %v4840
    %v4842 = vpop.f32.mrb[0].mxu0
    %v4843 = vadd.f32 %v3899, %v4842
    %4844 = vmatprep.mubr.bf16.mxu0 0
    %4845 = vmatmul.mubr.bf16.gmra.mrb[0].mxu0 %v3818
    %v4846 = vpop.f32.mrb[0].mxu0
    %v4847 = vadd.f32 %v3895, %v4846
    %v4848 = vpop.f32.mrb[0].mxu0
    %v4849 = vadd.f32 %v3899, %v4848
    %v4850 = vpop.f32.mrb[0].mxu0
    %v4851 = vadd.f32 %v3895, %v4850
    %v4852 = vpop.f32.mrb[0].mxu0
    %v4853 = vadd.f32 %v3899, %v4852
    %4854 = vmatprep.mubr.bf16.mxu0 0
    %4855 = vmatmul.mubr.bf16.gmra.mrb[0].mxu0 %v3819
    %v4856 = vpop.f32.mrb[0].mxu0
    %v4857 = vadd.f32 %v3895, %v4856
    %v4858 = vpop.f32.mrb[0].mxu0
    %v4859 = vadd.f32 %v3899, %v4858
    %v4860 = vpop.f32.mrb[0].mxu0
    %v4861 = vadd.f32 %v3895, %v4860
    %v4862 = vpop.f32.mrb[0].mxu0
    %v4863 = vadd.f32 %v3899, %v4862
    %4864 = vmatprep.mubr.bf16.mxu0 0
    %4865 = vmatmul.mubr.bf16.gmra.mrb[0].mxu0 %v3820
    %v4866 = vpop.f32.mrb[0].mxu0
    %v4867 = vadd.f32 %v3895, %v4866
    %v4868 = vpop.f32.mrb[0].mxu0
    %v4869 = vadd.f32 %v3899, %v4868
    %v4870 = vpop.f32.mrb[0].mxu0
    %v4871 = vadd.f32 %v3895, %v4870
    %v4872 = vpop.f32.mrb[0].mxu0
    %v4873 = vadd.f32 %v3899, %v4872
    %4874 = vmatprep.mubr.bf16.mxu0 0
    %4875 = vmatmul.mubr.bf16.gmra.mrb[0].mxu0 %v3821
    %v4876 = vpop.f32.mrb[0].mxu0
    %v4877 = vadd.f32 %v3895, %v4876
    %v4878 = vpop.f32.mrb[0].mxu0
    %v4879 = vadd.f32 %v3899, %v4878
    %v4880 = vpop.f32.mrb[0].mxu0
    %v4881 = vadd.f32 %v3895, %v4880
    %v4882 = vpop.f32.mrb[0].mxu0
    %v4883 = vadd.f32 %v3899, %v4882
    %4884 = vmatprep.mubr.bf16.mxu0 0
    %4885 = vmatmul.mubr.bf16.gmra.mrb[0].mxu0 %v3822
    %v4886 = vpop.f32.mrb[0].mxu0
    %v4887 = vadd.f32 %v3895, %v4886
    %v4888 = vpop.f32.mrb[0].mxu0
    %v4889 = vadd.f32 %v3899, %v4888
    %v4890 = vpop.f32.mrb[0].mxu0
    %v4891 = vadd.f32 %v3895, %v4890
    %v4892 = vpop.f32.mrb[0].mxu0
    %v4893 = vadd.f32 %v3899, %v4892
    %4894 = vmatprep.mubr.bf16.mxu0 0
    %4895 = vmatmul.mubr.bf16.gmra.mrb[0].mxu0 %v3823
    %v4896 = vpop.f32.mrb[0].mxu0
    %v4897 = vadd.f32 %v3895, %v4896
    %v4898 = vpop.f32.mrb[0].mxu0
    %v4899 = vadd.f32 %v3899, %v4898
    %v4900 = vpop.f32.mrb[0].mxu0
    %v4901 = vadd.f32 %v3895, %v4900
    %v4902 = vpop.f32.mrb[0].mxu0
    %v4903 = vadd.f32 %v3899, %v4902
    %4904 = vmatprep.mubr.bf16.mxu0 0
    %4905 = vmatmul.mubr.bf16.gmra.mrb[0].mxu0 %v3824
    %v4906 = vpop.f32.mrb[0].mxu0
    %v4907 = vadd.f32 %v3895, %v4906
    %v4908 = vpop.f32.mrb[0].mxu0
    %v4909 = vadd.f32 %v3899, %v4908
    %v4910 = vpop.f32.mrb[0].mxu0
    %v4911 = vadd.f32 %v3895, %v4910
    %v4912 = vpop.f32.mrb[0].mxu0
    %v4913 = vadd.f32 %v3899, %v4912
    %4914 = vmatprep.mubr.bf16.mxu0 0
    %4915 = vmatmul.mubr.bf16.gmra.mrb[0].mxu0 %v3825
    %v4916 = vpop.f32.mrb[0].mxu0
    %v4917 = vadd.f32 %v3895, %v4916
    %v4918 = vpop.f32.mrb[0].mxu0
    %v4919 = vadd.f32 %v3899, %v4918
    %v4920 = vpop.f32.mrb[0].mxu0
    %v4921 = vadd.f32 %v3895, %v4920
    %v4922 = vpop.f32.mrb[0].mxu0
    %v4923 = vadd.f32 %v3899, %v4922
    %4924 = vdwg.mxu0
    %4925 = vmatprep.subr.bf16.mxu0 %v4127
    %4926 = vmatpush1.bf16.msra.mxu0 %v4126
    %4927 = vmatprep.subr.bf16.mxu0 %v4135
    %4928 = vmatpush1.bf16.msra.mxu0 %v4134
    %4929 = vmatprep.subr.bf16.mxu0 %v4143
    %4930 = vmatpush1.bf16.msra.mxu0 %v4142
    %4931 = vmatprep.subr.bf16.mxu0 %v4151
    %4932 = vmatpush1.bf16.msra.mxu0 %v4150
    %4933 = vmatprep.subr.bf16.mxu0 %v4159
    %4934 = vmatpush1.bf16.msra.mxu0 %v4158
    %4935 = vmatprep.subr.bf16.mxu0 %v4167
    %4936 = vmatpush1.bf16.msra.mxu0 %v4166
    %4937 = vmatprep.subr.bf16.mxu0 %v4175
    %4938 = vmatpush1.bf16.msra.mxu0 %v4174
    %4939 = vmatprep.subr.bf16.mxu0 %v4183
    %4940 = vmatpush1.bf16.msra.mxu0 %v4182
    %4941 = vmatprep.subr.bf16.mxu0 0
    %4942 = vmatpush1.bf16.msra.mxu0 0
    %4943 = vmatprep.subr.bf16.mxu0 0
    %4944 = vmatpush1.bf16.msra.mxu0 0
    %4945 = vmatprep.subr.bf16.mxu0 0
    %4946 = vmatpush1.bf16.msra.mxu0 0
    %4947 = vmatprep.subr.bf16.mxu0 0
    %4948 = vmatpush1.bf16.msra.mxu0 0
    %4949 = vmatprep.subr.bf16.mxu0 0
    %4950 = vmatpush1.bf16.msra.mxu0 0
    %4951 = vmatprep.subr.bf16.mxu0 0
    %4952 = vmatpush1.bf16.msra.mxu0 0
    %4953 = vmatprep.subr.bf16.mxu0 0
    %4954 = vmatpush1.bf16.msra.mxu0 0
    %4955 = vmatprep.subr.bf16.mxu0 0
    %4956 = vmatpush1.bf16.msra.mxu0 0
    %4957 = vmatprep.mubr.bf16.mxu0 0
    %4958 = vmatmul.mubr.bf16.gmra.mrb[0].mxu0 %v3762
    %v4959 = vpop.f32.mrb[0].mxu0
    %v4960 = vadd.f32 %v3903, %v4959
    %v4961 = vpop.f32.mrb[0].mxu0
    %v4962 = vadd.f32 %v3907, %v4961
    %v4963 = vpop.f32.mrb[0].mxu0
    %v4964 = vadd.f32 %v3903, %v4963
    %v4965 = vpop.f32.mrb[0].mxu0
    %v4966 = vadd.f32 %v3907, %v4965
    %4967 = vmatprep.mubr.bf16.mxu0 0
    %4968 = vmatmul.mubr.bf16.gmra.mrb[0].mxu0 %v3763
    %v4969 = vpop.f32.mrb[0].mxu0
    %v4970 = vadd.f32 %v3903, %v4969
    %v4971 = vpop.f32.mrb[0].mxu0
    %v4972 = vadd.f32 %v3907, %v4971
    %v4973 = vpop.f32.mrb[0].mxu0
    %v4974 = vadd.f32 %v3903, %v4973
    %v4975 = vpop.f32.mrb[0].mxu0
    %v4976 = vadd.f32 %v3907, %v4975
    %4977 = vmatprep.mubr.bf16.mxu0 0
    %4978 = vmatmul.mubr.bf16.gmra.mrb[0].mxu0 %v3764
    %v4979 = vpop.f32.mrb[0].mxu0
    %v4980 = vadd.f32 %v3903, %v4979
    %v4981 = vpop.f32.mrb[0].mxu0
    %v4982 = vadd.f32 %v3907, %v4981
    %v4983 = vpop.f32.mrb[0].mxu0
    %v4984 = vadd.f32 %v3903, %v4983
    %v4985 = vpop.f32.mrb[0].mxu0
    %v4986 = vadd.f32 %v3907, %v4985
    %4987 = vmatprep.mubr.bf16.mxu0 0
    %4988 = vmatmul.mubr.bf16.gmra.mrb[0].mxu0 %v3765
    %v4989 = vpop.f32.mrb[0].mxu0
    %v4990 = vadd.f32 %v3903, %v4989
    %v4991 = vpop.f32.mrb[0].mxu0
    %v4992 = vadd.f32 %v3907, %v4991
    %v4993 = vpop.f32.mrb[0].mxu0
    %v4994 = vadd.f32 %v3903, %v4993
    %v4995 = vpop.f32.mrb[0].mxu0
    %v4996 = vadd.f32 %v3907, %v4995
    %4997 = vmatprep.mubr.bf16.mxu0 0
    %4998 = vmatmul.mubr.bf16.gmra.mrb[0].mxu0 %v3766
    %v4999 = vpop.f32.mrb[0].mxu0
    %v5000 = vadd.f32 %v3903, %v4999
    %v5001 = vpop.f32.mrb[0].mxu0
    %v5002 = vadd.f32 %v3907, %v5001
    %v5003 = vpop.f32.mrb[0].mxu0
    %v5004 = vadd.f32 %v3903, %v5003
    %v5005 = vpop.f32.mrb[0].mxu0
    %v5006 = vadd.f32 %v3907, %v5005
    %5007 = vmatprep.mubr.bf16.mxu0 0
    %5008 = vmatmul.mubr.bf16.gmra.mrb[0].mxu0 %v3767
    %v5009 = vpop.f32.mrb[0].mxu0
    %v5010 = vadd.f32 %v3903, %v5009
    %v5011 = vpop.f32.mrb[0].mxu0
    %v5012 = vadd.f32 %v3907, %v5011
    %v5013 = vpop.f32.mrb[0].mxu0
    %v5014 = vadd.f32 %v3903, %v5013
    %v5015 = vpop.f32.mrb[0].mxu0
    %v5016 = vadd.f32 %v3907, %v5015
    %5017 = vmatprep.mubr.bf16.mxu0 0
    %5018 = vmatmul.mubr.bf16.gmra.mrb[0].mxu0 %v3768
    %v5019 = vpop.f32.mrb[0].mxu0
    %v5020 = vadd.f32 %v3903, %v5019
    %v5021 = vpop.f32.mrb[0].mxu0
    %v5022 = vadd.f32 %v3907, %v5021
    %v5023 = vpop.f32.mrb[0].mxu0
    %v5024 = vadd.f32 %v3903, %v5023
    %v5025 = vpop.f32.mrb[0].mxu0
    %v5026 = vadd.f32 %v3907, %v5025
    %5027 = vmatprep.mubr.bf16.mxu0 0
    %5028 = vmatmul.mubr.bf16.gmra.mrb[0].mxu0 %v3769
    %v5029 = vpop.f32.mrb[0].mxu0
    %v5030 = vadd.f32 %v3903, %v5029
    %v5031 = vpop.f32.mrb[0].mxu0
    %v5032 = vadd.f32 %v3907, %v5031
    %v5033 = vpop.f32.mrb[0].mxu0
    %v5034 = vadd.f32 %v3903, %v5033
    %v5035 = vpop.f32.mrb[0].mxu0
    %v5036 = vadd.f32 %v3907, %v5035
    %5037 = vmatprep.mubr.bf16.mxu0 0
    %5038 = vmatmul.mubr.bf16.gmra.mrb[0].mxu0 %v3770
    %v5039 = vpop.f32.mrb[0].mxu0
    %v5040 = vadd.f32 %v3903, %v5039
    %v5041 = vpop.f32.mrb[0].mxu0
    %v5042 = vadd.f32 %v3907, %v5041
    %v5043 = vpop.f32.mrb[0].mxu0
    %v5044 = vadd.f32 %v3903, %v5043
    %v5045 = vpop.f32.mrb[0].mxu0
    %v5046 = vadd.f32 %v3907, %v5045
    %5047 = vmatprep.mubr.bf16.mxu0 0
    %5048 = vmatmul.mubr.bf16.gmra.mrb[0].mxu0 %v3771
    %v5049 = vpop.f32.mrb[0].mxu0
    %v5050 = vadd.f32 %v3903, %v5049
    %v5051 = vpop.f32.mrb[0].mxu0
    %v5052 = vadd.f32 %v3907, %v5051
    %v5053 = vpop.f32.mrb[0].mxu0
    %v5054 = vadd.f32 %v3903, %v5053
    %v5055 = vpop.f32.mrb[0].mxu0
    %v5056 = vadd.f32 %v3907, %v5055
    %5057 = vmatprep.mubr.bf16.mxu0 0
    %5058 = vmatmul.mubr.bf16.gmra.mrb[0].mxu0 %v3772
    %v5059 = vpop.f32.mrb[0].mxu0
    %v5060 = vadd.f32 %v3903, %v5059
    %v5061 = vpop.f32.mrb[0].mxu0
    %v5062 = vadd.f32 %v3907, %v5061
    %v5063 = vpop.f32.mrb[0].mxu0
    %v5064 = vadd.f32 %v3903, %v5063
    %v5065 = vpop.f32.mrb[0].mxu0
    %v5066 = vadd.f32 %v3907, %v5065
    %5067 = vmatprep.mubr.bf16.mxu0 0
    %5068 = vmatmul.mubr.bf16.gmra.mrb[0].mxu0 %v3773
    %v5069 = vpop.f32.mrb[0].mxu0
    %v5070 = vadd.f32 %v3903, %v5069
    %v5071 = vpop.f32.mrb[0].mxu0
    %v5072 = vadd.f32 %v3907, %v5071
    %v5073 = vpop.f32.mrb[0].mxu0
    %v5074 = vadd.f32 %v3903, %v5073
    %v5075 = vpop.f32.mrb[0].mxu0
    %v5076 = vadd.f32 %v3907, %v5075
    %5077 = vmatprep.mubr.bf16.mxu0 0
    %5078 = vmatmul.mubr.bf16.gmra.mrb[0].mxu0 %v3774
    %v5079 = vpop.f32.mrb[0].mxu0
    %v5080 = vadd.f32 %v3903, %v5079
    %v5081 = vpop.f32.mrb[0].mxu0
    %v5082 = vadd.f32 %v3907, %v5081
    %v5083 = vpop.f32.mrb[0].mxu0
    %v5084 = vadd.f32 %v3903, %v5083
    %v5085 = vpop.f32.mrb[0].mxu0
    %v5086 = vadd.f32 %v3907, %v5085
    %5087 = vmatprep.mubr.bf16.mxu0 0
    %5088 = vmatmul.mubr.bf16.gmra.mrb[0].mxu0 %v3775
    %v5089 = vpop.f32.mrb[0].mxu0
    %v5090 = vadd.f32 %v3903, %v5089
    %v5091 = vpop.f32.mrb[0].mxu0
    %v5092 = vadd.f32 %v3907, %v5091
    %v5093 = vpop.f32.mrb[0].mxu0
    %v5094 = vadd.f32 %v3903, %v5093
    %v5095 = vpop.f32.mrb[0].mxu0
    %v5096 = vadd.f32 %v3907, %v5095
    %5097 = vmatprep.mubr.bf16.mxu0 0
    %5098 = vmatmul.mubr.bf16.gmra.mrb[0].mxu0 %v3776
    %v5099 = vpop.f32.mrb[0].mxu0
    %v5100 = vadd.f32 %v3903, %v5099
    %v5101 = vpop.f32.mrb[0].mxu0
    %v5102 = vadd.f32 %v3907, %v5101
    %v5103 = vpop.f32.mrb[0].mxu0
    %v5104 = vadd.f32 %v3903, %v5103
    %v5105 = vpop.f32.mrb[0].mxu0
    %v5106 = vadd.f32 %v3907, %v5105
    %5107 = vmatprep.mubr.bf16.mxu0 0
    %5108 = vmatmul.mubr.bf16.gmra.mrb[0].mxu0 %v3777
    %v5109 = vpop.f32.mrb[0].mxu0
    %v5110 = vadd.f32 %v3903, %v5109
    %v5111 = vpop.f32.mrb[0].mxu0
    %v5112 = vadd.f32 %v3907, %v5111
    %v5113 = vpop.f32.mrb[0].mxu0
    %v5114 = vadd.f32 %v3903, %v5113
    %v5115 = vpop.f32.mrb[0].mxu0
    %v5116 = vadd.f32 %v3907, %v5115
    %5117 = vmatprep.mubr.bf16.mxu0 0
    %5118 = vmatmul.mubr.bf16.gmra.mrb[0].mxu0 %v3778
    %v5119 = vpop.f32.mrb[0].mxu0
    %v5120 = vadd.f32 %v3903, %v5119
    %v5121 = vpop.f32.mrb[0].mxu0
    %v5122 = vadd.f32 %v3907, %v5121
    %v5123 = vpop.f32.mrb[0].mxu0
    %v5124 = vadd.f32 %v3903, %v5123
    %v5125 = vpop.f32.mrb[0].mxu0
    %v5126 = vadd.f32 %v3907, %v5125
    %5127 = vmatprep.mubr.bf16.mxu0 0
    %5128 = vmatmul.mubr.bf16.gmra.mrb[0].mxu0 %v3779
    %v5129 = vpop.f32.mrb[0].mxu0
    %v5130 = vadd.f32 %v3903, %v5129
    %v5131 = vpop.f32.mrb[0].mxu0
    %v5132 = vadd.f32 %v3907, %v5131
    %v5133 = vpop.f32.mrb[0].mxu0
    %v5134 = vadd.f32 %v3903, %v5133
    %v5135 = vpop.f32.mrb[0].mxu0
    %v5136 = vadd.f32 %v3907, %v5135
    %5137 = vmatprep.mubr.bf16.mxu0 0
    %5138 = vmatmul.mubr.bf16.gmra.mrb[0].mxu0 %v3780
    %v5139 = vpop.f32.mrb[0].mxu0
    %v5140 = vadd.f32 %v3903, %v5139
    %v5141 = vpop.f32.mrb[0].mxu0
    %v5142 = vadd.f32 %v3907, %v5141
    %v5143 = vpop.f32.mrb[0].mxu0
    %v5144 = vadd.f32 %v3903, %v5143
    %v5145 = vpop.f32.mrb[0].mxu0
    %v5146 = vadd.f32 %v3907, %v5145
    %5147 = vmatprep.mubr.bf16.mxu0 0
    %5148 = vmatmul.mubr.bf16.gmra.mrb[0].mxu0 %v3781
    %v5149 = vpop.f32.mrb[0].mxu0
    %v5150 = vadd.f32 %v3903, %v5149
    %v5151 = vpop.f32.mrb[0].mxu0
    %v5152 = vadd.f32 %v3907, %v5151
    %v5153 = vpop.f32.mrb[0].mxu0
    %v5154 = vadd.f32 %v3903, %v5153
    %v5155 = vpop.f32.mrb[0].mxu0
    %v5156 = vadd.f32 %v3907, %v5155
    %5157 = vmatprep.mubr.bf16.mxu0 0
    %5158 = vmatmul.mubr.bf16.gmra.mrb[0].mxu0 %v3782
    %v5159 = vpop.f32.mrb[0].mxu0
    %v5160 = vadd.f32 %v3903, %v5159
    %v5161 = vpop.f32.mrb[0].mxu0
    %v5162 = vadd.f32 %v3907, %v5161
    %v5163 = vpop.f32.mrb[0].mxu0
    %v5164 = vadd.f32 %v3903, %v5163
    %v5165 = vpop.f32.mrb[0].mxu0
    %v5166 = vadd.f32 %v3907, %v5165
    %5167 = vmatprep.mubr.bf16.mxu0 0
    %5168 = vmatmul.mubr.bf16.gmra.mrb[0].mxu0 %v3783
    %v5169 = vpop.f32.mrb[0].mxu0
    %v5170 = vadd.f32 %v3903, %v5169
    %v5171 = vpop.f32.mrb[0].mxu0
    %v5172 = vadd.f32 %v3907, %v5171
    %v5173 = vpop.f32.mrb[0].mxu0
    %v5174 = vadd.f32 %v3903, %v5173
    %v5175 = vpop.f32.mrb[0].mxu0
    %v5176 = vadd.f32 %v3907, %v5175
    %5177 = vmatprep.mubr.bf16.mxu0 0
    %5178 = vmatmul.mubr.bf16.gmra.mrb[0].mxu0 %v3784
    %v5179 = vpop.f32.mrb[0].mxu0
    %v5180 = vadd.f32 %v3903, %v5179
    %v5181 = vpop.f32.mrb[0].mxu0
    %v5182 = vadd.f32 %v3907, %v5181
    %v5183 = vpop.f32.mrb[0].mxu0
    %v5184 = vadd.f32 %v3903, %v5183
    %v5185 = vpop.f32.mrb[0].mxu0
    %v5186 = vadd.f32 %v3907, %v5185
    %5187 = vmatprep.mubr.bf16.mxu0 0
    %5188 = vmatmul.mubr.bf16.gmra.mrb[0].mxu0 %v3785
    %v5189 = vpop.f32.mrb[0].mxu0
    %v5190 = vadd.f32 %v3903, %v5189
    %v5191 = vpop.f32.mrb[0].mxu0
    %v5192 = vadd.f32 %v3907, %v5191
    %v5193 = vpop.f32.mrb[0].mxu0
    %v5194 = vadd.f32 %v3903, %v5193
    %v5195 = vpop.f32.mrb[0].mxu0
    %v5196 = vadd.f32 %v3907, %v5195
    %5197 = vmatprep.mubr.bf16.mxu0 0
    %5198 = vmatmul.mubr.bf16.gmra.mrb[0].mxu0 %v3786
    %v5199 = vpop.f32.mrb[0].mxu0
    %v5200 = vadd.f32 %v3903, %v5199
    %v5201 = vpop.f32.mrb[0].mxu0
    %v5202 = vadd.f32 %v3907, %v5201
    %v5203 = vpop.f32.mrb[0].mxu0
    %v5204 = vadd.f32 %v3903, %v5203
    %v5205 = vpop.f32.mrb[0].mxu0
    %v5206 = vadd.f32 %v3907, %v5205
    %5207 = vmatprep.mubr.bf16.mxu0 0
    %5208 = vmatmul.mubr.bf16.gmra.mrb[0].mxu0 %v3787
    %v5209 = vpop.f32.mrb[0].mxu0
    %v5210 = vadd.f32 %v3903, %v5209
    %v5211 = vpop.f32.mrb[0].mxu0
    %v5212 = vadd.f32 %v3907, %v5211
    %v5213 = vpop.f32.mrb[0].mxu0
    %v5214 = vadd.f32 %v3903, %v5213
    %v5215 = vpop.f32.mrb[0].mxu0
    %v5216 = vadd.f32 %v3907, %v5215
    %5217 = vmatprep.mubr.bf16.mxu0 0
    %5218 = vmatmul.mubr.bf16.gmra.mrb[0].mxu0 %v3788
    %v5219 = vpop.f32.mrb[0].mxu0
    %v5220 = vadd.f32 %v3903, %v5219
    %v5221 = vpop.f32.mrb[0].mxu0
    %v5222 = vadd.f32 %v3907, %v5221
    %v5223 = vpop.f32.mrb[0].mxu0
    %v5224 = vadd.f32 %v3903, %v5223
    %v5225 = vpop.f32.mrb[0].mxu0
    %v5226 = vadd.f32 %v3907, %v5225
    %5227 = vmatprep.mubr.bf16.mxu0 0
    %5228 = vmatmul.mubr.bf16.gmra.mrb[0].mxu0 %v3789
    %v5229 = vpop.f32.mrb[0].mxu0
    %v5230 = vadd.f32 %v3903, %v5229
    %v5231 = vpop.f32.mrb[0].mxu0
    %v5232 = vadd.f32 %v3907, %v5231
    %v5233 = vpop.f32.mrb[0].mxu0
    %v5234 = vadd.f32 %v3903, %v5233
    %v5235 = vpop.f32.mrb[0].mxu0
    %v5236 = vadd.f32 %v3907, %v5235
    %5237 = vmatprep.mubr.bf16.mxu0 0
    %5238 = vmatmul.mubr.bf16.gmra.mrb[0].mxu0 %v3790
    %v5239 = vpop.f32.mrb[0].mxu0
    %v5240 = vadd.f32 %v3903, %v5239
    %v5241 = vpop.f32.mrb[0].mxu0
    %v5242 = vadd.f32 %v3907, %v5241
    %v5243 = vpop.f32.mrb[0].mxu0
    %v5244 = vadd.f32 %v3903, %v5243
    %v5245 = vpop.f32.mrb[0].mxu0
    %v5246 = vadd.f32 %v3907, %v5245
    %5247 = vmatprep.mubr.bf16.mxu0 0
    %5248 = vmatmul.mubr.bf16.gmra.mrb[0].mxu0 %v3791
    %v5249 = vpop.f32.mrb[0].mxu0
    %v5250 = vadd.f32 %v3903, %v5249
    %v5251 = vpop.f32.mrb[0].mxu0
    %v5252 = vadd.f32 %v3907, %v5251
    %v5253 = vpop.f32.mrb[0].mxu0
    %v5254 = vadd.f32 %v3903, %v5253
    %v5255 = vpop.f32.mrb[0].mxu0
    %v5256 = vadd.f32 %v3907, %v5255
    %5257 = vmatprep.mubr.bf16.mxu0 0
    %5258 = vmatmul.mubr.bf16.gmra.mrb[0].mxu0 %v3792
    %v5259 = vpop.f32.mrb[0].mxu0
    %v5260 = vadd.f32 %v3903, %v5259
    %v5261 = vpop.f32.mrb[0].mxu0
    %v5262 = vadd.f32 %v3907, %v5261
    %v5263 = vpop.f32.mrb[0].mxu0
    %v5264 = vadd.f32 %v3903, %v5263
    %v5265 = vpop.f32.mrb[0].mxu0
    %v5266 = vadd.f32 %v3907, %v5265
    %5267 = vmatprep.mubr.bf16.mxu0 0
    %5268 = vmatmul.mubr.bf16.gmra.mrb[0].mxu0 %v3793
    %v5269 = vpop.f32.mrb[0].mxu0
    %v5270 = vadd.f32 %v3903, %v5269
    %v5271 = vpop.f32.mrb[0].mxu0
    %v5272 = vadd.f32 %v3907, %v5271
    %v5273 = vpop.f32.mrb[0].mxu0
    %v5274 = vadd.f32 %v3903, %v5273
    %v5275 = vpop.f32.mrb[0].mxu0
    %v5276 = vadd.f32 %v3907, %v5275
    %5277 = vmatprep.mubr.bf16.mxu0 0
    %5278 = vmatmul.mubr.bf16.gmra.mrb[0].mxu0 %v3794
    %v5279 = vpop.f32.mrb[0].mxu0
    %v5280 = vadd.f32 %v3903, %v5279
    %v5281 = vpop.f32.mrb[0].mxu0
    %v5282 = vadd.f32 %v3907, %v5281
    %v5283 = vpop.f32.mrb[0].mxu0
    %v5284 = vadd.f32 %v3903, %v5283
    %v5285 = vpop.f32.mrb[0].mxu0
    %v5286 = vadd.f32 %v3907, %v5285
    %5287 = vmatprep.mubr.bf16.mxu0 0
    %5288 = vmatmul.mubr.bf16.gmra.mrb[0].mxu0 %v3795
    %v5289 = vpop.f32.mrb[0].mxu0
    %v5290 = vadd.f32 %v3903, %v5289
    %v5291 = vpop.f32.mrb[0].mxu0
    %v5292 = vadd.f32 %v3907, %v5291
    %v5293 = vpop.f32.mrb[0].mxu0
    %v5294 = vadd.f32 %v3903, %v5293
    %v5295 = vpop.f32.mrb[0].mxu0
    %v5296 = vadd.f32 %v3907, %v5295
    %5297 = vmatprep.mubr.bf16.mxu0 0
    %5298 = vmatmul.mubr.bf16.gmra.mrb[0].mxu0 %v3796
    %v5299 = vpop.f32.mrb[0].mxu0
    %v5300 = vadd.f32 %v3903, %v5299
    %v5301 = vpop.f32.mrb[0].mxu0
    %v5302 = vadd.f32 %v3907, %v5301
    %v5303 = vpop.f32.mrb[0].mxu0
    %v5304 = vadd.f32 %v3903, %v5303
    %v5305 = vpop.f32.mrb[0].mxu0
    %v5306 = vadd.f32 %v3907, %v5305
    %5307 = vmatprep.mubr.bf16.mxu0 0
    %5308 = vmatmul.mubr.bf16.gmra.mrb[0].mxu0 %v3797
    %v5309 = vpop.f32.mrb[0].mxu0
    %v5310 = vadd.f32 %v3903, %v5309
    %v5311 = vpop.f32.mrb[0].mxu0
    %v5312 = vadd.f32 %v3907, %v5311
    %v5313 = vpop.f32.mrb[0].mxu0
    %v5314 = vadd.f32 %v3903, %v5313
    %v5315 = vpop.f32.mrb[0].mxu0
    %v5316 = vadd.f32 %v3907, %v5315
    %5317 = vmatprep.mubr.bf16.mxu0 0
    %5318 = vmatmul.mubr.bf16.gmra.mrb[0].mxu0 %v3798
    %v5319 = vpop.f32.mrb[0].mxu0
    %v5320 = vadd.f32 %v3903, %v5319
    %v5321 = vpop.f32.mrb[0].mxu0
    %v5322 = vadd.f32 %v3907, %v5321
    %v5323 = vpop.f32.mrb[0].mxu0
    %v5324 = vadd.f32 %v3903, %v5323
    %v5325 = vpop.f32.mrb[0].mxu0
    %v5326 = vadd.f32 %v3907, %v5325
    %5327 = vmatprep.mubr.bf16.mxu0 0
    %5328 = vmatmul.mubr.bf16.gmra.mrb[0].mxu0 %v3799
    %v5329 = vpop.f32.mrb[0].mxu0
    %v5330 = vadd.f32 %v3903, %v5329
    %v5331 = vpop.f32.mrb[0].mxu0
    %v5332 = vadd.f32 %v3907, %v5331
    %v5333 = vpop.f32.mrb[0].mxu0
    %v5334 = vadd.f32 %v3903, %v5333
    %v5335 = vpop.f32.mrb[0].mxu0
    %v5336 = vadd.f32 %v3907, %v5335
    %5337 = vmatprep.mubr.bf16.mxu0 0
    %5338 = vmatmul.mubr.bf16.gmra.mrb[0].mxu0 %v3800
    %v5339 = vpop.f32.mrb[0].mxu0
    %v5340 = vadd.f32 %v3903, %v5339
    %v5341 = vpop.f32.mrb[0].mxu0
    %v5342 = vadd.f32 %v3907, %v5341
    %v5343 = vpop.f32.mrb[0].mxu0
    %v5344 = vadd.f32 %v3903, %v5343
    %v5345 = vpop.f32.mrb[0].mxu0
    %v5346 = vadd.f32 %v3907, %v5345
    %5347 = vmatprep.mubr.bf16.mxu0 0
    %5348 = vmatmul.mubr.bf16.gmra.mrb[0].mxu0 %v3801
    %v5349 = vpop.f32.mrb[0].mxu0
    %v5350 = vadd.f32 %v3903, %v5349
    %v5351 = vpop.f32.mrb[0].mxu0
    %v5352 = vadd.f32 %v3907, %v5351
    %v5353 = vpop.f32.mrb[0].mxu0
    %v5354 = vadd.f32 %v3903, %v5353
    %v5355 = vpop.f32.mrb[0].mxu0
    %v5356 = vadd.f32 %v3907, %v5355
    %5357 = vmatprep.mubr.bf16.mxu0 0
    %5358 = vmatmul.mubr.bf16.gmra.mrb[0].mxu0 %v3802
    %v5359 = vpop.f32.mrb[0].mxu0
    %v5360 = vadd.f32 %v3903, %v5359
    %v5361 = vpop.f32.mrb[0].mxu0
    %v5362 = vadd.f32 %v3907, %v5361
    %v5363 = vpop.f32.mrb[0].mxu0
    %v5364 = vadd.f32 %v3903, %v5363
    %v5365 = vpop.f32.mrb[0].mxu0
    %v5366 = vadd.f32 %v3907, %v5365
    %5367 = vmatprep.mubr.bf16.mxu0 0
    %5368 = vmatmul.mubr.bf16.gmra.mrb[0].mxu0 %v3803
    %v5369 = vpop.f32.mrb[0].mxu0
    %v5370 = vadd.f32 %v3903, %v5369
    %v5371 = vpop.f32.mrb[0].mxu0
    %v5372 = vadd.f32 %v3907, %v5371
    %v5373 = vpop.f32.mrb[0].mxu0
    %v5374 = vadd.f32 %v3903, %v5373
    %v5375 = vpop.f32.mrb[0].mxu0
    %v5376 = vadd.f32 %v3907, %v5375
    %5377 = vmatprep.mubr.bf16.mxu0 0
    %5378 = vmatmul.mubr.bf16.gmra.mrb[0].mxu0 %v3804
    %v5379 = vpop.f32.mrb[0].mxu0
    %v5380 = vadd.f32 %v3903, %v5379
    %v5381 = vpop.f32.mrb[0].mxu0
    %v5382 = vadd.f32 %v3907, %v5381
    %v5383 = vpop.f32.mrb[0].mxu0
    %v5384 = vadd.f32 %v3903, %v5383
    %v5385 = vpop.f32.mrb[0].mxu0
    %v5386 = vadd.f32 %v3907, %v5385
    %5387 = vmatprep.mubr.bf16.mxu0 0
    %5388 = vmatmul.mubr.bf16.gmra.mrb[0].mxu0 %v3805
    %v5389 = vpop.f32.mrb[0].mxu0
    %v5390 = vadd.f32 %v3903, %v5389
    %v5391 = vpop.f32.mrb[0].mxu0
    %v5392 = vadd.f32 %v3907, %v5391
    %v5393 = vpop.f32.mrb[0].mxu0
    %v5394 = vadd.f32 %v3903, %v5393
    %v5395 = vpop.f32.mrb[0].mxu0
    %v5396 = vadd.f32 %v3907, %v5395
    %5397 = vmatprep.mubr.bf16.mxu0 0
    %5398 = vmatmul.mubr.bf16.gmra.mrb[0].mxu0 %v3806
    %v5399 = vpop.f32.mrb[0].mxu0
    %v5400 = vadd.f32 %v3903, %v5399
    %v5401 = vpop.f32.mrb[0].mxu0
    %v5402 = vadd.f32 %v3907, %v5401
    %v5403 = vpop.f32.mrb[0].mxu0
    %v5404 = vadd.f32 %v3903, %v5403
    %v5405 = vpop.f32.mrb[0].mxu0
    %v5406 = vadd.f32 %v3907, %v5405
    %5407 = vmatprep.mubr.bf16.mxu0 0
    %5408 = vmatmul.mubr.bf16.gmra.mrb[0].mxu0 %v3807
    %v5409 = vpop.f32.mrb[0].mxu0
    %v5410 = vadd.f32 %v3903, %v5409
    %v5411 = vpop.f32.mrb[0].mxu0
    %v5412 = vadd.f32 %v3907, %v5411
    %v5413 = vpop.f32.mrb[0].mxu0
    %v5414 = vadd.f32 %v3903, %v5413
    %v5415 = vpop.f32.mrb[0].mxu0
    %v5416 = vadd.f32 %v3907, %v5415
    %5417 = vmatprep.mubr.bf16.mxu0 0
    %5418 = vmatmul.mubr.bf16.gmra.mrb[0].mxu0 %v3808
    %v5419 = vpop.f32.mrb[0].mxu0
    %v5420 = vadd.f32 %v3903, %v5419
    %v5421 = vpop.f32.mrb[0].mxu0
    %v5422 = vadd.f32 %v3907, %v5421
    %v5423 = vpop.f32.mrb[0].mxu0
    %v5424 = vadd.f32 %v3903, %v5423
    %v5425 = vpop.f32.mrb[0].mxu0
    %v5426 = vadd.f32 %v3907, %v5425
    %5427 = vmatprep.mubr.bf16.mxu0 0
    %5428 = vmatmul.mubr.bf16.gmra.mrb[0].mxu0 %v3809
    %v5429 = vpop.f32.mrb[0].mxu0
    %v5430 = vadd.f32 %v3903, %v5429
    %v5431 = vpop.f32.mrb[0].mxu0
    %v5432 = vadd.f32 %v3907, %v5431
    %v5433 = vpop.f32.mrb[0].mxu0
    %v5434 = vadd.f32 %v3903, %v5433
    %v5435 = vpop.f32.mrb[0].mxu0
    %v5436 = vadd.f32 %v3907, %v5435
    %5437 = vmatprep.mubr.bf16.mxu0 0
    %5438 = vmatmul.mubr.bf16.gmra.mrb[0].mxu0 %v3810
    %v5439 = vpop.f32.mrb[0].mxu0
    %v5440 = vadd.f32 %v3903, %v5439
    %v5441 = vpop.f32.mrb[0].mxu0
    %v5442 = vadd.f32 %v3907, %v5441
    %v5443 = vpop.f32.mrb[0].mxu0
    %v5444 = vadd.f32 %v3903, %v5443
    %v5445 = vpop.f32.mrb[0].mxu0
    %v5446 = vadd.f32 %v3907, %v5445
    %5447 = vmatprep.mubr.bf16.mxu0 0
    %5448 = vmatmul.mubr.bf16.gmra.mrb[0].mxu0 %v3811
    %v5449 = vpop.f32.mrb[0].mxu0
    %v5450 = vadd.f32 %v3903, %v5449
    %v5451 = vpop.f32.mrb[0].mxu0
    %v5452 = vadd.f32 %v3907, %v5451
    %v5453 = vpop.f32.mrb[0].mxu0
    %v5454 = vadd.f32 %v3903, %v5453
    %v5455 = vpop.f32.mrb[0].mxu0
    %v5456 = vadd.f32 %v3907, %v5455
    %5457 = vmatprep.mubr.bf16.mxu0 0
    %5458 = vmatmul.mubr.bf16.gmra.mrb[0].mxu0 %v3812
    %v5459 = vpop.f32.mrb[0].mxu0
    %v5460 = vadd.f32 %v3903, %v5459
    %v5461 = vpop.f32.mrb[0].mxu0
    %v5462 = vadd.f32 %v3907, %v5461
    %v5463 = vpop.f32.mrb[0].mxu0
    %v5464 = vadd.f32 %v3903, %v5463
    %v5465 = vpop.f32.mrb[0].mxu0
    %v5466 = vadd.f32 %v3907, %v5465
    %5467 = vmatprep.mubr.bf16.mxu0 0
    %5468 = vmatmul.mubr.bf16.gmra.mrb[0].mxu0 %v3813
    %v5469 = vpop.f32.mrb[0].mxu0
    %v5470 = vadd.f32 %v3903, %v5469
    %v5471 = vpop.f32.mrb[0].mxu0
    %v5472 = vadd.f32 %v3907, %v5471
    %v5473 = vpop.f32.mrb[0].mxu0
    %v5474 = vadd.f32 %v3903, %v5473
    %v5475 = vpop.f32.mrb[0].mxu0
    %v5476 = vadd.f32 %v3907, %v5475
    %5477 = vmatprep.mubr.bf16.mxu0 0
    %5478 = vmatmul.mubr.bf16.gmra.mrb[0].mxu0 %v3814
    %v5479 = vpop.f32.mrb[0].mxu0
    %v5480 = vadd.f32 %v3903, %v5479
    %v5481 = vpop.f32.mrb[0].mxu0
    %v5482 = vadd.f32 %v3907, %v5481
    %v5483 = vpop.f32.mrb[0].mxu0
    %v5484 = vadd.f32 %v3903, %v5483
    %v5485 = vpop.f32.mrb[0].mxu0
    %v5486 = vadd.f32 %v3907, %v5485
    %5487 = vmatprep.mubr.bf16.mxu0 0
    %5488 = vmatmul.mubr.bf16.gmra.mrb[0].mxu0 %v3815
    %v5489 = vpop.f32.mrb[0].mxu0
    %v5490 = vadd.f32 %v3903, %v5489
    %v5491 = vpop.f32.mrb[0].mxu0
    %v5492 = vadd.f32 %v3907, %v5491
    %v5493 = vpop.f32.mrb[0].mxu0
    %v5494 = vadd.f32 %v3903, %v5493
    %v5495 = vpop.f32.mrb[0].mxu0
    %v5496 = vadd.f32 %v3907, %v5495
    %5497 = vmatprep.mubr.bf16.mxu0 0
    %5498 = vmatmul.mubr.bf16.gmra.mrb[0].mxu0 %v3816
    %v5499 = vpop.f32.mrb[0].mxu0
    %v5500 = vadd.f32 %v3903, %v5499
    %v5501 = vpop.f32.mrb[0].mxu0
    %v5502 = vadd.f32 %v3907, %v5501
    %v5503 = vpop.f32.mrb[0].mxu0
    %v5504 = vadd.f32 %v3903, %v5503
    %v5505 = vpop.f32.mrb[0].mxu0
    %v5506 = vadd.f32 %v3907, %v5505
    %5507 = vmatprep.mubr.bf16.mxu0 0
    %5508 = vmatmul.mubr.bf16.gmra.mrb[0].mxu0 %v3817
    %v5509 = vpop.f32.mrb[0].mxu0
    %v5510 = vadd.f32 %v3903, %v5509
    %v5511 = vpop.f32.mrb[0].mxu0
    %v5512 = vadd.f32 %v3907, %v5511
    %v5513 = vpop.f32.mrb[0].mxu0
    %v5514 = vadd.f32 %v3903, %v5513
    %v5515 = vpop.f32.mrb[0].mxu0
    %v5516 = vadd.f32 %v3907, %v5515
    %5517 = vmatprep.mubr.bf16.mxu0 0
    %5518 = vmatmul.mubr.bf16.gmra.mrb[0].mxu0 %v3818
    %v5519 = vpop.f32.mrb[0].mxu0
    %v5520 = vadd.f32 %v3903, %v5519
    %v5521 = vpop.f32.mrb[0].mxu0
    %v5522 = vadd.f32 %v3907, %v5521
    %v5523 = vpop.f32.mrb[0].mxu0
    %v5524 = vadd.f32 %v3903, %v5523
    %v5525 = vpop.f32.mrb[0].mxu0
    %v5526 = vadd.f32 %v3907, %v5525
    %5527 = vmatprep.mubr.bf16.mxu0 0
    %5528 = vmatmul.mubr.bf16.gmra.mrb[0].mxu0 %v3819
    %v5529 = vpop.f32.mrb[0].mxu0
    %v5530 = vadd.f32 %v3903, %v5529
    %v5531 = vpop.f32.mrb[0].mxu0
    %v5532 = vadd.f32 %v3907, %v5531
    %v5533 = vpop.f32.mrb[0].mxu0
    %v5534 = vadd.f32 %v3903, %v5533
    %v5535 = vpop.f32.mrb[0].mxu0
    %v5536 = vadd.f32 %v3907, %v5535
    %5537 = vmatprep.mubr.bf16.mxu0 0
    %5538 = vmatmul.mubr.bf16.gmra.mrb[0].mxu0 %v3820
    %v5539 = vpop.f32.mrb[0].mxu0
    %v5540 = vadd.f32 %v3903, %v5539
    %v5541 = vpop.f32.mrb[0].mxu0
    %v5542 = vadd.f32 %v3907, %v5541
    %v5543 = vpop.f32.mrb[0].mxu0
    %v5544 = vadd.f32 %v3903, %v5543
    %v5545 = vpop.f32.mrb[0].mxu0
    %v5546 = vadd.f32 %v3907, %v5545
    %5547 = vmatprep.mubr.bf16.mxu0 0
    %5548 = vmatmul.mubr.bf16.gmra.mrb[0].mxu0 %v3821
    %v5549 = vpop.f32.mrb[0].mxu0
    %v5550 = vadd.f32 %v3903, %v5549
    %v5551 = vpop.f32.mrb[0].mxu0
    %v5552 = vadd.f32 %v3907, %v5551
    %v5553 = vpop.f32.mrb[0].mxu0
    %v5554 = vadd.f32 %v3903, %v5553
    %v5555 = vpop.f32.mrb[0].mxu0
    %v5556 = vadd.f32 %v3907, %v5555
    %5557 = vmatprep.mubr.bf16.mxu0 0
    %5558 = vmatmul.mubr.bf16.gmra.mrb[0].mxu0 %v3822
    %v5559 = vpop.f32.mrb[0].mxu0
    %v5560 = vadd.f32 %v3903, %v5559
    %v5561 = vpop.f32.mrb[0].mxu0
    %v5562 = vadd.f32 %v3907, %v5561
    %v5563 = vpop.f32.mrb[0].mxu0
    %v5564 = vadd.f32 %v3903, %v5563
    %v5565 = vpop.f32.mrb[0].mxu0
    %v5566 = vadd.f32 %v3907, %v5565
    %5567 = vmatprep.mubr.bf16.mxu0 0
    %5568 = vmatmul.mubr.bf16.gmra.mrb[0].mxu0 %v3823
    %v5569 = vpop.f32.mrb[0].mxu0
    %v5570 = vadd.f32 %v3903, %v5569
    %v5571 = vpop.f32.mrb[0].mxu0
    %v5572 = vadd.f32 %v3907, %v5571
    %v5573 = vpop.f32.mrb[0].mxu0
    %v5574 = vadd.f32 %v3903, %v5573
    %v5575 = vpop.f32.mrb[0].mxu0
    %v5576 = vadd.f32 %v3907, %v5575
    %5577 = vmatprep.mubr.bf16.mxu0 0
    %5578 = vmatmul.mubr.bf16.gmra.mrb[0].mxu0 %v3824
    %v5579 = vpop.f32.mrb[0].mxu0
    %v5580 = vadd.f32 %v3903, %v5579
    %v5581 = vpop.f32.mrb[0].mxu0
    %v5582 = vadd.f32 %v3907, %v5581
    %v5583 = vpop.f32.mrb[0].mxu0
    %v5584 = vadd.f32 %v3903, %v5583
    %v5585 = vpop.f32.mrb[0].mxu0
    %v5586 = vadd.f32 %v3907, %v5585
    %5587 = vmatprep.mubr.bf16.mxu0 0
    %5588 = vmatmul.mubr.bf16.gmra.mrb[0].mxu0 %v3825
    %v5589 = vpop.f32.mrb[0].mxu0
    %v5590 = vadd.f32 %v3903, %v5589
    %v5591 = vpop.f32.mrb[0].mxu0
    %v5592 = vadd.f32 %v3907, %v5591
    %v5593 = vpop.f32.mrb[0].mxu0
    %v5594 = vadd.f32 %v3903, %v5593
    %v5595 = vpop.f32.mrb[0].mxu0
    %v5596 = vadd.f32 %v3907, %v5595
    %5597 = vdwg.mxu0
    %5598 = vmatprep.subr.bf16.mxu0 %v4129
    %5599 = vmatpush1.bf16.msra.mxu0 %v4128
    %5600 = vmatprep.subr.bf16.mxu0 %v4137
    %5601 = vmatpush1.bf16.msra.mxu0 %v4136
    %5602 = vmatprep.subr.bf16.mxu0 %v4145
    %5603 = vmatpush1.bf16.msra.mxu0 %v4144
    %5604 = vmatprep.subr.bf16.mxu0 %v4153
    %5605 = vmatpush1.bf16.msra.mxu0 %v4152
    %5606 = vmatprep.subr.bf16.mxu0 %v4161
    %5607 = vmatpush1.bf16.msra.mxu0 %v4160
    %5608 = vmatprep.subr.bf16.mxu0 %v4169
    %5609 = vmatpush1.bf16.msra.mxu0 %v4168
    %5610 = vmatprep.subr.bf16.mxu0 %v4177
    %5611 = vmatpush1.bf16.msra.mxu0 %v4176
    %5612 = vmatprep.subr.bf16.mxu0 %v4185
    %5613 = vmatpush1.bf16.msra.mxu0 %v4184
    %5614 = vmatprep.subr.bf16.mxu0 0
    %5615 = vmatpush1.bf16.msra.mxu0 0
    %5616 = vmatprep.subr.bf16.mxu0 0
    %5617 = vmatpush1.bf16.msra.mxu0 0
    %5618 = vmatprep.subr.bf16.mxu0 0
    %5619 = vmatpush1.bf16.msra.mxu0 0
    %5620 = vmatprep.subr.bf16.mxu0 0
    %5621 = vmatpush1.bf16.msra.mxu0 0
    %5622 = vmatprep.subr.bf16.mxu0 0
    %5623 = vmatpush1.bf16.msra.mxu0 0
    %5624 = vmatprep.subr.bf16.mxu0 0
    %5625 = vmatpush1.bf16.msra.mxu0 0
    %5626 = vmatprep.subr.bf16.mxu0 0
    %5627 = vmatpush1.bf16.msra.mxu0 0
    %5628 = vmatprep.subr.bf16.mxu0 0
    %5629 = vmatpush1.bf16.msra.mxu0 0
    %5630 = vmatprep.mubr.bf16.mxu0 0
    %5631 = vmatmul.mubr.bf16.gmra.mrb[0].mxu0 %v3762
    %v5632 = vpop.f32.mrb[0].mxu0
    %v5633 = vadd.f32 %v3911, %v5632
    %v5634 = vpop.f32.mrb[0].mxu0
    %v5635 = vadd.f32 %v3915, %v5634
    %v5636 = vpop.f32.mrb[0].mxu0
    %v5637 = vadd.f32 %v3911, %v5636
    %v5638 = vpop.f32.mrb[0].mxu0
    %v5639 = vadd.f32 %v3915, %v5638
    %5640 = vmatprep.mubr.bf16.mxu0 0
    %5641 = vmatmul.mubr.bf16.gmra.mrb[0].mxu0 %v3763
    %v5642 = vpop.f32.mrb[0].mxu0
    %v5643 = vadd.f32 %v3911, %v5642
    %v5644 = vpop.f32.mrb[0].mxu0
    %v5645 = vadd.f32 %v3915, %v5644
    %v5646 = vpop.f32.mrb[0].mxu0
    %v5647 = vadd.f32 %v3911, %v5646
    %v5648 = vpop.f32.mrb[0].mxu0
    %v5649 = vadd.f32 %v3915, %v5648
    %5650 = vmatprep.mubr.bf16.mxu0 0
    %5651 = vmatmul.mubr.bf16.gmra.mrb[0].mxu0 %v3764
    %v5652 = vpop.f32.mrb[0].mxu0
    %v5653 = vadd.f32 %v3911, %v5652
    %v5654 = vpop.f32.mrb[0].mxu0
    %v5655 = vadd.f32 %v3915, %v5654
    %v5656 = vpop.f32.mrb[0].mxu0
    %v5657 = vadd.f32 %v3911, %v5656
    %v5658 = vpop.f32.mrb[0].mxu0
    %v5659 = vadd.f32 %v3915, %v5658
    %5660 = vmatprep.mubr.bf16.mxu0 0
    %5661 = vmatmul.mubr.bf16.gmra.mrb[0].mxu0 %v3765
    %v5662 = vpop.f32.mrb[0].mxu0
    %v5663 = vadd.f32 %v3911, %v5662
    %v5664 = vpop.f32.mrb[0].mxu0
    %v5665 = vadd.f32 %v3915, %v5664
    %v5666 = vpop.f32.mrb[0].mxu0
    %v5667 = vadd.f32 %v3911, %v5666
    %v5668 = vpop.f32.mrb[0].mxu0
    %v5669 = vadd.f32 %v3915, %v5668
    %5670 = vmatprep.mubr.bf16.mxu0 0
    %5671 = vmatmul.mubr.bf16.gmra.mrb[0].mxu0 %v3766
    %v5672 = vpop.f32.mrb[0].mxu0
    %v5673 = vadd.f32 %v3911, %v5672
    %v5674 = vpop.f32.mrb[0].mxu0
    %v5675 = vadd.f32 %v3915, %v5674
    %v5676 = vpop.f32.mrb[0].mxu0
    %v5677 = vadd.f32 %v3911, %v5676
    %v5678 = vpop.f32.mrb[0].mxu0
    %v5679 = vadd.f32 %v3915, %v5678
    %5680 = vmatprep.mubr.bf16.mxu0 0
    %5681 = vmatmul.mubr.bf16.gmra.mrb[0].mxu0 %v3767
    %v5682 = vpop.f32.mrb[0].mxu0
    %v5683 = vadd.f32 %v3911, %v5682
    %v5684 = vpop.f32.mrb[0].mxu0
    %v5685 = vadd.f32 %v3915, %v5684
    %v5686 = vpop.f32.mrb[0].mxu0
    %v5687 = vadd.f32 %v3911, %v5686
    %v5688 = vpop.f32.mrb[0].mxu0
    %v5689 = vadd.f32 %v3915, %v5688
    %5690 = vmatprep.mubr.bf16.mxu0 0
    %5691 = vmatmul.mubr.bf16.gmra.mrb[0].mxu0 %v3768
    %v5692 = vpop.f32.mrb[0].mxu0
    %v5693 = vadd.f32 %v3911, %v5692
    %v5694 = vpop.f32.mrb[0].mxu0
    %v5695 = vadd.f32 %v3915, %v5694
    %v5696 = vpop.f32.mrb[0].mxu0
    %v5697 = vadd.f32 %v3911, %v5696
    %v5698 = vpop.f32.mrb[0].mxu0
    %v5699 = vadd.f32 %v3915, %v5698
    %5700 = vmatprep.mubr.bf16.mxu0 0
    %5701 = vmatmul.mubr.bf16.gmra.mrb[0].mxu0 %v3769
    %v5702 = vpop.f32.mrb[0].mxu0
    %v5703 = vadd.f32 %v3911, %v5702
    %v5704 = vpop.f32.mrb[0].mxu0
    %v5705 = vadd.f32 %v3915, %v5704
    %v5706 = vpop.f32.mrb[0].mxu0
    %v5707 = vadd.f32 %v3911, %v5706
    %v5708 = vpop.f32.mrb[0].mxu0
    %v5709 = vadd.f32 %v3915, %v5708
    %5710 = vmatprep.mubr.bf16.mxu0 0
    %5711 = vmatmul.mubr.bf16.gmra.mrb[0].mxu0 %v3770
    %v5712 = vpop.f32.mrb[0].mxu0
    %v5713 = vadd.f32 %v3911, %v5712
    %v5714 = vpop.f32.mrb[0].mxu0
    %v5715 = vadd.f32 %v3915, %v5714
    %v5716 = vpop.f32.mrb[0].mxu0
    %v5717 = vadd.f32 %v3911, %v5716
    %v5718 = vpop.f32.mrb[0].mxu0
    %v5719 = vadd.f32 %v3915, %v5718
    %5720 = vmatprep.mubr.bf16.mxu0 0
    %5721 = vmatmul.mubr.bf16.gmra.mrb[0].mxu0 %v3771
    %v5722 = vpop.f32.mrb[0].mxu0
    %v5723 = vadd.f32 %v3911, %v5722
    %v5724 = vpop.f32.mrb[0].mxu0
    %v5725 = vadd.f32 %v3915, %v5724
    %v5726 = vpop.f32.mrb[0].mxu0
    %v5727 = vadd.f32 %v3911, %v5726
    %v5728 = vpop.f32.mrb[0].mxu0
    %v5729 = vadd.f32 %v3915, %v5728
    %5730 = vmatprep.mubr.bf16.mxu0 0
    %5731 = vmatmul.mubr.bf16.gmra.mrb[0].mxu0 %v3772
    %v5732 = vpop.f32.mrb[0].mxu0
    %v5733 = vadd.f32 %v3911, %v5732
    %v5734 = vpop.f32.mrb[0].mxu0
    %v5735 = vadd.f32 %v3915, %v5734
    %v5736 = vpop.f32.mrb[0].mxu0
    %v5737 = vadd.f32 %v3911, %v5736
    %v5738 = vpop.f32.mrb[0].mxu0
    %v5739 = vadd.f32 %v3915, %v5738
    %5740 = vmatprep.mubr.bf16.mxu0 0
    %5741 = vmatmul.mubr.bf16.gmra.mrb[0].mxu0 %v3773
    %v5742 = vpop.f32.mrb[0].mxu0
    %v5743 = vadd.f32 %v3911, %v5742
    %v5744 = vpop.f32.mrb[0].mxu0
    %v5745 = vadd.f32 %v3915, %v5744
    %v5746 = vpop.f32.mrb[0].mxu0
    %v5747 = vadd.f32 %v3911, %v5746
    %v5748 = vpop.f32.mrb[0].mxu0
    %v5749 = vadd.f32 %v3915, %v5748
    %5750 = vmatprep.mubr.bf16.mxu0 0
    %5751 = vmatmul.mubr.bf16.gmra.mrb[0].mxu0 %v3774
    %v5752 = vpop.f32.mrb[0].mxu0
    %v5753 = vadd.f32 %v3911, %v5752
    %v5754 = vpop.f32.mrb[0].mxu0
    %v5755 = vadd.f32 %v3915, %v5754
    %v5756 = vpop.f32.mrb[0].mxu0
    %v5757 = vadd.f32 %v3911, %v5756
    %v5758 = vpop.f32.mrb[0].mxu0
    %v5759 = vadd.f32 %v3915, %v5758
    %5760 = vmatprep.mubr.bf16.mxu0 0
    %5761 = vmatmul.mubr.bf16.gmra.mrb[0].mxu0 %v3775
    %v5762 = vpop.f32.mrb[0].mxu0
    %v5763 = vadd.f32 %v3911, %v5762
    %v5764 = vpop.f32.mrb[0].mxu0
    %v5765 = vadd.f32 %v3915, %v5764
    %v5766 = vpop.f32.mrb[0].mxu0
    %v5767 = vadd.f32 %v3911, %v5766
    %v5768 = vpop.f32.mrb[0].mxu0
    %v5769 = vadd.f32 %v3915, %v5768
    %5770 = vmatprep.mubr.bf16.mxu0 0
    %5771 = vmatmul.mubr.bf16.gmra.mrb[0].mxu0 %v3776
    %v5772 = vpop.f32.mrb[0].mxu0
    %v5773 = vadd.f32 %v3911, %v5772
    %v5774 = vpop.f32.mrb[0].mxu0
    %v5775 = vadd.f32 %v3915, %v5774
    %v5776 = vpop.f32.mrb[0].mxu0
    %v5777 = vadd.f32 %v3911, %v5776
    %v5778 = vpop.f32.mrb[0].mxu0
    %v5779 = vadd.f32 %v3915, %v5778
    %5780 = vmatprep.mubr.bf16.mxu0 0
    %5781 = vmatmul.mubr.bf16.gmra.mrb[0].mxu0 %v3777
    %v5782 = vpop.f32.mrb[0].mxu0
    %v5783 = vadd.f32 %v3911, %v5782
    %v5784 = vpop.f32.mrb[0].mxu0
    %v5785 = vadd.f32 %v3915, %v5784
    %v5786 = vpop.f32.mrb[0].mxu0
    %v5787 = vadd.f32 %v3911, %v5786
    %v5788 = vpop.f32.mrb[0].mxu0
    %v5789 = vadd.f32 %v3915, %v5788
    %5790 = vmatprep.mubr.bf16.mxu0 0
    %5791 = vmatmul.mubr.bf16.gmra.mrb[0].mxu0 %v3778
    %v5792 = vpop.f32.mrb[0].mxu0
    %v5793 = vadd.f32 %v3911, %v5792
    %v5794 = vpop.f32.mrb[0].mxu0
    %v5795 = vadd.f32 %v3915, %v5794
    %v5796 = vpop.f32.mrb[0].mxu0
    %v5797 = vadd.f32 %v3911, %v5796
    %v5798 = vpop.f32.mrb[0].mxu0
    %v5799 = vadd.f32 %v3915, %v5798
    %5800 = vmatprep.mubr.bf16.mxu0 0
    %5801 = vmatmul.mubr.bf16.gmra.mrb[0].mxu0 %v3779
    %v5802 = vpop.f32.mrb[0].mxu0
    %v5803 = vadd.f32 %v3911, %v5802
    %v5804 = vpop.f32.mrb[0].mxu0
    %v5805 = vadd.f32 %v3915, %v5804
    %v5806 = vpop.f32.mrb[0].mxu0
    %v5807 = vadd.f32 %v3911, %v5806
    %v5808 = vpop.f32.mrb[0].mxu0
    %v5809 = vadd.f32 %v3915, %v5808
    %5810 = vmatprep.mubr.bf16.mxu0 0
    %5811 = vmatmul.mubr.bf16.gmra.mrb[0].mxu0 %v3780
    %v5812 = vpop.f32.mrb[0].mxu0
    %v5813 = vadd.f32 %v3911, %v5812
    %v5814 = vpop.f32.mrb[0].mxu0
    %v5815 = vadd.f32 %v3915, %v5814
    %v5816 = vpop.f32.mrb[0].mxu0
    %v5817 = vadd.f32 %v3911, %v5816
    %v5818 = vpop.f32.mrb[0].mxu0
    %v5819 = vadd.f32 %v3915, %v5818
    %5820 = vmatprep.mubr.bf16.mxu0 0
    %5821 = vmatmul.mubr.bf16.gmra.mrb[0].mxu0 %v3781
    %v5822 = vpop.f32.mrb[0].mxu0
    %v5823 = vadd.f32 %v3911, %v5822
    %v5824 = vpop.f32.mrb[0].mxu0
    %v5825 = vadd.f32 %v3915, %v5824
    %v5826 = vpop.f32.mrb[0].mxu0
    %v5827 = vadd.f32 %v3911, %v5826
    %v5828 = vpop.f32.mrb[0].mxu0
    %v5829 = vadd.f32 %v3915, %v5828
    %5830 = vmatprep.mubr.bf16.mxu0 0
    %5831 = vmatmul.mubr.bf16.gmra.mrb[0].mxu0 %v3782
    %v5832 = vpop.f32.mrb[0].mxu0
    %v5833 = vadd.f32 %v3911, %v5832
    %v5834 = vpop.f32.mrb[0].mxu0
    %v5835 = vadd.f32 %v3915, %v5834
    %v5836 = vpop.f32.mrb[0].mxu0
    %v5837 = vadd.f32 %v3911, %v5836
    %v5838 = vpop.f32.mrb[0].mxu0
    %v5839 = vadd.f32 %v3915, %v5838
    %5840 = vmatprep.mubr.bf16.mxu0 0
    %5841 = vmatmul.mubr.bf16.gmra.mrb[0].mxu0 %v3783
    %v5842 = vpop.f32.mrb[0].mxu0
    %v5843 = vadd.f32 %v3911, %v5842
    %v5844 = vpop.f32.mrb[0].mxu0
    %v5845 = vadd.f32 %v3915, %v5844
    %v5846 = vpop.f32.mrb[0].mxu0
    %v5847 = vadd.f32 %v3911, %v5846
    %v5848 = vpop.f32.mrb[0].mxu0
    %v5849 = vadd.f32 %v3915, %v5848
    %5850 = vmatprep.mubr.bf16.mxu0 0
    %5851 = vmatmul.mubr.bf16.gmra.mrb[0].mxu0 %v3784
    %v5852 = vpop.f32.mrb[0].mxu0
    %v5853 = vadd.f32 %v3911, %v5852
    %v5854 = vpop.f32.mrb[0].mxu0
    %v5855 = vadd.f32 %v3915, %v5854
    %v5856 = vpop.f32.mrb[0].mxu0
    %v5857 = vadd.f32 %v3911, %v5856
    %v5858 = vpop.f32.mrb[0].mxu0
    %v5859 = vadd.f32 %v3915, %v5858
    %5860 = vmatprep.mubr.bf16.mxu0 0
    %5861 = vmatmul.mubr.bf16.gmra.mrb[0].mxu0 %v3785
    %v5862 = vpop.f32.mrb[0].mxu0
    %v5863 = vadd.f32 %v3911, %v5862
    %v5864 = vpop.f32.mrb[0].mxu0
    %v5865 = vadd.f32 %v3915, %v5864
    %v5866 = vpop.f32.mrb[0].mxu0
    %v5867 = vadd.f32 %v3911, %v5866
    %v5868 = vpop.f32.mrb[0].mxu0
    %v5869 = vadd.f32 %v3915, %v5868
    %5870 = vmatprep.mubr.bf16.mxu0 0
    %5871 = vmatmul.mubr.bf16.gmra.mrb[0].mxu0 %v3786
    %v5872 = vpop.f32.mrb[0].mxu0
    %v5873 = vadd.f32 %v3911, %v5872
    %v5874 = vpop.f32.mrb[0].mxu0
    %v5875 = vadd.f32 %v3915, %v5874
    %v5876 = vpop.f32.mrb[0].mxu0
    %v5877 = vadd.f32 %v3911, %v5876
    %v5878 = vpop.f32.mrb[0].mxu0
    %v5879 = vadd.f32 %v3915, %v5878
    %5880 = vmatprep.mubr.bf16.mxu0 0
    %5881 = vmatmul.mubr.bf16.gmra.mrb[0].mxu0 %v3787
    %v5882 = vpop.f32.mrb[0].mxu0
    %v5883 = vadd.f32 %v3911, %v5882
    %v5884 = vpop.f32.mrb[0].mxu0
    %v5885 = vadd.f32 %v3915, %v5884
    %v5886 = vpop.f32.mrb[0].mxu0
    %v5887 = vadd.f32 %v3911, %v5886
    %v5888 = vpop.f32.mrb[0].mxu0
    %v5889 = vadd.f32 %v3915, %v5888
    %5890 = vmatprep.mubr.bf16.mxu0 0
    %5891 = vmatmul.mubr.bf16.gmra.mrb[0].mxu0 %v3788
    %v5892 = vpop.f32.mrb[0].mxu0
    %v5893 = vadd.f32 %v3911, %v5892
    %v5894 = vpop.f32.mrb[0].mxu0
    %v5895 = vadd.f32 %v3915, %v5894
    %v5896 = vpop.f32.mrb[0].mxu0
    %v5897 = vadd.f32 %v3911, %v5896
    %v5898 = vpop.f32.mrb[0].mxu0
    %v5899 = vadd.f32 %v3915, %v5898
    %5900 = vmatprep.mubr.bf16.mxu0 0
    %5901 = vmatmul.mubr.bf16.gmra.mrb[0].mxu0 %v3789
    %v5902 = vpop.f32.mrb[0].mxu0
    %v5903 = vadd.f32 %v3911, %v5902
    %v5904 = vpop.f32.mrb[0].mxu0
    %v5905 = vadd.f32 %v3915, %v5904
    %v5906 = vpop.f32.mrb[0].mxu0
    %v5907 = vadd.f32 %v3911, %v5906
    %v5908 = vpop.f32.mrb[0].mxu0
    %v5909 = vadd.f32 %v3915, %v5908
    %5910 = vmatprep.mubr.bf16.mxu0 0
    %5911 = vmatmul.mubr.bf16.gmra.mrb[0].mxu0 %v3790
    %v5912 = vpop.f32.mrb[0].mxu0
    %v5913 = vadd.f32 %v3911, %v5912
    %v5914 = vpop.f32.mrb[0].mxu0
    %v5915 = vadd.f32 %v3915, %v5914
    %v5916 = vpop.f32.mrb[0].mxu0
    %v5917 = vadd.f32 %v3911, %v5916
    %v5918 = vpop.f32.mrb[0].mxu0
    %v5919 = vadd.f32 %v3915, %v5918
    %5920 = vmatprep.mubr.bf16.mxu0 0
    %5921 = vmatmul.mubr.bf16.gmra.mrb[0].mxu0 %v3791
    %v5922 = vpop.f32.mrb[0].mxu0
    %v5923 = vadd.f32 %v3911, %v5922
    %v5924 = vpop.f32.mrb[0].mxu0
    %v5925 = vadd.f32 %v3915, %v5924
    %v5926 = vpop.f32.mrb[0].mxu0
    %v5927 = vadd.f32 %v3911, %v5926
    %v5928 = vpop.f32.mrb[0].mxu0
    %v5929 = vadd.f32 %v3915, %v5928
    %5930 = vmatprep.mubr.bf16.mxu0 0
    %5931 = vmatmul.mubr.bf16.gmra.mrb[0].mxu0 %v3792
    %v5932 = vpop.f32.mrb[0].mxu0
    %v5933 = vadd.f32 %v3911, %v5932
    %v5934 = vpop.f32.mrb[0].mxu0
    %v5935 = vadd.f32 %v3915, %v5934
    %v5936 = vpop.f32.mrb[0].mxu0
    %v5937 = vadd.f32 %v3911, %v5936
    %v5938 = vpop.f32.mrb[0].mxu0
    %v5939 = vadd.f32 %v3915, %v5938
    %5940 = vmatprep.mubr.bf16.mxu0 0
    %5941 = vmatmul.mubr.bf16.gmra.mrb[0].mxu0 %v3793
    %v5942 = vpop.f32.mrb[0].mxu0
    %v5943 = vadd.f32 %v3911, %v5942
    %v5944 = vpop.f32.mrb[0].mxu0
    %v5945 = vadd.f32 %v3915, %v5944
    %v5946 = vpop.f32.mrb[0].mxu0
    %v5947 = vadd.f32 %v3911, %v5946
    %v5948 = vpop.f32.mrb[0].mxu0
    %v5949 = vadd.f32 %v3915, %v5948
    %5950 = vmatprep.mubr.bf16.mxu0 0
    %5951 = vmatmul.mubr.bf16.gmra.mrb[0].mxu0 %v3794
    %v5952 = vpop.f32.mrb[0].mxu0
    %v5953 = vadd.f32 %v3911, %v5952
    %v5954 = vpop.f32.mrb[0].mxu0
    %v5955 = vadd.f32 %v3915, %v5954
    %v5956 = vpop.f32.mrb[0].mxu0
    %v5957 = vadd.f32 %v3911, %v5956
    %v5958 = vpop.f32.mrb[0].mxu0
    %v5959 = vadd.f32 %v3915, %v5958
    %5960 = vmatprep.mubr.bf16.mxu0 0
    %5961 = vmatmul.mubr.bf16.gmra.mrb[0].mxu0 %v3795
    %v5962 = vpop.f32.mrb[0].mxu0
    %v5963 = vadd.f32 %v3911, %v5962
    %v5964 = vpop.f32.mrb[0].mxu0
    %v5965 = vadd.f32 %v3915, %v5964
    %v5966 = vpop.f32.mrb[0].mxu0
    %v5967 = vadd.f32 %v3911, %v5966
    %v5968 = vpop.f32.mrb[0].mxu0
    %v5969 = vadd.f32 %v3915, %v5968
    %5970 = vmatprep.mubr.bf16.mxu0 0
    %5971 = vmatmul.mubr.bf16.gmra.mrb[0].mxu0 %v3796
    %v5972 = vpop.f32.mrb[0].mxu0
    %v5973 = vadd.f32 %v3911, %v5972
    %v5974 = vpop.f32.mrb[0].mxu0
    %v5975 = vadd.f32 %v3915, %v5974
    %v5976 = vpop.f32.mrb[0].mxu0
    %v5977 = vadd.f32 %v3911, %v5976
    %v5978 = vpop.f32.mrb[0].mxu0
    %v5979 = vadd.f32 %v3915, %v5978
    %5980 = vmatprep.mubr.bf16.mxu0 0
    %5981 = vmatmul.mubr.bf16.gmra.mrb[0].mxu0 %v3797
    %v5982 = vpop.f32.mrb[0].mxu0
    %v5983 = vadd.f32 %v3911, %v5982
    %v5984 = vpop.f32.mrb[0].mxu0
    %v5985 = vadd.f32 %v3915, %v5984
    %v5986 = vpop.f32.mrb[0].mxu0
    %v5987 = vadd.f32 %v3911, %v5986
    %v5988 = vpop.f32.mrb[0].mxu0
    %v5989 = vadd.f32 %v3915, %v5988
    %5990 = vmatprep.mubr.bf16.mxu0 0
    %5991 = vmatmul.mubr.bf16.gmra.mrb[0].mxu0 %v3798
    %v5992 = vpop.f32.mrb[0].mxu0
    %v5993 = vadd.f32 %v3911, %v5992
    %v5994 = vpop.f32.mrb[0].mxu0
    %v5995 = vadd.f32 %v3915, %v5994
    %v5996 = vpop.f32.mrb[0].mxu0
    %v5997 = vadd.f32 %v3911, %v5996
    %v5998 = vpop.f32.mrb[0].mxu0
    %v5999 = vadd.f32 %v3915, %v5998
    %6000 = vmatprep.mubr.bf16.mxu0 0
    %6001 = vmatmul.mubr.bf16.gmra.mrb[0].mxu0 %v3799
    %v6002 = vpop.f32.mrb[0].mxu0
    %v6003 = vadd.f32 %v3911, %v6002
    %v6004 = vpop.f32.mrb[0].mxu0
    %v6005 = vadd.f32 %v3915, %v6004
    %v6006 = vpop.f32.mrb[0].mxu0
    %v6007 = vadd.f32 %v3911, %v6006
    %v6008 = vpop.f32.mrb[0].mxu0
    %v6009 = vadd.f32 %v3915, %v6008
    %6010 = vmatprep.mubr.bf16.mxu0 0
    %6011 = vmatmul.mubr.bf16.gmra.mrb[0].mxu0 %v3800
    %v6012 = vpop.f32.mrb[0].mxu0
    %v6013 = vadd.f32 %v3911, %v6012
    %v6014 = vpop.f32.mrb[0].mxu0
    %v6015 = vadd.f32 %v3915, %v6014
    %v6016 = vpop.f32.mrb[0].mxu0
    %v6017 = vadd.f32 %v3911, %v6016
    %v6018 = vpop.f32.mrb[0].mxu0
    %v6019 = vadd.f32 %v3915, %v6018
    %6020 = vmatprep.mubr.bf16.mxu0 0
    %6021 = vmatmul.mubr.bf16.gmra.mrb[0].mxu0 %v3801
    %v6022 = vpop.f32.mrb[0].mxu0
    %v6023 = vadd.f32 %v3911, %v6022
    %v6024 = vpop.f32.mrb[0].mxu0
    %v6025 = vadd.f32 %v3915, %v6024
    %v6026 = vpop.f32.mrb[0].mxu0
    %v6027 = vadd.f32 %v3911, %v6026
    %v6028 = vpop.f32.mrb[0].mxu0
    %v6029 = vadd.f32 %v3915, %v6028
    %6030 = vmatprep.mubr.bf16.mxu0 0
    %6031 = vmatmul.mubr.bf16.gmra.mrb[0].mxu0 %v3802
    %v6032 = vpop.f32.mrb[0].mxu0
    %v6033 = vadd.f32 %v3911, %v6032
    %v6034 = vpop.f32.mrb[0].mxu0
    %v6035 = vadd.f32 %v3915, %v6034
    %v6036 = vpop.f32.mrb[0].mxu0
    %v6037 = vadd.f32 %v3911, %v6036
    %v6038 = vpop.f32.mrb[0].mxu0
    %v6039 = vadd.f32 %v3915, %v6038
    %6040 = vmatprep.mubr.bf16.mxu0 0
    %6041 = vmatmul.mubr.bf16.gmra.mrb[0].mxu0 %v3803
    %v6042 = vpop.f32.mrb[0].mxu0
    %v6043 = vadd.f32 %v3911, %v6042
    %v6044 = vpop.f32.mrb[0].mxu0
    %v6045 = vadd.f32 %v3915, %v6044
    %v6046 = vpop.f32.mrb[0].mxu0
    %v6047 = vadd.f32 %v3911, %v6046
    %v6048 = vpop.f32.mrb[0].mxu0
    %v6049 = vadd.f32 %v3915, %v6048
    %6050 = vmatprep.mubr.bf16.mxu0 0
    %6051 = vmatmul.mubr.bf16.gmra.mrb[0].mxu0 %v3804
    %v6052 = vpop.f32.mrb[0].mxu0
    %v6053 = vadd.f32 %v3911, %v6052
    %v6054 = vpop.f32.mrb[0].mxu0
    %v6055 = vadd.f32 %v3915, %v6054
    %v6056 = vpop.f32.mrb[0].mxu0
    %v6057 = vadd.f32 %v3911, %v6056
    %v6058 = vpop.f32.mrb[0].mxu0
    %v6059 = vadd.f32 %v3915, %v6058
    %6060 = vmatprep.mubr.bf16.mxu0 0
    %6061 = vmatmul.mubr.bf16.gmra.mrb[0].mxu0 %v3805
    %v6062 = vpop.f32.mrb[0].mxu0
    %v6063 = vadd.f32 %v3911, %v6062
    %v6064 = vpop.f32.mrb[0].mxu0
    %v6065 = vadd.f32 %v3915, %v6064
    %v6066 = vpop.f32.mrb[0].mxu0
    %v6067 = vadd.f32 %v3911, %v6066
    %v6068 = vpop.f32.mrb[0].mxu0
    %v6069 = vadd.f32 %v3915, %v6068
    %6070 = vmatprep.mubr.bf16.mxu0 0
    %6071 = vmatmul.mubr.bf16.gmra.mrb[0].mxu0 %v3806
    %v6072 = vpop.f32.mrb[0].mxu0
    %v6073 = vadd.f32 %v3911, %v6072
    %v6074 = vpop.f32.mrb[0].mxu0
    %v6075 = vadd.f32 %v3915, %v6074
    %v6076 = vpop.f32.mrb[0].mxu0
    %v6077 = vadd.f32 %v3911, %v6076
    %v6078 = vpop.f32.mrb[0].mxu0
    %v6079 = vadd.f32 %v3915, %v6078
    %6080 = vmatprep.mubr.bf16.mxu0 0
    %6081 = vmatmul.mubr.bf16.gmra.mrb[0].mxu0 %v3807
    %v6082 = vpop.f32.mrb[0].mxu0
    %v6083 = vadd.f32 %v3911, %v6082
    %v6084 = vpop.f32.mrb[0].mxu0
    %v6085 = vadd.f32 %v3915, %v6084
    %v6086 = vpop.f32.mrb[0].mxu0
    %v6087 = vadd.f32 %v3911, %v6086
    %v6088 = vpop.f32.mrb[0].mxu0
    %v6089 = vadd.f32 %v3915, %v6088
    %6090 = vmatprep.mubr.bf16.mxu0 0
    %6091 = vmatmul.mubr.bf16.gmra.mrb[0].mxu0 %v3808
    %v6092 = vpop.f32.mrb[0].mxu0
    %v6093 = vadd.f32 %v3911, %v6092
    %v6094 = vpop.f32.mrb[0].mxu0
    %v6095 = vadd.f32 %v3915, %v6094
    %v6096 = vpop.f32.mrb[0].mxu0
    %v6097 = vadd.f32 %v3911, %v6096
    %v6098 = vpop.f32.mrb[0].mxu0
    %v6099 = vadd.f32 %v3915, %v6098
    %6100 = vmatprep.mubr.bf16.mxu0 0
    %6101 = vmatmul.mubr.bf16.gmra.mrb[0].mxu0 %v3809
    %v6102 = vpop.f32.mrb[0].mxu0
    %v6103 = vadd.f32 %v3911, %v6102
    %v6104 = vpop.f32.mrb[0].mxu0
    %v6105 = vadd.f32 %v3915, %v6104
    %v6106 = vpop.f32.mrb[0].mxu0
    %v6107 = vadd.f32 %v3911, %v6106
    %v6108 = vpop.f32.mrb[0].mxu0
    %v6109 = vadd.f32 %v3915, %v6108
    %6110 = vmatprep.mubr.bf16.mxu0 0
    %6111 = vmatmul.mubr.bf16.gmra.mrb[0].mxu0 %v3810
    %v6112 = vpop.f32.mrb[0].mxu0
    %v6113 = vadd.f32 %v3911, %v6112
    %v6114 = vpop.f32.mrb[0].mxu0
    %v6115 = vadd.f32 %v3915, %v6114
    %v6116 = vpop.f32.mrb[0].mxu0
    %v6117 = vadd.f32 %v3911, %v6116
    %v6118 = vpop.f32.mrb[0].mxu0
    %v6119 = vadd.f32 %v3915, %v6118
    %6120 = vmatprep.mubr.bf16.mxu0 0
    %6121 = vmatmul.mubr.bf16.gmra.mrb[0].mxu0 %v3811
    %v6122 = vpop.f32.mrb[0].mxu0
    %v6123 = vadd.f32 %v3911, %v6122
    %v6124 = vpop.f32.mrb[0].mxu0
    %v6125 = vadd.f32 %v3915, %v6124
    %v6126 = vpop.f32.mrb[0].mxu0
    %v6127 = vadd.f32 %v3911, %v6126
    %v6128 = vpop.f32.mrb[0].mxu0
    %v6129 = vadd.f32 %v3915, %v6128
    %6130 = vmatprep.mubr.bf16.mxu0 0
    %6131 = vmatmul.mubr.bf16.gmra.mrb[0].mxu0 %v3812
    %v6132 = vpop.f32.mrb[0].mxu0
    %v6133 = vadd.f32 %v3911, %v6132
    %v6134 = vpop.f32.mrb[0].mxu0
    %v6135 = vadd.f32 %v3915, %v6134
    %v6136 = vpop.f32.mrb[0].mxu0
    %v6137 = vadd.f32 %v3911, %v6136
    %v6138 = vpop.f32.mrb[0].mxu0
    %v6139 = vadd.f32 %v3915, %v6138
    %6140 = vmatprep.mubr.bf16.mxu0 0
    %6141 = vmatmul.mubr.bf16.gmra.mrb[0].mxu0 %v3813
    %v6142 = vpop.f32.mrb[0].mxu0
    %v6143 = vadd.f32 %v3911, %v6142
    %v6144 = vpop.f32.mrb[0].mxu0
    %v6145 = vadd.f32 %v3915, %v6144
    %v6146 = vpop.f32.mrb[0].mxu0
    %v6147 = vadd.f32 %v3911, %v6146
    %v6148 = vpop.f32.mrb[0].mxu0
    %v6149 = vadd.f32 %v3915, %v6148
    %6150 = vmatprep.mubr.bf16.mxu0 0
    %6151 = vmatmul.mubr.bf16.gmra.mrb[0].mxu0 %v3814
    %v6152 = vpop.f32.mrb[0].mxu0
    %v6153 = vadd.f32 %v3911, %v6152
    %v6154 = vpop.f32.mrb[0].mxu0
    %v6155 = vadd.f32 %v3915, %v6154
    %v6156 = vpop.f32.mrb[0].mxu0
    %v6157 = vadd.f32 %v3911, %v6156
    %v6158 = vpop.f32.mrb[0].mxu0
    %v6159 = vadd.f32 %v3915, %v6158
    %6160 = vmatprep.mubr.bf16.mxu0 0
    %6161 = vmatmul.mubr.bf16.gmra.mrb[0].mxu0 %v3815
    %v6162 = vpop.f32.mrb[0].mxu0
    %v6163 = vadd.f32 %v3911, %v6162
    %v6164 = vpop.f32.mrb[0].mxu0
    %v6165 = vadd.f32 %v3915, %v6164
    %v6166 = vpop.f32.mrb[0].mxu0
    %v6167 = vadd.f32 %v3911, %v6166
    %v6168 = vpop.f32.mrb[0].mxu0
    %v6169 = vadd.f32 %v3915, %v6168
    %6170 = vmatprep.mubr.bf16.mxu0 0
    %6171 = vmatmul.mubr.bf16.gmra.mrb[0].mxu0 %v3816
    %v6172 = vpop.f32.mrb[0].mxu0
    %v6173 = vadd.f32 %v3911, %v6172
    %v6174 = vpop.f32.mrb[0].mxu0
    %v6175 = vadd.f32 %v3915, %v6174
    %v6176 = vpop.f32.mrb[0].mxu0
    %v6177 = vadd.f32 %v3911, %v6176
    %v6178 = vpop.f32.mrb[0].mxu0
    %v6179 = vadd.f32 %v3915, %v6178
    %6180 = vmatprep.mubr.bf16.mxu0 0
    %6181 = vmatmul.mubr.bf16.gmra.mrb[0].mxu0 %v3817
    %v6182 = vpop.f32.mrb[0].mxu0
    %v6183 = vadd.f32 %v3911, %v6182
    %v6184 = vpop.f32.mrb[0].mxu0
    %v6185 = vadd.f32 %v3915, %v6184
    %v6186 = vpop.f32.mrb[0].mxu0
    %v6187 = vadd.f32 %v3911, %v6186
    %v6188 = vpop.f32.mrb[0].mxu0
    %v6189 = vadd.f32 %v3915, %v6188
    %6190 = vmatprep.mubr.bf16.mxu0 0
    %6191 = vmatmul.mubr.bf16.gmra.mrb[0].mxu0 %v3818
    %v6192 = vpop.f32.mrb[0].mxu0
    %v6193 = vadd.f32 %v3911, %v6192
    %v6194 = vpop.f32.mrb[0].mxu0
    %v6195 = vadd.f32 %v3915, %v6194
    %v6196 = vpop.f32.mrb[0].mxu0
    %v6197 = vadd.f32 %v3911, %v6196
    %v6198 = vpop.f32.mrb[0].mxu0
    %v6199 = vadd.f32 %v3915, %v6198
    %6200 = vmatprep.mubr.bf16.mxu0 0
    %6201 = vmatmul.mubr.bf16.gmra.mrb[0].mxu0 %v3819
    %v6202 = vpop.f32.mrb[0].mxu0
    %v6203 = vadd.f32 %v3911, %v6202
    %v6204 = vpop.f32.mrb[0].mxu0
    %v6205 = vadd.f32 %v3915, %v6204
    %v6206 = vpop.f32.mrb[0].mxu0
    %v6207 = vadd.f32 %v3911, %v6206
    %v6208 = vpop.f32.mrb[0].mxu0
    %v6209 = vadd.f32 %v3915, %v6208
    %6210 = vmatprep.mubr.bf16.mxu0 0
    %6211 = vmatmul.mubr.bf16.gmra.mrb[0].mxu0 %v3820
    %v6212 = vpop.f32.mrb[0].mxu0
    %v6213 = vadd.f32 %v3911, %v6212
    %v6214 = vpop.f32.mrb[0].mxu0
    %v6215 = vadd.f32 %v3915, %v6214
    %v6216 = vpop.f32.mrb[0].mxu0
    %v6217 = vadd.f32 %v3911, %v6216
    %v6218 = vpop.f32.mrb[0].mxu0
    %v6219 = vadd.f32 %v3915, %v6218
    %6220 = vmatprep.mubr.bf16.mxu0 0
    %6221 = vmatmul.mubr.bf16.gmra.mrb[0].mxu0 %v3821
    %v6222 = vpop.f32.mrb[0].mxu0
    %v6223 = vadd.f32 %v3911, %v6222
    %v6224 = vpop.f32.mrb[0].mxu0
    %v6225 = vadd.f32 %v3915, %v6224
    %v6226 = vpop.f32.mrb[0].mxu0
    %v6227 = vadd.f32 %v3911, %v6226
    %v6228 = vpop.f32.mrb[0].mxu0
    %v6229 = vadd.f32 %v3915, %v6228
    %6230 = vmatprep.mubr.bf16.mxu0 0
    %6231 = vmatmul.mubr.bf16.gmra.mrb[0].mxu0 %v3822
    %v6232 = vpop.f32.mrb[0].mxu0
    %v6233 = vadd.f32 %v3911, %v6232
    %v6234 = vpop.f32.mrb[0].mxu0
    %v6235 = vadd.f32 %v3915, %v6234
    %v6236 = vpop.f32.mrb[0].mxu0
    %v6237 = vadd.f32 %v3911, %v6236
    %v6238 = vpop.f32.mrb[0].mxu0
    %v6239 = vadd.f32 %v3915, %v6238
    %6240 = vmatprep.mubr.bf16.mxu0 0
    %6241 = vmatmul.mubr.bf16.gmra.mrb[0].mxu0 %v3823
    %v6242 = vpop.f32.mrb[0].mxu0
    %v6243 = vadd.f32 %v3911, %v6242
    %v6244 = vpop.f32.mrb[0].mxu0
    %v6245 = vadd.f32 %v3915, %v6244
    %v6246 = vpop.f32.mrb[0].mxu0
    %v6247 = vadd.f32 %v3911, %v6246
    %v6248 = vpop.f32.mrb[0].mxu0
    %v6249 = vadd.f32 %v3915, %v6248
    %6250 = vmatprep.mubr.bf16.mxu0 0
    %6251 = vmatmul.mubr.bf16.gmra.mrb[0].mxu0 %v3824
    %v6252 = vpop.f32.mrb[0].mxu0
    %v6253 = vadd.f32 %v3911, %v6252
    %v6254 = vpop.f32.mrb[0].mxu0
    %v6255 = vadd.f32 %v3915, %v6254
    %v6256 = vpop.f32.mrb[0].mxu0
    %v6257 = vadd.f32 %v3911, %v6256
    %v6258 = vpop.f32.mrb[0].mxu0
    %v6259 = vadd.f32 %v3915, %v6258
    %6260 = vmatprep.mubr.bf16.mxu0 0
    %6261 = vmatmul.mubr.bf16.gmra.mrb[0].mxu0 %v3825
    %v6262 = vpop.f32.mrb[0].mxu0
    %v6263 = vadd.f32 %v3911, %v6262
    %v6264 = vpop.f32.mrb[0].mxu0
    %v6265 = vadd.f32 %v3915, %v6264
    %v6266 = vpop.f32.mrb[0].mxu0
    %v6267 = vadd.f32 %v3911, %v6266
    %v6268 = vpop.f32.mrb[0].mxu0
    %v6269 = vadd.f32 %v3915, %v6268
    %6270 = vdwg.mxu0
    %6271 = vmatprep.subr.bf16.mxu0 %v4131
    %6272 = vmatpush1.bf16.msra.mxu0 %v4130
    %6273 = vmatprep.subr.bf16.mxu0 %v4139
    %6274 = vmatpush1.bf16.msra.mxu0 %v4138
    %6275 = vmatprep.subr.bf16.mxu0 %v4147
    %6276 = vmatpush1.bf16.msra.mxu0 %v4146
    %6277 = vmatprep.subr.bf16.mxu0 %v4155
    %6278 = vmatpush1.bf16.msra.mxu0 %v4154
    %6279 = vmatprep.subr.bf16.mxu0 %v4163
    %6280 = vmatpush1.bf16.msra.mxu0 %v4162
    %6281 = vmatprep.subr.bf16.mxu0 %v4171
    %6282 = vmatpush1.bf16.msra.mxu0 %v4170
    %6283 = vmatprep.subr.bf16.mxu0 %v4179
    %6284 = vmatpush1.bf16.msra.mxu0 %v4178
    %6285 = vmatprep.subr.bf16.mxu0 %v4187
    %6286 = vmatpush1.bf16.msra.mxu0 %v4186
    %6287 = vmatprep.subr.bf16.mxu0 0
    %6288 = vmatpush1.bf16.msra.mxu0 0
    %6289 = vmatprep.subr.bf16.mxu0 0
    %6290 = vmatpush1.bf16.msra.mxu0 0
    %6291 = vmatprep.subr.bf16.mxu0 0
    %6292 = vmatpush1.bf16.msra.mxu0 0
    %6293 = vmatprep.subr.bf16.mxu0 0
    %6294 = vmatpush1.bf16.msra.mxu0 0
    %6295 = vmatprep.subr.bf16.mxu0 0
    %6296 = vmatpush1.bf16.msra.mxu0 0
    %6297 = vmatprep.subr.bf16.mxu0 0
    %6298 = vmatpush1.bf16.msra.mxu0 0
    %6299 = vmatprep.subr.bf16.mxu0 0
    %6300 = vmatpush1.bf16.msra.mxu0 0
    %6301 = vmatprep.subr.bf16.mxu0 0
    %6302 = vmatpush1.bf16.msra.mxu0 0
    %6303 = vmatprep.mubr.bf16.mxu0 0
    %6304 = vmatmul.mubr.bf16.gmra.mrb[0].mxu0 %v3762
    %v6305 = vpop.f32.mrb[0].mxu0
    %v6306 = vadd.f32 %v3919, %v6305
    %v6307 = vpop.f32.mrb[0].mxu0
    %v6308 = vadd.f32 %v3923, %v6307
    %v6309 = vpop.f32.mrb[0].mxu0
    %v6310 = vadd.f32 %v3919, %v6309
    %v6311 = vpop.f32.mrb[0].mxu0
    %v6312 = vadd.f32 %v3923, %v6311
    %6313 = vmatprep.mubr.bf16.mxu0 0
    %6314 = vmatmul.mubr.bf16.gmra.mrb[0].mxu0 %v3763
    %v6315 = vpop.f32.mrb[0].mxu0
    %v6316 = vadd.f32 %v3919, %v6315
    %v6317 = vpop.f32.mrb[0].mxu0
    %v6318 = vadd.f32 %v3923, %v6317
    %v6319 = vpop.f32.mrb[0].mxu0
    %v6320 = vadd.f32 %v3919, %v6319
    %v6321 = vpop.f32.mrb[0].mxu0
    %v6322 = vadd.f32 %v3923, %v6321
    %6323 = vmatprep.mubr.bf16.mxu0 0
    %6324 = vmatmul.mubr.bf16.gmra.mrb[0].mxu0 %v3764
    %v6325 = vpop.f32.mrb[0].mxu0
    %v6326 = vadd.f32 %v3919, %v6325
    %v6327 = vpop.f32.mrb[0].mxu0
    %v6328 = vadd.f32 %v3923, %v6327
    %v6329 = vpop.f32.mrb[0].mxu0
    %v6330 = vadd.f32 %v3919, %v6329
    %v6331 = vpop.f32.mrb[0].mxu0
    %v6332 = vadd.f32 %v3923, %v6331
    %6333 = vmatprep.mubr.bf16.mxu0 0
    %6334 = vmatmul.mubr.bf16.gmra.mrb[0].mxu0 %v3765
    %v6335 = vpop.f32.mrb[0].mxu0
    %v6336 = vadd.f32 %v3919, %v6335
    %v6337 = vpop.f32.mrb[0].mxu0
    %v6338 = vadd.f32 %v3923, %v6337
    %v6339 = vpop.f32.mrb[0].mxu0
    %v6340 = vadd.f32 %v3919, %v6339
    %v6341 = vpop.f32.mrb[0].mxu0
    %v6342 = vadd.f32 %v3923, %v6341
    %6343 = vmatprep.mubr.bf16.mxu0 0
    %6344 = vmatmul.mubr.bf16.gmra.mrb[0].mxu0 %v3766
    %v6345 = vpop.f32.mrb[0].mxu0
    %v6346 = vadd.f32 %v3919, %v6345
    %v6347 = vpop.f32.mrb[0].mxu0
    %v6348 = vadd.f32 %v3923, %v6347
    %v6349 = vpop.f32.mrb[0].mxu0
    %v6350 = vadd.f32 %v3919, %v6349
    %v6351 = vpop.f32.mrb[0].mxu0
    %v6352 = vadd.f32 %v3923, %v6351
    %6353 = vmatprep.mubr.bf16.mxu0 0
    %6354 = vmatmul.mubr.bf16.gmra.mrb[0].mxu0 %v3767
    %v6355 = vpop.f32.mrb[0].mxu0
    %v6356 = vadd.f32 %v3919, %v6355
    %v6357 = vpop.f32.mrb[0].mxu0
    %v6358 = vadd.f32 %v3923, %v6357
    %v6359 = vpop.f32.mrb[0].mxu0
    %v6360 = vadd.f32 %v3919, %v6359
    %v6361 = vpop.f32.mrb[0].mxu0
    %v6362 = vadd.f32 %v3923, %v6361
    %6363 = vmatprep.mubr.bf16.mxu0 0
    %6364 = vmatmul.mubr.bf16.gmra.mrb[0].mxu0 %v3768
    %v6365 = vpop.f32.mrb[0].mxu0
    %v6366 = vadd.f32 %v3919, %v6365
    %v6367 = vpop.f32.mrb[0].mxu0
    %v6368 = vadd.f32 %v3923, %v6367
    %v6369 = vpop.f32.mrb[0].mxu0
    %v6370 = vadd.f32 %v3919, %v6369
    %v6371 = vpop.f32.mrb[0].mxu0
    %v6372 = vadd.f32 %v3923, %v6371
    %6373 = vmatprep.mubr.bf16.mxu0 0
    %6374 = vmatmul.mubr.bf16.gmra.mrb[0].mxu0 %v3769
    %v6375 = vpop.f32.mrb[0].mxu0
    %v6376 = vadd.f32 %v3919, %v6375
    %v6377 = vpop.f32.mrb[0].mxu0
    %v6378 = vadd.f32 %v3923, %v6377
    %v6379 = vpop.f32.mrb[0].mxu0
    %v6380 = vadd.f32 %v3919, %v6379
    %v6381 = vpop.f32.mrb[0].mxu0
    %v6382 = vadd.f32 %v3923, %v6381
    %6383 = vmatprep.mubr.bf16.mxu0 0
    %6384 = vmatmul.mubr.bf16.gmra.mrb[0].mxu0 %v3770
    %v6385 = vpop.f32.mrb[0].mxu0
    %v6386 = vadd.f32 %v3919, %v6385
    %v6387 = vpop.f32.mrb[0].mxu0
    %v6388 = vadd.f32 %v3923, %v6387
    %v6389 = vpop.f32.mrb[0].mxu0
    %v6390 = vadd.f32 %v3919, %v6389
    %v6391 = vpop.f32.mrb[0].mxu0
    %v6392 = vadd.f32 %v3923, %v6391
    %6393 = vmatprep.mubr.bf16.mxu0 0
    %6394 = vmatmul.mubr.bf16.gmra.mrb[0].mxu0 %v3771
    %v6395 = vpop.f32.mrb[0].mxu0
    %v6396 = vadd.f32 %v3919, %v6395
    %v6397 = vpop.f32.mrb[0].mxu0
    %v6398 = vadd.f32 %v3923, %v6397
    %v6399 = vpop.f32.mrb[0].mxu0
    %v6400 = vadd.f32 %v3919, %v6399
    %v6401 = vpop.f32.mrb[0].mxu0
    %v6402 = vadd.f32 %v3923, %v6401
    %6403 = vmatprep.mubr.bf16.mxu0 0
    %6404 = vmatmul.mubr.bf16.gmra.mrb[0].mxu0 %v3772
    %v6405 = vpop.f32.mrb[0].mxu0
    %v6406 = vadd.f32 %v3919, %v6405
    %v6407 = vpop.f32.mrb[0].mxu0
    %v6408 = vadd.f32 %v3923, %v6407
    %v6409 = vpop.f32.mrb[0].mxu0
    %v6410 = vadd.f32 %v3919, %v6409
    %v6411 = vpop.f32.mrb[0].mxu0
    %v6412 = vadd.f32 %v3923, %v6411
    %6413 = vmatprep.mubr.bf16.mxu0 0
    %6414 = vmatmul.mubr.bf16.gmra.mrb[0].mxu0 %v3773
    %v6415 = vpop.f32.mrb[0].mxu0
    %v6416 = vadd.f32 %v3919, %v6415
    %v6417 = vpop.f32.mrb[0].mxu0
    %v6418 = vadd.f32 %v3923, %v6417
    %v6419 = vpop.f32.mrb[0].mxu0
    %v6420 = vadd.f32 %v3919, %v6419
    %v6421 = vpop.f32.mrb[0].mxu0
    %v6422 = vadd.f32 %v3923, %v6421
    %6423 = vmatprep.mubr.bf16.mxu0 0
    %6424 = vmatmul.mubr.bf16.gmra.mrb[0].mxu0 %v3774
    %v6425 = vpop.f32.mrb[0].mxu0
    %v6426 = vadd.f32 %v3919, %v6425
    %v6427 = vpop.f32.mrb[0].mxu0
    %v6428 = vadd.f32 %v3923, %v6427
    %v6429 = vpop.f32.mrb[0].mxu0
    %v6430 = vadd.f32 %v3919, %v6429
    %v6431 = vpop.f32.mrb[0].mxu0
    %v6432 = vadd.f32 %v3923, %v6431
    %6433 = vmatprep.mubr.bf16.mxu0 0
    %6434 = vmatmul.mubr.bf16.gmra.mrb[0].mxu0 %v3775
    %v6435 = vpop.f32.mrb[0].mxu0
    %v6436 = vadd.f32 %v3919, %v6435
    %v6437 = vpop.f32.mrb[0].mxu0
    %v6438 = vadd.f32 %v3923, %v6437
    %v6439 = vpop.f32.mrb[0].mxu0
    %v6440 = vadd.f32 %v3919, %v6439
    %v6441 = vpop.f32.mrb[0].mxu0
    %v6442 = vadd.f32 %v3923, %v6441
    %6443 = vmatprep.mubr.bf16.mxu0 0
    %6444 = vmatmul.mubr.bf16.gmra.mrb[0].mxu0 %v3776
    %v6445 = vpop.f32.mrb[0].mxu0
    %v6446 = vadd.f32 %v3919, %v6445
    %v6447 = vpop.f32.mrb[0].mxu0
    %v6448 = vadd.f32 %v3923, %v6447
    %v6449 = vpop.f32.mrb[0].mxu0
    %v6450 = vadd.f32 %v3919, %v6449
    %v6451 = vpop.f32.mrb[0].mxu0
    %v6452 = vadd.f32 %v3923, %v6451
    %6453 = vmatprep.mubr.bf16.mxu0 0
    %6454 = vmatmul.mubr.bf16.gmra.mrb[0].mxu0 %v3777
    %v6455 = vpop.f32.mrb[0].mxu0
    %v6456 = vadd.f32 %v3919, %v6455
    %v6457 = vpop.f32.mrb[0].mxu0
    %v6458 = vadd.f32 %v3923, %v6457
    %v6459 = vpop.f32.mrb[0].mxu0
    %v6460 = vadd.f32 %v3919, %v6459
    %v6461 = vpop.f32.mrb[0].mxu0
    %v6462 = vadd.f32 %v3923, %v6461
    %6463 = vmatprep.mubr.bf16.mxu0 0
    %6464 = vmatmul.mubr.bf16.gmra.mrb[0].mxu0 %v3778
    %v6465 = vpop.f32.mrb[0].mxu0
    %v6466 = vadd.f32 %v3919, %v6465
    %v6467 = vpop.f32.mrb[0].mxu0
    %v6468 = vadd.f32 %v3923, %v6467
    %v6469 = vpop.f32.mrb[0].mxu0
    %v6470 = vadd.f32 %v3919, %v6469
    %v6471 = vpop.f32.mrb[0].mxu0
    %v6472 = vadd.f32 %v3923, %v6471
    %6473 = vmatprep.mubr.bf16.mxu0 0
    %6474 = vmatmul.mubr.bf16.gmra.mrb[0].mxu0 %v3779
    %v6475 = vpop.f32.mrb[0].mxu0
    %v6476 = vadd.f32 %v3919, %v6475
    %v6477 = vpop.f32.mrb[0].mxu0
    %v6478 = vadd.f32 %v3923, %v6477
    %v6479 = vpop.f32.mrb[0].mxu0
    %v6480 = vadd.f32 %v3919, %v6479
    %v6481 = vpop.f32.mrb[0].mxu0
    %v6482 = vadd.f32 %v3923, %v6481
    %6483 = vmatprep.mubr.bf16.mxu0 0
    %6484 = vmatmul.mubr.bf16.gmra.mrb[0].mxu0 %v3780
    %v6485 = vpop.f32.mrb[0].mxu0
    %v6486 = vadd.f32 %v3919, %v6485
    %v6487 = vpop.f32.mrb[0].mxu0
    %v6488 = vadd.f32 %v3923, %v6487
    %v6489 = vpop.f32.mrb[0].mxu0
    %v6490 = vadd.f32 %v3919, %v6489
    %v6491 = vpop.f32.mrb[0].mxu0
    %v6492 = vadd.f32 %v3923, %v6491
    %6493 = vmatprep.mubr.bf16.mxu0 0
    %6494 = vmatmul.mubr.bf16.gmra.mrb[0].mxu0 %v3781
    %v6495 = vpop.f32.mrb[0].mxu0
    %v6496 = vadd.f32 %v3919, %v6495
    %v6497 = vpop.f32.mrb[0].mxu0
    %v6498 = vadd.f32 %v3923, %v6497
    %v6499 = vpop.f32.mrb[0].mxu0
    %v6500 = vadd.f32 %v3919, %v6499
    %v6501 = vpop.f32.mrb[0].mxu0
    %v6502 = vadd.f32 %v3923, %v6501
    %6503 = vmatprep.mubr.bf16.mxu0 0
    %6504 = vmatmul.mubr.bf16.gmra.mrb[0].mxu0 %v3782
    %v6505 = vpop.f32.mrb[0].mxu0
    %v6506 = vadd.f32 %v3919, %v6505
    %v6507 = vpop.f32.mrb[0].mxu0
    %v6508 = vadd.f32 %v3923, %v6507
    %v6509 = vpop.f32.mrb[0].mxu0
    %v6510 = vadd.f32 %v3919, %v6509
    %v6511 = vpop.f32.mrb[0].mxu0
    %v6512 = vadd.f32 %v3923, %v6511
    %6513 = vmatprep.mubr.bf16.mxu0 0
    %6514 = vmatmul.mubr.bf16.gmra.mrb[0].mxu0 %v3783
    %v6515 = vpop.f32.mrb[0].mxu0
    %v6516 = vadd.f32 %v3919, %v6515
    %v6517 = vpop.f32.mrb[0].mxu0
    %v6518 = vadd.f32 %v3923, %v6517
    %v6519 = vpop.f32.mrb[0].mxu0
    %v6520 = vadd.f32 %v3919, %v6519
    %v6521 = vpop.f32.mrb[0].mxu0
    %v6522 = vadd.f32 %v3923, %v6521
    %6523 = vmatprep.mubr.bf16.mxu0 0
    %6524 = vmatmul.mubr.bf16.gmra.mrb[0].mxu0 %v3784
    %v6525 = vpop.f32.mrb[0].mxu0
    %v6526 = vadd.f32 %v3919, %v6525
    %v6527 = vpop.f32.mrb[0].mxu0
    %v6528 = vadd.f32 %v3923, %v6527
    %v6529 = vpop.f32.mrb[0].mxu0
    %v6530 = vadd.f32 %v3919, %v6529
    %v6531 = vpop.f32.mrb[0].mxu0
    %v6532 = vadd.f32 %v3923, %v6531
    %6533 = vmatprep.mubr.bf16.mxu0 0
    %6534 = vmatmul.mubr.bf16.gmra.mrb[0].mxu0 %v3785
    %v6535 = vpop.f32.mrb[0].mxu0
    %v6536 = vadd.f32 %v3919, %v6535
    %v6537 = vpop.f32.mrb[0].mxu0
    %v6538 = vadd.f32 %v3923, %v6537
    %v6539 = vpop.f32.mrb[0].mxu0
    %v6540 = vadd.f32 %v3919, %v6539
    %v6541 = vpop.f32.mrb[0].mxu0
    %v6542 = vadd.f32 %v3923, %v6541
    %6543 = vmatprep.mubr.bf16.mxu0 0
    %6544 = vmatmul.mubr.bf16.gmra.mrb[0].mxu0 %v3786
    %v6545 = vpop.f32.mrb[0].mxu0
    %v6546 = vadd.f32 %v3919, %v6545
    %v6547 = vpop.f32.mrb[0].mxu0
    %v6548 = vadd.f32 %v3923, %v6547
    %v6549 = vpop.f32.mrb[0].mxu0
    %v6550 = vadd.f32 %v3919, %v6549
    %v6551 = vpop.f32.mrb[0].mxu0
    %v6552 = vadd.f32 %v3923, %v6551
    %6553 = vmatprep.mubr.bf16.mxu0 0
    %6554 = vmatmul.mubr.bf16.gmra.mrb[0].mxu0 %v3787
    %v6555 = vpop.f32.mrb[0].mxu0
    %v6556 = vadd.f32 %v3919, %v6555
    %v6557 = vpop.f32.mrb[0].mxu0
    %v6558 = vadd.f32 %v3923, %v6557
    %v6559 = vpop.f32.mrb[0].mxu0
    %v6560 = vadd.f32 %v3919, %v6559
    %v6561 = vpop.f32.mrb[0].mxu0
    %v6562 = vadd.f32 %v3923, %v6561
    %6563 = vmatprep.mubr.bf16.mxu0 0
    %6564 = vmatmul.mubr.bf16.gmra.mrb[0].mxu0 %v3788
    %v6565 = vpop.f32.mrb[0].mxu0
    %v6566 = vadd.f32 %v3919, %v6565
    %v6567 = vpop.f32.mrb[0].mxu0
    %v6568 = vadd.f32 %v3923, %v6567
    %v6569 = vpop.f32.mrb[0].mxu0
    %v6570 = vadd.f32 %v3919, %v6569
    %v6571 = vpop.f32.mrb[0].mxu0
    %v6572 = vadd.f32 %v3923, %v6571
    %6573 = vmatprep.mubr.bf16.mxu0 0
    %6574 = vmatmul.mubr.bf16.gmra.mrb[0].mxu0 %v3789
    %v6575 = vpop.f32.mrb[0].mxu0
    %v6576 = vadd.f32 %v3919, %v6575
    %v6577 = vpop.f32.mrb[0].mxu0
    %v6578 = vadd.f32 %v3923, %v6577
    %v6579 = vpop.f32.mrb[0].mxu0
    %v6580 = vadd.f32 %v3919, %v6579
    %v6581 = vpop.f32.mrb[0].mxu0
    %v6582 = vadd.f32 %v3923, %v6581
    %6583 = vmatprep.mubr.bf16.mxu0 0
    %6584 = vmatmul.mubr.bf16.gmra.mrb[0].mxu0 %v3790
    %v6585 = vpop.f32.mrb[0].mxu0
    %v6586 = vadd.f32 %v3919, %v6585
    %v6587 = vpop.f32.mrb[0].mxu0
    %v6588 = vadd.f32 %v3923, %v6587
    %v6589 = vpop.f32.mrb[0].mxu0
    %v6590 = vadd.f32 %v3919, %v6589
    %v6591 = vpop.f32.mrb[0].mxu0
    %v6592 = vadd.f32 %v3923, %v6591
    %6593 = vmatprep.mubr.bf16.mxu0 0
    %6594 = vmatmul.mubr.bf16.gmra.mrb[0].mxu0 %v3791
    %v6595 = vpop.f32.mrb[0].mxu0
    %v6596 = vadd.f32 %v3919, %v6595
    %v6597 = vpop.f32.mrb[0].mxu0
    %v6598 = vadd.f32 %v3923, %v6597
    %v6599 = vpop.f32.mrb[0].mxu0
    %v6600 = vadd.f32 %v3919, %v6599
    %v6601 = vpop.f32.mrb[0].mxu0
    %v6602 = vadd.f32 %v3923, %v6601
    %6603 = vmatprep.mubr.bf16.mxu0 0
    %6604 = vmatmul.mubr.bf16.gmra.mrb[0].mxu0 %v3792
    %v6605 = vpop.f32.mrb[0].mxu0
    %v6606 = vadd.f32 %v3919, %v6605
    %v6607 = vpop.f32.mrb[0].mxu0
    %v6608 = vadd.f32 %v3923, %v6607
    %v6609 = vpop.f32.mrb[0].mxu0
    %v6610 = vadd.f32 %v3919, %v6609
    %v6611 = vpop.f32.mrb[0].mxu0
    %v6612 = vadd.f32 %v3923, %v6611
    %6613 = vmatprep.mubr.bf16.mxu0 0
    %6614 = vmatmul.mubr.bf16.gmra.mrb[0].mxu0 %v3793
    %v6615 = vpop.f32.mrb[0].mxu0
    %v6616 = vadd.f32 %v3919, %v6615
    %v6617 = vpop.f32.mrb[0].mxu0
    %v6618 = vadd.f32 %v3923, %v6617
    %v6619 = vpop.f32.mrb[0].mxu0
    %v6620 = vadd.f32 %v3919, %v6619
    %v6621 = vpop.f32.mrb[0].mxu0
    %v6622 = vadd.f32 %v3923, %v6621
    %6623 = vmatprep.mubr.bf16.mxu0 0
    %6624 = vmatmul.mubr.bf16.gmra.mrb[0].mxu0 %v3794
    %v6625 = vpop.f32.mrb[0].mxu0
    %v6626 = vadd.f32 %v3919, %v6625
    %v6627 = vpop.f32.mrb[0].mxu0
    %v6628 = vadd.f32 %v3923, %v6627
    %v6629 = vpop.f32.mrb[0].mxu0
    %v6630 = vadd.f32 %v3919, %v6629
    %v6631 = vpop.f32.mrb[0].mxu0
    %v6632 = vadd.f32 %v3923, %v6631
    %6633 = vmatprep.mubr.bf16.mxu0 0
    %6634 = vmatmul.mubr.bf16.gmra.mrb[0].mxu0 %v3795
    %v6635 = vpop.f32.mrb[0].mxu0
    %v6636 = vadd.f32 %v3919, %v6635
    %v6637 = vpop.f32.mrb[0].mxu0
    %v6638 = vadd.f32 %v3923, %v6637
    %v6639 = vpop.f32.mrb[0].mxu0
    %v6640 = vadd.f32 %v3919, %v6639
    %v6641 = vpop.f32.mrb[0].mxu0
    %v6642 = vadd.f32 %v3923, %v6641
    %6643 = vmatprep.mubr.bf16.mxu0 0
    %6644 = vmatmul.mubr.bf16.gmra.mrb[0].mxu0 %v3796
    %v6645 = vpop.f32.mrb[0].mxu0
    %v6646 = vadd.f32 %v3919, %v6645
    %v6647 = vpop.f32.mrb[0].mxu0
    %v6648 = vadd.f32 %v3923, %v6647
    %v6649 = vpop.f32.mrb[0].mxu0
    %v6650 = vadd.f32 %v3919, %v6649
    %v6651 = vpop.f32.mrb[0].mxu0
    %v6652 = vadd.f32 %v3923, %v6651
    %6653 = vmatprep.mubr.bf16.mxu0 0
    %6654 = vmatmul.mubr.bf16.gmra.mrb[0].mxu0 %v3797
    %v6655 = vpop.f32.mrb[0].mxu0
    %v6656 = vadd.f32 %v3919, %v6655
    %v6657 = vpop.f32.mrb[0].mxu0
    %v6658 = vadd.f32 %v3923, %v6657
    %v6659 = vpop.f32.mrb[0].mxu0
    %v6660 = vadd.f32 %v3919, %v6659
    %v6661 = vpop.f32.mrb[0].mxu0
    %v6662 = vadd.f32 %v3923, %v6661
    %6663 = vmatprep.mubr.bf16.mxu0 0
    %6664 = vmatmul.mubr.bf16.gmra.mrb[0].mxu0 %v3798
    %v6665 = vpop.f32.mrb[0].mxu0
    %v6666 = vadd.f32 %v3919, %v6665
    %v6667 = vpop.f32.mrb[0].mxu0
    %v6668 = vadd.f32 %v3923, %v6667
    %v6669 = vpop.f32.mrb[0].mxu0
    %v6670 = vadd.f32 %v3919, %v6669
    %v6671 = vpop.f32.mrb[0].mxu0
    %v6672 = vadd.f32 %v3923, %v6671
    %6673 = vmatprep.mubr.bf16.mxu0 0
    %6674 = vmatmul.mubr.bf16.gmra.mrb[0].mxu0 %v3799
    %v6675 = vpop.f32.mrb[0].mxu0
    %v6676 = vadd.f32 %v3919, %v6675
    %v6677 = vpop.f32.mrb[0].mxu0
    %v6678 = vadd.f32 %v3923, %v6677
    %v6679 = vpop.f32.mrb[0].mxu0
    %v6680 = vadd.f32 %v3919, %v6679
    %v6681 = vpop.f32.mrb[0].mxu0
    %v6682 = vadd.f32 %v3923, %v6681
    %6683 = vmatprep.mubr.bf16.mxu0 0
    %6684 = vmatmul.mubr.bf16.gmra.mrb[0].mxu0 %v3800
    %v6685 = vpop.f32.mrb[0].mxu0
    %v6686 = vadd.f32 %v3919, %v6685
    %v6687 = vpop.f32.mrb[0].mxu0
    %v6688 = vadd.f32 %v3923, %v6687
    %v6689 = vpop.f32.mrb[0].mxu0
    %v6690 = vadd.f32 %v3919, %v6689
    %v6691 = vpop.f32.mrb[0].mxu0
    %v6692 = vadd.f32 %v3923, %v6691
    %6693 = vmatprep.mubr.bf16.mxu0 0
    %6694 = vmatmul.mubr.bf16.gmra.mrb[0].mxu0 %v3801
    %v6695 = vpop.f32.mrb[0].mxu0
    %v6696 = vadd.f32 %v3919, %v6695
    %v6697 = vpop.f32.mrb[0].mxu0
    %v6698 = vadd.f32 %v3923, %v6697
    %v6699 = vpop.f32.mrb[0].mxu0
    %v6700 = vadd.f32 %v3919, %v6699
    %v6701 = vpop.f32.mrb[0].mxu0
    %v6702 = vadd.f32 %v3923, %v6701
    %6703 = vmatprep.mubr.bf16.mxu0 0
    %6704 = vmatmul.mubr.bf16.gmra.mrb[0].mxu0 %v3802
    %v6705 = vpop.f32.mrb[0].mxu0
    %v6706 = vadd.f32 %v3919, %v6705
    %v6707 = vpop.f32.mrb[0].mxu0
    %v6708 = vadd.f32 %v3923, %v6707
    %v6709 = vpop.f32.mrb[0].mxu0
    %v6710 = vadd.f32 %v3919, %v6709
    %v6711 = vpop.f32.mrb[0].mxu0
    %v6712 = vadd.f32 %v3923, %v6711
    %6713 = vmatprep.mubr.bf16.mxu0 0
    %6714 = vmatmul.mubr.bf16.gmra.mrb[0].mxu0 %v3803
    %v6715 = vpop.f32.mrb[0].mxu0
    %v6716 = vadd.f32 %v3919, %v6715
    %v6717 = vpop.f32.mrb[0].mxu0
    %v6718 = vadd.f32 %v3923, %v6717
    %v6719 = vpop.f32.mrb[0].mxu0
    %v6720 = vadd.f32 %v3919, %v6719
    %v6721 = vpop.f32.mrb[0].mxu0
    %v6722 = vadd.f32 %v3923, %v6721
    %6723 = vmatprep.mubr.bf16.mxu0 0
    %6724 = vmatmul.mubr.bf16.gmra.mrb[0].mxu0 %v3804
    %v6725 = vpop.f32.mrb[0].mxu0
    %v6726 = vadd.f32 %v3919, %v6725
    %v6727 = vpop.f32.mrb[0].mxu0
    %v6728 = vadd.f32 %v3923, %v6727
    %v6729 = vpop.f32.mrb[0].mxu0
    %v6730 = vadd.f32 %v3919, %v6729
    %v6731 = vpop.f32.mrb[0].mxu0
    %v6732 = vadd.f32 %v3923, %v6731
    %6733 = vmatprep.mubr.bf16.mxu0 0
    %6734 = vmatmul.mubr.bf16.gmra.mrb[0].mxu0 %v3805
    %v6735 = vpop.f32.mrb[0].mxu0
    %v6736 = vadd.f32 %v3919, %v6735
    %v6737 = vpop.f32.mrb[0].mxu0
    %v6738 = vadd.f32 %v3923, %v6737
    %v6739 = vpop.f32.mrb[0].mxu0
    %v6740 = vadd.f32 %v3919, %v6739
    %v6741 = vpop.f32.mrb[0].mxu0
    %v6742 = vadd.f32 %v3923, %v6741
    %6743 = vmatprep.mubr.bf16.mxu0 0
    %6744 = vmatmul.mubr.bf16.gmra.mrb[0].mxu0 %v3806
    %v6745 = vpop.f32.mrb[0].mxu0
    %v6746 = vadd.f32 %v3919, %v6745
    %v6747 = vpop.f32.mrb[0].mxu0
    %v6748 = vadd.f32 %v3923, %v6747
    %v6749 = vpop.f32.mrb[0].mxu0
    %v6750 = vadd.f32 %v3919, %v6749
    %v6751 = vpop.f32.mrb[0].mxu0
    %v6752 = vadd.f32 %v3923, %v6751
    %6753 = vmatprep.mubr.bf16.mxu0 0
    %6754 = vmatmul.mubr.bf16.gmra.mrb[0].mxu0 %v3807
    %v6755 = vpop.f32.mrb[0].mxu0
    %v6756 = vadd.f32 %v3919, %v6755
    %v6757 = vpop.f32.mrb[0].mxu0
    %v6758 = vadd.f32 %v3923, %v6757
    %v6759 = vpop.f32.mrb[0].mxu0
    %v6760 = vadd.f32 %v3919, %v6759
    %v6761 = vpop.f32.mrb[0].mxu0
    %v6762 = vadd.f32 %v3923, %v6761
    %6763 = vmatprep.mubr.bf16.mxu0 0
    %6764 = vmatmul.mubr.bf16.gmra.mrb[0].mxu0 %v3808
    %v6765 = vpop.f32.mrb[0].mxu0
    %v6766 = vadd.f32 %v3919, %v6765
    %v6767 = vpop.f32.mrb[0].mxu0
    %v6768 = vadd.f32 %v3923, %v6767
    %v6769 = vpop.f32.mrb[0].mxu0
    %v6770 = vadd.f32 %v3919, %v6769
    %v6771 = vpop.f32.mrb[0].mxu0
    %v6772 = vadd.f32 %v3923, %v6771
    %6773 = vmatprep.mubr.bf16.mxu0 0
    %6774 = vmatmul.mubr.bf16.gmra.mrb[0].mxu0 %v3809
    %v6775 = vpop.f32.mrb[0].mxu0
    %v6776 = vadd.f32 %v3919, %v6775
    %v6777 = vpop.f32.mrb[0].mxu0
    %v6778 = vadd.f32 %v3923, %v6777
    %v6779 = vpop.f32.mrb[0].mxu0
    %v6780 = vadd.f32 %v3919, %v6779
    %v6781 = vpop.f32.mrb[0].mxu0
    %v6782 = vadd.f32 %v3923, %v6781
    %6783 = vmatprep.mubr.bf16.mxu0 0
    %6784 = vmatmul.mubr.bf16.gmra.mrb[0].mxu0 %v3810
    %v6785 = vpop.f32.mrb[0].mxu0
    %v6786 = vadd.f32 %v3919, %v6785
    %v6787 = vpop.f32.mrb[0].mxu0
    %v6788 = vadd.f32 %v3923, %v6787
    %v6789 = vpop.f32.mrb[0].mxu0
    %v6790 = vadd.f32 %v3919, %v6789
    %v6791 = vpop.f32.mrb[0].mxu0
    %v6792 = vadd.f32 %v3923, %v6791
    %6793 = vmatprep.mubr.bf16.mxu0 0
    %6794 = vmatmul.mubr.bf16.gmra.mrb[0].mxu0 %v3811
    %v6795 = vpop.f32.mrb[0].mxu0
    %v6796 = vadd.f32 %v3919, %v6795
    %v6797 = vpop.f32.mrb[0].mxu0
    %v6798 = vadd.f32 %v3923, %v6797
    %v6799 = vpop.f32.mrb[0].mxu0
    %v6800 = vadd.f32 %v3919, %v6799
    %v6801 = vpop.f32.mrb[0].mxu0
    %v6802 = vadd.f32 %v3923, %v6801
    %6803 = vmatprep.mubr.bf16.mxu0 0
    %6804 = vmatmul.mubr.bf16.gmra.mrb[0].mxu0 %v3812
    %v6805 = vpop.f32.mrb[0].mxu0
    %v6806 = vadd.f32 %v3919, %v6805
    %v6807 = vpop.f32.mrb[0].mxu0
    %v6808 = vadd.f32 %v3923, %v6807
    %v6809 = vpop.f32.mrb[0].mxu0
    %v6810 = vadd.f32 %v3919, %v6809
    %v6811 = vpop.f32.mrb[0].mxu0
    %v6812 = vadd.f32 %v3923, %v6811
    %6813 = vmatprep.mubr.bf16.mxu0 0
    %6814 = vmatmul.mubr.bf16.gmra.mrb[0].mxu0 %v3813
    %v6815 = vpop.f32.mrb[0].mxu0
    %v6816 = vadd.f32 %v3919, %v6815
    %v6817 = vpop.f32.mrb[0].mxu0
    %v6818 = vadd.f32 %v3923, %v6817
    %v6819 = vpop.f32.mrb[0].mxu0
    %v6820 = vadd.f32 %v3919, %v6819
    %v6821 = vpop.f32.mrb[0].mxu0
    %v6822 = vadd.f32 %v3923, %v6821
    %6823 = vmatprep.mubr.bf16.mxu0 0
    %6824 = vmatmul.mubr.bf16.gmra.mrb[0].mxu0 %v3814
    %v6825 = vpop.f32.mrb[0].mxu0
    %v6826 = vadd.f32 %v3919, %v6825
    %v6827 = vpop.f32.mrb[0].mxu0
    %v6828 = vadd.f32 %v3923, %v6827
    %v6829 = vpop.f32.mrb[0].mxu0
    %v6830 = vadd.f32 %v3919, %v6829
    %v6831 = vpop.f32.mrb[0].mxu0
    %v6832 = vadd.f32 %v3923, %v6831
    %6833 = vmatprep.mubr.bf16.mxu0 0
    %6834 = vmatmul.mubr.bf16.gmra.mrb[0].mxu0 %v3815
    %v6835 = vpop.f32.mrb[0].mxu0
    %v6836 = vadd.f32 %v3919, %v6835
    %v6837 = vpop.f32.mrb[0].mxu0
    %v6838 = vadd.f32 %v3923, %v6837
    %v6839 = vpop.f32.mrb[0].mxu0
    %v6840 = vadd.f32 %v3919, %v6839
    %v6841 = vpop.f32.mrb[0].mxu0
    %v6842 = vadd.f32 %v3923, %v6841
    %6843 = vmatprep.mubr.bf16.mxu0 0
    %6844 = vmatmul.mubr.bf16.gmra.mrb[0].mxu0 %v3816
    %v6845 = vpop.f32.mrb[0].mxu0
    %v6846 = vadd.f32 %v3919, %v6845
    %v6847 = vpop.f32.mrb[0].mxu0
    %v6848 = vadd.f32 %v3923, %v6847
    %v6849 = vpop.f32.mrb[0].mxu0
    %v6850 = vadd.f32 %v3919, %v6849
    %v6851 = vpop.f32.mrb[0].mxu0
    %v6852 = vadd.f32 %v3923, %v6851
    %6853 = vmatprep.mubr.bf16.mxu0 0
    %6854 = vmatmul.mubr.bf16.gmra.mrb[0].mxu0 %v3817
    %v6855 = vpop.f32.mrb[0].mxu0
    %v6856 = vadd.f32 %v3919, %v6855
    %v6857 = vpop.f32.mrb[0].mxu0
    %v6858 = vadd.f32 %v3923, %v6857
    %v6859 = vpop.f32.mrb[0].mxu0
    %v6860 = vadd.f32 %v3919, %v6859
    %v6861 = vpop.f32.mrb[0].mxu0
    %v6862 = vadd.f32 %v3923, %v6861
    %6863 = vmatprep.mubr.bf16.mxu0 0
    %6864 = vmatmul.mubr.bf16.gmra.mrb[0].mxu0 %v3818
    %v6865 = vpop.f32.mrb[0].mxu0
    %v6866 = vadd.f32 %v3919, %v6865
    %v6867 = vpop.f32.mrb[0].mxu0
    %v6868 = vadd.f32 %v3923, %v6867
    %v6869 = vpop.f32.mrb[0].mxu0
    %v6870 = vadd.f32 %v3919, %v6869
    %v6871 = vpop.f32.mrb[0].mxu0
    %v6872 = vadd.f32 %v3923, %v6871
    %6873 = vmatprep.mubr.bf16.mxu0 0
    %6874 = vmatmul.mubr.bf16.gmra.mrb[0].mxu0 %v3819
    %v6875 = vpop.f32.mrb[0].mxu0
    %v6876 = vadd.f32 %v3919, %v6875
    %v6877 = vpop.f32.mrb[0].mxu0
    %v6878 = vadd.f32 %v3923, %v6877
    %v6879 = vpop.f32.mrb[0].mxu0
    %v6880 = vadd.f32 %v3919, %v6879
    %v6881 = vpop.f32.mrb[0].mxu0
    %v6882 = vadd.f32 %v3923, %v6881
    %6883 = vmatprep.mubr.bf16.mxu0 0
    %6884 = vmatmul.mubr.bf16.gmra.mrb[0].mxu0 %v3820
    %v6885 = vpop.f32.mrb[0].mxu0
    %v6886 = vadd.f32 %v3919, %v6885
    %v6887 = vpop.f32.mrb[0].mxu0
    %v6888 = vadd.f32 %v3923, %v6887
    %v6889 = vpop.f32.mrb[0].mxu0
    %v6890 = vadd.f32 %v3919, %v6889
    %v6891 = vpop.f32.mrb[0].mxu0
    %v6892 = vadd.f32 %v3923, %v6891
    %6893 = vmatprep.mubr.bf16.mxu0 0
    %6894 = vmatmul.mubr.bf16.gmra.mrb[0].mxu0 %v3821
    %v6895 = vpop.f32.mrb[0].mxu0
    %v6896 = vadd.f32 %v3919, %v6895
    %v6897 = vpop.f32.mrb[0].mxu0
    %v6898 = vadd.f32 %v3923, %v6897
    %v6899 = vpop.f32.mrb[0].mxu0
    %v6900 = vadd.f32 %v3919, %v6899
    %v6901 = vpop.f32.mrb[0].mxu0
    %v6902 = vadd.f32 %v3923, %v6901
    %6903 = vmatprep.mubr.bf16.mxu0 0
    %6904 = vmatmul.mubr.bf16.gmra.mrb[0].mxu0 %v3822
    %v6905 = vpop.f32.mrb[0].mxu0
    %v6906 = vadd.f32 %v3919, %v6905
    %v6907 = vpop.f32.mrb[0].mxu0
    %v6908 = vadd.f32 %v3923, %v6907
    %v6909 = vpop.f32.mrb[0].mxu0
    %v6910 = vadd.f32 %v3919, %v6909
    %v6911 = vpop.f32.mrb[0].mxu0
    %v6912 = vadd.f32 %v3923, %v6911
    %6913 = vmatprep.mubr.bf16.mxu0 0
    %6914 = vmatmul.mubr.bf16.gmra.mrb[0].mxu0 %v3823
    %v6915 = vpop.f32.mrb[0].mxu0
    %v6916 = vadd.f32 %v3919, %v6915
    %v6917 = vpop.f32.mrb[0].mxu0
    %v6918 = vadd.f32 %v3923, %v6917
    %v6919 = vpop.f32.mrb[0].mxu0
    %v6920 = vadd.f32 %v3919, %v6919
    %v6921 = vpop.f32.mrb[0].mxu0
    %v6922 = vadd.f32 %v3923, %v6921
    %6923 = vmatprep.mubr.bf16.mxu0 0
    %6924 = vmatmul.mubr.bf16.gmra.mrb[0].mxu0 %v3824
    %v6925 = vpop.f32.mrb[0].mxu0
    %v6926 = vadd.f32 %v3919, %v6925
    %v6927 = vpop.f32.mrb[0].mxu0
    %v6928 = vadd.f32 %v3923, %v6927
    %v6929 = vpop.f32.mrb[0].mxu0
    %v6930 = vadd.f32 %v3919, %v6929
    %v6931 = vpop.f32.mrb[0].mxu0
    %v6932 = vadd.f32 %v3923, %v6931
    %6933 = vmatprep.mubr.bf16.mxu0 0
    %6934 = vmatmul.mubr.bf16.gmra.mrb[0].mxu0 %v3825
    %v6935 = vpop.f32.mrb[0].mxu0
    %v6936 = vadd.f32 %v3919, %v6935
    %v6937 = vpop.f32.mrb[0].mxu0
    %v6938 = vadd.f32 %v3923, %v6937
    %v6939 = vpop.f32.mrb[0].mxu0
    %v6940 = vadd.f32 %v3919, %v6939
    %v6941 = vpop.f32.mrb[0].mxu0
    %v6942 = vadd.f32 %v3923, %v6941
    %6943 = vdwg.mxu0
    %v6944 = vmax.f32 %v4287, %v4291
    %v6945 = vmax.f32 %v6944, %v4297
    %v6946 = vmax.f32 %v6945, %v4301
    %v6947 = vmax.f32 %v6946, %v4307
    %v6948 = vmax.f32 %v6947, %v4311
    %v6949 = vmax.f32 %v6948, %v4317
    %v6950 = vmax.f32 %v6949, %v4321
    %v6951 = vrot.slane %v6950, 4
    %v6952 = vmax.f32 %v6950, %v6951
    %v6953 = vrot.slane %v6952, 2
    %v6954 = vmax.f32 %v6952, %v6953
    %v6955 = vrot.slane %v6954, 1
    %v6956 = vmax.f32 %v6954, %v6955
    %v6957 = vmax.f32 %v4289, %v4293
    %v6958 = vmax.f32 %v6957, %v4299
    %v6959 = vmax.f32 %v6958, %v4303
    %v6960 = vmax.f32 %v6959, %v4309
    %v6961 = vmax.f32 %v6960, %v4313
    %v6962 = vmax.f32 %v6961, %v4319
    %v6963 = vmax.f32 %v6962, %v4323
    %v6964 = vrot.slane %v6963, 4
    %v6965 = vmax.f32 %v6963, %v6964
    %v6966 = vrot.slane %v6965, 2
    %v6967 = vmax.f32 %v6965, %v6966
    %v6968 = vrot.slane %v6967, 1
    %v6969 = vmax.f32 %v6967, %v6968
    %v6970 = vmax.f32 %v4960, %v4964
    %v6971 = vmax.f32 %v6970, %v4970
    %v6972 = vmax.f32 %v6971, %v4974
    %v6973 = vmax.f32 %v6972, %v4980
    %v6974 = vmax.f32 %v6973, %v4984
    %v6975 = vmax.f32 %v6974, %v4990
    %v6976 = vmax.f32 %v6975, %v4994
    %v6977 = vrot.slane %v6976, 4
    %v6978 = vmax.f32 %v6976, %v6977
    %v6979 = vrot.slane %v6978, 2
    %v6980 = vmax.f32 %v6978, %v6979
    %v6981 = vrot.slane %v6980, 1
    %v6982 = vmax.f32 %v6980, %v6981
    %v6983 = vmax.f32 %v4962, %v4966
    %v6984 = vmax.f32 %v6983, %v4972
    %v6985 = vmax.f32 %v6984, %v4976
    %v6986 = vmax.f32 %v6985, %v4982
    %v6987 = vmax.f32 %v6986, %v4986
    %v6988 = vmax.f32 %v6987, %v4992
    %v6989 = vmax.f32 %v6988, %v4996
    %v6990 = vrot.slane %v6989, 4
    %v6991 = vmax.f32 %v6989, %v6990
    %v6992 = vrot.slane %v6991, 2
    %v6993 = vmax.f32 %v6991, %v6992
    %v6994 = vrot.slane %v6993, 1
    %v6995 = vmax.f32 %v6993, %v6994
    %v6996 = vmax.f32 %v5633, %v5637
    %v6997 = vmax.f32 %v6996, %v5643
    %v6998 = vmax.f32 %v6997, %v5647
    %v6999 = vmax.f32 %v6998, %v5653
    %v7000 = vmax.f32 %v6999, %v5657
    %v7001 = vmax.f32 %v7000, %v5663
    %v7002 = vmax.f32 %v7001, %v5667
    %v7003 = vrot.slane %v7002, 4
    %v7004 = vmax.f32 %v7002, %v7003
    %v7005 = vrot.slane %v7004, 2
    %v7006 = vmax.f32 %v7004, %v7005
    %v7007 = vrot.slane %v7006, 1
    %v7008 = vmax.f32 %v7006, %v7007
    %v7009 = vmax.f32 %v5635, %v5639
    %v7010 = vmax.f32 %v7009, %v5645
    %v7011 = vmax.f32 %v7010, %v5649
    %v7012 = vmax.f32 %v7011, %v5655
    %v7013 = vmax.f32 %v7012, %v5659
    %v7014 = vmax.f32 %v7013, %v5665
    %v7015 = vmax.f32 %v7014, %v5669
    %v7016 = vrot.slane %v7015, 4
    %v7017 = vmax.f32 %v7015, %v7016
    %v7018 = vrot.slane %v7017, 2
    %v7019 = vmax.f32 %v7017, %v7018
    %v7020 = vrot.slane %v7019, 1
    %v7021 = vmax.f32 %v7019, %v7020
    %v7022 = vmax.f32 %v6306, %v6310
    %v7023 = vmax.f32 %v7022, %v6316
    %v7024 = vmax.f32 %v7023, %v6320
    %v7025 = vmax.f32 %v7024, %v6326
    %v7026 = vmax.f32 %v7025, %v6330
    %v7027 = vmax.f32 %v7026, %v6336
    %v7028 = vmax.f32 %v7027, %v6340
    %v7029 = vrot.slane %v7028, 4
    %v7030 = vmax.f32 %v7028, %v7029
    %v7031 = vrot.slane %v7030, 2
    %v7032 = vmax.f32 %v7030, %v7031
    %v7033 = vrot.slane %v7032, 1
    %v7034 = vmax.f32 %v7032, %v7033
    %v7035 = vmax.f32 %v6308, %v6312
    %v7036 = vmax.f32 %v7035, %v6318
    %v7037 = vmax.f32 %v7036, %v6322
    %v7038 = vmax.f32 %v7037, %v6328
    %v7039 = vmax.f32 %v7038, %v6332
    %v7040 = vmax.f32 %v7039, %v6338
    %v7041 = vmax.f32 %v7040, %v6342
    %v7042 = vrot.slane %v7041, 4
    %v7043 = vmax.f32 %v7041, %v7042
    %v7044 = vrot.slane %v7043, 2
    %v7045 = vmax.f32 %v7043, %v7044
    %v7046 = vrot.slane %v7045, 1
    %v7047 = vmax.f32 %v7045, %v7046
    %v7048 = vmax.f32 %v4327, %v4331
    %v7049 = vmax.f32 %v7048, %v4337
    %v7050 = vmax.f32 %v7049, %v4341
    %v7051 = vmax.f32 %v7050, %v4347
    %v7052 = vmax.f32 %v7051, %v4351
    %v7053 = vmax.f32 %v7052, %v4357
    %v7054 = vmax.f32 %v7053, %v4361
    %v7055 = vrot.slane %v7054, 4
    %v7056 = vmax.f32 %v7054, %v7055
    %v7057 = vrot.slane %v7056, 2
    %v7058 = vmax.f32 %v7056, %v7057
    %v7059 = vrot.slane %v7058, 1
    %v7060 = vmax.f32 %v7058, %v7059
    %v7061 = vmax.f32 %v4329, %v4333
    %v7062 = vmax.f32 %v7061, %v4339
    %v7063 = vmax.f32 %v7062, %v4343
    %v7064 = vmax.f32 %v7063, %v4349
    %v7065 = vmax.f32 %v7064, %v4353
    %v7066 = vmax.f32 %v7065, %v4359
    %v7067 = vmax.f32 %v7066, %v4363
    %v7068 = vrot.slane %v7067, 4
    %v7069 = vmax.f32 %v7067, %v7068
    %v7070 = vrot.slane %v7069, 2
    %v7071 = vmax.f32 %v7069, %v7070
    %v7072 = vrot.slane %v7071, 1
    %v7073 = vmax.f32 %v7071, %v7072
    %v7074 = vmax.f32 %v5000, %v5004
    %v7075 = vmax.f32 %v7074, %v5010
    %v7076 = vmax.f32 %v7075, %v5014
    %v7077 = vmax.f32 %v7076, %v5020
    %v7078 = vmax.f32 %v7077, %v5024
    %v7079 = vmax.f32 %v7078, %v5030
    %v7080 = vmax.f32 %v7079, %v5034
    %v7081 = vrot.slane %v7080, 4
    %v7082 = vmax.f32 %v7080, %v7081
    %v7083 = vrot.slane %v7082, 2
    %v7084 = vmax.f32 %v7082, %v7083
    %v7085 = vrot.slane %v7084, 1
    %v7086 = vmax.f32 %v7084, %v7085
    %v7087 = vmax.f32 %v5002, %v5006
    %v7088 = vmax.f32 %v7087, %v5012
    %v7089 = vmax.f32 %v7088, %v5016
    %v7090 = vmax.f32 %v7089, %v5022
    %v7091 = vmax.f32 %v7090, %v5026
    %v7092 = vmax.f32 %v7091, %v5032
    %v7093 = vmax.f32 %v7092, %v5036
    %v7094 = vrot.slane %v7093, 4
    %v7095 = vmax.f32 %v7093, %v7094
    %v7096 = vrot.slane %v7095, 2
    %v7097 = vmax.f32 %v7095, %v7096
    %v7098 = vrot.slane %v7097, 1
    %v7099 = vmax.f32 %v7097, %v7098
    %v7100 = vmax.f32 %v5673, %v5677
    %v7101 = vmax.f32 %v7100, %v5683
    %v7102 = vmax.f32 %v7101, %v5687
    %v7103 = vmax.f32 %v7102, %v5693
    %v7104 = vmax.f32 %v7103, %v5697
    %v7105 = vmax.f32 %v7104, %v5703
    %v7106 = vmax.f32 %v7105, %v5707
    %v7107 = vrot.slane %v7106, 4
    %v7108 = vmax.f32 %v7106, %v7107
    %v7109 = vrot.slane %v7108, 2
    %v7110 = vmax.f32 %v7108, %v7109
    %v7111 = vrot.slane %v7110, 1
    %v7112 = vmax.f32 %v7110, %v7111
    %v7113 = vmax.f32 %v5675, %v5679
    %v7114 = vmax.f32 %v7113, %v5685
    %v7115 = vmax.f32 %v7114, %v5689
    %v7116 = vmax.f32 %v7115, %v5695
    %v7117 = vmax.f32 %v7116, %v5699
    %v7118 = vmax.f32 %v7117, %v5705
    %v7119 = vmax.f32 %v7118, %v5709
    %v7120 = vrot.slane %v7119, 4
    %v7121 = vmax.f32 %v7119, %v7120
    %v7122 = vrot.slane %v7121, 2
    %v7123 = vmax.f32 %v7121, %v7122
    %v7124 = vrot.slane %v7123, 1
    %v7125 = vmax.f32 %v7123, %v7124
    %v7126 = vmax.f32 %v6346, %v6350
    %v7127 = vmax.f32 %v7126, %v6356
    %v7128 = vmax.f32 %v7127, %v6360
    %v7129 = vmax.f32 %v7128, %v6366
    %v7130 = vmax.f32 %v7129, %v6370
    %v7131 = vmax.f32 %v7130, %v6376
    %v7132 = vmax.f32 %v7131, %v6380
    %v7133 = vrot.slane %v7132, 4
    %v7134 = vmax.f32 %v7132, %v7133
    %v7135 = vrot.slane %v7134, 2
    %v7136 = vmax.f32 %v7134, %v7135
    %v7137 = vrot.slane %v7136, 1
    %v7138 = vmax.f32 %v7136, %v7137
    %v7139 = vmax.f32 %v6348, %v6352
    %v7140 = vmax.f32 %v7139, %v6358
    %v7141 = vmax.f32 %v7140, %v6362
    %v7142 = vmax.f32 %v7141, %v6368
    %v7143 = vmax.f32 %v7142, %v6372
    %v7144 = vmax.f32 %v7143, %v6378
    %v7145 = vmax.f32 %v7144, %v6382
    %v7146 = vrot.slane %v7145, 4
    %v7147 = vmax.f32 %v7145, %v7146
    %v7148 = vrot.slane %v7147, 2
    %v7149 = vmax.f32 %v7147, %v7148
    %v7150 = vrot.slane %v7149, 1
    %v7151 = vmax.f32 %v7149, %v7150
    %v7152 = vmax.f32 %v4367, %v4371
    %v7153 = vmax.f32 %v7152, %v4377
    %v7154 = vmax.f32 %v7153, %v4381
    %v7155 = vmax.f32 %v7154, %v4387
    %v7156 = vmax.f32 %v7155, %v4391
    %v7157 = vmax.f32 %v7156, %v4397
    %v7158 = vmax.f32 %v7157, %v4401
    %v7159 = vrot.slane %v7158, 4
    %v7160 = vmax.f32 %v7158, %v7159
    %v7161 = vrot.slane %v7160, 2
    %v7162 = vmax.f32 %v7160, %v7161
    %v7163 = vrot.slane %v7162, 1
    %v7164 = vmax.f32 %v7162, %v7163
    %v7165 = vmax.f32 %v4369, %v4373
    %v7166 = vmax.f32 %v7165, %v4379
    %v7167 = vmax.f32 %v7166, %v4383
    %v7168 = vmax.f32 %v7167, %v4389
    %v7169 = vmax.f32 %v7168, %v4393
    %v7170 = vmax.f32 %v7169, %v4399
    %v7171 = vmax.f32 %v7170, %v4403
    %v7172 = vrot.slane %v7171, 4
    %v7173 = vmax.f32 %v7171, %v7172
    %v7174 = vrot.slane %v7173, 2
    %v7175 = vmax.f32 %v7173, %v7174
    %v7176 = vrot.slane %v7175, 1
    %v7177 = vmax.f32 %v7175, %v7176
    %v7178 = vmax.f32 %v5040, %v5044
    %v7179 = vmax.f32 %v7178, %v5050
    %v7180 = vmax.f32 %v7179, %v5054
    %v7181 = vmax.f32 %v7180, %v5060
    %v7182 = vmax.f32 %v7181, %v5064
    %v7183 = vmax.f32 %v7182, %v5070
    %v7184 = vmax.f32 %v7183, %v5074
    %v7185 = vrot.slane %v7184, 4
    %v7186 = vmax.f32 %v7184, %v7185
    %v7187 = vrot.slane %v7186, 2
    %v7188 = vmax.f32 %v7186, %v7187
    %v7189 = vrot.slane %v7188, 1
    %v7190 = vmax.f32 %v7188, %v7189
    %v7191 = vmax.f32 %v5042, %v5046
    %v7192 = vmax.f32 %v7191, %v5052
    %v7193 = vmax.f32 %v7192, %v5056
    %v7194 = vmax.f32 %v7193, %v5062
    %v7195 = vmax.f32 %v7194, %v5066
    %v7196 = vmax.f32 %v7195, %v5072
    %v7197 = vmax.f32 %v7196, %v5076
    %v7198 = vrot.slane %v7197, 4
    %v7199 = vmax.f32 %v7197, %v7198
    %v7200 = vrot.slane %v7199, 2
    %v7201 = vmax.f32 %v7199, %v7200
    %v7202 = vrot.slane %v7201, 1
    %v7203 = vmax.f32 %v7201, %v7202
    %v7204 = vmax.f32 %v5713, %v5717
    %v7205 = vmax.f32 %v7204, %v5723
    %v7206 = vmax.f32 %v7205, %v5727
    %v7207 = vmax.f32 %v7206, %v5733
    %v7208 = vmax.f32 %v7207, %v5737
    %v7209 = vmax.f32 %v7208, %v5743
    %v7210 = vmax.f32 %v7209, %v5747
    %v7211 = vrot.slane %v7210, 4
    %v7212 = vmax.f32 %v7210, %v7211
    %v7213 = vrot.slane %v7212, 2
    %v7214 = vmax.f32 %v7212, %v7213
    %v7215 = vrot.slane %v7214, 1
    %v7216 = vmax.f32 %v7214, %v7215
    %v7217 = vmax.f32 %v5715, %v5719
    %v7218 = vmax.f32 %v7217, %v5725
    %v7219 = vmax.f32 %v7218, %v5729
    %v7220 = vmax.f32 %v7219, %v5735
    %v7221 = vmax.f32 %v7220, %v5739
    %v7222 = vmax.f32 %v7221, %v5745
    %v7223 = vmax.f32 %v7222, %v5749
    %v7224 = vrot.slane %v7223, 4
    %v7225 = vmax.f32 %v7223, %v7224
    %v7226 = vrot.slane %v7225, 2
    %v7227 = vmax.f32 %v7225, %v7226
    %v7228 = vrot.slane %v7227, 1
    %v7229 = vmax.f32 %v7227, %v7228
    %v7230 = vmax.f32 %v6386, %v6390
    %v7231 = vmax.f32 %v7230, %v6396
    %v7232 = vmax.f32 %v7231, %v6400
    %v7233 = vmax.f32 %v7232, %v6406
    %v7234 = vmax.f32 %v7233, %v6410
    %v7235 = vmax.f32 %v7234, %v6416
    %v7236 = vmax.f32 %v7235, %v6420
    %v7237 = vrot.slane %v7236, 4
    %v7238 = vmax.f32 %v7236, %v7237
    %v7239 = vrot.slane %v7238, 2
    %v7240 = vmax.f32 %v7238, %v7239
    %v7241 = vrot.slane %v7240, 1
    %v7242 = vmax.f32 %v7240, %v7241
    %v7243 = vmax.f32 %v6388, %v6392
    %v7244 = vmax.f32 %v7243, %v6398
    %v7245 = vmax.f32 %v7244, %v6402
    %v7246 = vmax.f32 %v7245, %v6408
    %v7247 = vmax.f32 %v7246, %v6412
    %v7248 = vmax.f32 %v7247, %v6418
    %v7249 = vmax.f32 %v7248, %v6422
    %v7250 = vrot.slane %v7249, 4
    %v7251 = vmax.f32 %v7249, %v7250
    %v7252 = vrot.slane %v7251, 2
    %v7253 = vmax.f32 %v7251, %v7252
    %v7254 = vrot.slane %v7253, 1
    %v7255 = vmax.f32 %v7253, %v7254
    %v7256 = vmax.f32 %v4407, %v4411
    %v7257 = vmax.f32 %v7256, %v4417
    %v7258 = vmax.f32 %v7257, %v4421
    %v7259 = vmax.f32 %v7258, %v4427
    %v7260 = vmax.f32 %v7259, %v4431
    %v7261 = vmax.f32 %v7260, %v4437
    %v7262 = vmax.f32 %v7261, %v4441
    %v7263 = vrot.slane %v7262, 4
    %v7264 = vmax.f32 %v7262, %v7263
    %v7265 = vrot.slane %v7264, 2
    %v7266 = vmax.f32 %v7264, %v7265
    %v7267 = vrot.slane %v7266, 1
    %v7268 = vmax.f32 %v7266, %v7267
    %v7269 = vmax.f32 %v4409, %v4413
    %v7270 = vmax.f32 %v7269, %v4419
    %v7271 = vmax.f32 %v7270, %v4423
    %v7272 = vmax.f32 %v7271, %v4429
    %v7273 = vmax.f32 %v7272, %v4433
    %v7274 = vmax.f32 %v7273, %v4439
    %v7275 = vmax.f32 %v7274, %v4443
    %v7276 = vrot.slane %v7275, 4
    %v7277 = vmax.f32 %v7275, %v7276
    %v7278 = vrot.slane %v7277, 2
    %v7279 = vmax.f32 %v7277, %v7278
    %v7280 = vrot.slane %v7279, 1
    %v7281 = vmax.f32 %v7279, %v7280
    %v7282 = vmax.f32 %v5080, %v5084
    %v7283 = vmax.f32 %v7282, %v5090
    %v7284 = vmax.f32 %v7283, %v5094
    %v7285 = vmax.f32 %v7284, %v5100
    %v7286 = vmax.f32 %v7285, %v5104
    %v7287 = vmax.f32 %v7286, %v5110
    %v7288 = vmax.f32 %v7287, %v5114
    %v7289 = vrot.slane %v7288, 4
    %v7290 = vmax.f32 %v7288, %v7289
    %v7291 = vrot.slane %v7290, 2
    %v7292 = vmax.f32 %v7290, %v7291
    %v7293 = vrot.slane %v7292, 1
    %v7294 = vmax.f32 %v7292, %v7293
    %v7295 = vmax.f32 %v5082, %v5086
    %v7296 = vmax.f32 %v7295, %v5092
    %v7297 = vmax.f32 %v7296, %v5096
    %v7298 = vmax.f32 %v7297, %v5102
    %v7299 = vmax.f32 %v7298, %v5106
    %v7300 = vmax.f32 %v7299, %v5112
    %v7301 = vmax.f32 %v7300, %v5116
    %v7302 = vrot.slane %v7301, 4
    %v7303 = vmax.f32 %v7301, %v7302
    %v7304 = vrot.slane %v7303, 2
    %v7305 = vmax.f32 %v7303, %v7304
    %v7306 = vrot.slane %v7305, 1
    %v7307 = vmax.f32 %v7305, %v7306
    %v7308 = vmax.f32 %v5753, %v5757
    %v7309 = vmax.f32 %v7308, %v5763
    %v7310 = vmax.f32 %v7309, %v5767
    %v7311 = vmax.f32 %v7310, %v5773
    %v7312 = vmax.f32 %v7311, %v5777
    %v7313 = vmax.f32 %v7312, %v5783
    %v7314 = vmax.f32 %v7313, %v5787
    %v7315 = vrot.slane %v7314, 4
    %v7316 = vmax.f32 %v7314, %v7315
    %v7317 = vrot.slane %v7316, 2
    %v7318 = vmax.f32 %v7316, %v7317
    %v7319 = vrot.slane %v7318, 1
    %v7320 = vmax.f32 %v7318, %v7319
    %v7321 = vmax.f32 %v5755, %v5759
    %v7322 = vmax.f32 %v7321, %v5765
    %v7323 = vmax.f32 %v7322, %v5769
    %v7324 = vmax.f32 %v7323, %v5775
    %v7325 = vmax.f32 %v7324, %v5779
    %v7326 = vmax.f32 %v7325, %v5785
    %v7327 = vmax.f32 %v7326, %v5789
    %v7328 = vrot.slane %v7327, 4
    %v7329 = vmax.f32 %v7327, %v7328
    %v7330 = vrot.slane %v7329, 2
    %v7331 = vmax.f32 %v7329, %v7330
    %v7332 = vrot.slane %v7331, 1
    %v7333 = vmax.f32 %v7331, %v7332
    %v7334 = vmax.f32 %v6426, %v6430
    %v7335 = vmax.f32 %v7334, %v6436
    %v7336 = vmax.f32 %v7335, %v6440
    %v7337 = vmax.f32 %v7336, %v6446
    %v7338 = vmax.f32 %v7337, %v6450
    %v7339 = vmax.f32 %v7338, %v6456
    %v7340 = vmax.f32 %v7339, %v6460
    %v7341 = vrot.slane %v7340, 4
    %v7342 = vmax.f32 %v7340, %v7341
    %v7343 = vrot.slane %v7342, 2
    %v7344 = vmax.f32 %v7342, %v7343
    %v7345 = vrot.slane %v7344, 1
    %v7346 = vmax.f32 %v7344, %v7345
    %v7347 = vmax.f32 %v6428, %v6432
    %v7348 = vmax.f32 %v7347, %v6438
    %v7349 = vmax.f32 %v7348, %v6442
    %v7350 = vmax.f32 %v7349, %v6448
    %v7351 = vmax.f32 %v7350, %v6452
    %v7352 = vmax.f32 %v7351, %v6458
    %v7353 = vmax.f32 %v7352, %v6462
    %v7354 = vrot.slane %v7353, 4
    %v7355 = vmax.f32 %v7353, %v7354
    %v7356 = vrot.slane %v7355, 2
    %v7357 = vmax.f32 %v7355, %v7356
    %v7358 = vrot.slane %v7357, 1
    %v7359 = vmax.f32 %v7357, %v7358
    %v7360 = vmax.f32 %v4447, %v4451
    %v7361 = vmax.f32 %v7360, %v4457
    %v7362 = vmax.f32 %v7361, %v4461
    %v7363 = vmax.f32 %v7362, %v4467
    %v7364 = vmax.f32 %v7363, %v4471
    %v7365 = vmax.f32 %v7364, %v4477
    %v7366 = vmax.f32 %v7365, %v4481
    %v7367 = vrot.slane %v7366, 4
    %v7368 = vmax.f32 %v7366, %v7367
    %v7369 = vrot.slane %v7368, 2
    %v7370 = vmax.f32 %v7368, %v7369
    %v7371 = vrot.slane %v7370, 1
    %v7372 = vmax.f32 %v7370, %v7371
    %v7373 = vmax.f32 %v4449, %v4453
    %v7374 = vmax.f32 %v7373, %v4459
    %v7375 = vmax.f32 %v7374, %v4463
    %v7376 = vmax.f32 %v7375, %v4469
    %v7377 = vmax.f32 %v7376, %v4473
    %v7378 = vmax.f32 %v7377, %v4479
    %v7379 = vmax.f32 %v7378, %v4483
    %v7380 = vrot.slane %v7379, 4
    %v7381 = vmax.f32 %v7379, %v7380
    %v7382 = vrot.slane %v7381, 2
    %v7383 = vmax.f32 %v7381, %v7382
    %v7384 = vrot.slane %v7383, 1
    %v7385 = vmax.f32 %v7383, %v7384
    %v7386 = vmax.f32 %v5120, %v5124
    %v7387 = vmax.f32 %v7386, %v5130
    %v7388 = vmax.f32 %v7387, %v5134
    %v7389 = vmax.f32 %v7388, %v5140
    %v7390 = vmax.f32 %v7389, %v5144
    %v7391 = vmax.f32 %v7390, %v5150
    %v7392 = vmax.f32 %v7391, %v5154
    %v7393 = vrot.slane %v7392, 4
    %v7394 = vmax.f32 %v7392, %v7393
    %v7395 = vrot.slane %v7394, 2
    %v7396 = vmax.f32 %v7394, %v7395
    %v7397 = vrot.slane %v7396, 1
    %v7398 = vmax.f32 %v7396, %v7397
    %v7399 = vmax.f32 %v5122, %v5126
    %v7400 = vmax.f32 %v7399, %v5132
    %v7401 = vmax.f32 %v7400, %v5136
    %v7402 = vmax.f32 %v7401, %v5142
    %v7403 = vmax.f32 %v7402, %v5146
    %v7404 = vmax.f32 %v7403, %v5152
    %v7405 = vmax.f32 %v7404, %v5156
    %v7406 = vrot.slane %v7405, 4
    %v7407 = vmax.f32 %v7405, %v7406
    %v7408 = vrot.slane %v7407, 2
    %v7409 = vmax.f32 %v7407, %v7408
    %v7410 = vrot.slane %v7409, 1
    %v7411 = vmax.f32 %v7409, %v7410
    %v7412 = vmax.f32 %v5793, %v5797
    %v7413 = vmax.f32 %v7412, %v5803
    %v7414 = vmax.f32 %v7413, %v5807
    %v7415 = vmax.f32 %v7414, %v5813
    %v7416 = vmax.f32 %v7415, %v5817
    %v7417 = vmax.f32 %v7416, %v5823
    %v7418 = vmax.f32 %v7417, %v5827
    %v7419 = vrot.slane %v7418, 4
    %v7420 = vmax.f32 %v7418, %v7419
    %v7421 = vrot.slane %v7420, 2
    %v7422 = vmax.f32 %v7420, %v7421
    %v7423 = vrot.slane %v7422, 1
    %v7424 = vmax.f32 %v7422, %v7423
    %v7425 = vmax.f32 %v5795, %v5799
    %v7426 = vmax.f32 %v7425, %v5805
    %v7427 = vmax.f32 %v7426, %v5809
    %v7428 = vmax.f32 %v7427, %v5815
    %v7429 = vmax.f32 %v7428, %v5819
    %v7430 = vmax.f32 %v7429, %v5825
    %v7431 = vmax.f32 %v7430, %v5829
    %v7432 = vrot.slane %v7431, 4
    %v7433 = vmax.f32 %v7431, %v7432
    %v7434 = vrot.slane %v7433, 2
    %v7435 = vmax.f32 %v7433, %v7434
    %v7436 = vrot.slane %v7435, 1
    %v7437 = vmax.f32 %v7435, %v7436
    %v7438 = vmax.f32 %v6466, %v6470
    %v7439 = vmax.f32 %v7438, %v6476
    %v7440 = vmax.f32 %v7439, %v6480
    %v7441 = vmax.f32 %v7440, %v6486
    %v7442 = vmax.f32 %v7441, %v6490
    %v7443 = vmax.f32 %v7442, %v6496
    %v7444 = vmax.f32 %v7443, %v6500
    %v7445 = vrot.slane %v7444, 4
    %v7446 = vmax.f32 %v7444, %v7445
    %v7447 = vrot.slane %v7446, 2
    %v7448 = vmax.f32 %v7446, %v7447
    %v7449 = vrot.slane %v7448, 1
    %v7450 = vmax.f32 %v7448, %v7449
    %v7451 = vmax.f32 %v6468, %v6472
    %v7452 = vmax.f32 %v7451, %v6478
    %v7453 = vmax.f32 %v7452, %v6482
    %v7454 = vmax.f32 %v7453, %v6488
    %v7455 = vmax.f32 %v7454, %v6492
    %v7456 = vmax.f32 %v7455, %v6498
    %v7457 = vmax.f32 %v7456, %v6502
    %v7458 = vrot.slane %v7457, 4
    %v7459 = vmax.f32 %v7457, %v7458
    %v7460 = vrot.slane %v7459, 2
    %v7461 = vmax.f32 %v7459, %v7460
    %v7462 = vrot.slane %v7461, 1
    %v7463 = vmax.f32 %v7461, %v7462
    %v7464 = vmax.f32 %v4487, %v4491
    %v7465 = vmax.f32 %v7464, %v4497
    %v7466 = vmax.f32 %v7465, %v4501
    %v7467 = vmax.f32 %v7466, %v4507
    %v7468 = vmax.f32 %v7467, %v4511
    %v7469 = vmax.f32 %v7468, %v4517
    %v7470 = vmax.f32 %v7469, %v4521
    %v7471 = vrot.slane %v7470, 4
    %v7472 = vmax.f32 %v7470, %v7471
    %v7473 = vrot.slane %v7472, 2
    %v7474 = vmax.f32 %v7472, %v7473
    %v7475 = vrot.slane %v7474, 1
    %v7476 = vmax.f32 %v7474, %v7475
    %v7477 = vmax.f32 %v4489, %v4493
    %v7478 = vmax.f32 %v7477, %v4499
    %v7479 = vmax.f32 %v7478, %v4503
    %v7480 = vmax.f32 %v7479, %v4509
    %v7481 = vmax.f32 %v7480, %v4513
    %v7482 = vmax.f32 %v7481, %v4519
    %v7483 = vmax.f32 %v7482, %v4523
    %v7484 = vrot.slane %v7483, 4
    %v7485 = vmax.f32 %v7483, %v7484
    %v7486 = vrot.slane %v7485, 2
    %v7487 = vmax.f32 %v7485, %v7486
    %v7488 = vrot.slane %v7487, 1
    %v7489 = vmax.f32 %v7487, %v7488
    %v7490 = vmax.f32 %v5160, %v5164
    %v7491 = vmax.f32 %v7490, %v5170
    %v7492 = vmax.f32 %v7491, %v5174
    %v7493 = vmax.f32 %v7492, %v5180
    %v7494 = vmax.f32 %v7493, %v5184
    %v7495 = vmax.f32 %v7494, %v5190
    %v7496 = vmax.f32 %v7495, %v5194
    %v7497 = vrot.slane %v7496, 4
    %v7498 = vmax.f32 %v7496, %v7497
    %v7499 = vrot.slane %v7498, 2
    %v7500 = vmax.f32 %v7498, %v7499
    %v7501 = vrot.slane %v7500, 1
    %v7502 = vmax.f32 %v7500, %v7501
    %v7503 = vmax.f32 %v5162, %v5166
    %v7504 = vmax.f32 %v7503, %v5172
    %v7505 = vmax.f32 %v7504, %v5176
    %v7506 = vmax.f32 %v7505, %v5182
    %v7507 = vmax.f32 %v7506, %v5186
    %v7508 = vmax.f32 %v7507, %v5192
    %v7509 = vmax.f32 %v7508, %v5196
    %v7510 = vrot.slane %v7509, 4
    %v7511 = vmax.f32 %v7509, %v7510
    %v7512 = vrot.slane %v7511, 2
    %v7513 = vmax.f32 %v7511, %v7512
    %v7514 = vrot.slane %v7513, 1
    %v7515 = vmax.f32 %v7513, %v7514
    %v7516 = vmax.f32 %v5833, %v5837
    %v7517 = vmax.f32 %v7516, %v5843
    %v7518 = vmax.f32 %v7517, %v5847
    %v7519 = vmax.f32 %v7518, %v5853
    %v7520 = vmax.f32 %v7519, %v5857
    %v7521 = vmax.f32 %v7520, %v5863
    %v7522 = vmax.f32 %v7521, %v5867
    %v7523 = vrot.slane %v7522, 4
    %v7524 = vmax.f32 %v7522, %v7523
    %v7525 = vrot.slane %v7524, 2
    %v7526 = vmax.f32 %v7524, %v7525
    %v7527 = vrot.slane %v7526, 1
    %v7528 = vmax.f32 %v7526, %v7527
    %v7529 = vmax.f32 %v5835, %v5839
    %v7530 = vmax.f32 %v7529, %v5845
    %v7531 = vmax.f32 %v7530, %v5849
    %v7532 = vmax.f32 %v7531, %v5855
    %v7533 = vmax.f32 %v7532, %v5859
    %v7534 = vmax.f32 %v7533, %v5865
    %v7535 = vmax.f32 %v7534, %v5869
    %v7536 = vrot.slane %v7535, 4
    %v7537 = vmax.f32 %v7535, %v7536
    %v7538 = vrot.slane %v7537, 2
    %v7539 = vmax.f32 %v7537, %v7538
    %v7540 = vrot.slane %v7539, 1
    %v7541 = vmax.f32 %v7539, %v7540
    %v7542 = vmax.f32 %v6506, %v6510
    %v7543 = vmax.f32 %v7542, %v6516
    %v7544 = vmax.f32 %v7543, %v6520
    %v7545 = vmax.f32 %v7544, %v6526
    %v7546 = vmax.f32 %v7545, %v6530
    %v7547 = vmax.f32 %v7546, %v6536
    %v7548 = vmax.f32 %v7547, %v6540
    %v7549 = vrot.slane %v7548, 4
    %v7550 = vmax.f32 %v7548, %v7549
    %v7551 = vrot.slane %v7550, 2
    %v7552 = vmax.f32 %v7550, %v7551
    %v7553 = vrot.slane %v7552, 1
    %v7554 = vmax.f32 %v7552, %v7553
    %v7555 = vmax.f32 %v6508, %v6512
    %v7556 = vmax.f32 %v7555, %v6518
    %v7557 = vmax.f32 %v7556, %v6522
    %v7558 = vmax.f32 %v7557, %v6528
    %v7559 = vmax.f32 %v7558, %v6532
    %v7560 = vmax.f32 %v7559, %v6538
    %v7561 = vmax.f32 %v7560, %v6542
    %v7562 = vrot.slane %v7561, 4
    %v7563 = vmax.f32 %v7561, %v7562
    %v7564 = vrot.slane %v7563, 2
    %v7565 = vmax.f32 %v7563, %v7564
    %v7566 = vrot.slane %v7565, 1
    %v7567 = vmax.f32 %v7565, %v7566
    %v7568 = vmax.f32 %v4527, %v4531
    %v7569 = vmax.f32 %v7568, %v4537
    %v7570 = vmax.f32 %v7569, %v4541
    %v7571 = vmax.f32 %v7570, %v4547
    %v7572 = vmax.f32 %v7571, %v4551
    %v7573 = vmax.f32 %v7572, %v4557
    %v7574 = vmax.f32 %v7573, %v4561
    %v7575 = vrot.slane %v7574, 4
    %v7576 = vmax.f32 %v7574, %v7575
    %v7577 = vrot.slane %v7576, 2
    %v7578 = vmax.f32 %v7576, %v7577
    %v7579 = vrot.slane %v7578, 1
    %v7580 = vmax.f32 %v7578, %v7579
    %v7581 = vmax.f32 %v4529, %v4533
    %v7582 = vmax.f32 %v7581, %v4539
    %v7583 = vmax.f32 %v7582, %v4543
    %v7584 = vmax.f32 %v7583, %v4549
    %v7585 = vmax.f32 %v7584, %v4553
    %v7586 = vmax.f32 %v7585, %v4559
    %v7587 = vmax.f32 %v7586, %v4563
    %v7588 = vrot.slane %v7587, 4
    %v7589 = vmax.f32 %v7587, %v7588
    %v7590 = vrot.slane %v7589, 2
    %v7591 = vmax.f32 %v7589, %v7590
    %v7592 = vrot.slane %v7591, 1
    %v7593 = vmax.f32 %v7591, %v7592
    %v7594 = vmax.f32 %v5200, %v5204
    %v7595 = vmax.f32 %v7594, %v5210
    %v7596 = vmax.f32 %v7595, %v5214
    %v7597 = vmax.f32 %v7596, %v5220
    %v7598 = vmax.f32 %v7597, %v5224
    %v7599 = vmax.f32 %v7598, %v5230
    %v7600 = vmax.f32 %v7599, %v5234
    %v7601 = vrot.slane %v7600, 4
    %v7602 = vmax.f32 %v7600, %v7601
    %v7603 = vrot.slane %v7602, 2
    %v7604 = vmax.f32 %v7602, %v7603
    %v7605 = vrot.slane %v7604, 1
    %v7606 = vmax.f32 %v7604, %v7605
    %v7607 = vmax.f32 %v5202, %v5206
    %v7608 = vmax.f32 %v7607, %v5212
    %v7609 = vmax.f32 %v7608, %v5216
    %v7610 = vmax.f32 %v7609, %v5222
    %v7611 = vmax.f32 %v7610, %v5226
    %v7612 = vmax.f32 %v7611, %v5232
    %v7613 = vmax.f32 %v7612, %v5236
    %v7614 = vrot.slane %v7613, 4
    %v7615 = vmax.f32 %v7613, %v7614
    %v7616 = vrot.slane %v7615, 2
    %v7617 = vmax.f32 %v7615, %v7616
    %v7618 = vrot.slane %v7617, 1
    %v7619 = vmax.f32 %v7617, %v7618
    %v7620 = vmax.f32 %v5873, %v5877
    %v7621 = vmax.f32 %v7620, %v5883
    %v7622 = vmax.f32 %v7621, %v5887
    %v7623 = vmax.f32 %v7622, %v5893
    %v7624 = vmax.f32 %v7623, %v5897
    %v7625 = vmax.f32 %v7624, %v5903
    %v7626 = vmax.f32 %v7625, %v5907
    %v7627 = vrot.slane %v7626, 4
    %v7628 = vmax.f32 %v7626, %v7627
    %v7629 = vrot.slane %v7628, 2
    %v7630 = vmax.f32 %v7628, %v7629
    %v7631 = vrot.slane %v7630, 1
    %v7632 = vmax.f32 %v7630, %v7631
    %v7633 = vmax.f32 %v5875, %v5879
    %v7634 = vmax.f32 %v7633, %v5885
    %v7635 = vmax.f32 %v7634, %v5889
    %v7636 = vmax.f32 %v7635, %v5895
    %v7637 = vmax.f32 %v7636, %v5899
    %v7638 = vmax.f32 %v7637, %v5905
    %v7639 = vmax.f32 %v7638, %v5909
    %v7640 = vrot.slane %v7639, 4
    %v7641 = vmax.f32 %v7639, %v7640
    %v7642 = vrot.slane %v7641, 2
    %v7643 = vmax.f32 %v7641, %v7642
    %v7644 = vrot.slane %v7643, 1
    %v7645 = vmax.f32 %v7643, %v7644
    %v7646 = vmax.f32 %v6546, %v6550
    %v7647 = vmax.f32 %v7646, %v6556
    %v7648 = vmax.f32 %v7647, %v6560
    %v7649 = vmax.f32 %v7648, %v6566
    %v7650 = vmax.f32 %v7649, %v6570
    %v7651 = vmax.f32 %v7650, %v6576
    %v7652 = vmax.f32 %v7651, %v6580
    %v7653 = vrot.slane %v7652, 4
    %v7654 = vmax.f32 %v7652, %v7653
    %v7655 = vrot.slane %v7654, 2
    %v7656 = vmax.f32 %v7654, %v7655
    %v7657 = vrot.slane %v7656, 1
    %v7658 = vmax.f32 %v7656, %v7657
    %v7659 = vmax.f32 %v6548, %v6552
    %v7660 = vmax.f32 %v7659, %v6558
    %v7661 = vmax.f32 %v7660, %v6562
    %v7662 = vmax.f32 %v7661, %v6568
    %v7663 = vmax.f32 %v7662, %v6572
    %v7664 = vmax.f32 %v7663, %v6578
    %v7665 = vmax.f32 %v7664, %v6582
    %v7666 = vrot.slane %v7665, 4
    %v7667 = vmax.f32 %v7665, %v7666
    %v7668 = vrot.slane %v7667, 2
    %v7669 = vmax.f32 %v7667, %v7668
    %v7670 = vrot.slane %v7669, 1
    %v7671 = vmax.f32 %v7669, %v7670
    %v7672 = vmax.f32 %v4567, %v4571
    %v7673 = vmax.f32 %v7672, %v4577
    %v7674 = vmax.f32 %v7673, %v4581
    %v7675 = vmax.f32 %v7674, %v4587
    %v7676 = vmax.f32 %v7675, %v4591
    %v7677 = vmax.f32 %v7676, %v4597
    %v7678 = vmax.f32 %v7677, %v4601
    %v7679 = vrot.slane %v7678, 4
    %v7680 = vmax.f32 %v7678, %v7679
    %v7681 = vrot.slane %v7680, 2
    %v7682 = vmax.f32 %v7680, %v7681
    %v7683 = vrot.slane %v7682, 1
    %v7684 = vmax.f32 %v7682, %v7683
    %v7685 = vmax.f32 %v4569, %v4573
    %v7686 = vmax.f32 %v7685, %v4579
    %v7687 = vmax.f32 %v7686, %v4583
    %v7688 = vmax.f32 %v7687, %v4589
    %v7689 = vmax.f32 %v7688, %v4593
    %v7690 = vmax.f32 %v7689, %v4599
    %v7691 = vmax.f32 %v7690, %v4603
    %v7692 = vrot.slane %v7691, 4
    %v7693 = vmax.f32 %v7691, %v7692
    %v7694 = vrot.slane %v7693, 2
    %v7695 = vmax.f32 %v7693, %v7694
    %v7696 = vrot.slane %v7695, 1
    %v7697 = vmax.f32 %v7695, %v7696
    %v7698 = vmax.f32 %v5240, %v5244
    %v7699 = vmax.f32 %v7698, %v5250
    %v7700 = vmax.f32 %v7699, %v5254
    %v7701 = vmax.f32 %v7700, %v5260
    %v7702 = vmax.f32 %v7701, %v5264
    %v7703 = vmax.f32 %v7702, %v5270
    %v7704 = vmax.f32 %v7703, %v5274
    %v7705 = vrot.slane %v7704, 4
    %v7706 = vmax.f32 %v7704, %v7705
    %v7707 = vrot.slane %v7706, 2
    %v7708 = vmax.f32 %v7706, %v7707
    %v7709 = vrot.slane %v7708, 1
    %v7710 = vmax.f32 %v7708, %v7709
    %v7711 = vmax.f32 %v5242, %v5246
    %v7712 = vmax.f32 %v7711, %v5252
    %v7713 = vmax.f32 %v7712, %v5256
    %v7714 = vmax.f32 %v7713, %v5262
    %v7715 = vmax.f32 %v7714, %v5266
    %v7716 = vmax.f32 %v7715, %v5272
    %v7717 = vmax.f32 %v7716, %v5276
    %v7718 = vrot.slane %v7717, 4
    %v7719 = vmax.f32 %v7717, %v7718
    %v7720 = vrot.slane %v7719, 2
    %v7721 = vmax.f32 %v7719, %v7720
    %v7722 = vrot.slane %v7721, 1
    %v7723 = vmax.f32 %v7721, %v7722
    %v7724 = vmax.f32 %v5913, %v5917
    %v7725 = vmax.f32 %v7724, %v5923
    %v7726 = vmax.f32 %v7725, %v5927
    %v7727 = vmax.f32 %v7726, %v5933
    %v7728 = vmax.f32 %v7727, %v5937
    %v7729 = vmax.f32 %v7728, %v5943
    %v7730 = vmax.f32 %v7729, %v5947
    %v7731 = vrot.slane %v7730, 4
    %v7732 = vmax.f32 %v7730, %v7731
    %v7733 = vrot.slane %v7732, 2
    %v7734 = vmax.f32 %v7732, %v7733
    %v7735 = vrot.slane %v7734, 1
    %v7736 = vmax.f32 %v7734, %v7735
    %v7737 = vmax.f32 %v5915, %v5919
    %v7738 = vmax.f32 %v7737, %v5925
    %v7739 = vmax.f32 %v7738, %v5929
    %v7740 = vmax.f32 %v7739, %v5935
    %v7741 = vmax.f32 %v7740, %v5939
    %v7742 = vmax.f32 %v7741, %v5945
    %v7743 = vmax.f32 %v7742, %v5949
    %v7744 = vrot.slane %v7743, 4
    %v7745 = vmax.f32 %v7743, %v7744
    %v7746 = vrot.slane %v7745, 2
    %v7747 = vmax.f32 %v7745, %v7746
    %v7748 = vrot.slane %v7747, 1
    %v7749 = vmax.f32 %v7747, %v7748
    %v7750 = vmax.f32 %v6586, %v6590
    %v7751 = vmax.f32 %v7750, %v6596
    %v7752 = vmax.f32 %v7751, %v6600
    %v7753 = vmax.f32 %v7752, %v6606
    %v7754 = vmax.f32 %v7753, %v6610
    %v7755 = vmax.f32 %v7754, %v6616
    %v7756 = vmax.f32 %v7755, %v6620
    %v7757 = vrot.slane %v7756, 4
    %v7758 = vmax.f32 %v7756, %v7757
    %v7759 = vrot.slane %v7758, 2
    %v7760 = vmax.f32 %v7758, %v7759
    %v7761 = vrot.slane %v7760, 1
    %v7762 = vmax.f32 %v7760, %v7761
    %v7763 = vmax.f32 %v6588, %v6592
    %v7764 = vmax.f32 %v7763, %v6598
    %v7765 = vmax.f32 %v7764, %v6602
    %v7766 = vmax.f32 %v7765, %v6608
    %v7767 = vmax.f32 %v7766, %v6612
    %v7768 = vmax.f32 %v7767, %v6618
    %v7769 = vmax.f32 %v7768, %v6622
    %v7770 = vrot.slane %v7769, 4
    %v7771 = vmax.f32 %v7769, %v7770
    %v7772 = vrot.slane %v7771, 2
    %v7773 = vmax.f32 %v7771, %v7772
    %v7774 = vrot.slane %v7773, 1
    %v7775 = vmax.f32 %v7773, %v7774
    %v7776 = vmax.f32 %v4607, %v4611
    %v7777 = vmax.f32 %v7776, %v4617
    %v7778 = vmax.f32 %v7777, %v4621
    %v7779 = vmax.f32 %v7778, %v4627
    %v7780 = vmax.f32 %v7779, %v4631
    %v7781 = vmax.f32 %v7780, %v4637
    %v7782 = vmax.f32 %v7781, %v4641
    %v7783 = vrot.slane %v7782, 4
    %v7784 = vmax.f32 %v7782, %v7783
    %v7785 = vrot.slane %v7784, 2
    %v7786 = vmax.f32 %v7784, %v7785
    %v7787 = vrot.slane %v7786, 1
    %v7788 = vmax.f32 %v7786, %v7787
    %v7789 = vmax.f32 %v4609, %v4613
    %v7790 = vmax.f32 %v7789, %v4619
    %v7791 = vmax.f32 %v7790, %v4623
    %v7792 = vmax.f32 %v7791, %v4629
    %v7793 = vmax.f32 %v7792, %v4633
    %v7794 = vmax.f32 %v7793, %v4639
    %v7795 = vmax.f32 %v7794, %v4643
    %v7796 = vrot.slane %v7795, 4
    %v7797 = vmax.f32 %v7795, %v7796
    %v7798 = vrot.slane %v7797, 2
    %v7799 = vmax.f32 %v7797, %v7798
    %v7800 = vrot.slane %v7799, 1
    %v7801 = vmax.f32 %v7799, %v7800
    %v7802 = vmax.f32 %v5280, %v5284
    %v7803 = vmax.f32 %v7802, %v5290
    %v7804 = vmax.f32 %v7803, %v5294
    %v7805 = vmax.f32 %v7804, %v5300
    %v7806 = vmax.f32 %v7805, %v5304
    %v7807 = vmax.f32 %v7806, %v5310
    %v7808 = vmax.f32 %v7807, %v5314
    %v7809 = vrot.slane %v7808, 4
    %v7810 = vmax.f32 %v7808, %v7809
    %v7811 = vrot.slane %v7810, 2
    %v7812 = vmax.f32 %v7810, %v7811
    %v7813 = vrot.slane %v7812, 1
    %v7814 = vmax.f32 %v7812, %v7813
    %v7815 = vmax.f32 %v5282, %v5286
    %v7816 = vmax.f32 %v7815, %v5292
    %v7817 = vmax.f32 %v7816, %v5296
    %v7818 = vmax.f32 %v7817, %v5302
    %v7819 = vmax.f32 %v7818, %v5306
    %v7820 = vmax.f32 %v7819, %v5312
    %v7821 = vmax.f32 %v7820, %v5316
    %v7822 = vrot.slane %v7821, 4
    %v7823 = vmax.f32 %v7821, %v7822
    %v7824 = vrot.slane %v7823, 2
    %v7825 = vmax.f32 %v7823, %v7824
    %v7826 = vrot.slane %v7825, 1
    %v7827 = vmax.f32 %v7825, %v7826
    %v7828 = vmax.f32 %v5953, %v5957
    %v7829 = vmax.f32 %v7828, %v5963
    %v7830 = vmax.f32 %v7829, %v5967
    %v7831 = vmax.f32 %v7830, %v5973
    %v7832 = vmax.f32 %v7831, %v5977
    %v7833 = vmax.f32 %v7832, %v5983
    %v7834 = vmax.f32 %v7833, %v5987
    %v7835 = vrot.slane %v7834, 4
    %v7836 = vmax.f32 %v7834, %v7835
    %v7837 = vrot.slane %v7836, 2
    %v7838 = vmax.f32 %v7836, %v7837
    %v7839 = vrot.slane %v7838, 1
    %v7840 = vmax.f32 %v7838, %v7839
    %v7841 = vmax.f32 %v5955, %v5959
    %v7842 = vmax.f32 %v7841, %v5965
    %v7843 = vmax.f32 %v7842, %v5969
    %v7844 = vmax.f32 %v7843, %v5975
    %v7845 = vmax.f32 %v7844, %v5979
    %v7846 = vmax.f32 %v7845, %v5985
    %v7847 = vmax.f32 %v7846, %v5989
    %v7848 = vrot.slane %v7847, 4
    %v7849 = vmax.f32 %v7847, %v7848
    %v7850 = vrot.slane %v7849, 2
    %v7851 = vmax.f32 %v7849, %v7850
    %v7852 = vrot.slane %v7851, 1
    %v7853 = vmax.f32 %v7851, %v7852
    %v7854 = vmax.f32 %v6626, %v6630
    %v7855 = vmax.f32 %v7854, %v6636
    %v7856 = vmax.f32 %v7855, %v6640
    %v7857 = vmax.f32 %v7856, %v6646
    %v7858 = vmax.f32 %v7857, %v6650
    %v7859 = vmax.f32 %v7858, %v6656
    %v7860 = vmax.f32 %v7859, %v6660
    %v7861 = vrot.slane %v7860, 4
    %v7862 = vmax.f32 %v7860, %v7861
    %v7863 = vrot.slane %v7862, 2
    %v7864 = vmax.f32 %v7862, %v7863
    %v7865 = vrot.slane %v7864, 1
    %v7866 = vmax.f32 %v7864, %v7865
    %v7867 = vmax.f32 %v6628, %v6632
    %v7868 = vmax.f32 %v7867, %v6638
    %v7869 = vmax.f32 %v7868, %v6642
    %v7870 = vmax.f32 %v7869, %v6648
    %v7871 = vmax.f32 %v7870, %v6652
    %v7872 = vmax.f32 %v7871, %v6658
    %v7873 = vmax.f32 %v7872, %v6662
    %v7874 = vrot.slane %v7873, 4
    %v7875 = vmax.f32 %v7873, %v7874
    %v7876 = vrot.slane %v7875, 2
    %v7877 = vmax.f32 %v7875, %v7876
    %v7878 = vrot.slane %v7877, 1
    %v7879 = vmax.f32 %v7877, %v7878
    %v7880 = vmax.f32 %v4647, %v4651
    %v7881 = vmax.f32 %v7880, %v4657
    %v7882 = vmax.f32 %v7881, %v4661
    %v7883 = vmax.f32 %v7882, %v4667
    %v7884 = vmax.f32 %v7883, %v4671
    %v7885 = vmax.f32 %v7884, %v4677
    %v7886 = vmax.f32 %v7885, %v4681
    %v7887 = vrot.slane %v7886, 4
    %v7888 = vmax.f32 %v7886, %v7887
    %v7889 = vrot.slane %v7888, 2
    %v7890 = vmax.f32 %v7888, %v7889
    %v7891 = vrot.slane %v7890, 1
    %v7892 = vmax.f32 %v7890, %v7891
    %v7893 = vmax.f32 %v4649, %v4653
    %v7894 = vmax.f32 %v7893, %v4659
    %v7895 = vmax.f32 %v7894, %v4663
    %v7896 = vmax.f32 %v7895, %v4669
    %v7897 = vmax.f32 %v7896, %v4673
    %v7898 = vmax.f32 %v7897, %v4679
    %v7899 = vmax.f32 %v7898, %v4683
    %v7900 = vrot.slane %v7899, 4
    %v7901 = vmax.f32 %v7899, %v7900
    %v7902 = vrot.slane %v7901, 2
    %v7903 = vmax.f32 %v7901, %v7902
    %v7904 = vrot.slane %v7903, 1
    %v7905 = vmax.f32 %v7903, %v7904
    %v7906 = vmax.f32 %v5320, %v5324
    %v7907 = vmax.f32 %v7906, %v5330
    %v7908 = vmax.f32 %v7907, %v5334
    %v7909 = vmax.f32 %v7908, %v5340
    %v7910 = vmax.f32 %v7909, %v5344
    %v7911 = vmax.f32 %v7910, %v5350
    %v7912 = vmax.f32 %v7911, %v5354
    %v7913 = vrot.slane %v7912, 4
    %v7914 = vmax.f32 %v7912, %v7913
    %v7915 = vrot.slane %v7914, 2
    %v7916 = vmax.f32 %v7914, %v7915
    %v7917 = vrot.slane %v7916, 1
    %v7918 = vmax.f32 %v7916, %v7917
    %v7919 = vmax.f32 %v5322, %v5326
    %v7920 = vmax.f32 %v7919, %v5332
    %v7921 = vmax.f32 %v7920, %v5336
    %v7922 = vmax.f32 %v7921, %v5342
    %v7923 = vmax.f32 %v7922, %v5346
    %v7924 = vmax.f32 %v7923, %v5352
    %v7925 = vmax.f32 %v7924, %v5356
    %v7926 = vrot.slane %v7925, 4
    %v7927 = vmax.f32 %v7925, %v7926
    %v7928 = vrot.slane %v7927, 2
    %v7929 = vmax.f32 %v7927, %v7928
    %v7930 = vrot.slane %v7929, 1
    %v7931 = vmax.f32 %v7929, %v7930
    %v7932 = vmax.f32 %v5993, %v5997
    %v7933 = vmax.f32 %v7932, %v6003
    %v7934 = vmax.f32 %v7933, %v6007
    %v7935 = vmax.f32 %v7934, %v6013
    %v7936 = vmax.f32 %v7935, %v6017
    %v7937 = vmax.f32 %v7936, %v6023
    %v7938 = vmax.f32 %v7937, %v6027
    %v7939 = vrot.slane %v7938, 4
    %v7940 = vmax.f32 %v7938, %v7939
    %v7941 = vrot.slane %v7940, 2
    %v7942 = vmax.f32 %v7940, %v7941
    %v7943 = vrot.slane %v7942, 1
    %v7944 = vmax.f32 %v7942, %v7943
    %v7945 = vmax.f32 %v5995, %v5999
    %v7946 = vmax.f32 %v7945, %v6005
    %v7947 = vmax.f32 %v7946, %v6009
    %v7948 = vmax.f32 %v7947, %v6015
    %v7949 = vmax.f32 %v7948, %v6019
    %v7950 = vmax.f32 %v7949, %v6025
    %v7951 = vmax.f32 %v7950, %v6029
    %v7952 = vrot.slane %v7951, 4
    %v7953 = vmax.f32 %v7951, %v7952
    %v7954 = vrot.slane %v7953, 2
    %v7955 = vmax.f32 %v7953, %v7954
    %v7956 = vrot.slane %v7955, 1
    %v7957 = vmax.f32 %v7955, %v7956
    %v7958 = vmax.f32 %v6666, %v6670
    %v7959 = vmax.f32 %v7958, %v6676
    %v7960 = vmax.f32 %v7959, %v6680
    %v7961 = vmax.f32 %v7960, %v6686
    %v7962 = vmax.f32 %v7961, %v6690
    %v7963 = vmax.f32 %v7962, %v6696
    %v7964 = vmax.f32 %v7963, %v6700
    %v7965 = vrot.slane %v7964, 4
    %v7966 = vmax.f32 %v7964, %v7965
    %v7967 = vrot.slane %v7966, 2
    %v7968 = vmax.f32 %v7966, %v7967
    %v7969 = vrot.slane %v7968, 1
    %v7970 = vmax.f32 %v7968, %v7969
    %v7971 = vmax.f32 %v6668, %v6672
    %v7972 = vmax.f32 %v7971, %v6678
    %v7973 = vmax.f32 %v7972, %v6682
    %v7974 = vmax.f32 %v7973, %v6688
    %v7975 = vmax.f32 %v7974, %v6692
    %v7976 = vmax.f32 %v7975, %v6698
    %v7977 = vmax.f32 %v7976, %v6702
    %v7978 = vrot.slane %v7977, 4
    %v7979 = vmax.f32 %v7977, %v7978
    %v7980 = vrot.slane %v7979, 2
    %v7981 = vmax.f32 %v7979, %v7980
    %v7982 = vrot.slane %v7981, 1
    %v7983 = vmax.f32 %v7981, %v7982
    %v7984 = vmax.f32 %v4687, %v4691
    %v7985 = vmax.f32 %v7984, %v4697
    %v7986 = vmax.f32 %v7985, %v4701
    %v7987 = vmax.f32 %v7986, %v4707
    %v7988 = vmax.f32 %v7987, %v4711
    %v7989 = vmax.f32 %v7988, %v4717
    %v7990 = vmax.f32 %v7989, %v4721
    %v7991 = vrot.slane %v7990, 4
    %v7992 = vmax.f32 %v7990, %v7991
    %v7993 = vrot.slane %v7992, 2
    %v7994 = vmax.f32 %v7992, %v7993
    %v7995 = vrot.slane %v7994, 1
    %v7996 = vmax.f32 %v7994, %v7995
    %v7997 = vmax.f32 %v4689, %v4693
    %v7998 = vmax.f32 %v7997, %v4699
    %v7999 = vmax.f32 %v7998, %v4703
    %v8000 = vmax.f32 %v7999, %v4709
    %v8001 = vmax.f32 %v8000, %v4713
    %v8002 = vmax.f32 %v8001, %v4719
    %v8003 = vmax.f32 %v8002, %v4723
    %v8004 = vrot.slane %v8003, 4
    %v8005 = vmax.f32 %v8003, %v8004
    %v8006 = vrot.slane %v8005, 2
    %v8007 = vmax.f32 %v8005, %v8006
    %v8008 = vrot.slane %v8007, 1
    %v8009 = vmax.f32 %v8007, %v8008
    %v8010 = vmax.f32 %v5360, %v5364
    %v8011 = vmax.f32 %v8010, %v5370
    %v8012 = vmax.f32 %v8011, %v5374
    %v8013 = vmax.f32 %v8012, %v5380
    %v8014 = vmax.f32 %v8013, %v5384
    %v8015 = vmax.f32 %v8014, %v5390
    %v8016 = vmax.f32 %v8015, %v5394
    %v8017 = vrot.slane %v8016, 4
    %v8018 = vmax.f32 %v8016, %v8017
    %v8019 = vrot.slane %v8018, 2
    %v8020 = vmax.f32 %v8018, %v8019
    %v8021 = vrot.slane %v8020, 1
    %v8022 = vmax.f32 %v8020, %v8021
    %v8023 = vmax.f32 %v5362, %v5366
    %v8024 = vmax.f32 %v8023, %v5372
    %v8025 = vmax.f32 %v8024, %v5376
    %v8026 = vmax.f32 %v8025, %v5382
    %v8027 = vmax.f32 %v8026, %v5386
    %v8028 = vmax.f32 %v8027, %v5392
    %v8029 = vmax.f32 %v8028, %v5396
    %v8030 = vrot.slane %v8029, 4
    %v8031 = vmax.f32 %v8029, %v8030
    %v8032 = vrot.slane %v8031, 2
    %v8033 = vmax.f32 %v8031, %v8032
    %v8034 = vrot.slane %v8033, 1
    %v8035 = vmax.f32 %v8033, %v8034
    %v8036 = vmax.f32 %v6033, %v6037
    %v8037 = vmax.f32 %v8036, %v6043
    %v8038 = vmax.f32 %v8037, %v6047
    %v8039 = vmax.f32 %v8038, %v6053
    %v8040 = vmax.f32 %v8039, %v6057
    %v8041 = vmax.f32 %v8040, %v6063
    %v8042 = vmax.f32 %v8041, %v6067
    %v8043 = vrot.slane %v8042, 4
    %v8044 = vmax.f32 %v8042, %v8043
    %v8045 = vrot.slane %v8044, 2
    %v8046 = vmax.f32 %v8044, %v8045
    %v8047 = vrot.slane %v8046, 1
    %v8048 = vmax.f32 %v8046, %v8047
    %v8049 = vmax.f32 %v6035, %v6039
    %v8050 = vmax.f32 %v8049, %v6045
    %v8051 = vmax.f32 %v8050, %v6049
    %v8052 = vmax.f32 %v8051, %v6055
    %v8053 = vmax.f32 %v8052, %v6059
    %v8054 = vmax.f32 %v8053, %v6065
    %v8055 = vmax.f32 %v8054, %v6069
    %v8056 = vrot.slane %v8055, 4
    %v8057 = vmax.f32 %v8055, %v8056
    %v8058 = vrot.slane %v8057, 2
    %v8059 = vmax.f32 %v8057, %v8058
    %v8060 = vrot.slane %v8059, 1
    %v8061 = vmax.f32 %v8059, %v8060
    %v8062 = vmax.f32 %v6706, %v6710
    %v8063 = vmax.f32 %v8062, %v6716
    %v8064 = vmax.f32 %v8063, %v6720
    %v8065 = vmax.f32 %v8064, %v6726
    %v8066 = vmax.f32 %v8065, %v6730
    %v8067 = vmax.f32 %v8066, %v6736
    %v8068 = vmax.f32 %v8067, %v6740
    %v8069 = vrot.slane %v8068, 4
    %v8070 = vmax.f32 %v8068, %v8069
    %v8071 = vrot.slane %v8070, 2
    %v8072 = vmax.f32 %v8070, %v8071
    %v8073 = vrot.slane %v8072, 1
    %v8074 = vmax.f32 %v8072, %v8073
    %v8075 = vmax.f32 %v6708, %v6712
    %v8076 = vmax.f32 %v8075, %v6718
    %v8077 = vmax.f32 %v8076, %v6722
    %v8078 = vmax.f32 %v8077, %v6728
    %v8079 = vmax.f32 %v8078, %v6732
    %v8080 = vmax.f32 %v8079, %v6738
    %v8081 = vmax.f32 %v8080, %v6742
    %v8082 = vrot.slane %v8081, 4
    %v8083 = vmax.f32 %v8081, %v8082
    %v8084 = vrot.slane %v8083, 2
    %v8085 = vmax.f32 %v8083, %v8084
    %v8086 = vrot.slane %v8085, 1
    %v8087 = vmax.f32 %v8085, %v8086
    %v8088 = vmax.f32 %v4727, %v4731
    %v8089 = vmax.f32 %v8088, %v4737
    %v8090 = vmax.f32 %v8089, %v4741
    %v8091 = vmax.f32 %v8090, %v4747
    %v8092 = vmax.f32 %v8091, %v4751
    %v8093 = vmax.f32 %v8092, %v4757
    %v8094 = vmax.f32 %v8093, %v4761
    %v8095 = vrot.slane %v8094, 4
    %v8096 = vmax.f32 %v8094, %v8095
    %v8097 = vrot.slane %v8096, 2
    %v8098 = vmax.f32 %v8096, %v8097
    %v8099 = vrot.slane %v8098, 1
    %v8100 = vmax.f32 %v8098, %v8099
    %v8101 = vmax.f32 %v4729, %v4733
    %v8102 = vmax.f32 %v8101, %v4739
    %v8103 = vmax.f32 %v8102, %v4743
    %v8104 = vmax.f32 %v8103, %v4749
    %v8105 = vmax.f32 %v8104, %v4753
    %v8106 = vmax.f32 %v8105, %v4759
    %v8107 = vmax.f32 %v8106, %v4763
    %v8108 = vrot.slane %v8107, 4
    %v8109 = vmax.f32 %v8107, %v8108
    %v8110 = vrot.slane %v8109, 2
    %v8111 = vmax.f32 %v8109, %v8110
    %v8112 = vrot.slane %v8111, 1
    %v8113 = vmax.f32 %v8111, %v8112
    %v8114 = vmax.f32 %v5400, %v5404
    %v8115 = vmax.f32 %v8114, %v5410
    %v8116 = vmax.f32 %v8115, %v5414
    %v8117 = vmax.f32 %v8116, %v5420
    %v8118 = vmax.f32 %v8117, %v5424
    %v8119 = vmax.f32 %v8118, %v5430
    %v8120 = vmax.f32 %v8119, %v5434
    %v8121 = vrot.slane %v8120, 4
    %v8122 = vmax.f32 %v8120, %v8121
    %v8123 = vrot.slane %v8122, 2
    %v8124 = vmax.f32 %v8122, %v8123
    %v8125 = vrot.slane %v8124, 1
    %v8126 = vmax.f32 %v8124, %v8125
    %v8127 = vmax.f32 %v5402, %v5406
    %v8128 = vmax.f32 %v8127, %v5412
    %v8129 = vmax.f32 %v8128, %v5416
    %v8130 = vmax.f32 %v8129, %v5422
    %v8131 = vmax.f32 %v8130, %v5426
    %v8132 = vmax.f32 %v8131, %v5432
    %v8133 = vmax.f32 %v8132, %v5436
    %v8134 = vrot.slane %v8133, 4
    %v8135 = vmax.f32 %v8133, %v8134
    %v8136 = vrot.slane %v8135, 2
    %v8137 = vmax.f32 %v8135, %v8136
    %v8138 = vrot.slane %v8137, 1
    %v8139 = vmax.f32 %v8137, %v8138
    %v8140 = vmax.f32 %v6073, %v6077
    %v8141 = vmax.f32 %v8140, %v6083
    %v8142 = vmax.f32 %v8141, %v6087
    %v8143 = vmax.f32 %v8142, %v6093
    %v8144 = vmax.f32 %v8143, %v6097
    %v8145 = vmax.f32 %v8144, %v6103
    %v8146 = vmax.f32 %v8145, %v6107
    %v8147 = vrot.slane %v8146, 4
    %v8148 = vmax.f32 %v8146, %v8147
    %v8149 = vrot.slane %v8148, 2
    %v8150 = vmax.f32 %v8148, %v8149
    %v8151 = vrot.slane %v8150, 1
    %v8152 = vmax.f32 %v8150, %v8151
    %v8153 = vmax.f32 %v6075, %v6079
    %v8154 = vmax.f32 %v8153, %v6085
    %v8155 = vmax.f32 %v8154, %v6089
    %v8156 = vmax.f32 %v8155, %v6095
    %v8157 = vmax.f32 %v8156, %v6099
    %v8158 = vmax.f32 %v8157, %v6105
    %v8159 = vmax.f32 %v8158, %v6109
    %v8160 = vrot.slane %v8159, 4
    %v8161 = vmax.f32 %v8159, %v8160
    %v8162 = vrot.slane %v8161, 2
    %v8163 = vmax.f32 %v8161, %v8162
    %v8164 = vrot.slane %v8163, 1
    %v8165 = vmax.f32 %v8163, %v8164
    %v8166 = vmax.f32 %v6746, %v6750
    %v8167 = vmax.f32 %v8166, %v6756
    %v8168 = vmax.f32 %v8167, %v6760
    %v8169 = vmax.f32 %v8168, %v6766
    %v8170 = vmax.f32 %v8169, %v6770
    %v8171 = vmax.f32 %v8170, %v6776
    %v8172 = vmax.f32 %v8171, %v6780
    %v8173 = vrot.slane %v8172, 4
    %v8174 = vmax.f32 %v8172, %v8173
    %v8175 = vrot.slane %v8174, 2
    %v8176 = vmax.f32 %v8174, %v8175
    %v8177 = vrot.slane %v8176, 1
    %v8178 = vmax.f32 %v8176, %v8177
    %v8179 = vmax.f32 %v6748, %v6752
    %v8180 = vmax.f32 %v8179, %v6758
    %v8181 = vmax.f32 %v8180, %v6762
    %v8182 = vmax.f32 %v8181, %v6768
    %v8183 = vmax.f32 %v8182, %v6772
    %v8184 = vmax.f32 %v8183, %v6778
    %v8185 = vmax.f32 %v8184, %v6782
    %v8186 = vrot.slane %v8185, 4
    %v8187 = vmax.f32 %v8185, %v8186
    %v8188 = vrot.slane %v8187, 2
    %v8189 = vmax.f32 %v8187, %v8188
    %v8190 = vrot.slane %v8189, 1
    %v8191 = vmax.f32 %v8189, %v8190
    %v8192 = vmax.f32 %v4767, %v4771
    %v8193 = vmax.f32 %v8192, %v4777
    %v8194 = vmax.f32 %v8193, %v4781
    %v8195 = vmax.f32 %v8194, %v4787
    %v8196 = vmax.f32 %v8195, %v4791
    %v8197 = vmax.f32 %v8196, %v4797
    %v8198 = vmax.f32 %v8197, %v4801
    %v8199 = vrot.slane %v8198, 4
    %v8200 = vmax.f32 %v8198, %v8199
    %v8201 = vrot.slane %v8200, 2
    %v8202 = vmax.f32 %v8200, %v8201
    %v8203 = vrot.slane %v8202, 1
    %v8204 = vmax.f32 %v8202, %v8203
    %v8205 = vmax.f32 %v4769, %v4773
    %v8206 = vmax.f32 %v8205, %v4779
    %v8207 = vmax.f32 %v8206, %v4783
    %v8208 = vmax.f32 %v8207, %v4789
    %v8209 = vmax.f32 %v8208, %v4793
    %v8210 = vmax.f32 %v8209, %v4799
    %v8211 = vmax.f32 %v8210, %v4803
    %v8212 = vrot.slane %v8211, 4
    %v8213 = vmax.f32 %v8211, %v8212
    %v8214 = vrot.slane %v8213, 2
    %v8215 = vmax.f32 %v8213, %v8214
    %v8216 = vrot.slane %v8215, 1
    %v8217 = vmax.f32 %v8215, %v8216
    %v8218 = vmax.f32 %v5440, %v5444
    %v8219 = vmax.f32 %v8218, %v5450
    %v8220 = vmax.f32 %v8219, %v5454
    %v8221 = vmax.f32 %v8220, %v5460
    %v8222 = vmax.f32 %v8221, %v5464
    %v8223 = vmax.f32 %v8222, %v5470
    %v8224 = vmax.f32 %v8223, %v5474
    %v8225 = vrot.slane %v8224, 4
    %v8226 = vmax.f32 %v8224, %v8225
    %v8227 = vrot.slane %v8226, 2
    %v8228 = vmax.f32 %v8226, %v8227
    %v8229 = vrot.slane %v8228, 1
    %v8230 = vmax.f32 %v8228, %v8229
    %v8231 = vmax.f32 %v5442, %v5446
    %v8232 = vmax.f32 %v8231, %v5452
    %v8233 = vmax.f32 %v8232, %v5456
    %v8234 = vmax.f32 %v8233, %v5462
    %v8235 = vmax.f32 %v8234, %v5466
    %v8236 = vmax.f32 %v8235, %v5472
    %v8237 = vmax.f32 %v8236, %v5476
    %v8238 = vrot.slane %v8237, 4
    %v8239 = vmax.f32 %v8237, %v8238
    %v8240 = vrot.slane %v8239, 2
    %v8241 = vmax.f32 %v8239, %v8240
    %v8242 = vrot.slane %v8241, 1
    %v8243 = vmax.f32 %v8241, %v8242
    %v8244 = vmax.f32 %v6113, %v6117
    %v8245 = vmax.f32 %v8244, %v6123
    %v8246 = vmax.f32 %v8245, %v6127
    %v8247 = vmax.f32 %v8246, %v6133
    %v8248 = vmax.f32 %v8247, %v6137
    %v8249 = vmax.f32 %v8248, %v6143
    %v8250 = vmax.f32 %v8249, %v6147
    %v8251 = vrot.slane %v8250, 4
    %v8252 = vmax.f32 %v8250, %v8251
    %v8253 = vrot.slane %v8252, 2
    %v8254 = vmax.f32 %v8252, %v8253
    %v8255 = vrot.slane %v8254, 1
    %v8256 = vmax.f32 %v8254, %v8255
    %v8257 = vmax.f32 %v6115, %v6119
    %v8258 = vmax.f32 %v8257, %v6125
    %v8259 = vmax.f32 %v8258, %v6129
    %v8260 = vmax.f32 %v8259, %v6135
    %v8261 = vmax.f32 %v8260, %v6139
    %v8262 = vmax.f32 %v8261, %v6145
    %v8263 = vmax.f32 %v8262, %v6149
    %v8264 = vrot.slane %v8263, 4
    %v8265 = vmax.f32 %v8263, %v8264
    %v8266 = vrot.slane %v8265, 2
    %v8267 = vmax.f32 %v8265, %v8266
    %v8268 = vrot.slane %v8267, 1
    %v8269 = vmax.f32 %v8267, %v8268
    %v8270 = vmax.f32 %v6786, %v6790
    %v8271 = vmax.f32 %v8270, %v6796
    %v8272 = vmax.f32 %v8271, %v6800
    %v8273 = vmax.f32 %v8272, %v6806
    %v8274 = vmax.f32 %v8273, %v6810
    %v8275 = vmax.f32 %v8274, %v6816
    %v8276 = vmax.f32 %v8275, %v6820
    %v8277 = vrot.slane %v8276, 4
    %v8278 = vmax.f32 %v8276, %v8277
    %v8279 = vrot.slane %v8278, 2
    %v8280 = vmax.f32 %v8278, %v8279
    %v8281 = vrot.slane %v8280, 1
    %v8282 = vmax.f32 %v8280, %v8281
    %v8283 = vmax.f32 %v6788, %v6792
    %v8284 = vmax.f32 %v8283, %v6798
    %v8285 = vmax.f32 %v8284, %v6802
    %v8286 = vmax.f32 %v8285, %v6808
    %v8287 = vmax.f32 %v8286, %v6812
    %v8288 = vmax.f32 %v8287, %v6818
    %v8289 = vmax.f32 %v8288, %v6822
    %v8290 = vrot.slane %v8289, 4
    %v8291 = vmax.f32 %v8289, %v8290
    %v8292 = vrot.slane %v8291, 2
    %v8293 = vmax.f32 %v8291, %v8292
    %v8294 = vrot.slane %v8293, 1
    %v8295 = vmax.f32 %v8293, %v8294
    %v8296 = vmax.f32 %v4807, %v4811
    %v8297 = vmax.f32 %v8296, %v4817
    %v8298 = vmax.f32 %v8297, %v4821
    %v8299 = vmax.f32 %v8298, %v4827
    %v8300 = vmax.f32 %v8299, %v4831
    %v8301 = vmax.f32 %v8300, %v4837
    %v8302 = vmax.f32 %v8301, %v4841
    %v8303 = vrot.slane %v8302, 4
    %v8304 = vmax.f32 %v8302, %v8303
    %v8305 = vrot.slane %v8304, 2
    %v8306 = vmax.f32 %v8304, %v8305
    %v8307 = vrot.slane %v8306, 1
    %v8308 = vmax.f32 %v8306, %v8307
    %v8309 = vmax.f32 %v4809, %v4813
    %v8310 = vmax.f32 %v8309, %v4819
    %v8311 = vmax.f32 %v8310, %v4823
    %v8312 = vmax.f32 %v8311, %v4829
    %v8313 = vmax.f32 %v8312, %v4833
    %v8314 = vmax.f32 %v8313, %v4839
    %v8315 = vmax.f32 %v8314, %v4843
    %v8316 = vrot.slane %v8315, 4
    %v8317 = vmax.f32 %v8315, %v8316
    %v8318 = vrot.slane %v8317, 2
    %v8319 = vmax.f32 %v8317, %v8318
    %v8320 = vrot.slane %v8319, 1
    %v8321 = vmax.f32 %v8319, %v8320
    %v8322 = vmax.f32 %v5480, %v5484
    %v8323 = vmax.f32 %v8322, %v5490
    %v8324 = vmax.f32 %v8323, %v5494
    %v8325 = vmax.f32 %v8324, %v5500
    %v8326 = vmax.f32 %v8325, %v5504
    %v8327 = vmax.f32 %v8326, %v5510
    %v8328 = vmax.f32 %v8327, %v5514
    %v8329 = vrot.slane %v8328, 4
    %v8330 = vmax.f32 %v8328, %v8329
    %v8331 = vrot.slane %v8330, 2
    %v8332 = vmax.f32 %v8330, %v8331
    %v8333 = vrot.slane %v8332, 1
    %v8334 = vmax.f32 %v8332, %v8333
    %v8335 = vmax.f32 %v5482, %v5486
    %v8336 = vmax.f32 %v8335, %v5492
    %v8337 = vmax.f32 %v8336, %v5496
    %v8338 = vmax.f32 %v8337, %v5502
    %v8339 = vmax.f32 %v8338, %v5506
    %v8340 = vmax.f32 %v8339, %v5512
    %v8341 = vmax.f32 %v8340, %v5516
    %v8342 = vrot.slane %v8341, 4
    %v8343 = vmax.f32 %v8341, %v8342
    %v8344 = vrot.slane %v8343, 2
    %v8345 = vmax.f32 %v8343, %v8344
    %v8346 = vrot.slane %v8345, 1
    %v8347 = vmax.f32 %v8345, %v8346
    %v8348 = vmax.f32 %v6153, %v6157
    %v8349 = vmax.f32 %v8348, %v6163
    %v8350 = vmax.f32 %v8349, %v6167
    %v8351 = vmax.f32 %v8350, %v6173
    %v8352 = vmax.f32 %v8351, %v6177
    %v8353 = vmax.f32 %v8352, %v6183
    %v8354 = vmax.f32 %v8353, %v6187
    %v8355 = vrot.slane %v8354, 4
    %v8356 = vmax.f32 %v8354, %v8355
    %v8357 = vrot.slane %v8356, 2
    %v8358 = vmax.f32 %v8356, %v8357
    %v8359 = vrot.slane %v8358, 1
    %v8360 = vmax.f32 %v8358, %v8359
    %v8361 = vmax.f32 %v6155, %v6159
    %v8362 = vmax.f32 %v8361, %v6165
    %v8363 = vmax.f32 %v8362, %v6169
    %v8364 = vmax.f32 %v8363, %v6175
    %v8365 = vmax.f32 %v8364, %v6179
    %v8366 = vmax.f32 %v8365, %v6185
    %v8367 = vmax.f32 %v8366, %v6189
    %v8368 = vrot.slane %v8367, 4
    %v8369 = vmax.f32 %v8367, %v8368
    %v8370 = vrot.slane %v8369, 2
    %v8371 = vmax.f32 %v8369, %v8370
    %v8372 = vrot.slane %v8371, 1
    %v8373 = vmax.f32 %v8371, %v8372
    %v8374 = vmax.f32 %v6826, %v6830
    %v8375 = vmax.f32 %v8374, %v6836
    %v8376 = vmax.f32 %v8375, %v6840
    %v8377 = vmax.f32 %v8376, %v6846
    %v8378 = vmax.f32 %v8377, %v6850
    %v8379 = vmax.f32 %v8378, %v6856
    %v8380 = vmax.f32 %v8379, %v6860
    %v8381 = vrot.slane %v8380, 4
    %v8382 = vmax.f32 %v8380, %v8381
    %v8383 = vrot.slane %v8382, 2
    %v8384 = vmax.f32 %v8382, %v8383
    %v8385 = vrot.slane %v8384, 1
    %v8386 = vmax.f32 %v8384, %v8385
    %v8387 = vmax.f32 %v6828, %v6832
    %v8388 = vmax.f32 %v8387, %v6838
    %v8389 = vmax.f32 %v8388, %v6842
    %v8390 = vmax.f32 %v8389, %v6848
    %v8391 = vmax.f32 %v8390, %v6852
    %v8392 = vmax.f32 %v8391, %v6858
    %v8393 = vmax.f32 %v8392, %v6862
    %v8394 = vrot.slane %v8393, 4
    %v8395 = vmax.f32 %v8393, %v8394
    %v8396 = vrot.slane %v8395, 2
    %v8397 = vmax.f32 %v8395, %v8396
    %v8398 = vrot.slane %v8397, 1
    %v8399 = vmax.f32 %v8397, %v8398
    %v8400 = vmax.f32 %v4847, %v4851
    %v8401 = vmax.f32 %v8400, %v4857
    %v8402 = vmax.f32 %v8401, %v4861
    %v8403 = vmax.f32 %v8402, %v4867
    %v8404 = vmax.f32 %v8403, %v4871
    %v8405 = vmax.f32 %v8404, %v4877
    %v8406 = vmax.f32 %v8405, %v4881
    %v8407 = vrot.slane %v8406, 4
    %v8408 = vmax.f32 %v8406, %v8407
    %v8409 = vrot.slane %v8408, 2
    %v8410 = vmax.f32 %v8408, %v8409
    %v8411 = vrot.slane %v8410, 1
    %v8412 = vmax.f32 %v8410, %v8411
    %v8413 = vmax.f32 %v4849, %v4853
    %v8414 = vmax.f32 %v8413, %v4859
    %v8415 = vmax.f32 %v8414, %v4863
    %v8416 = vmax.f32 %v8415, %v4869
    %v8417 = vmax.f32 %v8416, %v4873
    %v8418 = vmax.f32 %v8417, %v4879
    %v8419 = vmax.f32 %v8418, %v4883
    %v8420 = vrot.slane %v8419, 4
    %v8421 = vmax.f32 %v8419, %v8420
    %v8422 = vrot.slane %v8421, 2
    %v8423 = vmax.f32 %v8421, %v8422
    %v8424 = vrot.slane %v8423, 1
    %v8425 = vmax.f32 %v8423, %v8424
    %v8426 = vmax.f32 %v5520, %v5524
    %v8427 = vmax.f32 %v8426, %v5530
    %v8428 = vmax.f32 %v8427, %v5534
    %v8429 = vmax.f32 %v8428, %v5540
    %v8430 = vmax.f32 %v8429, %v5544
    %v8431 = vmax.f32 %v8430, %v5550
    %v8432 = vmax.f32 %v8431, %v5554
    %v8433 = vrot.slane %v8432, 4
    %v8434 = vmax.f32 %v8432, %v8433
    %v8435 = vrot.slane %v8434, 2
    %v8436 = vmax.f32 %v8434, %v8435
    %v8437 = vrot.slane %v8436, 1
    %v8438 = vmax.f32 %v8436, %v8437
    %v8439 = vmax.f32 %v5522, %v5526
    %v8440 = vmax.f32 %v8439, %v5532
    %v8441 = vmax.f32 %v8440, %v5536
    %v8442 = vmax.f32 %v8441, %v5542
    %v8443 = vmax.f32 %v8442, %v5546
    %v8444 = vmax.f32 %v8443, %v5552
    %v8445 = vmax.f32 %v8444, %v5556
    %v8446 = vrot.slane %v8445, 4
    %v8447 = vmax.f32 %v8445, %v8446
    %v8448 = vrot.slane %v8447, 2
    %v8449 = vmax.f32 %v8447, %v8448
    %v8450 = vrot.slane %v8449, 1
    %v8451 = vmax.f32 %v8449, %v8450
    %v8452 = vmax.f32 %v6193, %v6197
    %v8453 = vmax.f32 %v8452, %v6203
    %v8454 = vmax.f32 %v8453, %v6207
    %v8455 = vmax.f32 %v8454, %v6213
    %v8456 = vmax.f32 %v8455, %v6217
    %v8457 = vmax.f32 %v8456, %v6223
    %v8458 = vmax.f32 %v8457, %v6227
    %v8459 = vrot.slane %v8458, 4
    %v8460 = vmax.f32 %v8458, %v8459
    %v8461 = vrot.slane %v8460, 2
    %v8462 = vmax.f32 %v8460, %v8461
    %v8463 = vrot.slane %v8462, 1
    %v8464 = vmax.f32 %v8462, %v8463
    %v8465 = vmax.f32 %v6195, %v6199
    %v8466 = vmax.f32 %v8465, %v6205
    %v8467 = vmax.f32 %v8466, %v6209
    %v8468 = vmax.f32 %v8467, %v6215
    %v8469 = vmax.f32 %v8468, %v6219
    %v8470 = vmax.f32 %v8469, %v6225
    %v8471 = vmax.f32 %v8470, %v6229
    %v8472 = vrot.slane %v8471, 4
    %v8473 = vmax.f32 %v8471, %v8472
    %v8474 = vrot.slane %v8473, 2
    %v8475 = vmax.f32 %v8473, %v8474
    %v8476 = vrot.slane %v8475, 1
    %v8477 = vmax.f32 %v8475, %v8476
    %v8478 = vmax.f32 %v6866, %v6870
    %v8479 = vmax.f32 %v8478, %v6876
    %v8480 = vmax.f32 %v8479, %v6880
    %v8481 = vmax.f32 %v8480, %v6886
    %v8482 = vmax.f32 %v8481, %v6890
    %v8483 = vmax.f32 %v8482, %v6896
    %v8484 = vmax.f32 %v8483, %v6900
    %v8485 = vrot.slane %v8484, 4
    %v8486 = vmax.f32 %v8484, %v8485
    %v8487 = vrot.slane %v8486, 2
    %v8488 = vmax.f32 %v8486, %v8487
    %v8489 = vrot.slane %v8488, 1
    %v8490 = vmax.f32 %v8488, %v8489
    %v8491 = vmax.f32 %v6868, %v6872
    %v8492 = vmax.f32 %v8491, %v6878
    %v8493 = vmax.f32 %v8492, %v6882
    %v8494 = vmax.f32 %v8493, %v6888
    %v8495 = vmax.f32 %v8494, %v6892
    %v8496 = vmax.f32 %v8495, %v6898
    %v8497 = vmax.f32 %v8496, %v6902
    %v8498 = vrot.slane %v8497, 4
    %v8499 = vmax.f32 %v8497, %v8498
    %v8500 = vrot.slane %v8499, 2
    %v8501 = vmax.f32 %v8499, %v8500
    %v8502 = vrot.slane %v8501, 1
    %v8503 = vmax.f32 %v8501, %v8502
    %v8504 = vmax.f32 %v4887, %v4891
    %v8505 = vmax.f32 %v8504, %v4897
    %v8506 = vmax.f32 %v8505, %v4901
    %v8507 = vmax.f32 %v8506, %v4907
    %v8508 = vmax.f32 %v8507, %v4911
    %v8509 = vmax.f32 %v8508, %v4917
    %v8510 = vmax.f32 %v8509, %v4921
    %v8511 = vrot.slane %v8510, 4
    %v8512 = vmax.f32 %v8510, %v8511
    %v8513 = vrot.slane %v8512, 2
    %v8514 = vmax.f32 %v8512, %v8513
    %v8515 = vrot.slane %v8514, 1
    %v8516 = vmax.f32 %v8514, %v8515
    %v8517 = vmax.f32 %v4889, %v4893
    %v8518 = vmax.f32 %v8517, %v4899
    %v8519 = vmax.f32 %v8518, %v4903
    %v8520 = vmax.f32 %v8519, %v4909
    %v8521 = vmax.f32 %v8520, %v4913
    %v8522 = vmax.f32 %v8521, %v4919
    %v8523 = vmax.f32 %v8522, %v4923
    %v8524 = vrot.slane %v8523, 4
    %v8525 = vmax.f32 %v8523, %v8524
    %v8526 = vrot.slane %v8525, 2
    %v8527 = vmax.f32 %v8525, %v8526
    %v8528 = vrot.slane %v8527, 1
    %v8529 = vmax.f32 %v8527, %v8528
    %v8530 = vmax.f32 %v5560, %v5564
    %v8531 = vmax.f32 %v8530, %v5570
    %v8532 = vmax.f32 %v8531, %v5574
    %v8533 = vmax.f32 %v8532, %v5580
    %v8534 = vmax.f32 %v8533, %v5584
    %v8535 = vmax.f32 %v8534, %v5590
    %v8536 = vmax.f32 %v8535, %v5594
    %v8537 = vrot.slane %v8536, 4
    %v8538 = vmax.f32 %v8536, %v8537
    %v8539 = vrot.slane %v8538, 2
    %v8540 = vmax.f32 %v8538, %v8539
    %v8541 = vrot.slane %v8540, 1
    %v8542 = vmax.f32 %v8540, %v8541
    %v8543 = vmax.f32 %v5562, %v5566
    %v8544 = vmax.f32 %v8543, %v5572
    %v8545 = vmax.f32 %v8544, %v5576
    %v8546 = vmax.f32 %v8545, %v5582
    %v8547 = vmax.f32 %v8546, %v5586
    %v8548 = vmax.f32 %v8547, %v5592
    %v8549 = vmax.f32 %v8548, %v5596
    %v8550 = vrot.slane %v8549, 4
    %v8551 = vmax.f32 %v8549, %v8550
    %v8552 = vrot.slane %v8551, 2
    %v8553 = vmax.f32 %v8551, %v8552
    %v8554 = vrot.slane %v8553, 1
    %v8555 = vmax.f32 %v8553, %v8554
    %v8556 = vmax.f32 %v6233, %v6237
    %v8557 = vmax.f32 %v8556, %v6243
    %v8558 = vmax.f32 %v8557, %v6247
    %v8559 = vmax.f32 %v8558, %v6253
    %v8560 = vmax.f32 %v8559, %v6257
    %v8561 = vmax.f32 %v8560, %v6263
    %v8562 = vmax.f32 %v8561, %v6267
    %v8563 = vrot.slane %v8562, 4
    %v8564 = vmax.f32 %v8562, %v8563
    %v8565 = vrot.slane %v8564, 2
    %v8566 = vmax.f32 %v8564, %v8565
    %v8567 = vrot.slane %v8566, 1
    %v8568 = vmax.f32 %v8566, %v8567
    %v8569 = vmax.f32 %v6235, %v6239
    %v8570 = vmax.f32 %v8569, %v6245
    %v8571 = vmax.f32 %v8570, %v6249
    %v8572 = vmax.f32 %v8571, %v6255
    %v8573 = vmax.f32 %v8572, %v6259
    %v8574 = vmax.f32 %v8573, %v6265
    %v8575 = vmax.f32 %v8574, %v6269
    %v8576 = vrot.slane %v8575, 4
    %v8577 = vmax.f32 %v8575, %v8576
    %v8578 = vrot.slane %v8577, 2
    %v8579 = vmax.f32 %v8577, %v8578
    %v8580 = vrot.slane %v8579, 1
    %v8581 = vmax.f32 %v8579, %v8580
    %v8582 = vmax.f32 %v6906, %v6910
    %v8583 = vmax.f32 %v8582, %v6916
    %v8584 = vmax.f32 %v8583, %v6920
    %v8585 = vmax.f32 %v8584, %v6926
    %v8586 = vmax.f32 %v8585, %v6930
    %v8587 = vmax.f32 %v8586, %v6936
    %v8588 = vmax.f32 %v8587, %v6940
    %v8589 = vrot.slane %v8588, 4
    %v8590 = vmax.f32 %v8588, %v8589
    %v8591 = vrot.slane %v8590, 2
    %v8592 = vmax.f32 %v8590, %v8591
    %v8593 = vrot.slane %v8592, 1
    %v8594 = vmax.f32 %v8592, %v8593
    %v8595 = vmax.f32 %v6908, %v6912
    %v8596 = vmax.f32 %v8595, %v6918
    %v8597 = vmax.f32 %v8596, %v6922
    %v8598 = vmax.f32 %v8597, %v6928
    %v8599 = vmax.f32 %v8598, %v6932
    %v8600 = vmax.f32 %v8599, %v6938
    %v8601 = vmax.f32 %v8600, %v6942
    %v8602 = vrot.slane %v8601, 4
    %v8603 = vmax.f32 %v8601, %v8602
    %v8604 = vrot.slane %v8603, 2
    %v8605 = vmax.f32 %v8603, %v8604
    %v8606 = vrot.slane %v8605, 1
    %v8607 = vmax.f32 %v8605, %v8606
    %p8608 = scmp.eq.s32.totalorder 0, 0
    // Predicated region
    $region66: #{tpu_custom_call.1} parent=1 // pred_check
      %p8609 = pneg %p8608
    $region67: #{tpu_custom_call.1} parent=1 // pred_check_branch
      %8611 = sbr.rel (%p8609) target = $region69
    $region68: #{tpu_custom_call.1} parent=1 // pred_region
      %vm8740 = vcmask 1041409
      %v8741 = vsel %vm8740, %v7060, %v6956
      %vm8742 = vcmask 1042434
      %v8743 = vsel %vm8742, %v7164, %v8741
      %vm8744 = vcmask 1043459
      %v8745 = vsel %vm8744, %v7268, %v8743
      %vm8746 = vcmask 1044484
      %v8747 = vsel %vm8746, %v7372, %v8745
      %vm8748 = vcmask 1045509
      %v8749 = vsel %vm8748, %v7476, %v8747
      %vm8750 = vcmask 1046534
      %v8751 = vsel %vm8750, %v7580, %v8749
      %vm8752 = vcmask 1047559
      %v8753 = vsel %vm8752, %v7684, %v8751
      %v8754 = vsel %vm8740, %v7073, %v6969
      %v8755 = vsel %vm8742, %v7177, %v8754
      %v8756 = vsel %vm8744, %v7281, %v8755
      %v8757 = vsel %vm8746, %v7385, %v8756
      %v8758 = vsel %vm8748, %v7489, %v8757
      %v8759 = vsel %vm8750, %v7593, %v8758
      %v8760 = vsel %vm8752, %v7697, %v8759
      %v8761 = vsel %vm8740, %v7086, %v6982
      %v8762 = vsel %vm8742, %v7190, %v8761
      %v8763 = vsel %vm8744, %v7294, %v8762
      %v8764 = vsel %vm8746, %v7398, %v8763
      %v8765 = vsel %vm8748, %v7502, %v8764
      %v8766 = vsel %vm8750, %v7606, %v8765
      %v8767 = vsel %vm8752, %v7710, %v8766
      %v8768 = vsel %vm8740, %v7099, %v6995
      %v8769 = vsel %vm8742, %v7203, %v8768
      %v8770 = vsel %vm8744, %v7307, %v8769
      %v8771 = vsel %vm8746, %v7411, %v8770
      %v8772 = vsel %vm8748, %v7515, %v8771
      %v8773 = vsel %vm8750, %v7619, %v8772
      %v8774 = vsel %vm8752, %v7723, %v8773
      %v8775 = vsel %vm8740, %v7112, %v7008
      %v8776 = vsel %vm8742, %v7216, %v8775
      %v8777 = vsel %vm8744, %v7320, %v8776
      %v8778 = vsel %vm8746, %v7424, %v8777
      %v8779 = vsel %vm8748, %v7528, %v8778
      %v8780 = vsel %vm8750, %v7632, %v8779
      %v8781 = vsel %vm8752, %v7736, %v8780
      %v8782 = vsel %vm8740, %v7125, %v7021
      %v8783 = vsel %vm8742, %v7229, %v8782
      %v8784 = vsel %vm8744, %v7333, %v8783
      %v8785 = vsel %vm8746, %v7437, %v8784
      %v8786 = vsel %vm8748, %v7541, %v8785
      %v8787 = vsel %vm8750, %v7645, %v8786
      %v8788 = vsel %vm8752, %v7749, %v8787
      %v8789 = vsel %vm8740, %v7138, %v7034
      %v8790 = vsel %vm8742, %v7242, %v8789
      %v8791 = vsel %vm8744, %v7346, %v8790
      %v8792 = vsel %vm8746, %v7450, %v8791
      %v8793 = vsel %vm8748, %v7554, %v8792
      %v8794 = vsel %vm8750, %v7658, %v8793
      %v8795 = vsel %vm8752, %v7762, %v8794
      %v8796 = vsel %vm8740, %v7151, %v7047
      %v8797 = vsel %vm8742, %v7255, %v8796
      %v8798 = vsel %vm8744, %v7359, %v8797
      %v8799 = vsel %vm8746, %v7463, %v8798
      %v8800 = vsel %vm8748, %v7567, %v8799
      %v8801 = vsel %vm8750, %v7671, %v8800
      %v8802 = vsel %vm8752, %v7775, %v8801
      %v8803 = vsel %vm8740, %v7892, %v7788
      %v8804 = vsel %vm8742, %v7996, %v8803
      %v8805 = vsel %vm8744, %v8100, %v8804
      %v8806 = vsel %vm8746, %v8204, %v8805
      %v8807 = vsel %vm8748, %v8308, %v8806
      %v8808 = vsel %vm8750, %v8412, %v8807
      %v8809 = vsel %vm8752, %v8516, %v8808
      %v8810 = vsel %vm8740, %v7905, %v7801
      %v8811 = vsel %vm8742, %v8009, %v8810
      %v8812 = vsel %vm8744, %v8113, %v8811
      %v8813 = vsel %vm8746, %v8217, %v8812
      %v8814 = vsel %vm8748, %v8321, %v8813
      %v8815 = vsel %vm8750, %v8425, %v8814
      %v8816 = vsel %vm8752, %v8529, %v8815
      %v8817 = vsel %vm8740, %v7918, %v7814
      %v8818 = vsel %vm8742, %v8022, %v8817
      %v8819 = vsel %vm8744, %v8126, %v8818
      %v8820 = vsel %vm8746, %v8230, %v8819
      %v8821 = vsel %vm8748, %v8334, %v8820
      %v8822 = vsel %vm8750, %v8438, %v8821
      %v8823 = vsel %vm8752, %v8542, %v8822
      %v8824 = vsel %vm8740, %v7931, %v7827
      %v8825 = vsel %vm8742, %v8035, %v8824
      %v8826 = vsel %vm8744, %v8139, %v8825
      %v8827 = vsel %vm8746, %v8243, %v8826
      %v8828 = vsel %vm8748, %v8347, %v8827
      %v8829 = vsel %vm8750, %v8451, %v8828
      %v8830 = vsel %vm8752, %v8555, %v8829
      %v8831 = vsel %vm8740, %v7944, %v7840
      %v8832 = vsel %vm8742, %v8048, %v8831
      %v8833 = vsel %vm8744, %v8152, %v8832
      %v8834 = vsel %vm8746, %v8256, %v8833
      %v8835 = vsel %vm8748, %v8360, %v8834
      %v8836 = vsel %vm8750, %v8464, %v8835
      %v8837 = vsel %vm8752, %v8568, %v8836
      %v8838 = vsel %vm8740, %v7957, %v7853
      %v8839 = vsel %vm8742, %v8061, %v8838
      %v8840 = vsel %vm8744, %v8165, %v8839
      %v8841 = vsel %vm8746, %v8269, %v8840
      %v8842 = vsel %vm8748, %v8373, %v8841
      %v8843 = vsel %vm8750, %v8477, %v8842
      %v8844 = vsel %vm8752, %v8581, %v8843
      %v8845 = vsel %vm8740, %v7970, %v7866
      %v8846 = vsel %vm8742, %v8074, %v8845
      %v8847 = vsel %vm8744, %v8178, %v8846
      %v8848 = vsel %vm8746, %v8282, %v8847
      %v8849 = vsel %vm8748, %v8386, %v8848
      %v8850 = vsel %vm8750, %v8490, %v8849
      %v8851 = vsel %vm8752, %v8594, %v8850
      %v8852 = vsel %vm8740, %v7983, %v7879
      %v8853 = vsel %vm8742, %v8087, %v8852
      %v8854 = vsel %vm8744, %v8191, %v8853
      %v8855 = vsel %vm8746, %v8295, %v8854
      %v8856 = vsel %vm8748, %v8399, %v8855
      %v8857 = vsel %vm8750, %v8503, %v8856
      %v8858 = vsel %vm8752, %v8607, %v8857
      %8875 = vst [vmem:[#allocation2] sm:$0xff] %v8753
      %8876 = vst [vmem:[#allocation2 + $0x8] sm:$0xff] %v8760
      %8877 = vst [vmem:[#allocation2 + $0x10] sm:$0xff] %v8767
      %8878 = vst [vmem:[#allocation2 + $0x18] sm:$0xff] %v8774
      %8879 = vst [vmem:[#allocation2 + $0x20] sm:$0xff] %v8781
      %8880 = vst [vmem:[#allocation2 + $0x28] sm:$0xff] %v8788
      %8881 = vst [vmem:[#allocation2 + $0x30] sm:$0xff] %v8795
      %8882 = vst [vmem:[#allocation2 + $0x38] sm:$0xff] %v8802
      %8883 = vst [vmem:[#allocation2 + $0x40] sm:$0xff] %v8809
      %8884 = vst [vmem:[#allocation2 + $0x48] sm:$0xff] %v8816
      %8885 = vst [vmem:[#allocation2 + $0x50] sm:$0xff] %v8823
      %8886 = vst [vmem:[#allocation2 + $0x58] sm:$0xff] %v8830
      %8887 = vst [vmem:[#allocation2 + $0x60] sm:$0xff] %v8837
      %8888 = vst [vmem:[#allocation2 + $0x68] sm:$0xff] %v8844
      %8889 = vst [vmem:[#allocation2 + $0x70] sm:$0xff] %v8851
      %8890 = vst [vmem:[#allocation2 + $0x78] sm:$0xff] %v8858
    $region69: #{tpu_custom_call.1} parent=1 // pred_fallthru
      _
    %p8891 = scmp.ne.s32.totalorder 0, 0
    // Predicated region
    $region70: #{tpu_custom_call.1} parent=1 // pred_check
      %p8892 = pneg %p8891
    $region71: #{tpu_custom_call.1} parent=1 // pred_check_branch
      %8894 = sbr.rel (%p8892) target = $region73
    $region72: #{tpu_custom_call.1} parent=1 // pred_region
      %v8895 = vld [vmem:[#allocation2] sm:$0xff]
      %v8896 = vld [vmem:[#allocation2 + $0x8] sm:$0xff]
      %v8897 = vld [vmem:[#allocation2 + $0x10] sm:$0xff]
      %v8898 = vld [vmem:[#allocation2 + $0x18] sm:$0xff]
      %v8899 = vld [vmem:[#allocation2 + $0x20] sm:$0xff]
      %v8900 = vld [vmem:[#allocation2 + $0x28] sm:$0xff]
      %v8901 = vld [vmem:[#allocation2 + $0x30] sm:$0xff]
      %v8902 = vld [vmem:[#allocation2 + $0x38] sm:$0xff]
      %v8903 = vld [vmem:[#allocation2 + $0x40] sm:$0xff]
      %v8904 = vld [vmem:[#allocation2 + $0x48] sm:$0xff]
      %v8905 = vld [vmem:[#allocation2 + $0x50] sm:$0xff]
      %v8906 = vld [vmem:[#allocation2 + $0x58] sm:$0xff]
      %v8907 = vld [vmem:[#allocation2 + $0x60] sm:$0xff]
      %v8908 = vld [vmem:[#allocation2 + $0x68] sm:$0xff]
      %v8909 = vld [vmem:[#allocation2 + $0x70] sm:$0xff]
      %v8910 = vld [vmem:[#allocation2 + $0x78] sm:$0xff]
      %vm9039 = vcmask 1041409
      %v9040 = vsel %vm9039, %v7060, %v6956
      %vm9041 = vcmask 1042434
      %v9042 = vsel %vm9041, %v7164, %v9040
      %vm9043 = vcmask 1043459
      %v9044 = vsel %vm9043, %v7268, %v9042
      %vm9045 = vcmask 1044484
      %v9046 = vsel %vm9045, %v7372, %v9044
      %vm9047 = vcmask 1045509
      %v9048 = vsel %vm9047, %v7476, %v9046
      %vm9049 = vcmask 1046534
      %v9050 = vsel %vm9049, %v7580, %v9048
      %vm9051 = vcmask 1047559
      %v9052 = vsel %vm9051, %v7684, %v9050
      %v9053 = vsel %vm9039, %v7073, %v6969
      %v9054 = vsel %vm9041, %v7177, %v9053
      %v9055 = vsel %vm9043, %v7281, %v9054
      %v9056 = vsel %vm9045, %v7385, %v9055
      %v9057 = vsel %vm9047, %v7489, %v9056
      %v9058 = vsel %vm9049, %v7593, %v9057
      %v9059 = vsel %vm9051, %v7697, %v9058
      %v9060 = vsel %vm9039, %v7086, %v6982
      %v9061 = vsel %vm9041, %v7190, %v9060
      %v9062 = vsel %vm9043, %v7294, %v9061
      %v9063 = vsel %vm9045, %v7398, %v9062
      %v9064 = vsel %vm9047, %v7502, %v9063
      %v9065 = vsel %vm9049, %v7606, %v9064
      %v9066 = vsel %vm9051, %v7710, %v9065
      %v9067 = vsel %vm9039, %v7099, %v6995
      %v9068 = vsel %vm9041, %v7203, %v9067
      %v9069 = vsel %vm9043, %v7307, %v9068
      %v9070 = vsel %vm9045, %v7411, %v9069
      %v9071 = vsel %vm9047, %v7515, %v9070
      %v9072 = vsel %vm9049, %v7619, %v9071
      %v9073 = vsel %vm9051, %v7723, %v9072
      %v9074 = vsel %vm9039, %v7112, %v7008
      %v9075 = vsel %vm9041, %v7216, %v9074
      %v9076 = vsel %vm9043, %v7320, %v9075
      %v9077 = vsel %vm9045, %v7424, %v9076
      %v9078 = vsel %vm9047, %v7528, %v9077
      %v9079 = vsel %vm9049, %v7632, %v9078
      %v9080 = vsel %vm9051, %v7736, %v9079
      %v9081 = vsel %vm9039, %v7125, %v7021
      %v9082 = vsel %vm9041, %v7229, %v9081
      %v9083 = vsel %vm9043, %v7333, %v9082
      %v9084 = vsel %vm9045, %v7437, %v9083
      %v9085 = vsel %vm9047, %v7541, %v9084
      %v9086 = vsel %vm9049, %v7645, %v9085
      %v9087 = vsel %vm9051, %v7749, %v9086
      %v9088 = vsel %vm9039, %v7138, %v7034
      %v9089 = vsel %vm9041, %v7242, %v9088
      %v9090 = vsel %vm9043, %v7346, %v9089
      %v9091 = vsel %vm9045, %v7450, %v9090
      %v9092 = vsel %vm9047, %v7554, %v9091
      %v9093 = vsel %vm9049, %v7658, %v9092
      %v9094 = vsel %vm9051, %v7762, %v9093
      %v9095 = vsel %vm9039, %v7151, %v7047
      %v9096 = vsel %vm9041, %v7255, %v9095
      %v9097 = vsel %vm9043, %v7359, %v9096
      %v9098 = vsel %vm9045, %v7463, %v9097
      %v9099 = vsel %vm9047, %v7567, %v9098
      %v9100 = vsel %vm9049, %v7671, %v9099
      %v9101 = vsel %vm9051, %v7775, %v9100
      %v9102 = vsel %vm9039, %v7892, %v7788
      %v9103 = vsel %vm9041, %v7996, %v9102
      %v9104 = vsel %vm9043, %v8100, %v9103
      %v9105 = vsel %vm9045, %v8204, %v9104
      %v9106 = vsel %vm9047, %v8308, %v9105
      %v9107 = vsel %vm9049, %v8412, %v9106
      %v9108 = vsel %vm9051, %v8516, %v9107
      %v9109 = vsel %vm9039, %v7905, %v7801
      %v9110 = vsel %vm9041, %v8009, %v9109
      %v9111 = vsel %vm9043, %v8113, %v9110
      %v9112 = vsel %vm9045, %v8217, %v9111
      %v9113 = vsel %vm9047, %v8321, %v9112
      %v9114 = vsel %vm9049, %v8425, %v9113
      %v9115 = vsel %vm9051, %v8529, %v9114
      %v9116 = vsel %vm9039, %v7918, %v7814
      %v9117 = vsel %vm9041, %v8022, %v9116
      %v9118 = vsel %vm9043, %v8126, %v9117
      %v9119 = vsel %vm9045, %v8230, %v9118
      %v9120 = vsel %vm9047, %v8334, %v9119
      %v9121 = vsel %vm9049, %v8438, %v9120
      %v9122 = vsel %vm9051, %v8542, %v9121
      %v9123 = vsel %vm9039, %v7931, %v7827
      %v9124 = vsel %vm9041, %v8035, %v9123
      %v9125 = vsel %vm9043, %v8139, %v9124
      %v9126 = vsel %vm9045, %v8243, %v9125
      %v9127 = vsel %vm9047, %v8347, %v9126
      %v9128 = vsel %vm9049, %v8451, %v9127
      %v9129 = vsel %vm9051, %v8555, %v9128
      %v9130 = vsel %vm9039, %v7944, %v7840
      %v9131 = vsel %vm9041, %v8048, %v9130
      %v9132 = vsel %vm9043, %v8152, %v9131
      %v9133 = vsel %vm9045, %v8256, %v9132
      %v9134 = vsel %vm9047, %v8360, %v9133
      %v9135 = vsel %vm9049, %v8464, %v9134
      %v9136 = vsel %vm9051, %v8568, %v9135
      %v9137 = vsel %vm9039, %v7957, %v7853
      %v9138 = vsel %vm9041, %v8061, %v9137
      %v9139 = vsel %vm9043, %v8165, %v9138
      %v9140 = vsel %vm9045, %v8269, %v9139
      %v9141 = vsel %vm9047, %v8373, %v9140
      %v9142 = vsel %vm9049, %v8477, %v9141
      %v9143 = vsel %vm9051, %v8581, %v9142
      %v9144 = vsel %vm9039, %v7970, %v7866
      %v9145 = vsel %vm9041, %v8074, %v9144
      %v9146 = vsel %vm9043, %v8178, %v9145
      %v9147 = vsel %vm9045, %v8282, %v9146
      %v9148 = vsel %vm9047, %v8386, %v9147
      %v9149 = vsel %vm9049, %v8490, %v9148
      %v9150 = vsel %vm9051, %v8594, %v9149
      %v9151 = vsel %vm9039, %v7983, %v7879
      %v9152 = vsel %vm9041, %v8087, %v9151
      %v9153 = vsel %vm9043, %v8191, %v9152
      %v9154 = vsel %vm9045, %v8295, %v9153
      %v9155 = vsel %vm9047, %v8399, %v9154
      %v9156 = vsel %vm9049, %v8503, %v9155
      %v9157 = vsel %vm9051, %v8607, %v9156
      %v9174 = vmax.f32 %v8895, %v9052
      %v9175 = vmax.f32 %v8896, %v9059
      %v9176 = vmax.f32 %v8897, %v9066
      %v9177 = vmax.f32 %v8898, %v9073
      %v9178 = vmax.f32 %v8899, %v9080
      %v9179 = vmax.f32 %v8900, %v9087
      %v9180 = vmax.f32 %v8901, %v9094
      %v9181 = vmax.f32 %v8902, %v9101
      %v9182 = vmax.f32 %v8903, %v9108
      %v9183 = vmax.f32 %v8904, %v9115
      %v9184 = vmax.f32 %v8905, %v9122
      %v9185 = vmax.f32 %v8906, %v9129
      %v9186 = vmax.f32 %v8907, %v9136
      %v9187 = vmax.f32 %v8908, %v9143
      %v9188 = vmax.f32 %v8909, %v9150
      %v9189 = vmax.f32 %v8910, %v9157
      %9190 = vst [vmem:[#allocation2] sm:$0xff] %v9174
      %9191 = vst [vmem:[#allocation2 + $0x8] sm:$0xff] %v9175
      %9192 = vst [vmem:[#allocation2 + $0x10] sm:$0xff] %v9176
      %9193 = vst [vmem:[#allocation2 + $0x18] sm:$0xff] %v9177
      %9194 = vst [vmem:[#allocation2 + $0x20] sm:$0xff] %v9178
      %9195 = vst [vmem:[#allocation2 + $0x28] sm:$0xff] %v9179
      %9196 = vst [vmem:[#allocation2 + $0x30] sm:$0xff] %v9180
      %9197 = vst [vmem:[#allocation2 + $0x38] sm:$0xff] %v9181
      %9198 = vst [vmem:[#allocation2 + $0x40] sm:$0xff] %v9182
      %9199 = vst [vmem:[#allocation2 + $0x48] sm:$0xff] %v9183
      %9200 = vst [vmem:[#allocation2 + $0x50] sm:$0xff] %v9184
      %9201 = vst [vmem:[#allocation2 + $0x58] sm:$0xff] %v9185
      %9202 = vst [vmem:[#allocation2 + $0x60] sm:$0xff] %v9186
      %9203 = vst [vmem:[#allocation2 + $0x68] sm:$0xff] %v9187
      %9204 = vst [vmem:[#allocation2 + $0x70] sm:$0xff] %v9188
      %9205 = vst [vmem:[#allocation2 + $0x78] sm:$0xff] %v9189
    $region73: #{tpu_custom_call.1} parent=1 // pred_fallthru
      _
    // Predicated region
    $region74: #{tpu_custom_call.1} parent=1 // pred_check
      %p9206 = pneg %p8608
    $region75: #{tpu_custom_call.1} parent=1 // pred_check_branch
      %9208 = sbr.rel (%p9206) target = $region77
    $region76: #{tpu_custom_call.1} parent=1 // pred_region
      %v9209 = vld [vmem:[#allocation2] sm:$0xff]
      %v9210 = vld [vmem:[#allocation2 + $0x8] sm:$0xff]
      %v9211 = vld [vmem:[#allocation2 + $0x10] sm:$0xff]
      %v9212 = vld [vmem:[#allocation2 + $0x18] sm:$0xff]
      %v9213 = vld [vmem:[#allocation2 + $0x20] sm:$0xff]
      %v9214 = vld [vmem:[#allocation2 + $0x28] sm:$0xff]
      %v9215 = vld [vmem:[#allocation2 + $0x30] sm:$0xff]
      %v9216 = vld [vmem:[#allocation2 + $0x38] sm:$0xff]
      %v9217 = vld [vmem:[#allocation2 + $0x40] sm:$0xff]
      %v9218 = vld [vmem:[#allocation2 + $0x48] sm:$0xff]
      %v9219 = vld [vmem:[#allocation2 + $0x50] sm:$0xff]
      %v9220 = vld [vmem:[#allocation2 + $0x58] sm:$0xff]
      %v9221 = vld [vmem:[#allocation2 + $0x60] sm:$0xff]
      %v9222 = vld [vmem:[#allocation2 + $0x68] sm:$0xff]
      %v9223 = vld [vmem:[#allocation2 + $0x70] sm:$0xff]
      %v9224 = vld [vmem:[#allocation2 + $0x78] sm:$0xff]
      %v9225 = vpack.c.bf16 %v9217, %v9209
      %v9226 = vpack.c.bf16 %v9218, %v9210
      %v9227 = vpack.c.bf16 %v9219, %v9211
      %v9228 = vpack.c.bf16 %v9220, %v9212
      %v9229 = vpack.c.bf16 %v9221, %v9213
      %v9230 = vpack.c.bf16 %v9222, %v9214
      %v9231 = vpack.c.bf16 %v9223, %v9215
      %v9232 = vpack.c.bf16 %v9224, %v9216
      %v9233 = vld [vmem:[#allocation6] sm:$0xff]
      %v9234 = vld [vmem:[#allocation6 + $0x8] sm:$0xff]
      %v9235 = vld [vmem:[#allocation6 + $0x10] sm:$0xff]
      %v9236 = vld [vmem:[#allocation6 + $0x18] sm:$0xff]
      %v9237 = vld [vmem:[#allocation6 + $0x20] sm:$0xff]
      %v9238 = vld [vmem:[#allocation6 + $0x28] sm:$0xff]
      %v9239 = vld [vmem:[#allocation6 + $0x30] sm:$0xff]
      %v9240 = vld [vmem:[#allocation6 + $0x38] sm:$0xff]
      %v9241 = vld [vmem:[#allocation6 + $0x40] sm:$0xff]
      %v9242 = vld [vmem:[#allocation6 + $0x48] sm:$0xff]
      %v9243 = vld [vmem:[#allocation6 + $0x50] sm:$0xff]
      %v9244 = vld [vmem:[#allocation6 + $0x58] sm:$0xff]
      %v9245 = vld [vmem:[#allocation6 + $0x60] sm:$0xff]
      %v9246 = vld [vmem:[#allocation6 + $0x68] sm:$0xff]
      %v9247 = vld [vmem:[#allocation6 + $0x70] sm:$0xff]
      %v9248 = vld [vmem:[#allocation6 + $0x78] sm:$0xff]
      %v9249 = vld [vmem:[#allocation6 + $0x80] sm:$0xff]
      %v9250 = vld [vmem:[#allocation6 + $0x88] sm:$0xff]
      %v9251 = vld [vmem:[#allocation6 + $0x90] sm:$0xff]
      %v9252 = vld [vmem:[#allocation6 + $0x98] sm:$0xff]
      %v9253 = vld [vmem:[#allocation6 + $0xa0] sm:$0xff]
      %v9254 = vld [vmem:[#allocation6 + $0xa8] sm:$0xff]
      %v9255 = vld [vmem:[#allocation6 + $0xb0] sm:$0xff]
      %v9256 = vld [vmem:[#allocation6 + $0xb8] sm:$0xff]
      %v9257 = vld [vmem:[#allocation6 + $0xc0] sm:$0xff]
      %v9258 = vld [vmem:[#allocation6 + $0xc8] sm:$0xff]
      %v9259 = vld [vmem:[#allocation6 + $0xd0] sm:$0xff]
      %v9260 = vld [vmem:[#allocation6 + $0xd8] sm:$0xff]
      %v9261 = vld [vmem:[#allocation6 + $0xe0] sm:$0xff]
      %v9262 = vld [vmem:[#allocation6 + $0xe8] sm:$0xff]
      %v9263 = vld [vmem:[#allocation6 + $0xf0] sm:$0xff]
      %v9264 = vld [vmem:[#allocation6 + $0xf8] sm:$0xff]
      %v9265 = vld [vmem:[#allocation6 + $0x100] sm:$0xff]
      %v9266 = vld [vmem:[#allocation6 + $0x108] sm:$0xff]
      %v9267 = vld [vmem:[#allocation6 + $0x110] sm:$0xff]
      %v9268 = vld [vmem:[#allocation6 + $0x118] sm:$0xff]
      %v9269 = vld [vmem:[#allocation6 + $0x120] sm:$0xff]
      %v9270 = vld [vmem:[#allocation6 + $0x128] sm:$0xff]
      %v9271 = vld [vmem:[#allocation6 + $0x130] sm:$0xff]
      %v9272 = vld [vmem:[#allocation6 + $0x138] sm:$0xff]
      %v9273 = vld [vmem:[#allocation6 + $0x140] sm:$0xff]
      %v9274 = vld [vmem:[#allocation6 + $0x148] sm:$0xff]
      %v9275 = vld [vmem:[#allocation6 + $0x150] sm:$0xff]
      %v9276 = vld [vmem:[#allocation6 + $0x158] sm:$0xff]
      %v9277 = vld [vmem:[#allocation6 + $0x160] sm:$0xff]
      %v9278 = vld [vmem:[#allocation6 + $0x168] sm:$0xff]
      %v9279 = vld [vmem:[#allocation6 + $0x170] sm:$0xff]
      %v9280 = vld [vmem:[#allocation6 + $0x178] sm:$0xff]
      %v9281 = vld [vmem:[#allocation6 + $0x180] sm:$0xff]
      %v9282 = vld [vmem:[#allocation6 + $0x188] sm:$0xff]
      %v9283 = vld [vmem:[#allocation6 + $0x190] sm:$0xff]
      %v9284 = vld [vmem:[#allocation6 + $0x198] sm:$0xff]
      %v9285 = vld [vmem:[#allocation6 + $0x1a0] sm:$0xff]
      %v9286 = vld [vmem:[#allocation6 + $0x1a8] sm:$0xff]
      %v9287 = vld [vmem:[#allocation6 + $0x1b0] sm:$0xff]
      %v9288 = vld [vmem:[#allocation6 + $0x1b8] sm:$0xff]
      %v9289 = vld [vmem:[#allocation6 + $0x1c0] sm:$0xff]
      %v9290 = vld [vmem:[#allocation6 + $0x1c8] sm:$0xff]
      %v9291 = vld [vmem:[#allocation6 + $0x1d0] sm:$0xff]
      %v9292 = vld [vmem:[#allocation6 + $0x1d8] sm:$0xff]
      %v9293 = vld [vmem:[#allocation6 + $0x1e0] sm:$0xff]
      %v9294 = vld [vmem:[#allocation6 + $0x1e8] sm:$0xff]
      %v9295 = vld [vmem:[#allocation6 + $0x1f0] sm:$0xff]
      %v9296 = vld [vmem:[#allocation6 + $0x1f8] sm:$0xff]
      %v9297 = vld [vmem:[#allocation6 + $0x200] sm:$0xff]
      %v9298 = vld [vmem:[#allocation6 + $0x208] sm:$0xff]
      %v9299 = vld [vmem:[#allocation6 + $0x210] sm:$0xff]
      %v9300 = vld [vmem:[#allocation6 + $0x218] sm:$0xff]
      %v9301 = vld [vmem:[#allocation6 + $0x220] sm:$0xff]
      %v9302 = vld [vmem:[#allocation6 + $0x228] sm:$0xff]
      %v9303 = vld [vmem:[#allocation6 + $0x230] sm:$0xff]
      %v9304 = vld [vmem:[#allocation6 + $0x238] sm:$0xff]
      %v9305 = vld [vmem:[#allocation6 + $0x240] sm:$0xff]
      %v9306 = vld [vmem:[#allocation6 + $0x248] sm:$0xff]
      %v9307 = vld [vmem:[#allocation6 + $0x250] sm:$0xff]
      %v9308 = vld [vmem:[#allocation6 + $0x258] sm:$0xff]
      %v9309 = vld [vmem:[#allocation6 + $0x260] sm:$0xff]
      %v9310 = vld [vmem:[#allocation6 + $0x268] sm:$0xff]
      %v9311 = vld [vmem:[#allocation6 + $0x270] sm:$0xff]
      %v9312 = vld [vmem:[#allocation6 + $0x278] sm:$0xff]
      %v9313 = vld [vmem:[#allocation6 + $0x280] sm:$0xff]
      %v9314 = vld [vmem:[#allocation6 + $0x288] sm:$0xff]
      %v9315 = vld [vmem:[#allocation6 + $0x290] sm:$0xff]
      %v9316 = vld [vmem:[#allocation6 + $0x298] sm:$0xff]
      %v9317 = vld [vmem:[#allocation6 + $0x2a0] sm:$0xff]
      %v9318 = vld [vmem:[#allocation6 + $0x2a8] sm:$0xff]
      %v9319 = vld [vmem:[#allocation6 + $0x2b0] sm:$0xff]
      %v9320 = vld [vmem:[#allocation6 + $0x2b8] sm:$0xff]
      %v9321 = vld [vmem:[#allocation6 + $0x2c0] sm:$0xff]
      %v9322 = vld [vmem:[#allocation6 + $0x2c8] sm:$0xff]
      %v9323 = vld [vmem:[#allocation6 + $0x2d0] sm:$0xff]
      %v9324 = vld [vmem:[#allocation6 + $0x2d8] sm:$0xff]
      %v9325 = vld [vmem:[#allocation6 + $0x2e0] sm:$0xff]
      %v9326 = vld [vmem:[#allocation6 + $0x2e8] sm:$0xff]
      %v9327 = vld [vmem:[#allocation6 + $0x2f0] sm:$0xff]
      %v9328 = vld [vmem:[#allocation6 + $0x2f8] sm:$0xff]
      %v9329 = vld [vmem:[#allocation6 + $0x300] sm:$0xff]
      %v9330 = vld [vmem:[#allocation6 + $0x308] sm:$0xff]
      %v9331 = vld [vmem:[#allocation6 + $0x310] sm:$0xff]
      %v9332 = vld [vmem:[#allocation6 + $0x318] sm:$0xff]
      %v9333 = vld [vmem:[#allocation6 + $0x320] sm:$0xff]
      %v9334 = vld [vmem:[#allocation6 + $0x328] sm:$0xff]
      %v9335 = vld [vmem:[#allocation6 + $0x330] sm:$0xff]
      %v9336 = vld [vmem:[#allocation6 + $0x338] sm:$0xff]
      %v9337 = vld [vmem:[#allocation6 + $0x340] sm:$0xff]
      %v9338 = vld [vmem:[#allocation6 + $0x348] sm:$0xff]
      %v9339 = vld [vmem:[#allocation6 + $0x350] sm:$0xff]
      %v9340 = vld [vmem:[#allocation6 + $0x358] sm:$0xff]
      %v9341 = vld [vmem:[#allocation6 + $0x360] sm:$0xff]
      %v9342 = vld [vmem:[#allocation6 + $0x368] sm:$0xff]
      %v9343 = vld [vmem:[#allocation6 + $0x370] sm:$0xff]
      %v9344 = vld [vmem:[#allocation6 + $0x378] sm:$0xff]
      %v9345 = vld [vmem:[#allocation6 + $0x380] sm:$0xff]
      %v9346 = vld [vmem:[#allocation6 + $0x388] sm:$0xff]
      %v9347 = vld [vmem:[#allocation6 + $0x390] sm:$0xff]
      %v9348 = vld [vmem:[#allocation6 + $0x398] sm:$0xff]
      %v9349 = vld [vmem:[#allocation6 + $0x3a0] sm:$0xff]
      %v9350 = vld [vmem:[#allocation6 + $0x3a8] sm:$0xff]
      %v9351 = vld [vmem:[#allocation6 + $0x3b0] sm:$0xff]
      %v9352 = vld [vmem:[#allocation6 + $0x3b8] sm:$0xff]
      %v9353 = vld [vmem:[#allocation6 + $0x3c0] sm:$0xff]
      %v9354 = vld [vmem:[#allocation6 + $0x3c8] sm:$0xff]
      %v9355 = vld [vmem:[#allocation6 + $0x3d0] sm:$0xff]
      %v9356 = vld [vmem:[#allocation6 + $0x3d8] sm:$0xff]
      %v9357 = vld [vmem:[#allocation6 + $0x3e0] sm:$0xff]
      %v9358 = vld [vmem:[#allocation6 + $0x3e8] sm:$0xff]
      %v9359 = vld [vmem:[#allocation6 + $0x3f0] sm:$0xff]
      %v9360 = vld [vmem:[#allocation6 + $0x3f8] sm:$0xff]
      %v9361 = vld [vmem:[#allocation6 + $0x400] sm:$0xff]
      %v9362 = vld [vmem:[#allocation6 + $0x408] sm:$0xff]
      %v9363 = vld [vmem:[#allocation6 + $0x410] sm:$0xff]
      %v9364 = vld [vmem:[#allocation6 + $0x418] sm:$0xff]
      %v9365 = vld [vmem:[#allocation6 + $0x420] sm:$0xff]
      %v9366 = vld [vmem:[#allocation6 + $0x428] sm:$0xff]
      %v9367 = vld [vmem:[#allocation6 + $0x430] sm:$0xff]
      %v9368 = vld [vmem:[#allocation6 + $0x438] sm:$0xff]
      %v9369 = vld [vmem:[#allocation6 + $0x440] sm:$0xff]
      %v9370 = vld [vmem:[#allocation6 + $0x448] sm:$0xff]
      %v9371 = vld [vmem:[#allocation6 + $0x450] sm:$0xff]
      %v9372 = vld [vmem:[#allocation6 + $0x458] sm:$0xff]
      %v9373 = vld [vmem:[#allocation6 + $0x460] sm:$0xff]
      %v9374 = vld [vmem:[#allocation6 + $0x468] sm:$0xff]
      %v9375 = vld [vmem:[#allocation6 + $0x470] sm:$0xff]
      %v9376 = vld [vmem:[#allocation6 + $0x478] sm:$0xff]
      %v9377 = vld [vmem:[#allocation6 + $0x480] sm:$0xff]
      %v9378 = vld [vmem:[#allocation6 + $0x488] sm:$0xff]
      %v9379 = vld [vmem:[#allocation6 + $0x490] sm:$0xff]
      %v9380 = vld [vmem:[#allocation6 + $0x498] sm:$0xff]
      %v9381 = vld [vmem:[#allocation6 + $0x4a0] sm:$0xff]
      %v9382 = vld [vmem:[#allocation6 + $0x4a8] sm:$0xff]
      %v9383 = vld [vmem:[#allocation6 + $0x4b0] sm:$0xff]
      %v9384 = vld [vmem:[#allocation6 + $0x4b8] sm:$0xff]
      %v9385 = vld [vmem:[#allocation6 + $0x4c0] sm:$0xff]
      %v9386 = vld [vmem:[#allocation6 + $0x4c8] sm:$0xff]
      %v9387 = vld [vmem:[#allocation6 + $0x4d0] sm:$0xff]
      %v9388 = vld [vmem:[#allocation6 + $0x4d8] sm:$0xff]
      %v9389 = vld [vmem:[#allocation6 + $0x4e0] sm:$0xff]
      %v9390 = vld [vmem:[#allocation6 + $0x4e8] sm:$0xff]
      %v9391 = vld [vmem:[#allocation6 + $0x4f0] sm:$0xff]
      %v9392 = vld [vmem:[#allocation6 + $0x4f8] sm:$0xff]
      %v9393 = vld [vmem:[#allocation6 + $0x500] sm:$0xff]
      %v9394 = vld [vmem:[#allocation6 + $0x508] sm:$0xff]
      %v9395 = vld [vmem:[#allocation6 + $0x510] sm:$0xff]
      %v9396 = vld [vmem:[#allocation6 + $0x518] sm:$0xff]
      %v9397 = vld [vmem:[#allocation6 + $0x520] sm:$0xff]
      %v9398 = vld [vmem:[#allocation6 + $0x528] sm:$0xff]
      %v9399 = vld [vmem:[#allocation6 + $0x530] sm:$0xff]
      %v9400 = vld [vmem:[#allocation6 + $0x538] sm:$0xff]
      %v9401 = vld [vmem:[#allocation6 + $0x540] sm:$0xff]
      %v9402 = vld [vmem:[#allocation6 + $0x548] sm:$0xff]
      %v9403 = vld [vmem:[#allocation6 + $0x550] sm:$0xff]
      %v9404 = vld [vmem:[#allocation6 + $0x558] sm:$0xff]
      %v9405 = vld [vmem:[#allocation6 + $0x560] sm:$0xff]
      %v9406 = vld [vmem:[#allocation6 + $0x568] sm:$0xff]
      %v9407 = vld [vmem:[#allocation6 + $0x570] sm:$0xff]
      %v9408 = vld [vmem:[#allocation6 + $0x578] sm:$0xff]
      %v9409 = vld [vmem:[#allocation6 + $0x580] sm:$0xff]
      %v9410 = vld [vmem:[#allocation6 + $0x588] sm:$0xff]
      %v9411 = vld [vmem:[#allocation6 + $0x590] sm:$0xff]
      %v9412 = vld [vmem:[#allocation6 + $0x598] sm:$0xff]
      %v9413 = vld [vmem:[#allocation6 + $0x5a0] sm:$0xff]
      %v9414 = vld [vmem:[#allocation6 + $0x5a8] sm:$0xff]
      %v9415 = vld [vmem:[#allocation6 + $0x5b0] sm:$0xff]
      %v9416 = vld [vmem:[#allocation6 + $0x5b8] sm:$0xff]
      %v9417 = vld [vmem:[#allocation6 + $0x5c0] sm:$0xff]
      %v9418 = vld [vmem:[#allocation6 + $0x5c8] sm:$0xff]
      %v9419 = vld [vmem:[#allocation6 + $0x5d0] sm:$0xff]
      %v9420 = vld [vmem:[#allocation6 + $0x5d8] sm:$0xff]
      %v9421 = vld [vmem:[#allocation6 + $0x5e0] sm:$0xff]
      %v9422 = vld [vmem:[#allocation6 + $0x5e8] sm:$0xff]
      %v9423 = vld [vmem:[#allocation6 + $0x5f0] sm:$0xff]
      %v9424 = vld [vmem:[#allocation6 + $0x5f8] sm:$0xff]
      %v9425 = vld [vmem:[#allocation6 + $0x600] sm:$0xff]
      %v9426 = vld [vmem:[#allocation6 + $0x608] sm:$0xff]
      %v9427 = vld [vmem:[#allocation6 + $0x610] sm:$0xff]
      %v9428 = vld [vmem:[#allocation6 + $0x618] sm:$0xff]
      %v9429 = vld [vmem:[#allocation6 + $0x620] sm:$0xff]
      %v9430 = vld [vmem:[#allocation6 + $0x628] sm:$0xff]
      %v9431 = vld [vmem:[#allocation6 + $0x630] sm:$0xff]
      %v9432 = vld [vmem:[#allocation6 + $0x638] sm:$0xff]
      %v9433 = vld [vmem:[#allocation6 + $0x640] sm:$0xff]
      %v9434 = vld [vmem:[#allocation6 + $0x648] sm:$0xff]
      %v9435 = vld [vmem:[#allocation6 + $0x650] sm:$0xff]
      %v9436 = vld [vmem:[#allocation6 + $0x658] sm:$0xff]
      %v9437 = vld [vmem:[#allocation6 + $0x660] sm:$0xff]
      %v9438 = vld [vmem:[#allocation6 + $0x668] sm:$0xff]
      %v9439 = vld [vmem:[#allocation6 + $0x670] sm:$0xff]
      %v9440 = vld [vmem:[#allocation6 + $0x678] sm:$0xff]
      %v9441 = vld [vmem:[#allocation6 + $0x680] sm:$0xff]
      %v9442 = vld [vmem:[#allocation6 + $0x688] sm:$0xff]
      %v9443 = vld [vmem:[#allocation6 + $0x690] sm:$0xff]
      %v9444 = vld [vmem:[#allocation6 + $0x698] sm:$0xff]
      %v9445 = vld [vmem:[#allocation6 + $0x6a0] sm:$0xff]
      %v9446 = vld [vmem:[#allocation6 + $0x6a8] sm:$0xff]
      %v9447 = vld [vmem:[#allocation6 + $0x6b0] sm:$0xff]
      %v9448 = vld [vmem:[#allocation6 + $0x6b8] sm:$0xff]
      %v9449 = vld [vmem:[#allocation6 + $0x6c0] sm:$0xff]
      %v9450 = vld [vmem:[#allocation6 + $0x6c8] sm:$0xff]
      %v9451 = vld [vmem:[#allocation6 + $0x6d0] sm:$0xff]
      %v9452 = vld [vmem:[#allocation6 + $0x6d8] sm:$0xff]
      %v9453 = vld [vmem:[#allocation6 + $0x6e0] sm:$0xff]
      %v9454 = vld [vmem:[#allocation6 + $0x6e8] sm:$0xff]
      %v9455 = vld [vmem:[#allocation6 + $0x6f0] sm:$0xff]
      %v9456 = vld [vmem:[#allocation6 + $0x6f8] sm:$0xff]
      %v9457 = vld [vmem:[#allocation6 + $0x700] sm:$0xff]
      %v9458 = vld [vmem:[#allocation6 + $0x708] sm:$0xff]
      %v9459 = vld [vmem:[#allocation6 + $0x710] sm:$0xff]
      %v9460 = vld [vmem:[#allocation6 + $0x718] sm:$0xff]
      %v9461 = vld [vmem:[#allocation6 + $0x720] sm:$0xff]
      %v9462 = vld [vmem:[#allocation6 + $0x728] sm:$0xff]
      %v9463 = vld [vmem:[#allocation6 + $0x730] sm:$0xff]
      %v9464 = vld [vmem:[#allocation6 + $0x738] sm:$0xff]
      %v9465 = vld [vmem:[#allocation6 + $0x740] sm:$0xff]
      %v9466 = vld [vmem:[#allocation6 + $0x748] sm:$0xff]
      %v9467 = vld [vmem:[#allocation6 + $0x750] sm:$0xff]
      %v9468 = vld [vmem:[#allocation6 + $0x758] sm:$0xff]
      %v9469 = vld [vmem:[#allocation6 + $0x760] sm:$0xff]
      %v9470 = vld [vmem:[#allocation6 + $0x768] sm:$0xff]
      %v9471 = vld [vmem:[#allocation6 + $0x770] sm:$0xff]
      %v9472 = vld [vmem:[#allocation6 + $0x778] sm:$0xff]
      %v9473 = vld [vmem:[#allocation6 + $0x780] sm:$0xff]
      %v9474 = vld [vmem:[#allocation6 + $0x788] sm:$0xff]
      %v9475 = vld [vmem:[#allocation6 + $0x790] sm:$0xff]
      %v9476 = vld [vmem:[#allocation6 + $0x798] sm:$0xff]
      %v9477 = vld [vmem:[#allocation6 + $0x7a0] sm:$0xff]
      %v9478 = vld [vmem:[#allocation6 + $0x7a8] sm:$0xff]
      %v9479 = vld [vmem:[#allocation6 + $0x7b0] sm:$0xff]
      %v9480 = vld [vmem:[#allocation6 + $0x7b8] sm:$0xff]
      %v9481 = vld [vmem:[#allocation6 + $0x7c0] sm:$0xff]
      %v9482 = vld [vmem:[#allocation6 + $0x7c8] sm:$0xff]
      %v9483 = vld [vmem:[#allocation6 + $0x7d0] sm:$0xff]
      %v9484 = vld [vmem:[#allocation6 + $0x7d8] sm:$0xff]
      %v9485 = vld [vmem:[#allocation6 + $0x7e0] sm:$0xff]
      %v9486 = vld [vmem:[#allocation6 + $0x7e8] sm:$0xff]
      %v9487 = vld [vmem:[#allocation6 + $0x7f0] sm:$0xff]
      %v9488 = vld [vmem:[#allocation6 + $0x7f8] sm:$0xff]
      %v9489 = vld [vmem:[%s8] sm:$0xf]
      %v9491 = vlaneseq
      %v9492 = vshrl.u32 %v9491, 7
      %v9493 = vsub.s32 0, %v9492
      %v9494 = vrot.slane %v9489, %v9493
      %v9495 = vlaneseq
      %v9496 = vshrl.u32 %v9495, 7
      %v9497 = vsub.s32 1, %v9496
      %v9498 = vrot.slane %v9489, %v9497
      %v9499 = vlaneseq
      %v9500 = vshrl.u32 %v9499, 7
      %v9501 = vsub.s32 2, %v9500
      %v9502 = vrot.slane %v9489, %v9501
      %v9503 = vlaneseq
      %v9504 = vshrl.u32 %v9503, 7
      %v9505 = vsub.s32 3, %v9504
      %v9506 = vrot.slane %v9489, %v9505
      %v9767 = vunpack.c.l.b16 %v9233
      %v9768 = vunpack.c.h.b16 %v9233
      %v9769 = vunpack.c.l.b16 %v9234
      %v9770 = vunpack.c.h.b16 %v9234
      %v9771 = vunpack.c.l.b16 %v9235
      %v9772 = vunpack.c.h.b16 %v9235
      %v9773 = vunpack.c.l.b16 %v9236
      %v9774 = vunpack.c.h.b16 %v9236
      %v9775 = vunpack.c.l.b16 %v9237
      %v9776 = vunpack.c.h.b16 %v9237
      %v9777 = vunpack.c.l.b16 %v9238
      %v9778 = vunpack.c.h.b16 %v9238
      %v9779 = vunpack.c.l.b16 %v9239
      %v9780 = vunpack.c.h.b16 %v9239
      %v9781 = vunpack.c.l.b16 %v9240
      %v9782 = vunpack.c.h.b16 %v9240
      %v9783 = vunpack.c.l.b16 %v9241
      %v9784 = vunpack.c.h.b16 %v9241
      %v9785 = vunpack.c.l.b16 %v9242
      %v9786 = vunpack.c.h.b16 %v9242
      %v9787 = vunpack.c.l.b16 %v9243
      %v9788 = vunpack.c.h.b16 %v9243
      %v9789 = vunpack.c.l.b16 %v9244
      %v9790 = vunpack.c.h.b16 %v9244
      %v9791 = vunpack.c.l.b16 %v9245
      %v9792 = vunpack.c.h.b16 %v9245
      %v9793 = vunpack.c.l.b16 %v9246
      %v9794 = vunpack.c.h.b16 %v9246
      %v9795 = vunpack.c.l.b16 %v9247
      %v9796 = vunpack.c.h.b16 %v9247
      %v9797 = vunpack.c.l.b16 %v9248
      %v9798 = vunpack.c.h.b16 %v9248
      %v9799 = vunpack.c.l.b16 %v9249
      %v9800 = vunpack.c.h.b16 %v9249
      %v9801 = vunpack.c.l.b16 %v9250
      %v9802 = vunpack.c.h.b16 %v9250
      %v9803 = vunpack.c.l.b16 %v9251
      %v9804 = vunpack.c.h.b16 %v9251
      %v9805 = vunpack.c.l.b16 %v9252
      %v9806 = vunpack.c.h.b16 %v9252
      %v9807 = vunpack.c.l.b16 %v9253
      %v9808 = vunpack.c.h.b16 %v9253
      %v9809 = vunpack.c.l.b16 %v9254
      %v9810 = vunpack.c.h.b16 %v9254
      %v9811 = vunpack.c.l.b16 %v9255
      %v9812 = vunpack.c.h.b16 %v9255
      %v9813 = vunpack.c.l.b16 %v9256
      %v9814 = vunpack.c.h.b16 %v9256
      %v9815 = vunpack.c.l.b16 %v9257
      %v9816 = vunpack.c.h.b16 %v9257
      %v9817 = vunpack.c.l.b16 %v9258
      %v9818 = vunpack.c.h.b16 %v9258
      %v9819 = vunpack.c.l.b16 %v9259
      %v9820 = vunpack.c.h.b16 %v9259
      %v9821 = vunpack.c.l.b16 %v9260
      %v9822 = vunpack.c.h.b16 %v9260
      %v9823 = vunpack.c.l.b16 %v9261
      %v9824 = vunpack.c.h.b16 %v9261
      %v9825 = vunpack.c.l.b16 %v9262
      %v9826 = vunpack.c.h.b16 %v9262
      %v9827 = vunpack.c.l.b16 %v9263
      %v9828 = vunpack.c.h.b16 %v9263
      %v9829 = vunpack.c.l.b16 %v9264
      %v9830 = vunpack.c.h.b16 %v9264
      %v9831 = vunpack.c.l.b16 %v9265
      %v9832 = vunpack.c.h.b16 %v9265
      %v9833 = vunpack.c.l.b16 %v9266
      %v9834 = vunpack.c.h.b16 %v9266
      %v9835 = vunpack.c.l.b16 %v9267
      %v9836 = vunpack.c.h.b16 %v9267
      %v9837 = vunpack.c.l.b16 %v9268
      %v9838 = vunpack.c.h.b16 %v9268
      %v9839 = vunpack.c.l.b16 %v9269
      %v9840 = vunpack.c.h.b16 %v9269
      %v9841 = vunpack.c.l.b16 %v9270
      %v9842 = vunpack.c.h.b16 %v9270
      %v9843 = vunpack.c.l.b16 %v9271
      %v9844 = vunpack.c.h.b16 %v9271
      %v9845 = vunpack.c.l.b16 %v9272
      %v9846 = vunpack.c.h.b16 %v9272
      %v9847 = vunpack.c.l.b16 %v9273
      %v9848 = vunpack.c.h.b16 %v9273
      %v9849 = vunpack.c.l.b16 %v9274
      %v9850 = vunpack.c.h.b16 %v9274
      %v9851 = vunpack.c.l.b16 %v9275
      %v9852 = vunpack.c.h.b16 %v9275
      %v9853 = vunpack.c.l.b16 %v9276
      %v9854 = vunpack.c.h.b16 %v9276
      %v9855 = vunpack.c.l.b16 %v9277
      %v9856 = vunpack.c.h.b16 %v9277
      %v9857 = vunpack.c.l.b16 %v9278
      %v9858 = vunpack.c.h.b16 %v9278
      %v9859 = vunpack.c.l.b16 %v9279
      %v9860 = vunpack.c.h.b16 %v9279
      %v9861 = vunpack.c.l.b16 %v9280
      %v9862 = vunpack.c.h.b16 %v9280
      %v9863 = vunpack.c.l.b16 %v9281
      %v9864 = vunpack.c.h.b16 %v9281
      %v9865 = vunpack.c.l.b16 %v9282
      %v9866 = vunpack.c.h.b16 %v9282
      %v9867 = vunpack.c.l.b16 %v9283
      %v9868 = vunpack.c.h.b16 %v9283
      %v9869 = vunpack.c.l.b16 %v9284
      %v9870 = vunpack.c.h.b16 %v9284
      %v9871 = vunpack.c.l.b16 %v9285
      %v9872 = vunpack.c.h.b16 %v9285
      %v9873 = vunpack.c.l.b16 %v9286
      %v9874 = vunpack.c.h.b16 %v9286
      %v9875 = vunpack.c.l.b16 %v9287
      %v9876 = vunpack.c.h.b16 %v9287
      %v9877 = vunpack.c.l.b16 %v9288
      %v9878 = vunpack.c.h.b16 %v9288
      %v9879 = vunpack.c.l.b16 %v9289
      %v9880 = vunpack.c.h.b16 %v9289
      %v9881 = vunpack.c.l.b16 %v9290
      %v9882 = vunpack.c.h.b16 %v9290
      %v9883 = vunpack.c.l.b16 %v9291
      %v9884 = vunpack.c.h.b16 %v9291
      %v9885 = vunpack.c.l.b16 %v9292
      %v9886 = vunpack.c.h.b16 %v9292
      %v9887 = vunpack.c.l.b16 %v9293
      %v9888 = vunpack.c.h.b16 %v9293
      %v9889 = vunpack.c.l.b16 %v9294
      %v9890 = vunpack.c.h.b16 %v9294
      %v9891 = vunpack.c.l.b16 %v9295
      %v9892 = vunpack.c.h.b16 %v9295
      %v9893 = vunpack.c.l.b16 %v9296
      %v9894 = vunpack.c.h.b16 %v9296
      %v9895 = vunpack.c.l.b16 %v9297
      %v9896 = vunpack.c.h.b16 %v9297
      %v9897 = vunpack.c.l.b16 %v9298
      %v9898 = vunpack.c.h.b16 %v9298
      %v9899 = vunpack.c.l.b16 %v9299
      %v9900 = vunpack.c.h.b16 %v9299
      %v9901 = vunpack.c.l.b16 %v9300
      %v9902 = vunpack.c.h.b16 %v9300
      %v9903 = vunpack.c.l.b16 %v9301
      %v9904 = vunpack.c.h.b16 %v9301
      %v9905 = vunpack.c.l.b16 %v9302
      %v9906 = vunpack.c.h.b16 %v9302
      %v9907 = vunpack.c.l.b16 %v9303
      %v9908 = vunpack.c.h.b16 %v9303
      %v9909 = vunpack.c.l.b16 %v9304
      %v9910 = vunpack.c.h.b16 %v9304
      %v9911 = vunpack.c.l.b16 %v9305
      %v9912 = vunpack.c.h.b16 %v9305
      %v9913 = vunpack.c.l.b16 %v9306
      %v9914 = vunpack.c.h.b16 %v9306
      %v9915 = vunpack.c.l.b16 %v9307
      %v9916 = vunpack.c.h.b16 %v9307
      %v9917 = vunpack.c.l.b16 %v9308
      %v9918 = vunpack.c.h.b16 %v9308
      %v9919 = vunpack.c.l.b16 %v9309
      %v9920 = vunpack.c.h.b16 %v9309
      %v9921 = vunpack.c.l.b16 %v9310
      %v9922 = vunpack.c.h.b16 %v9310
      %v9923 = vunpack.c.l.b16 %v9311
      %v9924 = vunpack.c.h.b16 %v9311
      %v9925 = vunpack.c.l.b16 %v9312
      %v9926 = vunpack.c.h.b16 %v9312
      %v9927 = vunpack.c.l.b16 %v9313
      %v9928 = vunpack.c.h.b16 %v9313
      %v9929 = vunpack.c.l.b16 %v9314
      %v9930 = vunpack.c.h.b16 %v9314
      %v9931 = vunpack.c.l.b16 %v9315
      %v9932 = vunpack.c.h.b16 %v9315
      %v9933 = vunpack.c.l.b16 %v9316
      %v9934 = vunpack.c.h.b16 %v9316
      %v9935 = vunpack.c.l.b16 %v9317
      %v9936 = vunpack.c.h.b16 %v9317
      %v9937 = vunpack.c.l.b16 %v9318
      %v9938 = vunpack.c.h.b16 %v9318
      %v9939 = vunpack.c.l.b16 %v9319
      %v9940 = vunpack.c.h.b16 %v9319
      %v9941 = vunpack.c.l.b16 %v9320
      %v9942 = vunpack.c.h.b16 %v9320
      %v9943 = vunpack.c.l.b16 %v9321
      %v9944 = vunpack.c.h.b16 %v9321
      %v9945 = vunpack.c.l.b16 %v9322
      %v9946 = vunpack.c.h.b16 %v9322
      %v9947 = vunpack.c.l.b16 %v9323
      %v9948 = vunpack.c.h.b16 %v9323
      %v9949 = vunpack.c.l.b16 %v9324
      %v9950 = vunpack.c.h.b16 %v9324
      %v9951 = vunpack.c.l.b16 %v9325
      %v9952 = vunpack.c.h.b16 %v9325
      %v9953 = vunpack.c.l.b16 %v9326
      %v9954 = vunpack.c.h.b16 %v9326
      %v9955 = vunpack.c.l.b16 %v9327
      %v9956 = vunpack.c.h.b16 %v9327
      %v9957 = vunpack.c.l.b16 %v9328
      %v9958 = vunpack.c.h.b16 %v9328
      %v9959 = vunpack.c.l.b16 %v9329
      %v9960 = vunpack.c.h.b16 %v9329
      %v9961 = vunpack.c.l.b16 %v9330
      %v9962 = vunpack.c.h.b16 %v9330
      %v9963 = vunpack.c.l.b16 %v9331
      %v9964 = vunpack.c.h.b16 %v9331
      %v9965 = vunpack.c.l.b16 %v9332
      %v9966 = vunpack.c.h.b16 %v9332
      %v9967 = vunpack.c.l.b16 %v9333
      %v9968 = vunpack.c.h.b16 %v9333
      %v9969 = vunpack.c.l.b16 %v9334
      %v9970 = vunpack.c.h.b16 %v9334
      %v9971 = vunpack.c.l.b16 %v9335
      %v9972 = vunpack.c.h.b16 %v9335
      %v9973 = vunpack.c.l.b16 %v9336
      %v9974 = vunpack.c.h.b16 %v9336
      %v9975 = vunpack.c.l.b16 %v9337
      %v9976 = vunpack.c.h.b16 %v9337
      %v9977 = vunpack.c.l.b16 %v9338
      %v9978 = vunpack.c.h.b16 %v9338
      %v9979 = vunpack.c.l.b16 %v9339
      %v9980 = vunpack.c.h.b16 %v9339
      %v9981 = vunpack.c.l.b16 %v9340
      %v9982 = vunpack.c.h.b16 %v9340
      %v9983 = vunpack.c.l.b16 %v9341
      %v9984 = vunpack.c.h.b16 %v9341
      %v9985 = vunpack.c.l.b16 %v9342
      %v9986 = vunpack.c.h.b16 %v9342
      %v9987 = vunpack.c.l.b16 %v9343
      %v9988 = vunpack.c.h.b16 %v9343
      %v9989 = vunpack.c.l.b16 %v9344
      %v9990 = vunpack.c.h.b16 %v9344
      %v9991 = vunpack.c.l.b16 %v9345
      %v9992 = vunpack.c.h.b16 %v9345
      %v9993 = vunpack.c.l.b16 %v9346
      %v9994 = vunpack.c.h.b16 %v9346
      %v9995 = vunpack.c.l.b16 %v9347
      %v9996 = vunpack.c.h.b16 %v9347
      %v9997 = vunpack.c.l.b16 %v9348
      %v9998 = vunpack.c.h.b16 %v9348
      %v9999 = vunpack.c.l.b16 %v9349
      %v10000 = vunpack.c.h.b16 %v9349
      %v10001 = vunpack.c.l.b16 %v9350
      %v10002 = vunpack.c.h.b16 %v9350
      %v10003 = vunpack.c.l.b16 %v9351
      %v10004 = vunpack.c.h.b16 %v9351
      %v10005 = vunpack.c.l.b16 %v9352
      %v10006 = vunpack.c.h.b16 %v9352
      %v10007 = vunpack.c.l.b16 %v9353
      %v10008 = vunpack.c.h.b16 %v9353
      %v10009 = vunpack.c.l.b16 %v9354
      %v10010 = vunpack.c.h.b16 %v9354
      %v10011 = vunpack.c.l.b16 %v9355
      %v10012 = vunpack.c.h.b16 %v9355
      %v10013 = vunpack.c.l.b16 %v9356
      %v10014 = vunpack.c.h.b16 %v9356
      %v10015 = vunpack.c.l.b16 %v9357
      %v10016 = vunpack.c.h.b16 %v9357
      %v10017 = vunpack.c.l.b16 %v9358
      %v10018 = vunpack.c.h.b16 %v9358
      %v10019 = vunpack.c.l.b16 %v9359
      %v10020 = vunpack.c.h.b16 %v9359
      %v10021 = vunpack.c.l.b16 %v9360
      %v10022 = vunpack.c.h.b16 %v9360
      %v10023 = vunpack.c.l.b16 %v9361
      %v10024 = vunpack.c.h.b16 %v9361
      %v10025 = vunpack.c.l.b16 %v9362
      %v10026 = vunpack.c.h.b16 %v9362
      %v10027 = vunpack.c.l.b16 %v9363
      %v10028 = vunpack.c.h.b16 %v9363
      %v10029 = vunpack.c.l.b16 %v9364
      %v10030 = vunpack.c.h.b16 %v9364
      %v10031 = vunpack.c.l.b16 %v9365
      %v10032 = vunpack.c.h.b16 %v9365
      %v10033 = vunpack.c.l.b16 %v9366
      %v10034 = vunpack.c.h.b16 %v9366
      %v10035 = vunpack.c.l.b16 %v9367
      %v10036 = vunpack.c.h.b16 %v9367
      %v10037 = vunpack.c.l.b16 %v9368
      %v10038 = vunpack.c.h.b16 %v9368
      %v10039 = vunpack.c.l.b16 %v9369
      %v10040 = vunpack.c.h.b16 %v9369
      %v10041 = vunpack.c.l.b16 %v9370
      %v10042 = vunpack.c.h.b16 %v9370
      %v10043 = vunpack.c.l.b16 %v9371
      %v10044 = vunpack.c.h.b16 %v9371
      %v10045 = vunpack.c.l.b16 %v9372
      %v10046 = vunpack.c.h.b16 %v9372
      %v10047 = vunpack.c.l.b16 %v9373
      %v10048 = vunpack.c.h.b16 %v9373
      %v10049 = vunpack.c.l.b16 %v9374
      %v10050 = vunpack.c.h.b16 %v9374
      %v10051 = vunpack.c.l.b16 %v9375
      %v10052 = vunpack.c.h.b16 %v9375
      %v10053 = vunpack.c.l.b16 %v9376
      %v10054 = vunpack.c.h.b16 %v9376
      %v10055 = vunpack.c.l.b16 %v9377
      %v10056 = vunpack.c.h.b16 %v9377
      %v10057 = vunpack.c.l.b16 %v9378
      %v10058 = vunpack.c.h.b16 %v9378
      %v10059 = vunpack.c.l.b16 %v9379
      %v10060 = vunpack.c.h.b16 %v9379
      %v10061 = vunpack.c.l.b16 %v9380
      %v10062 = vunpack.c.h.b16 %v9380
      %v10063 = vunpack.c.l.b16 %v9381
      %v10064 = vunpack.c.h.b16 %v9381
      %v10065 = vunpack.c.l.b16 %v9382
      %v10066 = vunpack.c.h.b16 %v9382
      %v10067 = vunpack.c.l.b16 %v9383
      %v10068 = vunpack.c.h.b16 %v9383
      %v10069 = vunpack.c.l.b16 %v9384
      %v10070 = vunpack.c.h.b16 %v9384
      %v10071 = vunpack.c.l.b16 %v9385
      %v10072 = vunpack.c.h.b16 %v9385
      %v10073 = vunpack.c.l.b16 %v9386
      %v10074 = vunpack.c.h.b16 %v9386
      %v10075 = vunpack.c.l.b16 %v9387
      %v10076 = vunpack.c.h.b16 %v9387
      %v10077 = vunpack.c.l.b16 %v9388
      %v10078 = vunpack.c.h.b16 %v9388
      %v10079 = vunpack.c.l.b16 %v9389
      %v10080 = vunpack.c.h.b16 %v9389
      %v10081 = vunpack.c.l.b16 %v9390
      %v10082 = vunpack.c.h.b16 %v9390
      %v10083 = vunpack.c.l.b16 %v9391
      %v10084 = vunpack.c.h.b16 %v9391
      %v10085 = vunpack.c.l.b16 %v9392
      %v10086 = vunpack.c.h.b16 %v9392
      %v10087 = vunpack.c.l.b16 %v9393
      %v10088 = vunpack.c.h.b16 %v9393
      %v10089 = vunpack.c.l.b16 %v9394
      %v10090 = vunpack.c.h.b16 %v9394
      %v10091 = vunpack.c.l.b16 %v9395
      %v10092 = vunpack.c.h.b16 %v9395
      %v10093 = vunpack.c.l.b16 %v9396
      %v10094 = vunpack.c.h.b16 %v9396
      %v10095 = vunpack.c.l.b16 %v9397
      %v10096 = vunpack.c.h.b16 %v9397
      %v10097 = vunpack.c.l.b16 %v9398
      %v10098 = vunpack.c.h.b16 %v9398
      %v10099 = vunpack.c.l.b16 %v9399
      %v10100 = vunpack.c.h.b16 %v9399
      %v10101 = vunpack.c.l.b16 %v9400
      %v10102 = vunpack.c.h.b16 %v9400
      %v10103 = vunpack.c.l.b16 %v9401
      %v10104 = vunpack.c.h.b16 %v9401
      %v10105 = vunpack.c.l.b16 %v9402
      %v10106 = vunpack.c.h.b16 %v9402
      %v10107 = vunpack.c.l.b16 %v9403
      %v10108 = vunpack.c.h.b16 %v9403
      %v10109 = vunpack.c.l.b16 %v9404
      %v10110 = vunpack.c.h.b16 %v9404
      %v10111 = vunpack.c.l.b16 %v9405
      %v10112 = vunpack.c.h.b16 %v9405
      %v10113 = vunpack.c.l.b16 %v9406
      %v10114 = vunpack.c.h.b16 %v9406
      %v10115 = vunpack.c.l.b16 %v9407
      %v10116 = vunpack.c.h.b16 %v9407
      %v10117 = vunpack.c.l.b16 %v9408
      %v10118 = vunpack.c.h.b16 %v9408
      %v10119 = vunpack.c.l.b16 %v9409
      %v10120 = vunpack.c.h.b16 %v9409
      %v10121 = vunpack.c.l.b16 %v9410
      %v10122 = vunpack.c.h.b16 %v9410
      %v10123 = vunpack.c.l.b16 %v9411
      %v10124 = vunpack.c.h.b16 %v9411
      %v10125 = vunpack.c.l.b16 %v9412
      %v10126 = vunpack.c.h.b16 %v9412
      %v10127 = vunpack.c.l.b16 %v9413
      %v10128 = vunpack.c.h.b16 %v9413
      %v10129 = vunpack.c.l.b16 %v9414
      %v10130 = vunpack.c.h.b16 %v9414
      %v10131 = vunpack.c.l.b16 %v9415
      %v10132 = vunpack.c.h.b16 %v9415
      %v10133 = vunpack.c.l.b16 %v9416
      %v10134 = vunpack.c.h.b16 %v9416
      %v10135 = vunpack.c.l.b16 %v9417
      %v10136 = vunpack.c.h.b16 %v9417
      %v10137 = vunpack.c.l.b16 %v9418
      %v10138 = vunpack.c.h.b16 %v9418
      %v10139 = vunpack.c.l.b16 %v9419
      %v10140 = vunpack.c.h.b16 %v9419
      %v10141 = vunpack.c.l.b16 %v9420
      %v10142 = vunpack.c.h.b16 %v9420
      %v10143 = vunpack.c.l.b16 %v9421
      %v10144 = vunpack.c.h.b16 %v9421
      %v10145 = vunpack.c.l.b16 %v9422
      %v10146 = vunpack.c.h.b16 %v9422
      %v10147 = vunpack.c.l.b16 %v9423
      %v10148 = vunpack.c.h.b16 %v9423
      %v10149 = vunpack.c.l.b16 %v9424
      %v10150 = vunpack.c.h.b16 %v9424
      %v10151 = vunpack.c.l.b16 %v9425
      %v10152 = vunpack.c.h.b16 %v9425
      %v10153 = vunpack.c.l.b16 %v9426
      %v10154 = vunpack.c.h.b16 %v9426
      %v10155 = vunpack.c.l.b16 %v9427
      %v10156 = vunpack.c.h.b16 %v9427
      %v10157 = vunpack.c.l.b16 %v9428
      %v10158 = vunpack.c.h.b16 %v9428
      %v10159 = vunpack.c.l.b16 %v9429
      %v10160 = vunpack.c.h.b16 %v9429
      %v10161 = vunpack.c.l.b16 %v9430
      %v10162 = vunpack.c.h.b16 %v9430
      %v10163 = vunpack.c.l.b16 %v9431
      %v10164 = vunpack.c.h.b16 %v9431
      %v10165 = vunpack.c.l.b16 %v9432
      %v10166 = vunpack.c.h.b16 %v9432
      %v10167 = vunpack.c.l.b16 %v9433
      %v10168 = vunpack.c.h.b16 %v9433
      %v10169 = vunpack.c.l.b16 %v9434
      %v10170 = vunpack.c.h.b16 %v9434
      %v10171 = vunpack.c.l.b16 %v9435
      %v10172 = vunpack.c.h.b16 %v9435
      %v10173 = vunpack.c.l.b16 %v9436
      %v10174 = vunpack.c.h.b16 %v9436
      %v10175 = vunpack.c.l.b16 %v9437
      %v10176 = vunpack.c.h.b16 %v9437
      %v10177 = vunpack.c.l.b16 %v9438
      %v10178 = vunpack.c.h.b16 %v9438
      %v10179 = vunpack.c.l.b16 %v9439
      %v10180 = vunpack.c.h.b16 %v9439
      %v10181 = vunpack.c.l.b16 %v9440
      %v10182 = vunpack.c.h.b16 %v9440
      %v10183 = vunpack.c.l.b16 %v9441
      %v10184 = vunpack.c.h.b16 %v9441
      %v10185 = vunpack.c.l.b16 %v9442
      %v10186 = vunpack.c.h.b16 %v9442
      %v10187 = vunpack.c.l.b16 %v9443
      %v10188 = vunpack.c.h.b16 %v9443
      %v10189 = vunpack.c.l.b16 %v9444
      %v10190 = vunpack.c.h.b16 %v9444
      %v10191 = vunpack.c.l.b16 %v9445
      %v10192 = vunpack.c.h.b16 %v9445
      %v10193 = vunpack.c.l.b16 %v9446
      %v10194 = vunpack.c.h.b16 %v9446
      %v10195 = vunpack.c.l.b16 %v9447
      %v10196 = vunpack.c.h.b16 %v9447
      %v10197 = vunpack.c.l.b16 %v9448
      %v10198 = vunpack.c.h.b16 %v9448
      %v10199 = vunpack.c.l.b16 %v9449
      %v10200 = vunpack.c.h.b16 %v9449
      %v10201 = vunpack.c.l.b16 %v9450
      %v10202 = vunpack.c.h.b16 %v9450
      %v10203 = vunpack.c.l.b16 %v9451
      %v10204 = vunpack.c.h.b16 %v9451
      %v10205 = vunpack.c.l.b16 %v9452
      %v10206 = vunpack.c.h.b16 %v9452
      %v10207 = vunpack.c.l.b16 %v9453
      %v10208 = vunpack.c.h.b16 %v9453
      %v10209 = vunpack.c.l.b16 %v9454
      %v10210 = vunpack.c.h.b16 %v9454
      %v10211 = vunpack.c.l.b16 %v9455
      %v10212 = vunpack.c.h.b16 %v9455
      %v10213 = vunpack.c.l.b16 %v9456
      %v10214 = vunpack.c.h.b16 %v9456
      %v10215 = vunpack.c.l.b16 %v9457
      %v10216 = vunpack.c.h.b16 %v9457
      %v10217 = vunpack.c.l.b16 %v9458
      %v10218 = vunpack.c.h.b16 %v9458
      %v10219 = vunpack.c.l.b16 %v9459
      %v10220 = vunpack.c.h.b16 %v9459
      %v10221 = vunpack.c.l.b16 %v9460
      %v10222 = vunpack.c.h.b16 %v9460
      %v10223 = vunpack.c.l.b16 %v9461
      %v10224 = vunpack.c.h.b16 %v9461
      %v10225 = vunpack.c.l.b16 %v9462
      %v10226 = vunpack.c.h.b16 %v9462
      %v10227 = vunpack.c.l.b16 %v9463
      %v10228 = vunpack.c.h.b16 %v9463
      %v10229 = vunpack.c.l.b16 %v9464
      %v10230 = vunpack.c.h.b16 %v9464
      %v10231 = vunpack.c.l.b16 %v9465
      %v10232 = vunpack.c.h.b16 %v9465
      %v10233 = vunpack.c.l.b16 %v9466
      %v10234 = vunpack.c.h.b16 %v9466
      %v10235 = vunpack.c.l.b16 %v9467
      %v10236 = vunpack.c.h.b16 %v9467
      %v10237 = vunpack.c.l.b16 %v9468
      %v10238 = vunpack.c.h.b16 %v9468
      %v10239 = vunpack.c.l.b16 %v9469
      %v10240 = vunpack.c.h.b16 %v9469
      %v10241 = vunpack.c.l.b16 %v9470
      %v10242 = vunpack.c.h.b16 %v9470
      %v10243 = vunpack.c.l.b16 %v9471
      %v10244 = vunpack.c.h.b16 %v9471
      %v10245 = vunpack.c.l.b16 %v9472
      %v10246 = vunpack.c.h.b16 %v9472
      %v10247 = vunpack.c.l.b16 %v9473
      %v10248 = vunpack.c.h.b16 %v9473
      %v10249 = vunpack.c.l.b16 %v9474
      %v10250 = vunpack.c.h.b16 %v9474
      %v10251 = vunpack.c.l.b16 %v9475
      %v10252 = vunpack.c.h.b16 %v9475
      %v10253 = vunpack.c.l.b16 %v9476
      %v10254 = vunpack.c.h.b16 %v9476
      %v10255 = vunpack.c.l.b16 %v9477
      %v10256 = vunpack.c.h.b16 %v9477
      %v10257 = vunpack.c.l.b16 %v9478
      %v10258 = vunpack.c.h.b16 %v9478
      %v10259 = vunpack.c.l.b16 %v9479
      %v10260 = vunpack.c.h.b16 %v9479
      %v10261 = vunpack.c.l.b16 %v9480
      %v10262 = vunpack.c.h.b16 %v9480
      %v10263 = vunpack.c.l.b16 %v9481
      %v10264 = vunpack.c.h.b16 %v9481
      %v10265 = vunpack.c.l.b16 %v9482
      %v10266 = vunpack.c.h.b16 %v9482
      %v10267 = vunpack.c.l.b16 %v9483
      %v10268 = vunpack.c.h.b16 %v9483
      %v10269 = vunpack.c.l.b16 %v9484
      %v10270 = vunpack.c.h.b16 %v9484
      %v10271 = vunpack.c.l.b16 %v9485
      %v10272 = vunpack.c.h.b16 %v9485
      %v10273 = vunpack.c.l.b16 %v9486
      %v10274 = vunpack.c.h.b16 %v9486
      %v10275 = vunpack.c.l.b16 %v9487
      %v10276 = vunpack.c.h.b16 %v9487
      %v10277 = vunpack.c.l.b16 %v9488
      %v10278 = vunpack.c.h.b16 %v9488
      %v10279 = vpack.c.b16 %v9771, %v9767
      %v10280 = vpack.c.b16 %v9772, %v9768
      %v10281 = vpack.c.b16 %v9773, %v9769
      %v10282 = vpack.c.b16 %v9774, %v9770
      %v10283 = vpack.c.b16 %v9779, %v9775
      %v10284 = vpack.c.b16 %v9780, %v9776
      %v10285 = vpack.c.b16 %v9781, %v9777
      %v10286 = vpack.c.b16 %v9782, %v9778
      %v10287 = vpack.c.b16 %v9787, %v9783
      %v10288 = vpack.c.b16 %v9788, %v9784
      %v10289 = vpack.c.b16 %v9789, %v9785
      %v10290 = vpack.c.b16 %v9790, %v9786
      %v10291 = vpack.c.b16 %v9795, %v9791
      %v10292 = vpack.c.b16 %v9796, %v9792
      %v10293 = vpack.c.b16 %v9797, %v9793
      %v10294 = vpack.c.b16 %v9798, %v9794
      %v10295 = vpack.c.b16 %v9803, %v9799
      %v10296 = vpack.c.b16 %v9804, %v9800
      %v10297 = vpack.c.b16 %v9805, %v9801
      %v10298 = vpack.c.b16 %v9806, %v9802
      %v10299 = vpack.c.b16 %v9811, %v9807
      %v10300 = vpack.c.b16 %v9812, %v9808
      %v10301 = vpack.c.b16 %v9813, %v9809
      %v10302 = vpack.c.b16 %v9814, %v9810
      %v10303 = vpack.c.b16 %v9819, %v9815
      %v10304 = vpack.c.b16 %v9820, %v9816
      %v10305 = vpack.c.b16 %v9821, %v9817
      %v10306 = vpack.c.b16 %v9822, %v9818
      %v10307 = vpack.c.b16 %v9827, %v9823
      %v10308 = vpack.c.b16 %v9828, %v9824
      %v10309 = vpack.c.b16 %v9829, %v9825
      %v10310 = vpack.c.b16 %v9830, %v9826
      %v10311 = vpack.c.b16 %v9835, %v9831
      %v10312 = vpack.c.b16 %v9836, %v9832
      %v10313 = vpack.c.b16 %v9837, %v9833
      %v10314 = vpack.c.b16 %v9838, %v9834
      %v10315 = vpack.c.b16 %v9843, %v9839
      %v10316 = vpack.c.b16 %v9844, %v9840
      %v10317 = vpack.c.b16 %v9845, %v9841
      %v10318 = vpack.c.b16 %v9846, %v9842
      %v10319 = vpack.c.b16 %v9851, %v9847
      %v10320 = vpack.c.b16 %v9852, %v9848
      %v10321 = vpack.c.b16 %v9853, %v9849
      %v10322 = vpack.c.b16 %v9854, %v9850
      %v10323 = vpack.c.b16 %v9859, %v9855
      %v10324 = vpack.c.b16 %v9860, %v9856
      %v10325 = vpack.c.b16 %v9861, %v9857
      %v10326 = vpack.c.b16 %v9862, %v9858
      %v10327 = vpack.c.b16 %v9867, %v9863
      %v10328 = vpack.c.b16 %v9868, %v9864
      %v10329 = vpack.c.b16 %v9869, %v9865
      %v10330 = vpack.c.b16 %v9870, %v9866
      %v10331 = vpack.c.b16 %v9875, %v9871
      %v10332 = vpack.c.b16 %v9876, %v9872
      %v10333 = vpack.c.b16 %v9877, %v9873
      %v10334 = vpack.c.b16 %v9878, %v9874
      %v10335 = vpack.c.b16 %v9883, %v9879
      %v10336 = vpack.c.b16 %v9884, %v9880
      %v10337 = vpack.c.b16 %v9885, %v9881
      %v10338 = vpack.c.b16 %v9886, %v9882
      %v10339 = vpack.c.b16 %v9891, %v9887
      %v10340 = vpack.c.b16 %v9892, %v9888
      %v10341 = vpack.c.b16 %v9893, %v9889
      %v10342 = vpack.c.b16 %v9894, %v9890
      %v10343 = vpack.c.b16 %v9899, %v9895
      %v10344 = vpack.c.b16 %v9900, %v9896
      %v10345 = vpack.c.b16 %v9901, %v9897
      %v10346 = vpack.c.b16 %v9902, %v9898
      %v10347 = vpack.c.b16 %v9907, %v9903
      %v10348 = vpack.c.b16 %v9908, %v9904
      %v10349 = vpack.c.b16 %v9909, %v9905
      %v10350 = vpack.c.b16 %v9910, %v9906
      %v10351 = vpack.c.b16 %v9915, %v9911
      %v10352 = vpack.c.b16 %v9916, %v9912
      %v10353 = vpack.c.b16 %v9917, %v9913
      %v10354 = vpack.c.b16 %v9918, %v9914
      %v10355 = vpack.c.b16 %v9923, %v9919
      %v10356 = vpack.c.b16 %v9924, %v9920
      %v10357 = vpack.c.b16 %v9925, %v9921
      %v10358 = vpack.c.b16 %v9926, %v9922
      %v10359 = vpack.c.b16 %v9931, %v9927
      %v10360 = vpack.c.b16 %v9932, %v9928
      %v10361 = vpack.c.b16 %v9933, %v9929
      %v10362 = vpack.c.b16 %v9934, %v9930
      %v10363 = vpack.c.b16 %v9939, %v9935
      %v10364 = vpack.c.b16 %v9940, %v9936
      %v10365 = vpack.c.b16 %v9941, %v9937
      %v10366 = vpack.c.b16 %v9942, %v9938
      %v10367 = vpack.c.b16 %v9947, %v9943
      %v10368 = vpack.c.b16 %v9948, %v9944
      %v10369 = vpack.c.b16 %v9949, %v9945
      %v10370 = vpack.c.b16 %v9950, %v9946
      %v10371 = vpack.c.b16 %v9955, %v9951
      %v10372 = vpack.c.b16 %v9956, %v9952
      %v10373 = vpack.c.b16 %v9957, %v9953
      %v10374 = vpack.c.b16 %v9958, %v9954
      %v10375 = vpack.c.b16 %v9963, %v9959
      %v10376 = vpack.c.b16 %v9964, %v9960
      %v10377 = vpack.c.b16 %v9965, %v9961
      %v10378 = vpack.c.b16 %v9966, %v9962
      %v10379 = vpack.c.b16 %v9971, %v9967
      %v10380 = vpack.c.b16 %v9972, %v9968
      %v10381 = vpack.c.b16 %v9973, %v9969
      %v10382 = vpack.c.b16 %v9974, %v9970
      %v10383 = vpack.c.b16 %v9979, %v9975
      %v10384 = vpack.c.b16 %v9980, %v9976
      %v10385 = vpack.c.b16 %v9981, %v9977
      %v10386 = vpack.c.b16 %v9982, %v9978
      %v10387 = vpack.c.b16 %v9987, %v9983
      %v10388 = vpack.c.b16 %v9988, %v9984
      %v10389 = vpack.c.b16 %v9989, %v9985
      %v10390 = vpack.c.b16 %v9990, %v9986
      %v10391 = vpack.c.b16 %v9995, %v9991
      %v10392 = vpack.c.b16 %v9996, %v9992
      %v10393 = vpack.c.b16 %v9997, %v9993
      %v10394 = vpack.c.b16 %v9998, %v9994
      %v10395 = vpack.c.b16 %v10003, %v9999
      %v10396 = vpack.c.b16 %v10004, %v10000
      %v10397 = vpack.c.b16 %v10005, %v10001
      %v10398 = vpack.c.b16 %v10006, %v10002
      %v10399 = vpack.c.b16 %v10011, %v10007
      %v10400 = vpack.c.b16 %v10012, %v10008
      %v10401 = vpack.c.b16 %v10013, %v10009
      %v10402 = vpack.c.b16 %v10014, %v10010
      %v10403 = vpack.c.b16 %v10019, %v10015
      %v10404 = vpack.c.b16 %v10020, %v10016
      %v10405 = vpack.c.b16 %v10021, %v10017
      %v10406 = vpack.c.b16 %v10022, %v10018
      %v10407 = vpack.c.b16 %v10027, %v10023
      %v10408 = vpack.c.b16 %v10028, %v10024
      %v10409 = vpack.c.b16 %v10029, %v10025
      %v10410 = vpack.c.b16 %v10030, %v10026
      %v10411 = vpack.c.b16 %v10035, %v10031
      %v10412 = vpack.c.b16 %v10036, %v10032
      %v10413 = vpack.c.b16 %v10037, %v10033
      %v10414 = vpack.c.b16 %v10038, %v10034
      %v10415 = vpack.c.b16 %v10043, %v10039
      %v10416 = vpack.c.b16 %v10044, %v10040
      %v10417 = vpack.c.b16 %v10045, %v10041
      %v10418 = vpack.c.b16 %v10046, %v10042
      %v10419 = vpack.c.b16 %v10051, %v10047
      %v10420 = vpack.c.b16 %v10052, %v10048
      %v10421 = vpack.c.b16 %v10053, %v10049
      %v10422 = vpack.c.b16 %v10054, %v10050
      %v10423 = vpack.c.b16 %v10059, %v10055
      %v10424 = vpack.c.b16 %v10060, %v10056
      %v10425 = vpack.c.b16 %v10061, %v10057
      %v10426 = vpack.c.b16 %v10062, %v10058
      %v10427 = vpack.c.b16 %v10067, %v10063
      %v10428 = vpack.c.b16 %v10068, %v10064
      %v10429 = vpack.c.b16 %v10069, %v10065
      %v10430 = vpack.c.b16 %v10070, %v10066
      %v10431 = vpack.c.b16 %v10075, %v10071
      %v10432 = vpack.c.b16 %v10076, %v10072
      %v10433 = vpack.c.b16 %v10077, %v10073
      %v10434 = vpack.c.b16 %v10078, %v10074
      %v10435 = vpack.c.b16 %v10083, %v10079
      %v10436 = vpack.c.b16 %v10084, %v10080
      %v10437 = vpack.c.b16 %v10085, %v10081
      %v10438 = vpack.c.b16 %v10086, %v10082
      %v10439 = vpack.c.b16 %v10091, %v10087
      %v10440 = vpack.c.b16 %v10092, %v10088
      %v10441 = vpack.c.b16 %v10093, %v10089
      %v10442 = vpack.c.b16 %v10094, %v10090
      %v10443 = vpack.c.b16 %v10099, %v10095
      %v10444 = vpack.c.b16 %v10100, %v10096
      %v10445 = vpack.c.b16 %v10101, %v10097
      %v10446 = vpack.c.b16 %v10102, %v10098
      %v10447 = vpack.c.b16 %v10107, %v10103
      %v10448 = vpack.c.b16 %v10108, %v10104
      %v10449 = vpack.c.b16 %v10109, %v10105
      %v10450 = vpack.c.b16 %v10110, %v10106
      %v10451 = vpack.c.b16 %v10115, %v10111
      %v10452 = vpack.c.b16 %v10116, %v10112
      %v10453 = vpack.c.b16 %v10117, %v10113
      %v10454 = vpack.c.b16 %v10118, %v10114
      %v10455 = vpack.c.b16 %v10123, %v10119
      %v10456 = vpack.c.b16 %v10124, %v10120
      %v10457 = vpack.c.b16 %v10125, %v10121
      %v10458 = vpack.c.b16 %v10126, %v10122
      %v10459 = vpack.c.b16 %v10131, %v10127
      %v10460 = vpack.c.b16 %v10132, %v10128
      %v10461 = vpack.c.b16 %v10133, %v10129
      %v10462 = vpack.c.b16 %v10134, %v10130
      %v10463 = vpack.c.b16 %v10139, %v10135
      %v10464 = vpack.c.b16 %v10140, %v10136
      %v10465 = vpack.c.b16 %v10141, %v10137
      %v10466 = vpack.c.b16 %v10142, %v10138
      %v10467 = vpack.c.b16 %v10147, %v10143
      %v10468 = vpack.c.b16 %v10148, %v10144
      %v10469 = vpack.c.b16 %v10149, %v10145
      %v10470 = vpack.c.b16 %v10150, %v10146
      %v10471 = vpack.c.b16 %v10155, %v10151
      %v10472 = vpack.c.b16 %v10156, %v10152
      %v10473 = vpack.c.b16 %v10157, %v10153
      %v10474 = vpack.c.b16 %v10158, %v10154
      %v10475 = vpack.c.b16 %v10163, %v10159
      %v10476 = vpack.c.b16 %v10164, %v10160
      %v10477 = vpack.c.b16 %v10165, %v10161
      %v10478 = vpack.c.b16 %v10166, %v10162
      %v10479 = vpack.c.b16 %v10171, %v10167
      %v10480 = vpack.c.b16 %v10172, %v10168
      %v10481 = vpack.c.b16 %v10173, %v10169
      %v10482 = vpack.c.b16 %v10174, %v10170
      %v10483 = vpack.c.b16 %v10179, %v10175
      %v10484 = vpack.c.b16 %v10180, %v10176
      %v10485 = vpack.c.b16 %v10181, %v10177
      %v10486 = vpack.c.b16 %v10182, %v10178
      %v10487 = vpack.c.b16 %v10187, %v10183
      %v10488 = vpack.c.b16 %v10188, %v10184
      %v10489 = vpack.c.b16 %v10189, %v10185
      %v10490 = vpack.c.b16 %v10190, %v10186
      %v10491 = vpack.c.b16 %v10195, %v10191
      %v10492 = vpack.c.b16 %v10196, %v10192
      %v10493 = vpack.c.b16 %v10197, %v10193
      %v10494 = vpack.c.b16 %v10198, %v10194
      %v10495 = vpack.c.b16 %v10203, %v10199
      %v10496 = vpack.c.b16 %v10204, %v10200
      %v10497 = vpack.c.b16 %v10205, %v10201
      %v10498 = vpack.c.b16 %v10206, %v10202
      %v10499 = vpack.c.b16 %v10211, %v10207
      %v10500 = vpack.c.b16 %v10212, %v10208
      %v10501 = vpack.c.b16 %v10213, %v10209
      %v10502 = vpack.c.b16 %v10214, %v10210
      %v10503 = vpack.c.b16 %v10219, %v10215
      %v10504 = vpack.c.b16 %v10220, %v10216
      %v10505 = vpack.c.b16 %v10221, %v10217
      %v10506 = vpack.c.b16 %v10222, %v10218
      %v10507 = vpack.c.b16 %v10227, %v10223
      %v10508 = vpack.c.b16 %v10228, %v10224
      %v10509 = vpack.c.b16 %v10229, %v10225
      %v10510 = vpack.c.b16 %v10230, %v10226
      %v10511 = vpack.c.b16 %v10235, %v10231
      %v10512 = vpack.c.b16 %v10236, %v10232
      %v10513 = vpack.c.b16 %v10237, %v10233
      %v10514 = vpack.c.b16 %v10238, %v10234
      %v10515 = vpack.c.b16 %v10243, %v10239
      %v10516 = vpack.c.b16 %v10244, %v10240
      %v10517 = vpack.c.b16 %v10245, %v10241
      %v10518 = vpack.c.b16 %v10246, %v10242
      %v10519 = vpack.c.b16 %v10251, %v10247
      %v10520 = vpack.c.b16 %v10252, %v10248
      %v10521 = vpack.c.b16 %v10253, %v10249
      %v10522 = vpack.c.b16 %v10254, %v10250
      %v10523 = vpack.c.b16 %v10259, %v10255
      %v10524 = vpack.c.b16 %v10260, %v10256
      %v10525 = vpack.c.b16 %v10261, %v10257
      %v10526 = vpack.c.b16 %v10262, %v10258
      %v10527 = vpack.c.b16 %v10267, %v10263
      %v10528 = vpack.c.b16 %v10268, %v10264
      %v10529 = vpack.c.b16 %v10269, %v10265
      %v10530 = vpack.c.b16 %v10270, %v10266
      %v10531 = vpack.c.b16 %v10275, %v10271
      %v10532 = vpack.c.b16 %v10276, %v10272
      %v10533 = vpack.c.b16 %v10277, %v10273
      %v10534 = vpack.c.b16 %v10278, %v10274
      %10791 = vmatprep.subr.bf16.mxu0 %v10280
      %10792 = vmatpush1.bf16.msra.mxu0 %v10279
      %10793 = vmatprep.subr.bf16.mxu0 %v10284
      %10794 = vmatpush1.bf16.msra.mxu0 %v10283
      %10795 = vmatprep.subr.bf16.mxu0 %v10288
      %10796 = vmatpush1.bf16.msra.mxu0 %v10287
      %10797 = vmatprep.subr.bf16.mxu0 %v10292
      %10798 = vmatpush1.bf16.msra.mxu0 %v10291
      %10799 = vmatprep.subr.bf16.mxu0 %v10296
      %10800 = vmatpush1.bf16.msra.mxu0 %v10295
      %10801 = vmatprep.subr.bf16.mxu0 %v10300
      %10802 = vmatpush1.bf16.msra.mxu0 %v10299
      %10803 = vmatprep.subr.bf16.mxu0 %v10304
      %10804 = vmatpush1.bf16.msra.mxu0 %v10303
      %10805 = vmatprep.subr.bf16.mxu0 %v10308
      %10806 = vmatpush1.bf16.msra.mxu0 %v10307
      %10807 = vmatprep.subr.bf16.mxu0 %v10312
      %10808 = vmatpush1.bf16.msra.mxu0 %v10311
      %10809 = vmatprep.subr.bf16.mxu0 %v10316
      %10810 = vmatpush1.bf16.msra.mxu0 %v10315
      %10811 = vmatprep.subr.bf16.mxu0 %v10320
      %10812 = vmatpush1.bf16.msra.mxu0 %v10319
      %10813 = vmatprep.subr.bf16.mxu0 %v10324
      %10814 = vmatpush1.bf16.msra.mxu0 %v10323
      %10815 = vmatprep.subr.bf16.mxu0 %v10328
      %10816 = vmatpush1.bf16.msra.mxu0 %v10327
      %10817 = vmatprep.subr.bf16.mxu0 %v10332
      %10818 = vmatpush1.bf16.msra.mxu0 %v10331
      %10819 = vmatprep.subr.bf16.mxu0 %v10336
      %10820 = vmatpush1.bf16.msra.mxu0 %v10335
      %10821 = vmatprep.subr.bf16.mxu0 %v10340
      %10822 = vmatpush1.bf16.msra.mxu0 %v10339
      %10823 = vmatprep.mubr.bf16.mxu0 %v9226
      %10824 = vmatmul.mubr.bf16.gmra.mrb[0].mxu0 %v9225
      %v10825 = vpop.f32.mrb[0].mxu0
      %v10826 = vadd.f32 %v9494, %v10825
      %v10827 = vpop.f32.mrb[0].mxu0
      %v10828 = vadd.f32 %v9498, %v10827
      %v10829 = vpop.f32.mrb[0].mxu0
      %v10830 = vadd.f32 %v9494, %v10829
      %v10831 = vpop.f32.mrb[0].mxu0
      %v10832 = vadd.f32 %v9498, %v10831
      %10833 = vdwg.mxu0
      %10834 = vmatprep.subr.bf16.mxu0 %v10344
      %10835 = vmatpush1.bf16.msra.mxu0 %v10343
      %10836 = vmatprep.subr.bf16.mxu0 %v10348
      %10837 = vmatpush1.bf16.msra.mxu0 %v10347
      %10838 = vmatprep.subr.bf16.mxu0 %v10352
      %10839 = vmatpush1.bf16.msra.mxu0 %v10351
      %10840 = vmatprep.subr.bf16.mxu0 %v10356
      %10841 = vmatpush1.bf16.msra.mxu0 %v10355
      %10842 = vmatprep.subr.bf16.mxu0 %v10360
      %10843 = vmatpush1.bf16.msra.mxu0 %v10359
      %10844 = vmatprep.subr.bf16.mxu0 %v10364
      %10845 = vmatpush1.bf16.msra.mxu0 %v10363
      %10846 = vmatprep.subr.bf16.mxu0 %v10368
      %10847 = vmatpush1.bf16.msra.mxu0 %v10367
      %10848 = vmatprep.subr.bf16.mxu0 %v10372
      %10849 = vmatpush1.bf16.msra.mxu0 %v10371
      %10850 = vmatprep.subr.bf16.mxu0 %v10376
      %10851 = vmatpush1.bf16.msra.mxu0 %v10375
      %10852 = vmatprep.subr.bf16.mxu0 %v10380
      %10853 = vmatpush1.bf16.msra.mxu0 %v10379
      %10854 = vmatprep.subr.bf16.mxu0 %v10384
      %10855 = vmatpush1.bf16.msra.mxu0 %v10383
      %10856 = vmatprep.subr.bf16.mxu0 %v10388
      %10857 = vmatpush1.bf16.msra.mxu0 %v10387
      %10858 = vmatprep.subr.bf16.mxu0 %v10392
      %10859 = vmatpush1.bf16.msra.mxu0 %v10391
      %10860 = vmatprep.subr.bf16.mxu0 %v10396
      %10861 = vmatpush1.bf16.msra.mxu0 %v10395
      %10862 = vmatprep.subr.bf16.mxu0 %v10400
      %10863 = vmatpush1.bf16.msra.mxu0 %v10399
      %10864 = vmatprep.subr.bf16.mxu0 %v10404
      %10865 = vmatpush1.bf16.msra.mxu0 %v10403
      %10866 = vmatprep.mubr.bf16.mxu0 %v9228
      %10867 = vmatmul.mubr.bf16.gmra.mrb[0].mxu0 %v9227
      %v10868 = vpop.f32.mrb[0].mxu0
      %v10869 = vadd.f32 %v10826, %v10868
      %v10870 = vpop.f32.mrb[0].mxu0
      %v10871 = vadd.f32 %v10828, %v10870
      %v10872 = vpop.f32.mrb[0].mxu0
      %v10873 = vadd.f32 %v10830, %v10872
      %v10874 = vpop.f32.mrb[0].mxu0
      %v10875 = vadd.f32 %v10832, %v10874
      %10876 = vdwg.mxu0
      %10877 = vmatprep.subr.bf16.mxu0 %v10408
      %10878 = vmatpush1.bf16.msra.mxu0 %v10407
      %10879 = vmatprep.subr.bf16.mxu0 %v10412
      %10880 = vmatpush1.bf16.msra.mxu0 %v10411
      %10881 = vmatprep.subr.bf16.mxu0 %v10416
      %10882 = vmatpush1.bf16.msra.mxu0 %v10415
      %10883 = vmatprep.subr.bf16.mxu0 %v10420
      %10884 = vmatpush1.bf16.msra.mxu0 %v10419
      %10885 = vmatprep.subr.bf16.mxu0 %v10424
      %10886 = vmatpush1.bf16.msra.mxu0 %v10423
      %10887 = vmatprep.subr.bf16.mxu0 %v10428
      %10888 = vmatpush1.bf16.msra.mxu0 %v10427
      %10889 = vmatprep.subr.bf16.mxu0 %v10432
      %10890 = vmatpush1.bf16.msra.mxu0 %v10431
      %10891 = vmatprep.subr.bf16.mxu0 %v10436
      %10892 = vmatpush1.bf16.msra.mxu0 %v10435
      %10893 = vmatprep.subr.bf16.mxu0 %v10440
      %10894 = vmatpush1.bf16.msra.mxu0 %v10439
      %10895 = vmatprep.subr.bf16.mxu0 %v10444
      %10896 = vmatpush1.bf16.msra.mxu0 %v10443
      %10897 = vmatprep.subr.bf16.mxu0 %v10448
      %10898 = vmatpush1.bf16.msra.mxu0 %v10447
      %10899 = vmatprep.subr.bf16.mxu0 %v10452
      %10900 = vmatpush1.bf16.msra.mxu0 %v10451
      %10901 = vmatprep.subr.bf16.mxu0 %v10456
      %10902 = vmatpush1.bf16.msra.mxu0 %v10455
      %10903 = vmatprep.subr.bf16.mxu0 %v10460
      %10904 = vmatpush1.bf16.msra.mxu0 %v10459
      %10905 = vmatprep.subr.bf16.mxu0 %v10464
      %10906 = vmatpush1.bf16.msra.mxu0 %v10463
      %10907 = vmatprep.subr.bf16.mxu0 %v10468
      %10908 = vmatpush1.bf16.msra.mxu0 %v10467
      %10909 = vmatprep.mubr.bf16.mxu0 %v9230
      %10910 = vmatmul.mubr.bf16.gmra.mrb[0].mxu0 %v9229
      %v10911 = vpop.f32.mrb[0].mxu0
      %v10912 = vadd.f32 %v10869, %v10911
      %v10913 = vpop.f32.mrb[0].mxu0
      %v10914 = vadd.f32 %v10871, %v10913
      %v10915 = vpop.f32.mrb[0].mxu0
      %v10916 = vadd.f32 %v10873, %v10915
      %v10917 = vpop.f32.mrb[0].mxu0
      %v10918 = vadd.f32 %v10875, %v10917
      %10919 = vdwg.mxu0
      %10920 = vmatprep.subr.bf16.mxu0 %v10472
      %10921 = vmatpush1.bf16.msra.mxu0 %v10471
      %10922 = vmatprep.subr.bf16.mxu0 %v10476
      %10923 = vmatpush1.bf16.msra.mxu0 %v10475
      %10924 = vmatprep.subr.bf16.mxu0 %v10480
      %10925 = vmatpush1.bf16.msra.mxu0 %v10479
      %10926 = vmatprep.subr.bf16.mxu0 %v10484
      %10927 = vmatpush1.bf16.msra.mxu0 %v10483
      %10928 = vmatprep.subr.bf16.mxu0 %v10488
      %10929 = vmatpush1.bf16.msra.mxu0 %v10487
      %10930 = vmatprep.subr.bf16.mxu0 %v10492
      %10931 = vmatpush1.bf16.msra.mxu0 %v10491
      %10932 = vmatprep.subr.bf16.mxu0 %v10496
      %10933 = vmatpush1.bf16.msra.mxu0 %v10495
      %10934 = vmatprep.subr.bf16.mxu0 %v10500
      %10935 = vmatpush1.bf16.msra.mxu0 %v10499
      %10936 = vmatprep.subr.bf16.mxu0 %v10504
      %10937 = vmatpush1.bf16.msra.mxu0 %v10503
      %10938 = vmatprep.subr.bf16.mxu0 %v10508
      %10939 = vmatpush1.bf16.msra.mxu0 %v10507
      %10940 = vmatprep.subr.bf16.mxu0 %v10512
      %10941 = vmatpush1.bf16.msra.mxu0 %v10511
      %10942 = vmatprep.subr.bf16.mxu0 %v10516
      %10943 = vmatpush1.bf16.msra.mxu0 %v10515
      %10944 = vmatprep.subr.bf16.mxu0 %v10520
      %10945 = vmatpush1.bf16.msra.mxu0 %v10519
      %10946 = vmatprep.subr.bf16.mxu0 %v10524
      %10947 = vmatpush1.bf16.msra.mxu0 %v10523
      %10948 = vmatprep.subr.bf16.mxu0 %v10528
      %10949 = vmatpush1.bf16.msra.mxu0 %v10527
      %10950 = vmatprep.subr.bf16.mxu0 %v10532
      %10951 = vmatpush1.bf16.msra.mxu0 %v10531
      %10952 = vmatprep.mubr.bf16.mxu0 %v9232
      %10953 = vmatmul.mubr.bf16.gmra.mrb[0].mxu0 %v9231
      %v10954 = vpop.f32.mrb[0].mxu0
      %v10955 = vadd.f32 %v10912, %v10954
      %v10956 = vpop.f32.mrb[0].mxu0
      %v10957 = vadd.f32 %v10914, %v10956
      %v10958 = vpop.f32.mrb[0].mxu0
      %v10959 = vadd.f32 %v10916, %v10958
      %v10960 = vpop.f32.mrb[0].mxu0
      %v10961 = vadd.f32 %v10918, %v10960
      %10962 = vdwg.mxu0
      %10963 = vmatprep.subr.bf16.mxu0 %v10282
      %10964 = vmatpush1.bf16.msra.mxu0 %v10281
      %10965 = vmatprep.subr.bf16.mxu0 %v10286
      %10966 = vmatpush1.bf16.msra.mxu0 %v10285
      %10967 = vmatprep.subr.bf16.mxu0 %v10290
      %10968 = vmatpush1.bf16.msra.mxu0 %v10289
      %10969 = vmatprep.subr.bf16.mxu0 %v10294
      %10970 = vmatpush1.bf16.msra.mxu0 %v10293
      %10971 = vmatprep.subr.bf16.mxu0 %v10298
      %10972 = vmatpush1.bf16.msra.mxu0 %v10297
      %10973 = vmatprep.subr.bf16.mxu0 %v10302
      %10974 = vmatpush1.bf16.msra.mxu0 %v10301
      %10975 = vmatprep.subr.bf16.mxu0 %v10306
      %10976 = vmatpush1.bf16.msra.mxu0 %v10305
      %10977 = vmatprep.subr.bf16.mxu0 %v10310
      %10978 = vmatpush1.bf16.msra.mxu0 %v10309
      %10979 = vmatprep.subr.bf16.mxu0 %v10314
      %10980 = vmatpush1.bf16.msra.mxu0 %v10313
      %10981 = vmatprep.subr.bf16.mxu0 %v10318
      %10982 = vmatpush1.bf16.msra.mxu0 %v10317
      %10983 = vmatprep.subr.bf16.mxu0 %v10322
      %10984 = vmatpush1.bf16.msra.mxu0 %v10321
      %10985 = vmatprep.subr.bf16.mxu0 %v10326
      %10986 = vmatpush1.bf16.msra.mxu0 %v10325
      %10987 = vmatprep.subr.bf16.mxu0 %v10330
      %10988 = vmatpush1.bf16.msra.mxu0 %v10329
      %10989 = vmatprep.subr.bf16.mxu0 %v10334
      %10990 = vmatpush1.bf16.msra.mxu0 %v10333
      %10991 = vmatprep.subr.bf16.mxu0 %v10338
      %10992 = vmatpush1.bf16.msra.mxu0 %v10337
      %10993 = vmatprep.subr.bf16.mxu0 %v10342
      %10994 = vmatpush1.bf16.msra.mxu0 %v10341
      %10995 = vmatprep.mubr.bf16.mxu0 %v9226
      %10996 = vmatmul.mubr.bf16.gmra.mrb[0].mxu0 %v9225
      %v10997 = vpop.f32.mrb[0].mxu0
      %v10998 = vadd.f32 %v9502, %v10997
      %v10999 = vpop.f32.mrb[0].mxu0
      %v11000 = vadd.f32 %v9506, %v10999
      %v11001 = vpop.f32.mrb[0].mxu0
      %v11002 = vadd.f32 %v9502, %v11001
      %v11003 = vpop.f32.mrb[0].mxu0
      %v11004 = vadd.f32 %v9506, %v11003
      %11005 = vdwg.mxu0
      %11006 = vmatprep.subr.bf16.mxu0 %v10346
      %11007 = vmatpush1.bf16.msra.mxu0 %v10345
      %11008 = vmatprep.subr.bf16.mxu0 %v10350
      %11009 = vmatpush1.bf16.msra.mxu0 %v10349
      %11010 = vmatprep.subr.bf16.mxu0 %v10354
      %11011 = vmatpush1.bf16.msra.mxu0 %v10353
      %11012 = vmatprep.subr.bf16.mxu0 %v10358
      %11013 = vmatpush1.bf16.msra.mxu0 %v10357
      %11014 = vmatprep.subr.bf16.mxu0 %v10362
      %11015 = vmatpush1.bf16.msra.mxu0 %v10361
      %11016 = vmatprep.subr.bf16.mxu0 %v10366
      %11017 = vmatpush1.bf16.msra.mxu0 %v10365
      %11018 = vmatprep.subr.bf16.mxu0 %v10370
      %11019 = vmatpush1.bf16.msra.mxu0 %v10369
      %11020 = vmatprep.subr.bf16.mxu0 %v10374
      %11021 = vmatpush1.bf16.msra.mxu0 %v10373
      %11022 = vmatprep.subr.bf16.mxu0 %v10378
      %11023 = vmatpush1.bf16.msra.mxu0 %v10377
      %11024 = vmatprep.subr.bf16.mxu0 %v10382
      %11025 = vmatpush1.bf16.msra.mxu0 %v10381
      %11026 = vmatprep.subr.bf16.mxu0 %v10386
      %11027 = vmatpush1.bf16.msra.mxu0 %v10385
      %11028 = vmatprep.subr.bf16.mxu0 %v10390
      %11029 = vmatpush1.bf16.msra.mxu0 %v10389
      %11030 = vmatprep.subr.bf16.mxu0 %v10394
      %11031 = vmatpush1.bf16.msra.mxu0 %v10393
      %11032 = vmatprep.subr.bf16.mxu0 %v10398
      %11033 = vmatpush1.bf16.msra.mxu0 %v10397
      %11034 = vmatprep.subr.bf16.mxu0 %v10402
      %11035 = vmatpush1.bf16.msra.mxu0 %v10401
      %11036 = vmatprep.subr.bf16.mxu0 %v10406
      %11037 = vmatpush1.bf16.msra.mxu0 %v10405
      %11038 = vmatprep.mubr.bf16.mxu0 %v9228
      %11039 = vmatmul.mubr.bf16.gmra.mrb[0].mxu0 %v9227
      %v11040 = vpop.f32.mrb[0].mxu0
      %v11041 = vadd.f32 %v10998, %v11040
      %v11042 = vpop.f32.mrb[0].mxu0
      %v11043 = vadd.f32 %v11000, %v11042
      %v11044 = vpop.f32.mrb[0].mxu0
      %v11045 = vadd.f32 %v11002, %v11044
      %v11046 = vpop.f32.mrb[0].mxu0
      %v11047 = vadd.f32 %v11004, %v11046
      %11048 = vdwg.mxu0
      %11049 = vmatprep.subr.bf16.mxu0 %v10410
      %11050 = vmatpush1.bf16.msra.mxu0 %v10409
      %11051 = vmatprep.subr.bf16.mxu0 %v10414
      %11052 = vmatpush1.bf16.msra.mxu0 %v10413
      %11053 = vmatprep.subr.bf16.mxu0 %v10418
      %11054 = vmatpush1.bf16.msra.mxu0 %v10417
      %11055 = vmatprep.subr.bf16.mxu0 %v10422
      %11056 = vmatpush1.bf16.msra.mxu0 %v10421
      %11057 = vmatprep.subr.bf16.mxu0 %v10426
      %11058 = vmatpush1.bf16.msra.mxu0 %v10425
      %11059 = vmatprep.subr.bf16.mxu0 %v10430
      %11060 = vmatpush1.bf16.msra.mxu0 %v10429
      %11061 = vmatprep.subr.bf16.mxu0 %v10434
      %11062 = vmatpush1.bf16.msra.mxu0 %v10433
      %11063 = vmatprep.subr.bf16.mxu0 %v10438
      %11064 = vmatpush1.bf16.msra.mxu0 %v10437
      %11065 = vmatprep.subr.bf16.mxu0 %v10442
      %11066 = vmatpush1.bf16.msra.mxu0 %v10441
      %11067 = vmatprep.subr.bf16.mxu0 %v10446
      %11068 = vmatpush1.bf16.msra.mxu0 %v10445
      %11069 = vmatprep.subr.bf16.mxu0 %v10450
      %11070 = vmatpush1.bf16.msra.mxu0 %v10449
      %11071 = vmatprep.subr.bf16.mxu0 %v10454
      %11072 = vmatpush1.bf16.msra.mxu0 %v10453
      %11073 = vmatprep.subr.bf16.mxu0 %v10458
      %11074 = vmatpush1.bf16.msra.mxu0 %v10457
      %11075 = vmatprep.subr.bf16.mxu0 %v10462
      %11076 = vmatpush1.bf16.msra.mxu0 %v10461
      %11077 = vmatprep.subr.bf16.mxu0 %v10466
      %11078 = vmatpush1.bf16.msra.mxu0 %v10465
      %11079 = vmatprep.subr.bf16.mxu0 %v10470
      %11080 = vmatpush1.bf16.msra.mxu0 %v10469
      %11081 = vmatprep.mubr.bf16.mxu0 %v9230
      %11082 = vmatmul.mubr.bf16.gmra.mrb[0].mxu0 %v9229
      %v11083 = vpop.f32.mrb[0].mxu0
      %v11084 = vadd.f32 %v11041, %v11083
      %v11085 = vpop.f32.mrb[0].mxu0
      %v11086 = vadd.f32 %v11043, %v11085
      %v11087 = vpop.f32.mrb[0].mxu0
      %v11088 = vadd.f32 %v11045, %v11087
      %v11089 = vpop.f32.mrb[0].mxu0
      %v11090 = vadd.f32 %v11047, %v11089
      %11091 = vdwg.mxu0
      %11092 = vmatprep.subr.bf16.mxu0 %v10474
      %11093 = vmatpush1.bf16.msra.mxu0 %v10473
      %11094 = vmatprep.subr.bf16.mxu0 %v10478
      %11095 = vmatpush1.bf16.msra.mxu0 %v10477
      %11096 = vmatprep.subr.bf16.mxu0 %v10482
      %11097 = vmatpush1.bf16.msra.mxu0 %v10481
      %11098 = vmatprep.subr.bf16.mxu0 %v10486
      %11099 = vmatpush1.bf16.msra.mxu0 %v10485
      %11100 = vmatprep.subr.bf16.mxu0 %v10490
      %11101 = vmatpush1.bf16.msra.mxu0 %v10489
      %11102 = vmatprep.subr.bf16.mxu0 %v10494
      %11103 = vmatpush1.bf16.msra.mxu0 %v10493
      %11104 = vmatprep.subr.bf16.mxu0 %v10498
      %11105 = vmatpush1.bf16.msra.mxu0 %v10497
      %11106 = vmatprep.subr.bf16.mxu0 %v10502
      %11107 = vmatpush1.bf16.msra.mxu0 %v10501
      %11108 = vmatprep.subr.bf16.mxu0 %v10506
      %11109 = vmatpush1.bf16.msra.mxu0 %v10505
      %11110 = vmatprep.subr.bf16.mxu0 %v10510
      %11111 = vmatpush1.bf16.msra.mxu0 %v10509
      %11112 = vmatprep.subr.bf16.mxu0 %v10514
      %11113 = vmatpush1.bf16.msra.mxu0 %v10513
      %11114 = vmatprep.subr.bf16.mxu0 %v10518
      %11115 = vmatpush1.bf16.msra.mxu0 %v10517
      %11116 = vmatprep.subr.bf16.mxu0 %v10522
      %11117 = vmatpush1.bf16.msra.mxu0 %v10521
      %11118 = vmatprep.subr.bf16.mxu0 %v10526
      %11119 = vmatpush1.bf16.msra.mxu0 %v10525
      %11120 = vmatprep.subr.bf16.mxu0 %v10530
      %11121 = vmatpush1.bf16.msra.mxu0 %v10529
      %11122 = vmatprep.subr.bf16.mxu0 %v10534
      %11123 = vmatpush1.bf16.msra.mxu0 %v10533
      %11124 = vmatprep.mubr.bf16.mxu0 %v9232
      %11125 = vmatmul.mubr.bf16.gmra.mrb[0].mxu0 %v9231
      %v11126 = vpop.f32.mrb[0].mxu0
      %v11127 = vadd.f32 %v11084, %v11126
      %v11128 = vpop.f32.mrb[0].mxu0
      %v11129 = vadd.f32 %v11086, %v11128
      %v11130 = vpop.f32.mrb[0].mxu0
      %v11131 = vadd.f32 %v11088, %v11130
      %v11132 = vpop.f32.mrb[0].mxu0
      %v11133 = vadd.f32 %v11090, %v11132
      %11134 = vdwg.mxu0
      %v11135 = vmax.f32 %v10955, 0.0
      %v11136 = vmax.f32 %v10957, 0.0
      %v11137 = vmax.f32 %v11127, 0.0
      %v11138 = vmax.f32 %v11129, 0.0
      %v11139 = vmax.f32 %v10959, 0.0
      %v11140 = vmax.f32 %v10961, 0.0
      %v11141 = vmax.f32 %v11131, 0.0
      %v11142 = vmax.f32 %v11133, 0.0
      %v11143 = vpack.c.bf16 %v11139, %v11135
      %v11144 = vpack.c.bf16 %v11140, %v11136
      %v11145 = vpack.c.bf16 %v11141, %v11137
      %v11146 = vpack.c.bf16 %v11142, %v11138
      %v11147 = vld [vmem:[%s9] sm:$0xff]
      %v11148 = vld [vmem:[%s9 + $0x8] sm:$0xff]
      %v11149 = vld [vmem:[%s9 + $0x10] sm:$0xff]
      %v11150 = vld [vmem:[%s9 + $0x18] sm:$0xff]
      %v11151 = vld [vmem:[%s9 + $0x20] sm:$0xff]
      %v11152 = vld [vmem:[%s9 + $0x28] sm:$0xff]
      %v11153 = vld [vmem:[%s9 + $0x30] sm:$0xff]
      %v11154 = vld [vmem:[%s9 + $0x38] sm:$0xff]
      %v11155 = vld [vmem:[%s9 + $0x40] sm:$0xff]
      %v11156 = vld [vmem:[%s9 + $0x48] sm:$0xff]
      %v11157 = vld [vmem:[%s9 + $0x50] sm:$0xff]
      %v11158 = vld [vmem:[%s9 + $0x58] sm:$0xff]
      %v11159 = vld [vmem:[%s9 + $0x60] sm:$0xff]
      %v11160 = vld [vmem:[%s9 + $0x68] sm:$0xff]
      %v11161 = vld [vmem:[%s9 + $0x70] sm:$0xff]
      %v11162 = vld [vmem:[%s9 + $0x78] sm:$0xff]
      %v11163 = vld [vmem:[%s9 + $0x80] sm:$0xff]
      %v11164 = vld [vmem:[%s9 + $0x88] sm:$0xff]
      %v11165 = vld [vmem:[%s9 + $0x90] sm:$0xff]
      %v11166 = vld [vmem:[%s9 + $0x98] sm:$0xff]
      %v11167 = vld [vmem:[%s9 + $0xa0] sm:$0xff]
      %v11168 = vld [vmem:[%s9 + $0xa8] sm:$0xff]
      %v11169 = vld [vmem:[%s9 + $0xb0] sm:$0xff]
      %v11170 = vld [vmem:[%s9 + $0xb8] sm:$0xff]
      %v11171 = vld [vmem:[%s9 + $0xc0] sm:$0xff]
      %v11172 = vld [vmem:[%s9 + $0xc8] sm:$0xff]
      %v11173 = vld [vmem:[%s9 + $0xd0] sm:$0xff]
      %v11174 = vld [vmem:[%s9 + $0xd8] sm:$0xff]
      %v11175 = vld [vmem:[%s9 + $0xe0] sm:$0xff]
      %v11176 = vld [vmem:[%s9 + $0xe8] sm:$0xff]
      %v11177 = vld [vmem:[%s9 + $0xf0] sm:$0xff]
      %v11178 = vld [vmem:[%s9 + $0xf8] sm:$0xff]
      %v11179 = vld [vmem:[%s9 + $0x100] sm:$0xff]
      %v11180 = vld [vmem:[%s9 + $0x108] sm:$0xff]
      %v11181 = vld [vmem:[%s9 + $0x110] sm:$0xff]
      %v11182 = vld [vmem:[%s9 + $0x118] sm:$0xff]
      %v11183 = vld [vmem:[%s9 + $0x120] sm:$0xff]
      %v11184 = vld [vmem:[%s9 + $0x128] sm:$0xff]
      %v11185 = vld [vmem:[%s9 + $0x130] sm:$0xff]
      %v11186 = vld [vmem:[%s9 + $0x138] sm:$0xff]
      %v11187 = vld [vmem:[%s9 + $0x140] sm:$0xff]
      %v11188 = vld [vmem:[%s9 + $0x148] sm:$0xff]
      %v11189 = vld [vmem:[%s9 + $0x150] sm:$0xff]
      %v11190 = vld [vmem:[%s9 + $0x158] sm:$0xff]
      %v11191 = vld [vmem:[%s9 + $0x160] sm:$0xff]
      %v11192 = vld [vmem:[%s9 + $0x168] sm:$0xff]
      %v11193 = vld [vmem:[%s9 + $0x170] sm:$0xff]
      %v11194 = vld [vmem:[%s9 + $0x178] sm:$0xff]
      %v11195 = vld [vmem:[%s9 + $0x180] sm:$0xff]
      %v11196 = vld [vmem:[%s9 + $0x188] sm:$0xff]
      %v11197 = vld [vmem:[%s9 + $0x190] sm:$0xff]
      %v11198 = vld [vmem:[%s9 + $0x198] sm:$0xff]
      %v11199 = vld [vmem:[%s9 + $0x1a0] sm:$0xff]
      %v11200 = vld [vmem:[%s9 + $0x1a8] sm:$0xff]
      %v11201 = vld [vmem:[%s9 + $0x1b0] sm:$0xff]
      %v11202 = vld [vmem:[%s9 + $0x1b8] sm:$0xff]
      %v11203 = vld [vmem:[%s9 + $0x1c0] sm:$0xff]
      %v11204 = vld [vmem:[%s9 + $0x1c8] sm:$0xff]
      %v11205 = vld [vmem:[%s9 + $0x1d0] sm:$0xff]
      %v11206 = vld [vmem:[%s9 + $0x1d8] sm:$0xff]
      %v11207 = vld [vmem:[%s9 + $0x1e0] sm:$0xff]
      %v11208 = vld [vmem:[%s9 + $0x1e8] sm:$0xff]
      %v11209 = vld [vmem:[%s9 + $0x1f0] sm:$0xff]
      %v11210 = vld [vmem:[%s9 + $0x1f8] sm:$0xff]
      %v11211 = vld [vmem:[%s10] sm:$0x3]
      %v11213 = vlaneseq
      %v11214 = vshrl.u32 %v11213, 7
      %v11215 = vsub.s32 0, %v11214
      %v11216 = vrot.slane %v11211, %v11215
      %v11217 = vlaneseq
      %v11218 = vshrl.u32 %v11217, 7
      %v11219 = vsub.s32 1, %v11218
      %v11220 = vrot.slane %v11211, %v11219
      %v11287 = vunpack.c.l.b16 %v11147
      %v11288 = vunpack.c.h.b16 %v11147
      %v11289 = vunpack.c.l.b16 %v11148
      %v11290 = vunpack.c.h.b16 %v11148
      %v11291 = vunpack.c.l.b16 %v11149
      %v11292 = vunpack.c.h.b16 %v11149
      %v11293 = vunpack.c.l.b16 %v11150
      %v11294 = vunpack.c.h.b16 %v11150
      %v11295 = vunpack.c.l.b16 %v11151
      %v11296 = vunpack.c.h.b16 %v11151
      %v11297 = vunpack.c.l.b16 %v11152
      %v11298 = vunpack.c.h.b16 %v11152
      %v11299 = vunpack.c.l.b16 %v11153
      %v11300 = vunpack.c.h.b16 %v11153
      %v11301 = vunpack.c.l.b16 %v11154
      %v11302 = vunpack.c.h.b16 %v11154
      %v11303 = vunpack.c.l.b16 %v11155
      %v11304 = vunpack.c.h.b16 %v11155
      %v11305 = vunpack.c.l.b16 %v11156
      %v11306 = vunpack.c.h.b16 %v11156
      %v11307 = vunpack.c.l.b16 %v11157
      %v11308 = vunpack.c.h.b16 %v11157
      %v11309 = vunpack.c.l.b16 %v11158
      %v11310 = vunpack.c.h.b16 %v11158
      %v11311 = vunpack.c.l.b16 %v11159
      %v11312 = vunpack.c.h.b16 %v11159
      %v11313 = vunpack.c.l.b16 %v11160
      %v11314 = vunpack.c.h.b16 %v11160
      %v11315 = vunpack.c.l.b16 %v11161
      %v11316 = vunpack.c.h.b16 %v11161
      %v11317 = vunpack.c.l.b16 %v11162
      %v11318 = vunpack.c.h.b16 %v11162
      %v11319 = vunpack.c.l.b16 %v11163
      %v11320 = vunpack.c.h.b16 %v11163
      %v11321 = vunpack.c.l.b16 %v11164
      %v11322 = vunpack.c.h.b16 %v11164
      %v11323 = vunpack.c.l.b16 %v11165
      %v11324 = vunpack.c.h.b16 %v11165
      %v11325 = vunpack.c.l.b16 %v11166
      %v11326 = vunpack.c.h.b16 %v11166
      %v11327 = vunpack.c.l.b16 %v11167
      %v11328 = vunpack.c.h.b16 %v11167
      %v11329 = vunpack.c.l.b16 %v11168
      %v11330 = vunpack.c.h.b16 %v11168
      %v11331 = vunpack.c.l.b16 %v11169
      %v11332 = vunpack.c.h.b16 %v11169
      %v11333 = vunpack.c.l.b16 %v11170
      %v11334 = vunpack.c.h.b16 %v11170
      %v11335 = vunpack.c.l.b16 %v11171
      %v11336 = vunpack.c.h.b16 %v11171
      %v11337 = vunpack.c.l.b16 %v11172
      %v11338 = vunpack.c.h.b16 %v11172
      %v11339 = vunpack.c.l.b16 %v11173
      %v11340 = vunpack.c.h.b16 %v11173
      %v11341 = vunpack.c.l.b16 %v11174
      %v11342 = vunpack.c.h.b16 %v11174
      %v11343 = vunpack.c.l.b16 %v11175
      %v11344 = vunpack.c.h.b16 %v11175
      %v11345 = vunpack.c.l.b16 %v11176
      %v11346 = vunpack.c.h.b16 %v11176
      %v11347 = vunpack.c.l.b16 %v11177
      %v11348 = vunpack.c.h.b16 %v11177
      %v11349 = vunpack.c.l.b16 %v11178
      %v11350 = vunpack.c.h.b16 %v11178
      %v11351 = vunpack.c.l.b16 %v11179
      %v11352 = vunpack.c.h.b16 %v11179
      %v11353 = vunpack.c.l.b16 %v11180
      %v11354 = vunpack.c.h.b16 %v11180
      %v11355 = vunpack.c.l.b16 %v11181
      %v11356 = vunpack.c.h.b16 %v11181
      %v11357 = vunpack.c.l.b16 %v11182
      %v11358 = vunpack.c.h.b16 %v11182
      %v11359 = vunpack.c.l.b16 %v11183
      %v11360 = vunpack.c.h.b16 %v11183
      %v11361 = vunpack.c.l.b16 %v11184
      %v11362 = vunpack.c.h.b16 %v11184
      %v11363 = vunpack.c.l.b16 %v11185
      %v11364 = vunpack.c.h.b16 %v11185
      %v11365 = vunpack.c.l.b16 %v11186
      %v11366 = vunpack.c.h.b16 %v11186
      %v11367 = vunpack.c.l.b16 %v11187
      %v11368 = vunpack.c.h.b16 %v11187
      %v11369 = vunpack.c.l.b16 %v11188
      %v11370 = vunpack.c.h.b16 %v11188
      %v11371 = vunpack.c.l.b16 %v11189
      %v11372 = vunpack.c.h.b16 %v11189
      %v11373 = vunpack.c.l.b16 %v11190
      %v11374 = vunpack.c.h.b16 %v11190
      %v11375 = vunpack.c.l.b16 %v11191
      %v11376 = vunpack.c.h.b16 %v11191
      %v11377 = vunpack.c.l.b16 %v11192
      %v11378 = vunpack.c.h.b16 %v11192
      %v11379 = vunpack.c.l.b16 %v11193
      %v11380 = vunpack.c.h.b16 %v11193
      %v11381 = vunpack.c.l.b16 %v11194
      %v11382 = vunpack.c.h.b16 %v11194
      %v11383 = vunpack.c.l.b16 %v11195
      %v11384 = vunpack.c.h.b16 %v11195
      %v11385 = vunpack.c.l.b16 %v11196
      %v11386 = vunpack.c.h.b16 %v11196
      %v11387 = vunpack.c.l.b16 %v11197
      %v11388 = vunpack.c.h.b16 %v11197
      %v11389 = vunpack.c.l.b16 %v11198
      %v11390 = vunpack.c.h.b16 %v11198
      %v11391 = vunpack.c.l.b16 %v11199
      %v11392 = vunpack.c.h.b16 %v11199
      %v11393 = vunpack.c.l.b16 %v11200
      %v11394 = vunpack.c.h.b16 %v11200
      %v11395 = vunpack.c.l.b16 %v11201
      %v11396 = vunpack.c.h.b16 %v11201
      %v11397 = vunpack.c.l.b16 %v11202
      %v11398 = vunpack.c.h.b16 %v11202
      %v11399 = vunpack.c.l.b16 %v11203
      %v11400 = vunpack.c.h.b16 %v11203
      %v11401 = vunpack.c.l.b16 %v11204
      %v11402 = vunpack.c.h.b16 %v11204
      %v11403 = vunpack.c.l.b16 %v11205
      %v11404 = vunpack.c.h.b16 %v11205
      %v11405 = vunpack.c.l.b16 %v11206
      %v11406 = vunpack.c.h.b16 %v11206
      %v11407 = vunpack.c.l.b16 %v11207
      %v11408 = vunpack.c.h.b16 %v11207
      %v11409 = vunpack.c.l.b16 %v11208
      %v11410 = vunpack.c.h.b16 %v11208
      %v11411 = vunpack.c.l.b16 %v11209
      %v11412 = vunpack.c.h.b16 %v11209
      %v11413 = vunpack.c.l.b16 %v11210
      %v11414 = vunpack.c.h.b16 %v11210
      %v11415 = vpack.c.b16 %v11289, %v11287
      %v11416 = vpack.c.b16 %v11290, %v11288
      %v11417 = vpack.c.b16 %v11293, %v11291
      %v11418 = vpack.c.b16 %v11294, %v11292
      %v11419 = vpack.c.b16 %v11297, %v11295
      %v11420 = vpack.c.b16 %v11298, %v11296
      %v11421 = vpack.c.b16 %v11301, %v11299
      %v11422 = vpack.c.b16 %v11302, %v11300
      %v11423 = vpack.c.b16 %v11305, %v11303
      %v11424 = vpack.c.b16 %v11306, %v11304
      %v11425 = vpack.c.b16 %v11309, %v11307
      %v11426 = vpack.c.b16 %v11310, %v11308
      %v11427 = vpack.c.b16 %v11313, %v11311
      %v11428 = vpack.c.b16 %v11314, %v11312
      %v11429 = vpack.c.b16 %v11317, %v11315
      %v11430 = vpack.c.b16 %v11318, %v11316
      %v11431 = vpack.c.b16 %v11321, %v11319
      %v11432 = vpack.c.b16 %v11322, %v11320
      %v11433 = vpack.c.b16 %v11325, %v11323
      %v11434 = vpack.c.b16 %v11326, %v11324
      %v11435 = vpack.c.b16 %v11329, %v11327
      %v11436 = vpack.c.b16 %v11330, %v11328
      %v11437 = vpack.c.b16 %v11333, %v11331
      %v11438 = vpack.c.b16 %v11334, %v11332
      %v11439 = vpack.c.b16 %v11337, %v11335
      %v11440 = vpack.c.b16 %v11338, %v11336
      %v11441 = vpack.c.b16 %v11341, %v11339
      %v11442 = vpack.c.b16 %v11342, %v11340
      %v11443 = vpack.c.b16 %v11345, %v11343
      %v11444 = vpack.c.b16 %v11346, %v11344
      %v11445 = vpack.c.b16 %v11349, %v11347
      %v11446 = vpack.c.b16 %v11350, %v11348
      %v11447 = vpack.c.b16 %v11353, %v11351
      %v11448 = vpack.c.b16 %v11354, %v11352
      %v11449 = vpack.c.b16 %v11357, %v11355
      %v11450 = vpack.c.b16 %v11358, %v11356
      %v11451 = vpack.c.b16 %v11361, %v11359
      %v11452 = vpack.c.b16 %v11362, %v11360
      %v11453 = vpack.c.b16 %v11365, %v11363
      %v11454 = vpack.c.b16 %v11366, %v11364
      %v11455 = vpack.c.b16 %v11369, %v11367
      %v11456 = vpack.c.b16 %v11370, %v11368
      %v11457 = vpack.c.b16 %v11373, %v11371
      %v11458 = vpack.c.b16 %v11374, %v11372
      %v11459 = vpack.c.b16 %v11377, %v11375
      %v11460 = vpack.c.b16 %v11378, %v11376
      %v11461 = vpack.c.b16 %v11381, %v11379
      %v11462 = vpack.c.b16 %v11382, %v11380
      %v11463 = vpack.c.b16 %v11385, %v11383
      %v11464 = vpack.c.b16 %v11386, %v11384
      %v11465 = vpack.c.b16 %v11389, %v11387
      %v11466 = vpack.c.b16 %v11390, %v11388
      %v11467 = vpack.c.b16 %v11393, %v11391
      %v11468 = vpack.c.b16 %v11394, %v11392
      %v11469 = vpack.c.b16 %v11397, %v11395
      %v11470 = vpack.c.b16 %v11398, %v11396
      %v11471 = vpack.c.b16 %v11401, %v11399
      %v11472 = vpack.c.b16 %v11402, %v11400
      %v11473 = vpack.c.b16 %v11405, %v11403
      %v11474 = vpack.c.b16 %v11406, %v11404
      %v11475 = vpack.c.b16 %v11409, %v11407
      %v11476 = vpack.c.b16 %v11410, %v11408
      %v11477 = vpack.c.b16 %v11413, %v11411
      %v11478 = vpack.c.b16 %v11414, %v11412
      %11543 = vmatprep.subr.bf16.mxu0 %v11416
      %11544 = vmatpush1.bf16.msra.mxu0 %v11415
      %11545 = vmatprep.subr.bf16.mxu0 %v11418
      %11546 = vmatpush1.bf16.msra.mxu0 %v11417
      %11547 = vmatprep.subr.bf16.mxu0 %v11420
      %11548 = vmatpush1.bf16.msra.mxu0 %v11419
      %11549 = vmatprep.subr.bf16.mxu0 %v11422
      %11550 = vmatpush1.bf16.msra.mxu0 %v11421
      %11551 = vmatprep.subr.bf16.mxu0 %v11424
      %11552 = vmatpush1.bf16.msra.mxu0 %v11423
      %11553 = vmatprep.subr.bf16.mxu0 %v11426
      %11554 = vmatpush1.bf16.msra.mxu0 %v11425
      %11555 = vmatprep.subr.bf16.mxu0 %v11428
      %11556 = vmatpush1.bf16.msra.mxu0 %v11427
      %11557 = vmatprep.subr.bf16.mxu0 %v11430
      %11558 = vmatpush1.bf16.msra.mxu0 %v11429
      %11559 = vmatprep.subr.bf16.mxu0 %v11432
      %11560 = vmatpush1.bf16.msra.mxu0 %v11431
      %11561 = vmatprep.subr.bf16.mxu0 %v11434
      %11562 = vmatpush1.bf16.msra.mxu0 %v11433
      %11563 = vmatprep.subr.bf16.mxu0 %v11436
      %11564 = vmatpush1.bf16.msra.mxu0 %v11435
      %11565 = vmatprep.subr.bf16.mxu0 %v11438
      %11566 = vmatpush1.bf16.msra.mxu0 %v11437
      %11567 = vmatprep.subr.bf16.mxu0 %v11440
      %11568 = vmatpush1.bf16.msra.mxu0 %v11439
      %11569 = vmatprep.subr.bf16.mxu0 %v11442
      %11570 = vmatpush1.bf16.msra.mxu0 %v11441
      %11571 = vmatprep.subr.bf16.mxu0 %v11444
      %11572 = vmatpush1.bf16.msra.mxu0 %v11443
      %11573 = vmatprep.subr.bf16.mxu0 %v11446
      %11574 = vmatpush1.bf16.msra.mxu0 %v11445
      %11575 = vmatprep.mubr.bf16.mxu0 %v11144
      %11576 = vmatmul.mubr.bf16.gmra.mrb[0].mxu0 %v11143
      %v11577 = vpop.f32.mrb[0].mxu0
      %v11578 = vadd.f32 %v11216, %v11577
      %v11579 = vpop.f32.mrb[0].mxu0
      %v11580 = vadd.f32 %v11220, %v11579
      %v11581 = vpop.f32.mrb[0].mxu0
      %v11582 = vadd.f32 %v11216, %v11581
      %v11583 = vpop.f32.mrb[0].mxu0
      %v11584 = vadd.f32 %v11220, %v11583
      %11585 = vdwg.mxu0
      %11586 = vmatprep.subr.bf16.mxu0 %v11448
      %11587 = vmatpush1.bf16.msra.mxu0 %v11447
      %11588 = vmatprep.subr.bf16.mxu0 %v11450
      %11589 = vmatpush1.bf16.msra.mxu0 %v11449
      %11590 = vmatprep.subr.bf16.mxu0 %v11452
      %11591 = vmatpush1.bf16.msra.mxu0 %v11451
      %11592 = vmatprep.subr.bf16.mxu0 %v11454
      %11593 = vmatpush1.bf16.msra.mxu0 %v11453
      %11594 = vmatprep.subr.bf16.mxu0 %v11456
      %11595 = vmatpush1.bf16.msra.mxu0 %v11455
      %11596 = vmatprep.subr.bf16.mxu0 %v11458
      %11597 = vmatpush1.bf16.msra.mxu0 %v11457
      %11598 = vmatprep.subr.bf16.mxu0 %v11460
      %11599 = vmatpush1.bf16.msra.mxu0 %v11459
      %11600 = vmatprep.subr.bf16.mxu0 %v11462
      %11601 = vmatpush1.bf16.msra.mxu0 %v11461
      %11602 = vmatprep.subr.bf16.mxu0 %v11464
      %11603 = vmatpush1.bf16.msra.mxu0 %v11463
      %11604 = vmatprep.subr.bf16.mxu0 %v11466
      %11605 = vmatpush1.bf16.msra.mxu0 %v11465
      %11606 = vmatprep.subr.bf16.mxu0 %v11468
      %11607 = vmatpush1.bf16.msra.mxu0 %v11467
      %11608 = vmatprep.subr.bf16.mxu0 %v11470
      %11609 = vmatpush1.bf16.msra.mxu0 %v11469
      %11610 = vmatprep.subr.bf16.mxu0 %v11472
      %11611 = vmatpush1.bf16.msra.mxu0 %v11471
      %11612 = vmatprep.subr.bf16.mxu0 %v11474
      %11613 = vmatpush1.bf16.msra.mxu0 %v11473
      %11614 = vmatprep.subr.bf16.mxu0 %v11476
      %11615 = vmatpush1.bf16.msra.mxu0 %v11475
      %11616 = vmatprep.subr.bf16.mxu0 %v11478
      %11617 = vmatpush1.bf16.msra.mxu0 %v11477
      %11618 = vmatprep.mubr.bf16.mxu0 %v11146
      %11619 = vmatmul.mubr.bf16.gmra.mrb[0].mxu0 %v11145
      %v11620 = vpop.f32.mrb[0].mxu0
      %v11621 = vadd.f32 %v11578, %v11620
      %v11622 = vpop.f32.mrb[0].mxu0
      %v11623 = vadd.f32 %v11580, %v11622
      %v11624 = vpop.f32.mrb[0].mxu0
      %v11625 = vadd.f32 %v11582, %v11624
      %v11626 = vpop.f32.mrb[0].mxu0
      %v11627 = vadd.f32 %v11584, %v11626
      %11628 = vdwg.mxu0
      %v11629 = vmax.f32 %v11621, 0.0
      %v11630 = vmax.f32 %v11623, 0.0
      %v11631 = vmax.f32 %v11625, 0.0
      %v11632 = vmax.f32 %v11627, 0.0
      %v11633 = vpack.c.bf16 %v11631, %v11629
      %v11634 = vpack.c.bf16 %v11632, %v11630
      %v11635 = vld [vmem:[#allocation8] sm:$0xf]
      %v11636 = vld [vmem:[#allocation8 + $0x4] sm:$0xf]
      %v11637 = vld [vmem:[#allocation8 + $0x8] sm:$0xf]
      %v11638 = vld [vmem:[#allocation8 + $0xc] sm:$0xf]
      %v11639 = vld [vmem:[#allocation8 + $0x10] sm:$0xf]
      %v11640 = vld [vmem:[#allocation8 + $0x14] sm:$0xf]
      %v11641 = vld [vmem:[#allocation8 + $0x18] sm:$0xf]
      %v11642 = vld [vmem:[#allocation8 + $0x1c] sm:$0xf]
      %v11643 = vld [vmem:[#allocation8 + $0x20] sm:$0xf]
      %v11644 = vld [vmem:[#allocation8 + $0x24] sm:$0xf]
      %v11645 = vld [vmem:[#allocation8 + $0x28] sm:$0xf]
      %v11646 = vld [vmem:[#allocation8 + $0x2c] sm:$0xf]
      %v11647 = vld [vmem:[#allocation8 + $0x30] sm:$0xf]
      %v11648 = vld [vmem:[#allocation8 + $0x34] sm:$0xf]
      %v11649 = vld [vmem:[#allocation8 + $0x38] sm:$0xf]
      %v11650 = vld [vmem:[#allocation8 + $0x3c] sm:$0xf]
      %v11651 = vld [vmem:[#allocation8 + $0x40] sm:$0xf]
      %v11652 = vld [vmem:[#allocation8 + $0x44] sm:$0xf]
      %v11653 = vld [vmem:[#allocation8 + $0x48] sm:$0xf]
      %v11654 = vld [vmem:[#allocation8 + $0x4c] sm:$0xf]
      %v11655 = vld [vmem:[#allocation8 + $0x50] sm:$0xf]
      %v11656 = vld [vmem:[#allocation8 + $0x54] sm:$0xf]
      %v11657 = vld [vmem:[#allocation8 + $0x58] sm:$0xf]
      %v11658 = vld [vmem:[#allocation8 + $0x5c] sm:$0xf]
      %v11659 = vld [vmem:[#allocation8 + $0x60] sm:$0xf]
      %v11660 = vld [vmem:[#allocation8 + $0x64] sm:$0xf]
      %v11661 = vld [vmem:[#allocation8 + $0x68] sm:$0xf]
      %v11662 = vld [vmem:[#allocation8 + $0x6c] sm:$0xf]
      %v11663 = vld [vmem:[#allocation8 + $0x70] sm:$0xf]
      %v11664 = vld [vmem:[#allocation8 + $0x74] sm:$0xf]
      %v11665 = vld [vmem:[#allocation8 + $0x78] sm:$0xf]
      %v11666 = vld [vmem:[#allocation8 + $0x7c] sm:$0xf]
      %v11667 = vld [vmem:[%s12] sm:$0x1]
      %v11669 = vlaneseq
      %v11670 = vshrl.u32 %v11669, 7
      %v11671 = vsub.s32 0, %v11670
      %v11672 = vrot.slane %v11667, %v11671
      %v11706 = vunpack.c.l.b16 %v11635
      %v11707 = vunpack.c.l.b16 %v11636
      %v11708 = vunpack.c.l.b16 %v11637
      %v11709 = vunpack.c.l.b16 %v11638
      %v11710 = vunpack.c.l.b16 %v11639
      %v11711 = vunpack.c.l.b16 %v11640
      %v11712 = vunpack.c.l.b16 %v11641
      %v11713 = vunpack.c.l.b16 %v11642
      %v11714 = vunpack.c.l.b16 %v11643
      %v11715 = vunpack.c.l.b16 %v11644
      %v11716 = vunpack.c.l.b16 %v11645
      %v11717 = vunpack.c.l.b16 %v11646
      %v11718 = vunpack.c.l.b16 %v11647
      %v11719 = vunpack.c.l.b16 %v11648
      %v11720 = vunpack.c.l.b16 %v11649
      %v11721 = vunpack.c.l.b16 %v11650
      %v11722 = vunpack.c.l.b16 %v11651
      %v11723 = vunpack.c.l.b16 %v11652
      %v11724 = vunpack.c.l.b16 %v11653
      %v11725 = vunpack.c.l.b16 %v11654
      %v11726 = vunpack.c.l.b16 %v11655
      %v11727 = vunpack.c.l.b16 %v11656
      %v11728 = vunpack.c.l.b16 %v11657
      %v11729 = vunpack.c.l.b16 %v11658
      %v11730 = vunpack.c.l.b16 %v11659
      %v11731 = vunpack.c.l.b16 %v11660
      %v11732 = vunpack.c.l.b16 %v11661
      %v11733 = vunpack.c.l.b16 %v11662
      %v11734 = vunpack.c.l.b16 %v11663
      %v11735 = vunpack.c.l.b16 %v11664
      %v11736 = vunpack.c.l.b16 %v11665
      %v11737 = vunpack.c.l.b16 %v11666
      %v11738 = vpack.c.b16 %v11707, %v11706
      %v11739 = vpack.c.b16 %v11709, %v11708
      %v11740 = vpack.c.b16 %v11711, %v11710
      %v11741 = vpack.c.b16 %v11713, %v11712
      %v11742 = vpack.c.b16 %v11715, %v11714
      %v11743 = vpack.c.b16 %v11717, %v11716
      %v11744 = vpack.c.b16 %v11719, %v11718
      %v11745 = vpack.c.b16 %v11721, %v11720
      %v11746 = vpack.c.b16 %v11723, %v11722
      %v11747 = vpack.c.b16 %v11725, %v11724
      %v11748 = vpack.c.b16 %v11727, %v11726
      %v11749 = vpack.c.b16 %v11729, %v11728
      %v11750 = vpack.c.b16 %v11731, %v11730
      %v11751 = vpack.c.b16 %v11733, %v11732
      %v11752 = vpack.c.b16 %v11735, %v11734
      %v11753 = vpack.c.b16 %v11737, %v11736
      %11770 = vmatprep.subr.bf16.mxu0 0
      %11771 = vmatpush1.bf16.msra.mxu0 %v11738
      %11772 = vmatprep.subr.bf16.mxu0 0
      %11773 = vmatpush1.bf16.msra.mxu0 %v11739
      %11774 = vmatprep.subr.bf16.mxu0 0
      %11775 = vmatpush1.bf16.msra.mxu0 %v11740
      %11776 = vmatprep.subr.bf16.mxu0 0
      %11777 = vmatpush1.bf16.msra.mxu0 %v11741
      %11778 = vmatprep.subr.bf16.mxu0 0
      %11779 = vmatpush1.bf16.msra.mxu0 %v11742
      %11780 = vmatprep.subr.bf16.mxu0 0
      %11781 = vmatpush1.bf16.msra.mxu0 %v11743
      %11782 = vmatprep.subr.bf16.mxu0 0
      %11783 = vmatpush1.bf16.msra.mxu0 %v11744
      %11784 = vmatprep.subr.bf16.mxu0 0
      %11785 = vmatpush1.bf16.msra.mxu0 %v11745
      %11786 = vmatprep.subr.bf16.mxu0 0
      %11787 = vmatpush1.bf16.msra.mxu0 %v11746
      %11788 = vmatprep.subr.bf16.mxu0 0
      %11789 = vmatpush1.bf16.msra.mxu0 %v11747
      %11790 = vmatprep.subr.bf16.mxu0 0
      %11791 = vmatpush1.bf16.msra.mxu0 %v11748
      %11792 = vmatprep.subr.bf16.mxu0 0
      %11793 = vmatpush1.bf16.msra.mxu0 %v11749
      %11794 = vmatprep.subr.bf16.mxu0 0
      %11795 = vmatpush1.bf16.msra.mxu0 %v11750
      %11796 = vmatprep.subr.bf16.mxu0 0
      %11797 = vmatpush1.bf16.msra.mxu0 %v11751
      %11798 = vmatprep.subr.bf16.mxu0 0
      %11799 = vmatpush1.bf16.msra.mxu0 %v11752
      %11800 = vmatprep.subr.bf16.mxu0 0
      %11801 = vmatpush1.bf16.msra.mxu0 %v11753
      %11802 = vmatprep.mubr.bf16.mxu0 %v11634
      %11803 = vmatmul.mubr.bf16.gmra.mrb[0].mxu0 %v11633
      %v11804 = vpop.f32.mrb[0].mxu0
      %v11805 = vadd.f32 %v11672, %v11804
      %v11806 = vpop.f32.mrb[0].mxu0
      %v11807 = vpop.f32.mrb[0].mxu0
      %v11808 = vadd.f32 %v11672, %v11807
      %v11809 = vpop.f32.mrb[0].mxu0
      %11810 = vdwg.mxu0
      %11811 = vmax.xlane.f32.xlu0 %v11805
      %v11812 = vpop.xlane.xlu0 %11811
      %11813 = vmax.xlane.f32.xlu0 %v11808
      %v11814 = vpop.xlane.xlu0 %11813
      %v11815 = vsub.f32 %v11805, %v11812
      %v11816 = vsub.f32 %v11808, %v11814
      %v11817 = vmul.f32 %v11815, 1.442695
      %v11818 = vpow.pop %v11817
      %v11819 = vmul.f32 %v11816, 1.442695
      %v11820 = vpow.pop %v11819
      %11821 = vadd.xlane.f32.xlu0 %v11818
      %v11822 = vpop.xlane.xlu0 %11821
      %11823 = vadd.xlane.f32.xlu0 %v11820
      %v11824 = vpop.xlane.xlu0 %11823
      %v11825 = vlog2.pop %v11822
      %v11826 = vmul.f32 %v11825, 0.6931472
      %v11827 = vlog2.pop %v11824
      %v11828 = vmul.f32 %v11827, 0.6931472
      %v11829 = vadd.f32 %v11812, %v11826
      %v11830 = vadd.f32 %v11814, %v11828
      %v11831 = vsub.f32 %v11805, %v11829
      %v11832 = vsub.f32 %v11808, %v11830
      %11833 = vst [vmem:[#allocation9] sm:$0xff] %v11831
      %11834 = vst [vmem:[#allocation9 + $0x8] sm:$0xff] %v11832
    $region77: #{tpu_custom_call.1} parent=1 // pred_fallthru
      _
    // Predicated region
    $region78: #{tpu_custom_call.1} parent=1 // pred_check
      _
    $region79: #{tpu_custom_call.1} parent=1 // pred_check_branch
      %11836 = sbr.rel (0) target = $region81
    $region80: #{tpu_custom_call.1} parent=1 // pred_region
      %s11838 = ssub.s32 256, 256
      %11839 = vsyncadd [#allocation5], %s11838
      %s11840 = sshll.u32 [#allocation9], 4
      %s11841 = int_to_ptr.vmem [resolvable:$true] %s11840
      %11846 = dma.vmem_to_hbm [thread:$0]  %s11841, 256, %s13, [#allocation5], 128, 128, 8
    $region81: #{tpu_custom_call.1} parent=1 // pred_fallthru
      _
    // Predicated region
    $region82: #{tpu_custom_call.1} parent=1 // pred_check
      _
    $region83: #{tpu_custom_call.1} parent=1 // pred_check_branch
      %11848 = sbr.rel (0) target = $region85
    $region84: #{tpu_custom_call.1} parent=1 // pred_region
      %11849 = dma.done [#allocation5], 256
    $region85: #{tpu_custom_call.1} parent=1 // pred_fallthru
      _
    %11850 = vsyncpa [#allocation4], 1
    %11851 = vsyncpa [#allocation7], 1
    %11852 = vsyncpa [#allocation5], 1

</llo_original>
